<compile_context>
chip_gen: v5e
topology: v5e:2x2
jax: 0.10.0
libtpu: 0.0.40
codegen_flags: <defaults>
</compile_context>

<pallas_src>
import jax
import jax.numpy as jnp
from jax.experimental import pallas as pl
from jax.experimental.pallas import tpu as pltpu


# ----------------------------- in-kernel helpers ----------------------------
def _stable_sigmoid(v):
    # Exact, overflow-free sigmoid (used for the iAFF attention weights).
    e = jnp.exp(-jnp.abs(v))
    inv = 1.0 / (1.0 + e)
    return jnp.where(v >= 0, inv, e * inv)


def _silu(v):
    # SiLU gate: approximate EUP reciprocal is fine for the activation path.
    e = jnp.exp(-jnp.abs(v))
    inv = pl.reciprocal(1.0 + e, approx=True)
    return v * jnp.where(v >= 0, inv, e * inv)


def _pad_rows(W):
    # Halo rows of zeros in the flattened (row-major) buffer; >= W+1 and
    # aligned to the bf16 sublane tile (16).
    return ((W + 1 + 15) // 16) * 16


# ------------- fused cv1 (1x1) + cv2 (3x3) conv + BN + SiLU body -------------
def _conv_body(H, W, PAD, x_ref, w1_ref, b1_ref, w2_ref, b2_ref, buf_ref):
    """Returns y = SiLU(BN(conv3x3(SiLU(BN(conv1x1(x)))))) as f32 (HW, c2p)."""
    HW = H * W
    c_p = w1_ref.shape[1]
    c2p = w2_ref.shape[1]

    # --- cv1: 1x1 conv (+folded BN) + SiLU, single MXU matmul ---------------
    x = x_ref[0]                                                   # (HW, C1p) bf16
    h1 = jnp.dot(x, w1_ref[...], preferred_element_type=jnp.float32) + b1_ref[...]
    h1 = _silu(h1).astype(jnp.bfloat16)                            # (HW, c_p)

    # --- stage h1 into the zero-halo VMEM scratch buffer ---------------------
    # Halos are re-zeroed every step (cheap, 2*PAD rows) so the kernel stays
    # correct under megacore "parallel" splitting of the batch axis.
    buf_ref[0:PAD, :] = jnp.zeros((PAD, c_p), jnp.bfloat16)
    buf_ref[PAD + HW:PAD + HW + PAD, :] = jnp.zeros((PAD, c_p), jnp.bfloat16)
    buf_ref[PAD:PAD + HW, :] = h1

    # --- column edge masks, hoisted once (lane-broadcast (HW, 1)) -----------
    col = jax.lax.broadcasted_iota(jnp.int32, (HW, 1), 0) % W
    mask_l = (col >= 1).astype(jnp.bfloat16)                       # kx == 0 taps
    mask_r = (col <= W - 2).astype(jnp.bfloat16)                   # kx == 2 taps

    # --- cv2: 3x3 'SAME' conv as 3 accumulated matmuls of K = 3*c_p ----------
    acc = jnp.zeros((HW, c2p), jnp.float32)
    for ky in range(3):
        taps = []
        for kx in range(3):
            start = PAD + (ky - 1) * W + (kx - 1)                  # static
            t = buf_ref[start:start + HW, :]                       # (HW, c_p)
            if kx == 0:
                t = t * mask_l
            elif kx == 2:
                t = t * mask_r
            taps.append(t)
        taps = jnp.concatenate(taps, axis=-1)                      # (HW, 3*c_p)
        wg = w2_ref[3 * ky * c_p:3 * (ky + 1) * c_p, :]            # (3*c_p, c2p)
        acc = acc + jnp.dot(taps, wg, preferred_element_type=jnp.float32)

    return _silu(acc + b2_ref[...])                                # (HW, c2p) f32


# ---------------------------- Kernel A: conv only ----------------------------
def make_conv_kernel(H, W, PAD):
    def conv_kernel(x_ref, w1_ref, b1_ref, w2_ref, b2_ref, y_ref, buf_ref):
        y = _conv_body(H, W, PAD, x_ref, w1_ref, b1_ref, w2_ref, b2_ref, buf_ref)
        y_ref[0] = y.astype(y_ref.dtype)
    return conv_kernel


# --------------------- Kernel B: fused conv + iAFF (shortcut) ----------------
def make_fused_kernel(H, W, PAD):
    HW = H * W
    inv_hw = 1.0 / HW

    def fused_kernel(x_ref, w1_ref, b1_ref, w2_ref, b2_ref,
                     wl1_ref, bl1_ref, wl2_ref, bl2_ref,
                     wg1_ref, bg1_ref, wg2_ref, bg2_ref,
                     wm1_ref, bm1_ref, wm2_ref, bm2_ref,
                     o_ref, buf_ref):
        # residual r = cv2(cv1(x)), kept in f32 registers/VMEM (no HBM trip)
        r = _conv_body(H, W, PAD, x_ref, w1_ref, b1_ref, w2_ref, b2_ref, buf_ref)
        x = x_ref[0].astype(jnp.float32)                           # (HW, Cp)

        def local_att(v_bf, w1, b1, w2, b2):
            h = jnp.dot(v_bf, w1[...], preferred_element_type=jnp.float32) + b1[...]
            h = jnp.maximum(h, 0.0).astype(jnp.bfloat16)
            return jnp.dot(h, w2[...], preferred_element_type=jnp.float32) + b2[...]

        def global_att(v_bf):
            # global average pool over the full HW extent held in this block
            p = (jnp.sum(v_bf.astype(jnp.float32), axis=0, keepdims=True)
                 * inv_hw).astype(jnp.bfloat16)                    # (1, Cp)
            h = jnp.dot(p, wg1_ref[...],
                        preferred_element_type=jnp.float32) + bg1_ref[...]
            h = jnp.maximum(h, 0.0).astype(jnp.bfloat16)
            return jnp.dot(h, wg2_ref[...],
                           preferred_element_type=jnp.float32) + bg2_ref[...]

        xa = (x + r).astype(jnp.bfloat16)
        wei = _stable_sigmoid(local_att(xa, wl1_ref, bl1_ref, wl2_ref, bl2_ref)
                              + global_att(xa))
        xi = r + (x - r) * wei                                     # x*wei + r*(1-wei)

        xib = xi.astype(jnp.bfloat16)
        wei2 = _stable_sigmoid(local_att(xib, wm1_ref, bm1_ref, wm2_ref, bm2_ref)
                               + global_att(xib))                  # module reuses global_att
        o_ref[0] = (r + (x - r) * wei2).astype(o_ref.dtype)

    return fused_kernel


# ------------------------------ VMEM budgeting --------------------------------
def _vmem_limit_bytes(step_bytes):
    try:
        phys = int(pltpu.get_tpu_info().vmem_capacity_bytes)
    except Exception:
        phys = 64 << 20
    cap = int(phys * 0.78)
    want = 3 * step_bytes + (8 << 20)
    return int(max(32 << 20, min(cap, want)))


# ---------------------------- pallas_call wrappers ---------------------------
def _run_conv(xp, pp, H, W):
    N, HW, C1p = xp.shape
    c_p = pp['w1'].shape[1]
    c2p = pp['w2'].shape[1]
    PAD = _pad_rows(W)
    args = (xp, pp['w1'], pp['b1'], pp['w2'], pp['b2'])
    weight_bytes = sum(int(a.size) * a.dtype.itemsize for a in args[1:])
    step_bytes = (2 * HW * C1p * 2 + 2 * HW * c2p * 4 + 2 * weight_bytes
                  + (HW + 2 * PAD) * c_p * 2
                  + HW * (3 * c_p * 2 + 6 * c2p * 4))
    in_specs = [pl.BlockSpec((1, HW, C1p), lambda n: (n, 0, 0))]
    in_specs += [pl.BlockSpec(a.shape, lambda n: (0, 0)) for a in args[1:]]
    return pl.pallas_call(
        make_conv_kernel(H, W, PAD),
        out_shape=jax.ShapeDtypeStruct((N, HW, c2p), jnp.float32),
        grid=(N,),
        in_specs=in_specs,
        out_specs=pl.BlockSpec((1, HW, c2p), lambda n: (n, 0, 0)),
        scratch_shapes=[pltpu.VMEM((HW + 2 * PAD, c_p), jnp.bfloat16)],
        compiler_params=pltpu.CompilerParams(
            dimension_semantics=("parallel",),
            vmem_limit_bytes=_vmem_limit_bytes(step_bytes)),
    )(*args)


def _run_fused(xp, pp, H, W):
    N, HW, C1p = xp.shape
    c_p = pp['w1'].shape[1]
    c2p = pp['w2'].shape[1]
    PAD = _pad_rows(W)
    args = (xp, pp['w1'], pp['b1'], pp['w2'], pp['b2'],
            pp['wl1'], pp['bl1'], pp['wl2'], pp['bl2'],
            pp['wg1'], pp['bg1'], pp['wg2'], pp['bg2'],
            pp['wm1'], pp['bm1'], pp['wm2'], pp['bm2'])
    weight_bytes = sum(int(a.size) * a.dtype.itemsize for a in args[1:])
    step_bytes = (2 * HW * C1p * 2 + 2 * HW * c2p * 4 + 2 * weight_bytes
                  + (HW + 2 * PAD) * c_p * 2
                  + HW * (3 * c_p * 2 + 10 * c2p * 4))
    in_specs = [pl.BlockSpec((1, HW, C1p), lambda n: (n, 0, 0))]
    in_specs += [pl.BlockSpec(a.shape, lambda n: (0, 0)) for a in args[1:]]
    return pl.pallas_call(
        make_fused_kernel(H, W, PAD),
        out_shape=jax.ShapeDtypeStruct((N, HW, c2p), jnp.float32),
        grid=(N,),
        in_specs=in_specs,
        out_specs=pl.BlockSpec((1, HW, c2p), lambda n: (n, 0, 0)),
        scratch_shapes=[pltpu.VMEM((HW + 2 * PAD, c_p), jnp.bfloat16)],
        compiler_params=pltpu.CompilerParams(
            dimension_semantics=("parallel",),
            vmem_limit_bytes=_vmem_limit_bytes(step_bytes)),
    )(*args)


# ------------------------- parameter prep (pad + bf16) -----------------------
def _rup(n, m=128):
    return ((n + m - 1) // m) * m


def _bf16_round(a):
    return a.astype(jnp.bfloat16).astype(jnp.float32)


def pad_params(p):
    """Pad channel dims to multiples of 128 (lane-dense) and cast weights to bf16."""
    c1, c_ = p['w1'].shape
    c2 = p['w2'].shape[2]
    ci = p['wg1'].shape[1]
    c1p, c_p, c2p, cip = _rup(c1), _rup(c_), _rup(c2), _rup(ci)

    def padw(w, rp, cp):
        out = jnp.zeros((rp, cp), jnp.bfloat16)
        return out.at[:w.shape[0], :w.shape[1]].set(w.astype(jnp.bfloat16))

    def padb(b, cp):
        out = jnp.zeros((1, cp), jnp.float32)
        return out.at[:, :b.shape[1]].set(b)

    q = {'w1': padw(p['w1'], c1p, c_p), 'b1': padb(p['b1'], c_p)}
    w2 = jnp.zeros((9, c_p, c2p), jnp.bfloat16)
    w2 = w2.at[:, :c_, :c2].set(p['w2'].astype(jnp.bfloat16))
    q['w2'] = w2.reshape(9 * c_p, c2p)           # tap-major packed (9*c_p, c2p)
    q['b2'] = padb(p['b2'], c2p)
    q['wl1'] = padw(p['wl1'], c2p, cip); q['bl1'] = padb(p['bl1'], cip)
    q['wl2'] = padw(p['wl2'], cip, c2p); q['bl2'] = padb(p['bl2'], c2p)
    q['wg1'] = padw(p['wg1'], c2p, cip); q['bg1'] = padb(p['bg1'], cip)
    q['wg2'] = padw(p['wg2'], cip, c2p); q['bg2'] = padb(p['bg2'], c2p)
    q['wm1'] = padw(p['wm1'], c2p, cip); q['bm1'] = padb(p['bm1'], cip)
    q['wm2'] = padw(p['wm2'], cip, c2p); q['bm2'] = padb(p['bm2'], c2p)
    return q


# ---------------------------- forward (glue + kernels) -----------------------
def bottleneck_forward(x_nchw, params, shortcut=True):
    N, C1, H, W = x_nchw.shape
    c2 = params['w2'].shape[2]
    pp = pad_params(params)
    C1p = pp['w1'].shape[0]

    # one fused cast + transpose + pad: activations hit the kernel as bf16
    x2d = jnp.transpose(x_nchw, (0, 2, 3, 1)).reshape(N, H * W, C1)
    xp = jnp.pad(x2d.astype(jnp.bfloat16), ((0, 0), (0, 0), (0, C1p - C1)))

    if shortcut and C1 == c2:                            # C1p == c2p here
        out2d = _run_fused(xp, pp, H, W)                 # (N, HW, c2p) f32
    else:
        out2d = _run_conv(xp, pp, H, W)                  # (N, HW, c2p) f32
    return out2d[:, :, :c2].reshape(N, H, W, c2).transpose(0, 3, 1, 2)  # NCHW


# ---------------------------- parameter init / BN folding --------------------
def init_params(key, c1, c2, e=0.5):
    c_ = int(c2 * e)          # cv1 out channels
    ci = c2 // 2              # iAFF inter_channels (r=2)
    keys = iter(jax.random.split(key, 48))
    eps = 1e-5

    def rnd(shape, scale=0.3):
        return scale * jax.random.normal(next(keys), shape, jnp.float32)

    def bn(n):
        gamma = 0.5 + jax.random.uniform(next(keys), (n,), jnp.float32)
        beta = rnd((n,), 0.2)
        mean = rnd((n,), 0.2)
        var = 0.5 + jax.random.uniform(next(keys), (n,), jnp.float32)
        return gamma, beta, mean, var

    def fold(w_io, conv_bias, gamma, beta, mean, var):
        s = gamma / jnp.sqrt(var + eps)
        wf = _bf16_round(w_io * s[None, :])              # bf16-representable weights
        b0 = 0.0 if conv_bias is None else conv_bias
        bf = (b0 - mean) * s + beta
        return wf, bf.reshape(1, -1)

    p = {}
    # cv1: Conv2d(c1, c_, 1, bias=False) + BN(c_)   [SiLU in kernel]
    p['w1'], p['b1'] = fold(rnd((c1, c_)), None, *bn(c_))
    # cv2: Conv2d(c_, c2, 3, pad=1, bias=False) + BN(c2)
    w2 = rnd((9, c_, c2))
    g2, be2, m2, v2 = bn(c2)
    s2 = g2 / jnp.sqrt(v2 + eps)
    p['w2'] = _bf16_round(w2 * s2[None, None, :])
    p['b2'] = ((0.0 - m2) * s2 + be2).reshape(1, -1)
    # iAFF.local_att : conv(c2->ci)+b, BN, ReLU, conv(ci->c2)+b, BN
    p['wl1'], p['bl1'] = fold(rnd((c2, ci)), rnd((ci,)), *bn(ci))
    p['wl2'], p['bl2'] = fold(rnd((ci, c2)), rnd((c2,)), *bn(c2))
    # iAFF.global_att: pool, conv(c2->ci)+b, ReLU, conv(ci->c2)+b   (no BN)
    p['wg1'] = _bf16_round(rnd((c2, ci))); p['bg1'] = rnd((ci,)).reshape(1, -1)
    p['wg2'] = _bf16_round(rnd((ci, c2))); p['bg2'] = rnd((c2,)).reshape(1, -1)
    # iAFF.local_att2: same structure, independent params
    p['wm1'], p['bm1'] = fold(rnd((c2, ci)), rnd((ci,)), *bn(ci))
    p['wm2'], p['bm2'] = fold(rnd((ci, c2)), rnd((c2,)), *bn(c2))
    # iAFF.global_att2 is defined in the PyTorch module but never used -> omitted.
    return p


# ---------------------------- pure-JAX reference (same folded params) --------
def reference_forward(x_nchw, params):
    x = jnp.transpose(x_nchw, (0, 2, 3, 1))                        # NHWC
    c_ = params['w1'].shape[1]
    c2 = params['w2'].shape[2]

    sig = lambda v: 1.0 / (1.0 + jnp.exp(-v))
    h1 = x @ params['w1'] + params['b1']
    h1 = h1 * sig(h1)
    w2 = params['w2'].reshape(3, 3, c_, c2)
    y = jax.lax.conv_general_dilated(h1, w2, (1, 1), 'SAME',
                                     dimension_numbers=('NHWC', 'HWIO', 'NHWC'))
    y = y + params['b2']
    y = y * sig(y)

    def local(v, wA, bA, wB, bB):
        return jnp.maximum(v @ wA + bA, 0.0) @ wB + bB

    def glob(v):
        pmean = jnp.mean(v, axis=(1, 2), keepdims=True)
        return jnp.maximum(pmean @ params['wg1'] + params['bg1'], 0.0) \
            @ params['wg2'] + params['bg2']

    r = y
    xa = x + r
    wei = sig(local(xa, params['wl1'], params['bl1'],
                    params['wl2'], params['bl2']) + glob(xa))
    xi = x * wei + r * (1.0 - wei)
    wei2 = sig(local(xi, params['wm1'], params['bm1'],
                     params['wm2'], params['bm2']) + glob(xi))
    xo = x * wei2 + r * (1.0 - wei2)
    return jnp.transpose(xo, (0, 3, 1, 2))


if __name__ == "__main__":
    key = jax.random.PRNGKey(0)
    kx, kp = jax.random.split(key)
    N, C, H, W = 2, 4, 16, 16                 # c1 == c2 == 4 -> shortcut path (iAFF)
    x = jax.random.normal(kx, (N, C, H, W), jnp.float32)
    params = init_params(kp, C, C, e=0.5)

    out = bottleneck_forward(x, params)
    out = jax.block_until_ready(out)
    assert out.shape == (N, C, H, W)

    ref = reference_forward(x, params)
    max_err = float(jnp.max(jnp.abs(out - ref)))
    # bf16 matmul operands / bf16 activation I/O + approx-reciprocal SiLU
    if not bool(jnp.allclose(out, ref, atol=5e-2, rtol=5e-2)):
        raise AssertionError(f"Pallas vs reference mismatch, max abs err = {max_err}")
    print("KERNEL_OK")
</pallas_src>

<mosaic_0001>
module attributes {stable_mosaic.version = 11 : i64} {
  func.func @fused_kernel(%arg0: i32, %arg1: memref<1x256x128xbf16, #tpu.memory_space<vmem>>, %arg2: memref<128x128xbf16, #tpu.memory_space<vmem>>, %arg3: memref<1x128xf32, #tpu.memory_space<vmem>>, %arg4: memref<1152x128xbf16, #tpu.memory_space<vmem>>, %arg5: memref<1x128xf32, #tpu.memory_space<vmem>>, %arg6: memref<128x128xbf16, #tpu.memory_space<vmem>>, %arg7: memref<1x128xf32, #tpu.memory_space<vmem>>, %arg8: memref<128x128xbf16, #tpu.memory_space<vmem>>, %arg9: memref<1x128xf32, #tpu.memory_space<vmem>>, %arg10: memref<128x128xbf16, #tpu.memory_space<vmem>>, %arg11: memref<1x128xf32, #tpu.memory_space<vmem>>, %arg12: memref<128x128xbf16, #tpu.memory_space<vmem>>, %arg13: memref<1x128xf32, #tpu.memory_space<vmem>>, %arg14: memref<128x128xbf16, #tpu.memory_space<vmem>>, %arg15: memref<1x128xf32, #tpu.memory_space<vmem>>, %arg16: memref<128x128xbf16, #tpu.memory_space<vmem>>, %arg17: memref<1x128xf32, #tpu.memory_space<vmem>>, %arg18: memref<1x256x128xf32, #tpu.memory_space<vmem>>, %arg19: memref<320x128xbf16, #tpu.memory_space<vmem>>) attributes {dimension_semantics = [#tpu.dimension_semantics<parallel>], iteration_bounds = array<i64: 2>, scalar_prefetch = 0 : i64, scratch_operands = 1 : i64, tpu.core_type = #tpu.core_type<tc>, window_params = [{transform_indices = @transform_0, window_bounds = array<i64: 1, 256, 128>}, {pipeline_mode = #tpu.pipeline_mode<synchronous>, transform_indices = @transform_1, window_bounds = array<i64: 128, 128>}, {pipeline_mode = #tpu.pipeline_mode<synchronous>, transform_indices = @transform_2, window_bounds = array<i64: 1, 128>}, {pipeline_mode = #tpu.pipeline_mode<synchronous>, transform_indices = @transform_3, window_bounds = array<i64: 1152, 128>}, {pipeline_mode = #tpu.pipeline_mode<synchronous>, transform_indices = @transform_4, window_bounds = array<i64: 1, 128>}, {pipeline_mode = #tpu.pipeline_mode<synchronous>, transform_indices = @transform_5, window_bounds = array<i64: 128, 128>}, {pipeline_mode = #tpu.pipeline_mode<synchronous>, transform_indices = @transform_6, window_bounds = array<i64: 1, 128>}, {pipeline_mode = #tpu.pipeline_mode<synchronous>, transform_indices = @transform_7, window_bounds = array<i64: 128, 128>}, {pipeline_mode = #tpu.pipeline_mode<synchronous>, transform_indices = @transform_8, window_bounds = array<i64: 1, 128>}, {pipeline_mode = #tpu.pipeline_mode<synchronous>, transform_indices = @transform_9, window_bounds = array<i64: 128, 128>}, {pipeline_mode = #tpu.pipeline_mode<synchronous>, transform_indices = @transform_10, window_bounds = array<i64: 1, 128>}, {pipeline_mode = #tpu.pipeline_mode<synchronous>, transform_indices = @transform_11, window_bounds = array<i64: 128, 128>}, {pipeline_mode = #tpu.pipeline_mode<synchronous>, transform_indices = @transform_12, window_bounds = array<i64: 1, 128>}, {pipeline_mode = #tpu.pipeline_mode<synchronous>, transform_indices = @transform_13, window_bounds = array<i64: 128, 128>}, {pipeline_mode = #tpu.pipeline_mode<synchronous>, transform_indices = @transform_14, window_bounds = array<i64: 1, 128>}, {pipeline_mode = #tpu.pipeline_mode<synchronous>, transform_indices = @transform_15, window_bounds = array<i64: 128, 128>}, {pipeline_mode = #tpu.pipeline_mode<synchronous>, transform_indices = @transform_16, window_bounds = array<i64: 1, 128>}, {transform_indices = @transform_17, window_bounds = array<i64: 1, 256, 128>}]} {
    %c0 = arith.constant 0 : index
    %c0_0 = arith.constant 0 : index
    %c0_1 = arith.constant 0 : index
    %0 = vector.load %arg1[%c0, %c0_0, %c0_1] : memref<1x256x128xbf16, #tpu.memory_space<vmem>>, vector<1x256x128xbf16>
    %1 = vector.shape_cast %0 : vector<1x256x128xbf16> to vector<256x128xbf16>
    %c0_2 = arith.constant 0 : index
    %c0_3 = arith.constant 0 : index
    %2 = vector.load %arg2[%c0_2, %c0_3] : memref<128x128xbf16, #tpu.memory_space<vmem>>, vector<128x128xbf16>
    %cst = arith.constant dense<0.000000e+00> : vector<256x128xf32>
    %3 = tpu.matmul %1, %2, %cst {dimension_numbers = #tpu.dot_dimension_numbers<[1], [0], [0], [1], [0, 0, 1, 1], [], []>} : vector<256x128xbf16>, vector<128x128xbf16>, vector<256x128xf32> -> vector<256x128xf32>
    %c0_4 = arith.constant 0 : index
    %c0_5 = arith.constant 0 : index
    %4 = vector.load %arg3[%c0_4, %c0_5] : memref<1x128xf32, #tpu.memory_space<vmem>>, vector<1x128xf32>
    %5 = vector.broadcast %4 : vector<1x128xf32> to vector<256x128xf32>
    %6 = arith.addf %3, %5 : vector<256x128xf32>
    %7 = math.absf %6 : vector<256x128xf32>
    %cst_6 = arith.constant 0.000000e+00 : f32
    %8 = vector.broadcast %cst_6 : f32 to vector<256x128xf32>
    %9 = arith.subf %8, %7 : vector<256x128xf32>
    %10 = math.exp %9 : vector<256x128xf32>
    %cst_7 = arith.constant 1.000000e+00 : f32
    %11 = vector.broadcast %cst_7 : f32 to vector<256x128xf32>
    %12 = arith.addf %11, %10 : vector<256x128xf32>
    %13 = tpu.reciprocal %12 {approx = true} : vector<256x128xf32> -> vector<256x128xf32>
    %cst_8 = arith.constant 0.000000e+00 : f32
    %14 = vector.broadcast %cst_8 : f32 to vector<256x128xf32>
    %15 = arith.cmpf oge, %6, %14 : vector<256x128xf32>
    %16 = arith.mulf %10, %13 : vector<256x128xf32>
    %17 = arith.select %15, %13, %16 : vector<256x128xi1>, vector<256x128xf32>
    %18 = arith.mulf %6, %17 : vector<256x128xf32>
    %19 = arith.truncf %18 : vector<256x128xf32> to vector<256x128xbf16>
    %cst_9 = arith.constant 0.000000e+00 : bf16
    %20 = vector.broadcast %cst_9 : bf16 to vector<32x128xbf16>
    %c0_10 = arith.constant 0 : index
    %c0_11 = arith.constant 0 : index
    %21 = vector.load %arg19[%c0_10, %c0_11] : memref<320x128xbf16, #tpu.memory_space<vmem>>, vector<32x128xbf16>
    tpu.vector_store %arg19[%c0_10, %c0_11], %20 {strides = array<i32>} : memref<320x128xbf16, #tpu.memory_space<vmem>>, vector<32x128xbf16>,
    %cst_12 = arith.constant 0.000000e+00 : bf16
    %22 = vector.broadcast %cst_12 : bf16 to vector<32x128xbf16>
    %c288 = arith.constant 288 : index
    %c0_13 = arith.constant 0 : index
    %23 = vector.load %arg19[%c288, %c0_13] : memref<320x128xbf16, #tpu.memory_space<vmem>>, vector<32x128xbf16>
    tpu.vector_store %arg19[%c288, %c0_13], %22 {strides = array<i32>} : memref<320x128xbf16, #tpu.memory_space<vmem>>, vector<32x128xbf16>,
    %c32 = arith.constant 32 : index
    %c0_14 = arith.constant 0 : index
    %24 = vector.load %arg19[%c32, %c0_14] : memref<320x128xbf16, #tpu.memory_space<vmem>>, vector<256x128xbf16>
    tpu.vector_store %arg19[%c32, %c0_14], %19 {strides = array<i32>} : memref<320x128xbf16, #tpu.memory_space<vmem>>, vector<256x128xbf16>,
    %25 = tpu.iota {dimensions = array<i32: 0>} : vector<256x1xi32>
    %c16_i32 = arith.constant 16 : i32
    %c0_i32 = arith.constant 0 : i32
    %26 = arith.cmpi eq, %c16_i32, %c0_i32 : i32
    %c1_i32 = arith.constant 1 : i32
    %27 = arith.select %26, %c1_i32, %c16_i32 : i32
    %28 = vector.broadcast %27 : i32 to vector<256x1xi32>
    %29 = arith.remsi %25, %28 : vector<256x1xi32>
    %c0_i32_15 = arith.constant 0 : i32
    %30 = vector.broadcast %c0_i32_15 : i32 to vector<256x1xi32>
    %31 = arith.cmpi ne, %29, %30 : vector<256x1xi32>
    %c0_i32_16 = arith.constant 0 : i32
    %32 = vector.broadcast %c0_i32_16 : i32 to vector<256x1xi32>
    %33 = arith.cmpi slt, %29, %32 : vector<256x1xi32>
    %c0_i32_17 = arith.constant 0 : i32
    %34 = arith.cmpi slt, %27, %c0_i32_17 : i32
    %35 = vector.broadcast %34 : i1 to vector<256x1xi1>
    %36 = vector.broadcast %35 : vector<256x1xi1> to vector<256x1xi1>
    %37 = arith.xori %33, %36 : vector<256x1xi1>
    %38 = arith.andi %37, %31 : vector<256x1xi1>
    %39 = vector.broadcast %27 : i32 to vector<256x1xi32>
    %40 = arith.addi %29, %39 : vector<256x1xi32>
    %41 = arith.select %38, %40, %29 : vector<256x1xi1>, vector<256x1xi32>
    %c1_i32_18 = arith.constant 1 : i32
    %42 = vector.broadcast %c1_i32_18 : i32 to vector<256x1xi32>
    %43 = arith.cmpi sge, %41, %42 : vector<256x1xi32>
    %44 = arith.extui %43 : vector<256x1xi1> to vector<256x1xi32>
    %45 = arith.sitofp %44 : vector<256x1xi32> to vector<256x1xf32>
    %46 = arith.truncf %45 : vector<256x1xf32> to vector<256x1xbf16>
    %c14_i32 = arith.constant 14 : i32
    %47 = vector.broadcast %c14_i32 : i32 to vector<256x1xi32>
    %48 = arith.cmpi sle, %41, %47 : vector<256x1xi32>
    %49 = arith.extui %48 : vector<256x1xi1> to vector<256x1xi32>
    %50 = arith.sitofp %49 : vector<256x1xi32> to vector<256x1xf32>
    %51 = arith.truncf %50 : vector<256x1xf32> to vector<256x1xbf16>
    %cst_19 = arith.constant 0.000000e+00 : f32
    %52 = vector.broadcast %cst_19 : f32 to vector<256x128xf32>
    %c15 = arith.constant 15 : index
    %c0_20 = arith.constant 0 : index
    %53 = vector.load %arg19[%c15, %c0_20] : memref<320x128xbf16, #tpu.memory_space<vmem>>, vector<256x128xbf16>
    %54 = vector.broadcast %46 : vector<256x1xbf16> to vector<256x128xbf16>
    %55 = arith.mulf %53, %54 : vector<256x128xbf16>
    %c16 = arith.constant 16 : index
    %c0_21 = arith.constant 0 : index
    %56 = vector.load %arg19[%c16, %c0_21] : memref<320x128xbf16, #tpu.memory_space<vmem>>, vector<256x128xbf16>
    %c17 = arith.constant 17 : index
    %c0_22 = arith.constant 0 : index
    %57 = vector.load %arg19[%c17, %c0_22] : memref<320x128xbf16, #tpu.memory_space<vmem>>, vector<256x128xbf16>
    %58 = vector.broadcast %51 : vector<256x1xbf16> to vector<256x128xbf16>
    %59 = arith.mulf %57, %58 : vector<256x128xbf16>
    %60 = tpu.concatenate %55, %56, %59 in 1 : vector<256x128xbf16>, vector<256x128xbf16>, vector<256x128xbf16> -> vector<256x384xbf16>
    %c0_23 = arith.constant 0 : index
    %c0_24 = arith.constant 0 : index
    %61 = vector.load %arg4[%c0_23, %c0_24] : memref<1152x128xbf16, #tpu.memory_space<vmem>>, vector<384x128xbf16>
    %cst_25 = arith.constant dense<0.000000e+00> : vector<256x128xf32>
    %62 = tpu.matmul %60, %61, %cst_25 {dimension_numbers = #tpu.dot_dimension_numbers<[1], [0], [0], [1], [0, 0, 1, 1], [], []>} : vector<256x384xbf16>, vector<384x128xbf16>, vector<256x128xf32> -> vector<256x128xf32>
    %63 = arith.addf %52, %62 : vector<256x128xf32>
    %c31 = arith.constant 31 : index
    %c0_26 = arith.constant 0 : index
    %64 = vector.load %arg19[%c31, %c0_26] : memref<320x128xbf16, #tpu.memory_space<vmem>>, vector<256x128xbf16>
    %65 = vector.broadcast %46 : vector<256x1xbf16> to vector<256x128xbf16>
    %66 = arith.mulf %64, %65 : vector<256x128xbf16>
    %c32_27 = arith.constant 32 : index
    %c0_28 = arith.constant 0 : index
    %67 = vector.load %arg19[%c32_27, %c0_28] : memref<320x128xbf16, #tpu.memory_space<vmem>>, vector<256x128xbf16>
    %c33 = arith.constant 33 : index
    %c0_29 = arith.constant 0 : index
    %68 = vector.load %arg19[%c33, %c0_29] : memref<320x128xbf16, #tpu.memory_space<vmem>>, vector<256x128xbf16>
    %69 = vector.broadcast %51 : vector<256x1xbf16> to vector<256x128xbf16>
    %70 = arith.mulf %68, %69 : vector<256x128xbf16>
    %71 = tpu.concatenate %66, %67, %70 in 1 : vector<256x128xbf16>, vector<256x128xbf16>, vector<256x128xbf16> -> vector<256x384xbf16>
    %c384 = arith.constant 384 : index
    %c0_30 = arith.constant 0 : index
    %72 = vector.load %arg4[%c384, %c0_30] : memref<1152x128xbf16, #tpu.memory_space<vmem>>, vector<384x128xbf16>
    %cst_31 = arith.constant dense<0.000000e+00> : vector<256x128xf32>
    %73 = tpu.matmul %71, %72, %cst_31 {dimension_numbers = #tpu.dot_dimension_numbers<[1], [0], [0], [1], [0, 0, 1, 1], [], []>} : vector<256x384xbf16>, vector<384x128xbf16>, vector<256x128xf32> -> vector<256x128xf32>
    %74 = arith.addf %63, %73 : vector<256x128xf32>
    %c47 = arith.constant 47 : index
    %c0_32 = arith.constant 0 : index
    %75 = vector.load %arg19[%c47, %c0_32] : memref<320x128xbf16, #tpu.memory_space<vmem>>, vector<256x128xbf16>
    %76 = vector.broadcast %46 : vector<256x1xbf16> to vector<256x128xbf16>
    %77 = arith.mulf %75, %76 : vector<256x128xbf16>
    %c48 = arith.constant 48 : index
    %c0_33 = arith.constant 0 : index
    %78 = vector.load %arg19[%c48, %c0_33] : memref<320x128xbf16, #tpu.memory_space<vmem>>, vector<256x128xbf16>
    %c49 = arith.constant 49 : index
    %c0_34 = arith.constant 0 : index
    %79 = vector.load %arg19[%c49, %c0_34] : memref<320x128xbf16, #tpu.memory_space<vmem>>, vector<256x128xbf16>
    %80 = vector.broadcast %51 : vector<256x1xbf16> to vector<256x128xbf16>
    %81 = arith.mulf %79, %80 : vector<256x128xbf16>
    %82 = tpu.concatenate %77, %78, %81 in 1 : vector<256x128xbf16>, vector<256x128xbf16>, vector<256x128xbf16> -> vector<256x384xbf16>
    %c768 = arith.constant 768 : index
    %c0_35 = arith.constant 0 : index
    %83 = vector.load %arg4[%c768, %c0_35] : memref<1152x128xbf16, #tpu.memory_space<vmem>>, vector<384x128xbf16>
    %cst_36 = arith.constant dense<0.000000e+00> : vector<256x128xf32>
    %84 = tpu.matmul %82, %83, %cst_36 {dimension_numbers = #tpu.dot_dimension_numbers<[1], [0], [0], [1], [0, 0, 1, 1], [], []>} : vector<256x384xbf16>, vector<384x128xbf16>, vector<256x128xf32> -> vector<256x128xf32>
    %85 = arith.addf %74, %84 : vector<256x128xf32>
    %c0_37 = arith.constant 0 : index
    %c0_38 = arith.constant 0 : index
    %86 = vector.load %arg5[%c0_37, %c0_38] : memref<1x128xf32, #tpu.memory_space<vmem>>, vector<1x128xf32>
    %87 = vector.broadcast %86 : vector<1x128xf32> to vector<256x128xf32>
    %88 = arith.addf %85, %87 : vector<256x128xf32>
    %89 = math.absf %88 : vector<256x128xf32>
    %cst_39 = arith.constant 0.000000e+00 : f32
    %90 = vector.broadcast %cst_39 : f32 to vector<256x128xf32>
    %91 = arith.subf %90, %89 : vector<256x128xf32>
    %92 = math.exp %91 : vector<256x128xf32>
    %cst_40 = arith.constant 1.000000e+00 : f32
    %93 = vector.broadcast %cst_40 : f32 to vector<256x128xf32>
    %94 = arith.addf %93, %92 : vector<256x128xf32>
    %95 = tpu.reciprocal %94 {approx = true} : vector<256x128xf32> -> vector<256x128xf32>
    %cst_41 = arith.constant 0.000000e+00 : f32
    %96 = vector.broadcast %cst_41 : f32 to vector<256x128xf32>
    %97 = arith.cmpf oge, %88, %96 : vector<256x128xf32>
    %98 = arith.mulf %92, %95 : vector<256x128xf32>
    %99 = arith.select %97, %95, %98 : vector<256x128xi1>, vector<256x128xf32>
    %100 = arith.mulf %88, %99 : vector<256x128xf32>
    %c0_42 = arith.constant 0 : index
    %c0_43 = arith.constant 0 : index
    %c0_44 = arith.constant 0 : index
    %101 = vector.load %arg1[%c0_42, %c0_43, %c0_44] : memref<1x256x128xbf16, #tpu.memory_space<vmem>>, vector<1x256x128xbf16>
    %102 = vector.shape_cast %101 : vector<1x256x128xbf16> to vector<256x128xbf16>
    %103 = arith.extf %102 : vector<256x128xbf16> to vector<256x128xf32>
    %104 = arith.addf %103, %100 : vector<256x128xf32>
    %105 = arith.truncf %104 : vector<256x128xf32> to vector<256x128xbf16>
    %c0_45 = arith.constant 0 : index
    %c0_46 = arith.constant 0 : index
    %106 = vector.load %arg6[%c0_45, %c0_46] : memref<128x128xbf16, #tpu.memory_space<vmem>>, vector<128x128xbf16>
    %cst_47 = arith.constant dense<0.000000e+00> : vector<256x128xf32>
    %107 = tpu.matmul %105, %106, %cst_47 {dimension_numbers = #tpu.dot_dimension_numbers<[1], [0], [0], [1], [0, 0, 1, 1], [], []>} : vector<256x128xbf16>, vector<128x128xbf16>, vector<256x128xf32> -> vector<256x128xf32>
    %c0_48 = arith.constant 0 : index
    %c0_49 = arith.constant 0 : index
    %108 = vector.load %arg7[%c0_48, %c0_49] : memref<1x128xf32, #tpu.memory_space<vmem>>, vector<1x128xf32>
    %109 = vector.broadcast %108 : vector<1x128xf32> to vector<256x128xf32>
    %110 = arith.addf %107, %109 : vector<256x128xf32>
    %cst_50 = arith.constant 0.000000e+00 : f32
    %111 = vector.broadcast %cst_50 : f32 to vector<256x128xf32>
    %112 = arith.maximumf %110, %111 : vector<256x128xf32>
    %113 = arith.truncf %112 : vector<256x128xf32> to vector<256x128xbf16>
    %c0_51 = arith.constant 0 : index
    %c0_52 = arith.constant 0 : index
    %114 = vector.load %arg8[%c0_51, %c0_52] : memref<128x128xbf16, #tpu.memory_space<vmem>>, vector<128x128xbf16>
    %cst_53 = arith.constant dense<0.000000e+00> : vector<256x128xf32>
    %115 = tpu.matmul %113, %114, %cst_53 {dimension_numbers = #tpu.dot_dimension_numbers<[1], [0], [0], [1], [0, 0, 1, 1], [], []>} : vector<256x128xbf16>, vector<128x128xbf16>, vector<256x128xf32> -> vector<256x128xf32>
    %c0_54 = arith.constant 0 : index
    %c0_55 = arith.constant 0 : index
    %116 = vector.load %arg9[%c0_54, %c0_55] : memref<1x128xf32, #tpu.memory_space<vmem>>, vector<1x128xf32>
    %117 = vector.broadcast %116 : vector<1x128xf32> to vector<256x128xf32>
    %118 = arith.addf %115, %117 : vector<256x128xf32>
    %119 = arith.extf %105 : vector<256x128xbf16> to vector<256x128xf32>
    %cst_56 = arith.constant dense<0.000000e+00> : vector<128xf32>
    %120 = vector.multi_reduction <add>, %119, %cst_56 [0] : vector<256x128xf32> to vector<128xf32>
    %121 = vector.shape_cast %120 : vector<128xf32> to vector<1x128xf32>
    %cst_57 = arith.constant 3.906250e-03 : f32
    %122 = vector.broadcast %cst_57 : f32 to vector<1x128xf32>
    %123 = arith.mulf %121, %122 : vector<1x128xf32>
    %124 = arith.truncf %123 : vector<1x128xf32> to vector<1x128xbf16>
    %c0_58 = arith.constant 0 : index
    %c0_59 = arith.constant 0 : index
    %125 = vector.load %arg10[%c0_58, %c0_59] : memref<128x128xbf16, #tpu.memory_space<vmem>>, vector<128x128xbf16>
    %cst_60 = arith.constant dense<0.000000e+00> : vector<1x128xf32>
    %126 = tpu.matmul %124, %125, %cst_60 {dimension_numbers = #tpu.dot_dimension_numbers<[1], [0], [0], [1], [0, 0, 1, 1], [], []>} : vector<1x128xbf16>, vector<128x128xbf16>, vector<1x128xf32> -> vector<1x128xf32>
    %c0_61 = arith.constant 0 : index
    %c0_62 = arith.constant 0 : index
    %127 = vector.load %arg11[%c0_61, %c0_62] : memref<1x128xf32, #tpu.memory_space<vmem>>, vector<1x128xf32>
    %128 = arith.addf %126, %127 : vector<1x128xf32>
    %cst_63 = arith.constant 0.000000e+00 : f32
    %129 = vector.broadcast %cst_63 : f32 to vector<1x128xf32>
    %130 = arith.maximumf %128, %129 : vector<1x128xf32>
    %131 = arith.truncf %130 : vector<1x128xf32> to vector<1x128xbf16>
    %c0_64 = arith.constant 0 : index
    %c0_65 = arith.constant 0 : index
    %132 = vector.load %arg12[%c0_64, %c0_65] : memref<128x128xbf16, #tpu.memory_space<vmem>>, vector<128x128xbf16>
    %cst_66 = arith.constant dense<0.000000e+00> : vector<1x128xf32>
    %133 = tpu.matmul %131, %132, %cst_66 {dimension_numbers = #tpu.dot_dimension_numbers<[1], [0], [0], [1], [0, 0, 1, 1], [], []>} : vector<1x128xbf16>, vector<128x128xbf16>, vector<1x128xf32> -> vector<1x128xf32>
    %c0_67 = arith.constant 0 : index
    %c0_68 = arith.constant 0 : index
    %134 = vector.load %arg13[%c0_67, %c0_68] : memref<1x128xf32, #tpu.memory_space<vmem>>, vector<1x128xf32>
    %135 = arith.addf %133, %134 : vector<1x128xf32>
    %136 = vector.broadcast %135 : vector<1x128xf32> to vector<256x128xf32>
    %137 = arith.addf %118, %136 : vector<256x128xf32>
    %138 = math.absf %137 : vector<256x128xf32>
    %cst_69 = arith.constant 0.000000e+00 : f32
    %139 = vector.broadcast %cst_69 : f32 to vector<256x128xf32>
    %140 = arith.subf %139, %138 : vector<256x128xf32>
    %141 = math.exp %140 : vector<256x128xf32>
    %cst_70 = arith.constant 1.000000e+00 : f32
    %142 = vector.broadcast %cst_70 : f32 to vector<256x128xf32>
    %143 = arith.addf %142, %141 : vector<256x128xf32>
    %cst_71 = arith.constant 1.000000e+00 : f32
    %144 = vector.broadcast %cst_71 : f32 to vector<256x128xf32>
    %145 = arith.divf %144, %143 : vector<256x128xf32>
    %cst_72 = arith.constant 0.000000e+00 : f32
    %146 = vector.broadcast %cst_72 : f32 to vector<256x128xf32>
    %147 = arith.cmpf oge, %137, %146 : vector<256x128xf32>
    %148 = arith.mulf %141, %145 : vector<256x128xf32>
    %149 = arith.select %147, %145, %148 : vector<256x128xi1>, vector<256x128xf32>
    %150 = arith.subf %103, %100 : vector<256x128xf32>
    %151 = arith.mulf %150, %149 : vector<256x128xf32>
    %152 = arith.addf %100, %151 : vector<256x128xf32>
    %153 = arith.truncf %152 : vector<256x128xf32> to vector<256x128xbf16>
    %c0_73 = arith.constant 0 : index
    %c0_74 = arith.constant 0 : index
    %154 = vector.load %arg14[%c0_73, %c0_74] : memref<128x128xbf16, #tpu.memory_space<vmem>>, vector<128x128xbf16>
    %cst_75 = arith.constant dense<0.000000e+00> : vector<256x128xf32>
    %155 = tpu.matmul %153, %154, %cst_75 {dimension_numbers = #tpu.dot_dimension_numbers<[1], [0], [0], [1], [0, 0, 1, 1], [], []>} : vector<256x128xbf16>, vector<128x128xbf16>, vector<256x128xf32> -> vector<256x128xf32>
    %c0_76 = arith.constant 0 : index
    %c0_77 = arith.constant 0 : index
    %156 = vector.load %arg15[%c0_76, %c0_77] : memref<1x128xf32, #tpu.memory_space<vmem>>, vector<1x128xf32>
    %157 = vector.broadcast %156 : vector<1x128xf32> to vector<256x128xf32>
    %158 = arith.addf %155, %157 : vector<256x128xf32>
    %cst_78 = arith.constant 0.000000e+00 : f32
    %159 = vector.broadcast %cst_78 : f32 to vector<256x128xf32>
    %160 = arith.maximumf %158, %159 : vector<256x128xf32>
    %161 = arith.truncf %160 : vector<256x128xf32> to vector<256x128xbf16>
    %c0_79 = arith.constant 0 : index
    %c0_80 = arith.constant 0 : index
    %162 = vector.load %arg16[%c0_79, %c0_80] : memref<128x128xbf16, #tpu.memory_space<vmem>>, vector<128x128xbf16>
    %cst_81 = arith.constant dense<0.000000e+00> : vector<256x128xf32>
    %163 = tpu.matmul %161, %162, %cst_81 {dimension_numbers = #tpu.dot_dimension_numbers<[1], [0], [0], [1], [0, 0, 1, 1], [], []>} : vector<256x128xbf16>, vector<128x128xbf16>, vector<256x128xf32> -> vector<256x128xf32>
    %c0_82 = arith.constant 0 : index
    %c0_83 = arith.constant 0 : index
    %164 = vector.load %arg17[%c0_82, %c0_83] : memref<1x128xf32, #tpu.memory_space<vmem>>, vector<1x128xf32>
    %165 = vector.broadcast %164 : vector<1x128xf32> to vector<256x128xf32>
    %166 = arith.addf %163, %165 : vector<256x128xf32>
    %167 = arith.extf %153 : vector<256x128xbf16> to vector<256x128xf32>
    %cst_84 = arith.constant dense<0.000000e+00> : vector<128xf32>
    %168 = vector.multi_reduction <add>, %167, %cst_84 [0] : vector<256x128xf32> to vector<128xf32>
    %169 = vector.shape_cast %168 : vector<128xf32> to vector<1x128xf32>
    %cst_85 = arith.constant 3.906250e-03 : f32
    %170 = vector.broadcast %cst_85 : f32 to vector<1x128xf32>
    %171 = arith.mulf %169, %170 : vector<1x128xf32>
    %172 = arith.truncf %171 : vector<1x128xf32> to vector<1x128xbf16>
    %c0_86 = arith.constant 0 : index
    %c0_87 = arith.constant 0 : index
    %173 = vector.load %arg10[%c0_86, %c0_87] : memref<128x128xbf16, #tpu.memory_space<vmem>>, vector<128x128xbf16>
    %cst_88 = arith.constant dense<0.000000e+00> : vector<1x128xf32>
    %174 = tpu.matmul %172, %173, %cst_88 {dimension_numbers = #tpu.dot_dimension_numbers<[1], [0], [0], [1], [0, 0, 1, 1], [], []>} : vector<1x128xbf16>, vector<128x128xbf16>, vector<1x128xf32> -> vector<1x128xf32>
    %c0_89 = arith.constant 0 : index
    %c0_90 = arith.constant 0 : index
    %175 = vector.load %arg11[%c0_89, %c0_90] : memref<1x128xf32, #tpu.memory_space<vmem>>, vector<1x128xf32>
    %176 = arith.addf %174, %175 : vector<1x128xf32>
    %cst_91 = arith.constant 0.000000e+00 : f32
    %177 = vector.broadcast %cst_91 : f32 to vector<1x128xf32>
    %178 = arith.maximumf %176, %177 : vector<1x128xf32>
    %179 = arith.truncf %178 : vector<1x128xf32> to vector<1x128xbf16>
    %c0_92 = arith.constant 0 : index
    %c0_93 = arith.constant 0 : index
    %180 = vector.load %arg12[%c0_92, %c0_93] : memref<128x128xbf16, #tpu.memory_space<vmem>>, vector<128x128xbf16>
    %cst_94 = arith.constant dense<0.000000e+00> : vector<1x128xf32>
    %181 = tpu.matmul %179, %180, %cst_94 {dimension_numbers = #tpu.dot_dimension_numbers<[1], [0], [0], [1], [0, 0, 1, 1], [], []>} : vector<1x128xbf16>, vector<128x128xbf16>, vector<1x128xf32> -> vector<1x128xf32>
    %c0_95 = arith.constant 0 : index
    %c0_96 = arith.constant 0 : index
    %182 = vector.load %arg13[%c0_95, %c0_96] : memref<1x128xf32, #tpu.memory_space<vmem>>, vector<1x128xf32>
    %183 = arith.addf %181, %182 : vector<1x128xf32>
    %184 = vector.broadcast %183 : vector<1x128xf32> to vector<256x128xf32>
    %185 = arith.addf %166, %184 : vector<256x128xf32>
    %186 = math.absf %185 : vector<256x128xf32>
    %cst_97 = arith.constant 0.000000e+00 : f32
    %187 = vector.broadcast %cst_97 : f32 to vector<256x128xf32>
    %188 = arith.subf %187, %186 : vector<256x128xf32>
    %189 = math.exp %188 : vector<256x128xf32>
    %cst_98 = arith.constant 1.000000e+00 : f32
    %190 = vector.broadcast %cst_98 : f32 to vector<256x128xf32>
    %191 = arith.addf %190, %189 : vector<256x128xf32>
    %cst_99 = arith.constant 1.000000e+00 : f32
    %192 = vector.broadcast %cst_99 : f32 to vector<256x128xf32>
    %193 = arith.divf %192, %191 : vector<256x128xf32>
    %cst_100 = arith.constant 0.000000e+00 : f32
    %194 = vector.broadcast %cst_100 : f32 to vector<256x128xf32>
    %195 = arith.cmpf oge, %185, %194 : vector<256x128xf32>
    %196 = arith.mulf %189, %193 : vector<256x128xf32>
    %197 = arith.select %195, %193, %196 : vector<256x128xi1>, vector<256x128xf32>
    %198 = arith.subf %103, %100 : vector<256x128xf32>
    %199 = arith.mulf %198, %197 : vector<256x128xf32>
    %200 = arith.addf %100, %199 : vector<256x128xf32>
    %c0_101 = arith.constant 0 : index
    %c0_102 = arith.constant 0 : index
    %c0_103 = arith.constant 0 : index
    %201 = vector.load %arg18[%c0_101, %c0_102, %c0_103] : memref<1x256x128xf32, #tpu.memory_space<vmem>>, vector<1x256x128xf32>
    %202 = vector.shape_cast %201 : vector<1x256x128xf32> to vector<256x128xf32>
    %203 = vector.shape_cast %200 : vector<256x128xf32> to vector<1x256x128xf32>
    tpu.vector_store %arg18[%c0_101, %c0_102, %c0_103], %203 {strides = array<i32>} : memref<1x256x128xf32, #tpu.memory_space<vmem>>, vector<1x256x128xf32>,
    return
  }
  func.func @transform_0(%arg0: i32) -> (i32, i32, i32) {
    %c0_i32 = arith.constant 0 : i32
    %c0_i32_0 = arith.constant 0 : i32
    %c0_i32_1 = arith.constant 0 : i32
    return %arg0, %c0_i32, %c0_i32_0 : i32, i32, i32
  }
  func.func @transform_1(%arg0: i32) -> (i32, i32) {
    %c0_i32 = arith.constant 0 : i32
    %c0_i32_0 = arith.constant 0 : i32
    %c0_i32_1 = arith.constant 0 : i32
    return %c0_i32, %c0_i32_0 : i32, i32
  }
  func.func @transform_2(%arg0: i32) -> (i32, i32) {
    %c0_i32 = arith.constant 0 : i32
    %c0_i32_0 = arith.constant 0 : i32
    %c0_i32_1 = arith.constant 0 : i32
    return %c0_i32, %c0_i32_0 : i32, i32
  }
  func.func @transform_3(%arg0: i32) -> (i32, i32) {
    %c0_i32 = arith.constant 0 : i32
    %c0_i32_0 = arith.constant 0 : i32
    %c0_i32_1 = arith.constant 0 : i32
    return %c0_i32, %c0_i32_0 : i32, i32
  }
  func.func @transform_4(%arg0: i32) -> (i32, i32) {
    %c0_i32 = arith.constant 0 : i32
    %c0_i32_0 = arith.constant 0 : i32
    %c0_i32_1 = arith.constant 0 : i32
    return %c0_i32, %c0_i32_0 : i32, i32
  }
  func.func @transform_5(%arg0: i32) -> (i32, i32) {
    %c0_i32 = arith.constant 0 : i32
    %c0_i32_0 = arith.constant 0 : i32
    %c0_i32_1 = arith.constant 0 : i32
    return %c0_i32, %c0_i32_0 : i32, i32
  }
  func.func @transform_6(%arg0: i32) -> (i32, i32) {
    %c0_i32 = arith.constant 0 : i32
    %c0_i32_0 = arith.constant 0 : i32
    %c0_i32_1 = arith.constant 0 : i32
    return %c0_i32, %c0_i32_0 : i32, i32
  }
  func.func @transform_7(%arg0: i32) -> (i32, i32) {
    %c0_i32 = arith.constant 0 : i32
    %c0_i32_0 = arith.constant 0 : i32
    %c0_i32_1 = arith.constant 0 : i32
    return %c0_i32, %c0_i32_0 : i32, i32
  }
  func.func @transform_8(%arg0: i32) -> (i32, i32) {
    %c0_i32 = arith.constant 0 : i32
    %c0_i32_0 = arith.constant 0 : i32
    %c0_i32_1 = arith.constant 0 : i32
    return %c0_i32, %c0_i32_0 : i32, i32
  }
  func.func @transform_9(%arg0: i32) -> (i32, i32) {
    %c0_i32 = arith.constant 0 : i32
    %c0_i32_0 = arith.constant 0 : i32
    %c0_i32_1 = arith.constant 0 : i32
    return %c0_i32, %c0_i32_0 : i32, i32
  }
  func.func @transform_10(%arg0: i32) -> (i32, i32) {
    %c0_i32 = arith.constant 0 : i32
    %c0_i32_0 = arith.constant 0 : i32
    %c0_i32_1 = arith.constant 0 : i32
    return %c0_i32, %c0_i32_0 : i32, i32
  }
  func.func @transform_11(%arg0: i32) -> (i32, i32) {
    %c0_i32 = arith.constant 0 : i32
    %c0_i32_0 = arith.constant 0 : i32
    %c0_i32_1 = arith.constant 0 : i32
    return %c0_i32, %c0_i32_0 : i32, i32
  }
  func.func @transform_12(%arg0: i32) -> (i32, i32) {
    %c0_i32 = arith.constant 0 : i32
    %c0_i32_0 = arith.constant 0 : i32
    %c0_i32_1 = arith.constant 0 : i32
    return %c0_i32, %c0_i32_0 : i32, i32
  }
  func.func @transform_13(%arg0: i32) -> (i32, i32) {
    %c0_i32 = arith.constant 0 : i32
    %c0_i32_0 = arith.constant 0 : i32
    %c0_i32_1 = arith.constant 0 : i32
    return %c0_i32, %c0_i32_0 : i32, i32
  }
  func.func @transform_14(%arg0: i32) -> (i32, i32) {
    %c0_i32 = arith.constant 0 : i32
    %c0_i32_0 = arith.constant 0 : i32
    %c0_i32_1 = arith.constant 0 : i32
    return %c0_i32, %c0_i32_0 : i32, i32
  }
  func.func @transform_15(%arg0: i32) -> (i32, i32) {
    %c0_i32 = arith.constant 0 : i32
    %c0_i32_0 = arith.constant 0 : i32
    %c0_i32_1 = arith.constant 0 : i32
    return %c0_i32, %c0_i32_0 : i32, i32
  }
  func.func @transform_16(%arg0: i32) -> (i32, i32) {
    %c0_i32 = arith.constant 0 : i32
    %c0_i32_0 = arith.constant 0 : i32
    %c0_i32_1 = arith.constant 0 : i32
    return %c0_i32, %c0_i32_0 : i32, i32
  }
  func.func @transform_17(%arg0: i32) -> (i32, i32, i32) {
    %c0_i32 = arith.constant 0 : i32
    %c0_i32_0 = arith.constant 0 : i32
    %c0_i32_1 = arith.constant 0 : i32
    return %arg0, %c0_i32, %c0_i32_0 : i32, i32, i32
  }
}

</mosaic_0001>

<llo_original>
// kernel: tpu_custom_call.1
$region0: #{tpu_custom_call.1}
  #allocation0 [shape = 'u32[]', space=smem, size = 0x4, offset = 0x4, fixed_abs, tag = 'smem constant byte address 0x4 - core index']
  #allocation1 [shape = 'u32[72,128]{1,0:T(1,128)}', space=vmem, size = 0x9000, scoped, tag = 'internal scratch']
  #allocation2 [shape = 'bf16[320,128]{1,0:T(8,128)(2,1)}', space=vmem, size = 0x14000, scoped, tag = 'scratch operand']
  %s0 = inlined_call_operand.hbm [shape: bf16[2,256,128], index: 0, kind: input, shape index: {}]
  %s1 = inlined_call_operand.hbm [shape: bf16[128,128], index: 1, kind: input, shape index: {}]
  %s2 = inlined_call_operand.vmem [shape: f32[1,128], index: 2, kind: input, shape index: {}]
  %s3 = inlined_call_operand.hbm [shape: bf16[1152,128], index: 3, kind: input, shape index: {}]
  %s4 = inlined_call_operand.vmem [shape: f32[1,128], index: 4, kind: input, shape index: {}]
  %s5 = inlined_call_operand.hbm [shape: bf16[128,128], index: 5, kind: input, shape index: {}]
  %s6 = inlined_call_operand.vmem [shape: f32[1,128], index: 6, kind: input, shape index: {}]
  %s7 = inlined_call_operand.hbm [shape: bf16[128,128], index: 7, kind: input, shape index: {}]
  %s8 = inlined_call_operand.vmem [shape: f32[1,128], index: 8, kind: input, shape index: {}]
  %s9 = inlined_call_operand.hbm [shape: bf16[128,128], index: 9, kind: input, shape index: {}]
  %s10 = inlined_call_operand.vmem [shape: f32[1,128], index: 10, kind: input, shape index: {}]
  %s11 = inlined_call_operand.hbm [shape: bf16[128,128], index: 11, kind: input, shape index: {}]
  %s12 = inlined_call_operand.vmem [shape: f32[1,128], index: 12, kind: input, shape index: {}]
  %s13 = inlined_call_operand.hbm [shape: bf16[128,128], index: 13, kind: input, shape index: {}]
  %s14 = inlined_call_operand.vmem [shape: f32[1,128], index: 14, kind: input, shape index: {}]
  %s15 = inlined_call_operand.hbm [shape: bf16[128,128], index: 15, kind: input, shape index: {}]
  %s16 = inlined_call_operand.vmem [shape: f32[1,128], index: 16, kind: input, shape index: {}]
  %s17 = inlined_call_operand.hbm [shape: f32[2,256,128], index: 17, kind: output, shape index: {}]
  %s18 = sld [smem:[#allocation0]]
  $region137: #{tpu_custom_call.1} parent=0
    _
  %s20 = ssub.s32 1, %s18
  %s21 = scalar_select 0, %s20, %s18
  $region1: #{tpu_custom_call.1} parent=0
    #allocation3 [shape = 'u8[131072]{0}', space=vmem, size = 0x20000, scoped, tag = 'input window, operand 0']
    #allocation4 [shape = 's32[2]{0}', space=sflag, size = 0x8, scoped, tag = 'scoped memory for tpu_custom_call.1']
    #allocation5 [shape = 's32[2]{0}', space=sflag, size = 0x8, scoped, tag = 'scoped memory for tpu_custom_call.1']
    #allocation6 [shape = 'u8[32768]{0}', space=vmem, size = 0x8000, scoped, tag = 'input window, operand 1, single buffered']
    #allocation7 [shape = 's32[1]{0}', space=sflag, size = 0x4, scoped, tag = 'scoped memory for tpu_custom_call.1']
    #allocation8 [shape = 'u8[294912]{0}', space=vmem, size = 0x48000, scoped, tag = 'input window, operand 3, single buffered']
    #allocation9 [shape = 'u8[32768]{0}', space=vmem, size = 0x8000, scoped, tag = 'input window, operand 5, single buffered']
    #allocation10 [shape = 's32[1]{0}', space=sflag, size = 0x4, scoped, tag = 'scoped memory for tpu_custom_call.1']
    #allocation11 [shape = 'u8[32768]{0}', space=vmem, size = 0x8000, scoped, tag = 'input window, operand 7, single buffered']
    #allocation12 [shape = 'u8[32768]{0}', space=vmem, size = 0x8000, scoped, tag = 'input window, operand 9, single buffered']
    #allocation13 [shape = 's32[1]{0}', space=sflag, size = 0x4, scoped, tag = 'scoped memory for tpu_custom_call.1']
    #allocation14 [shape = 'u8[32768]{0}', space=vmem, size = 0x8000, scoped, tag = 'input window, operand 11, single buffered']
    #allocation15 [shape = 'u8[32768]{0}', space=vmem, size = 0x8000, scoped, tag = 'input window, operand 13, single buffered']
    #allocation16 [shape = 's32[1]{0}', space=sflag, size = 0x4, scoped, tag = 'scoped memory for tpu_custom_call.1']
    #allocation17 [shape = 'u8[32768]{0}', space=vmem, size = 0x8000, scoped, tag = 'input window, operand 15, single buffered']
    #allocation18 [shape = 'u8[262144]{0}', space=vmem, size = 0x40000, scoped, tag = 'output window, operand 0']
    %22 = vsyncpa [#allocation4], 0
    %s23 = scalar_lea.sflag [#allocation4], 1
    %24 = vsyncpa %s23, 0
    %25 = vsyncpa [#allocation7], 0
    %26 = vsyncpa [#allocation10], 0
    %27 = vsyncpa [#allocation13], 0
    %28 = vsyncpa [#allocation16], 0
    %29 = vsyncpa [#allocation5], 0
    %s30 = scalar_lea.sflag [#allocation5], 1
    %31 = vsyncpa %s30, 0
    loop: start=0, step=1, limit=4
    $region2: #{tpu_custom_call.1} parent=1 // loop_pre_header
      _
    $region3: #{tpu_custom_call.1} parent=1 // loop_header
      %s33 = sphi 0, %s37
      %p34 = scmp.ge.s32.totalorder %s33, 4
      %s43 = sphi 0, %s45
      %s46 = sphi 0, %s43
      %s47 = sphi 0, %s46
      %s63 = sphi 0, %s47
      %s67 = sphi 0, %s67
      %s69 = sphi 0, %s67
      %s70 = sphi 0, %s69
      %s84 = sphi 0, %s70
      %s88 = sphi 0, %s88
      %s90 = sphi 0, %s88
      %s91 = sphi 0, %s90
      %s105 = sphi 0, %s91
      %s109 = sphi 0, %s109
      %s111 = sphi 0, %s109
      %s112 = sphi 0, %s111
      %s126 = sphi 0, %s112
      %s130 = sphi 0, %s130
      %s132 = sphi 0, %s130
      %s133 = sphi 0, %s132
      %s147 = sphi 0, %s133
      %s151 = sphi 0, %s151
      %s153 = sphi 0, %s151
      %s154 = sphi 0, %s153
      %s168 = sphi 0, %s154
      %s172 = sphi 0, %s172
      %s174 = sphi 0, %s172
      %s175 = sphi 0, %s174
      %s189 = sphi 0, %s175
      %s193 = sphi 0, %s193
      %s195 = sphi 0, %s193
      %s196 = sphi 0, %s195
      %s210 = sphi 0, %s196
      %s214 = sphi 0, %s214
      %s216 = sphi 0, %s214
      %s217 = sphi 0, %s216
      %s231 = sphi 0, %s217
      %s235 = sphi 0, %s235
      %s237 = sphi 0, %s235
      %s238 = sphi 0, %s237
      %s252 = sphi 0, %s238
      %s256 = sphi 0, %s256
      %s258 = sphi 0, %s256
      %s259 = sphi 0, %s258
      %s273 = sphi 0, %s259
      %s277 = sphi 0, %s277
      %s279 = sphi 0, %s277
      %s280 = sphi 0, %s279
      %s294 = sphi 0, %s280
      %s298 = sphi 0, %s298
      %s300 = sphi 0, %s298
      %s301 = sphi 0, %s300
      %s315 = sphi 0, %s301
      %s319 = sphi 0, %s319
      %s321 = sphi 0, %s319
      %s322 = sphi 0, %s321
      %s336 = sphi 0, %s322
      %s340 = sphi 0, %s340
      %s342 = sphi 0, %s340
      %s343 = sphi 0, %s342
      %s357 = sphi 0, %s343
      %s361 = sphi 0, %s361
      %s363 = sphi 0, %s361
      %s364 = sphi 0, %s363
      %s378 = sphi 0, %s364
      %s382 = sphi 0, %s382
      %s384 = sphi 0, %s382
      %s385 = sphi 0, %s384
      %s399 = sphi 0, %s385
      %s405 = sphi 0, %s407
      %s408 = sphi 0, %s405
      %s409 = sphi 0, %s408
      %s425 = sphi 0, %s409
    $region4: #{tpu_custom_call.1} parent=1 // loop_header_branch
      %36 = sbr.rel (%p34) target = $region8
    $region5: #{tpu_custom_call.1} parent=1 // loop_body
      %s38 = ssub.s32 %s33, 1
      %s39 = ssub.s32 %s33, 2
      %s40 = sadd.s32 %s33, 1
      %s41 = ssub.s32 %s33, %s40
      %p42 = scmp.eq.s32.totalorder %s41, 0
      %s44 = sadd.s32 %s43, 1
      %s45 = scalar_select %p42, %s43, %s44
      %p48 = pneg %p42
      %p49 = scmp.eq.s32.totalorder %s33, 1
      %p50 = por %p48, %p49
      %p51 = scmp.ne.s32.totalorder %s43, %s46
      %p52 = scmp.eq.s32.totalorder %s33, 0
      %p53 = por %p51, %p52
      %p54 = scmp.ne.s32.totalorder %s43, %s46
      %p55 = scmp.eq.s32.totalorder %s38, 1
      %p56 = por %p54, %p55
      %p57 = scmp.ne.s32.totalorder %s46, %s47
      %p58 = scmp.eq.s32.totalorder %s38, 0
      %p59 = por %p57, %p58
      %p60 = scmp.ne.s32.totalorder %s46, %s47
      %p61 = scmp.eq.s32.totalorder %s39, 1
      %p62 = por %p60, %p61
      %p64 = scmp.ne.s32.totalorder %s47, %s63
      %p65 = scmp.eq.s32.totalorder %s39, 0
      %p66 = por %p64, %p65
      %s68 = sadd.s32 %s67, 1
      %p71 = scmp.eq.s32.totalorder %s33, 1
      %p72 = scmp.ne.s32.totalorder %s67, %s69
      %p73 = scmp.eq.s32.totalorder %s33, 0
      %p74 = por %p72, %p73
      %p75 = scmp.ne.s32.totalorder %s67, %s69
      %p76 = scmp.eq.s32.totalorder %s38, 1
      %p77 = por %p75, %p76
      %p78 = scmp.ne.s32.totalorder %s69, %s70
      %p79 = scmp.eq.s32.totalorder %s38, 0
      %p80 = por %p78, %p79
      %p81 = scmp.ne.s32.totalorder %s69, %s70
      %p82 = scmp.eq.s32.totalorder %s39, 1
      %p83 = por %p81, %p82
      %p85 = scmp.ne.s32.totalorder %s70, %s84
      %p86 = scmp.eq.s32.totalorder %s39, 0
      %p87 = por %p85, %p86
      %s89 = sadd.s32 %s88, 1
      %p92 = scmp.eq.s32.totalorder %s33, 1
      %p93 = scmp.ne.s32.totalorder %s88, %s90
      %p94 = scmp.eq.s32.totalorder %s33, 0
      %p95 = por %p93, %p94
      %p96 = scmp.ne.s32.totalorder %s88, %s90
      %p97 = scmp.eq.s32.totalorder %s38, 1
      %p98 = por %p96, %p97
      %p99 = scmp.ne.s32.totalorder %s90, %s91
      %p100 = scmp.eq.s32.totalorder %s38, 0
      %p101 = por %p99, %p100
      %p102 = scmp.ne.s32.totalorder %s90, %s91
      %p103 = scmp.eq.s32.totalorder %s39, 1
      %p104 = por %p102, %p103
      %p106 = scmp.ne.s32.totalorder %s91, %s105
      %p107 = scmp.eq.s32.totalorder %s39, 0
      %p108 = por %p106, %p107
      %s110 = sadd.s32 %s109, 1
      %p113 = scmp.eq.s32.totalorder %s33, 1
      %p114 = scmp.ne.s32.totalorder %s109, %s111
      %p115 = scmp.eq.s32.totalorder %s33, 0
      %p116 = por %p114, %p115
      %p117 = scmp.ne.s32.totalorder %s109, %s111
      %p118 = scmp.eq.s32.totalorder %s38, 1
      %p119 = por %p117, %p118
      %p120 = scmp.ne.s32.totalorder %s111, %s112
      %p121 = scmp.eq.s32.totalorder %s38, 0
      %p122 = por %p120, %p121
      %p123 = scmp.ne.s32.totalorder %s111, %s112
      %p124 = scmp.eq.s32.totalorder %s39, 1
      %p125 = por %p123, %p124
      %p127 = scmp.ne.s32.totalorder %s112, %s126
      %p128 = scmp.eq.s32.totalorder %s39, 0
      %p129 = por %p127, %p128
      %s131 = sadd.s32 %s130, 1
      %p134 = scmp.eq.s32.totalorder %s33, 1
      %p135 = scmp.ne.s32.totalorder %s130, %s132
      %p136 = scmp.eq.s32.totalorder %s33, 0
      %p137 = por %p135, %p136
      %p138 = scmp.ne.s32.totalorder %s130, %s132
      %p139 = scmp.eq.s32.totalorder %s38, 1
      %p140 = por %p138, %p139
      %p141 = scmp.ne.s32.totalorder %s132, %s133
      %p142 = scmp.eq.s32.totalorder %s38, 0
      %p143 = por %p141, %p142
      %p144 = scmp.ne.s32.totalorder %s132, %s133
      %p145 = scmp.eq.s32.totalorder %s39, 1
      %p146 = por %p144, %p145
      %p148 = scmp.ne.s32.totalorder %s133, %s147
      %p149 = scmp.eq.s32.totalorder %s39, 0
      %p150 = por %p148, %p149
      %s152 = sadd.s32 %s151, 1
      %p155 = scmp.eq.s32.totalorder %s33, 1
      %p156 = scmp.ne.s32.totalorder %s151, %s153
      %p157 = scmp.eq.s32.totalorder %s33, 0
      %p158 = por %p156, %p157
      %p159 = scmp.ne.s32.totalorder %s151, %s153
      %p160 = scmp.eq.s32.totalorder %s38, 1
      %p161 = por %p159, %p160
      %p162 = scmp.ne.s32.totalorder %s153, %s154
      %p163 = scmp.eq.s32.totalorder %s38, 0
      %p164 = por %p162, %p163
      %p165 = scmp.ne.s32.totalorder %s153, %s154
      %p166 = scmp.eq.s32.totalorder %s39, 1
      %p167 = por %p165, %p166
      %p169 = scmp.ne.s32.totalorder %s154, %s168
      %p170 = scmp.eq.s32.totalorder %s39, 0
      %p171 = por %p169, %p170
      %s173 = sadd.s32 %s172, 1
      %p176 = scmp.eq.s32.totalorder %s33, 1
      %p177 = scmp.ne.s32.totalorder %s172, %s174
      %p178 = scmp.eq.s32.totalorder %s33, 0
      %p179 = por %p177, %p178
      %p180 = scmp.ne.s32.totalorder %s172, %s174
      %p181 = scmp.eq.s32.totalorder %s38, 1
      %p182 = por %p180, %p181
      %p183 = scmp.ne.s32.totalorder %s174, %s175
      %p184 = scmp.eq.s32.totalorder %s38, 0
      %p185 = por %p183, %p184
      %p186 = scmp.ne.s32.totalorder %s174, %s175
      %p187 = scmp.eq.s32.totalorder %s39, 1
      %p188 = por %p186, %p187
      %p190 = scmp.ne.s32.totalorder %s175, %s189
      %p191 = scmp.eq.s32.totalorder %s39, 0
      %p192 = por %p190, %p191
      %s194 = sadd.s32 %s193, 1
      %p197 = scmp.eq.s32.totalorder %s33, 1
      %p198 = scmp.ne.s32.totalorder %s193, %s195
      %p199 = scmp.eq.s32.totalorder %s33, 0
      %p200 = por %p198, %p199
      %p201 = scmp.ne.s32.totalorder %s193, %s195
      %p202 = scmp.eq.s32.totalorder %s38, 1
      %p203 = por %p201, %p202
      %p204 = scmp.ne.s32.totalorder %s195, %s196
      %p205 = scmp.eq.s32.totalorder %s38, 0
      %p206 = por %p204, %p205
      %p207 = scmp.ne.s32.totalorder %s195, %s196
      %p208 = scmp.eq.s32.totalorder %s39, 1
      %p209 = por %p207, %p208
      %p211 = scmp.ne.s32.totalorder %s196, %s210
      %p212 = scmp.eq.s32.totalorder %s39, 0
      %p213 = por %p211, %p212
      %s215 = sadd.s32 %s214, 1
      %p218 = scmp.eq.s32.totalorder %s33, 1
      %p219 = scmp.ne.s32.totalorder %s214, %s216
      %p220 = scmp.eq.s32.totalorder %s33, 0
      %p221 = por %p219, %p220
      %p222 = scmp.ne.s32.totalorder %s214, %s216
      %p223 = scmp.eq.s32.totalorder %s38, 1
      %p224 = por %p222, %p223
      %p225 = scmp.ne.s32.totalorder %s216, %s217
      %p226 = scmp.eq.s32.totalorder %s38, 0
      %p227 = por %p225, %p226
      %p228 = scmp.ne.s32.totalorder %s216, %s217
      %p229 = scmp.eq.s32.totalorder %s39, 1
      %p230 = por %p228, %p229
      %p232 = scmp.ne.s32.totalorder %s217, %s231
      %p233 = scmp.eq.s32.totalorder %s39, 0
      %p234 = por %p232, %p233
      %s236 = sadd.s32 %s235, 1
      %p239 = scmp.eq.s32.totalorder %s33, 1
      %p240 = scmp.ne.s32.totalorder %s235, %s237
      %p241 = scmp.eq.s32.totalorder %s33, 0
      %p242 = por %p240, %p241
      %p243 = scmp.ne.s32.totalorder %s235, %s237
      %p244 = scmp.eq.s32.totalorder %s38, 1
      %p245 = por %p243, %p244
      %p246 = scmp.ne.s32.totalorder %s237, %s238
      %p247 = scmp.eq.s32.totalorder %s38, 0
      %p248 = por %p246, %p247
      %p249 = scmp.ne.s32.totalorder %s237, %s238
      %p250 = scmp.eq.s32.totalorder %s39, 1
      %p251 = por %p249, %p250
      %p253 = scmp.ne.s32.totalorder %s238, %s252
      %p254 = scmp.eq.s32.totalorder %s39, 0
      %p255 = por %p253, %p254
      %s257 = sadd.s32 %s256, 1
      %p260 = scmp.eq.s32.totalorder %s33, 1
      %p261 = scmp.ne.s32.totalorder %s256, %s258
      %p262 = scmp.eq.s32.totalorder %s33, 0
      %p263 = por %p261, %p262
      %p264 = scmp.ne.s32.totalorder %s256, %s258
      %p265 = scmp.eq.s32.totalorder %s38, 1
      %p266 = por %p264, %p265
      %p267 = scmp.ne.s32.totalorder %s258, %s259
      %p268 = scmp.eq.s32.totalorder %s38, 0
      %p269 = por %p267, %p268
      %p270 = scmp.ne.s32.totalorder %s258, %s259
      %p271 = scmp.eq.s32.totalorder %s39, 1
      %p272 = por %p270, %p271
      %p274 = scmp.ne.s32.totalorder %s259, %s273
      %p275 = scmp.eq.s32.totalorder %s39, 0
      %p276 = por %p274, %p275
      %s278 = sadd.s32 %s277, 1
      %p281 = scmp.eq.s32.totalorder %s33, 1
      %p282 = scmp.ne.s32.totalorder %s277, %s279
      %p283 = scmp.eq.s32.totalorder %s33, 0
      %p284 = por %p282, %p283
      %p285 = scmp.ne.s32.totalorder %s277, %s279
      %p286 = scmp.eq.s32.totalorder %s38, 1
      %p287 = por %p285, %p286
      %p288 = scmp.ne.s32.totalorder %s279, %s280
      %p289 = scmp.eq.s32.totalorder %s38, 0
      %p290 = por %p288, %p289
      %p291 = scmp.ne.s32.totalorder %s279, %s280
      %p292 = scmp.eq.s32.totalorder %s39, 1
      %p293 = por %p291, %p292
      %p295 = scmp.ne.s32.totalorder %s280, %s294
      %p296 = scmp.eq.s32.totalorder %s39, 0
      %p297 = por %p295, %p296
      %s299 = sadd.s32 %s298, 1
      %p302 = scmp.eq.s32.totalorder %s33, 1
      %p303 = scmp.ne.s32.totalorder %s298, %s300
      %p304 = scmp.eq.s32.totalorder %s33, 0
      %p305 = por %p303, %p304
      %p306 = scmp.ne.s32.totalorder %s298, %s300
      %p307 = scmp.eq.s32.totalorder %s38, 1
      %p308 = por %p306, %p307
      %p309 = scmp.ne.s32.totalorder %s300, %s301
      %p310 = scmp.eq.s32.totalorder %s38, 0
      %p311 = por %p309, %p310
      %p312 = scmp.ne.s32.totalorder %s300, %s301
      %p313 = scmp.eq.s32.totalorder %s39, 1
      %p314 = por %p312, %p313
      %p316 = scmp.ne.s32.totalorder %s301, %s315
      %p317 = scmp.eq.s32.totalorder %s39, 0
      %p318 = por %p316, %p317
      %s320 = sadd.s32 %s319, 1
      %p323 = scmp.eq.s32.totalorder %s33, 1
      %p324 = scmp.ne.s32.totalorder %s319, %s321
      %p325 = scmp.eq.s32.totalorder %s33, 0
      %p326 = por %p324, %p325
      %p327 = scmp.ne.s32.totalorder %s319, %s321
      %p328 = scmp.eq.s32.totalorder %s38, 1
      %p329 = por %p327, %p328
      %p330 = scmp.ne.s32.totalorder %s321, %s322
      %p331 = scmp.eq.s32.totalorder %s38, 0
      %p332 = por %p330, %p331
      %p333 = scmp.ne.s32.totalorder %s321, %s322
      %p334 = scmp.eq.s32.totalorder %s39, 1
      %p335 = por %p333, %p334
      %p337 = scmp.ne.s32.totalorder %s322, %s336
      %p338 = scmp.eq.s32.totalorder %s39, 0
      %p339 = por %p337, %p338
      %s341 = sadd.s32 %s340, 1
      %p344 = scmp.eq.s32.totalorder %s33, 1
      %p345 = scmp.ne.s32.totalorder %s340, %s342
      %p346 = scmp.eq.s32.totalorder %s33, 0
      %p347 = por %p345, %p346
      %p348 = scmp.ne.s32.totalorder %s340, %s342
      %p349 = scmp.eq.s32.totalorder %s38, 1
      %p350 = por %p348, %p349
      %p351 = scmp.ne.s32.totalorder %s342, %s343
      %p352 = scmp.eq.s32.totalorder %s38, 0
      %p353 = por %p351, %p352
      %p354 = scmp.ne.s32.totalorder %s342, %s343
      %p355 = scmp.eq.s32.totalorder %s39, 1
      %p356 = por %p354, %p355
      %p358 = scmp.ne.s32.totalorder %s343, %s357
      %p359 = scmp.eq.s32.totalorder %s39, 0
      %p360 = por %p358, %p359
      %s362 = sadd.s32 %s361, 1
      %p365 = scmp.eq.s32.totalorder %s33, 1
      %p366 = scmp.ne.s32.totalorder %s361, %s363
      %p367 = scmp.eq.s32.totalorder %s33, 0
      %p368 = por %p366, %p367
      %p369 = scmp.ne.s32.totalorder %s361, %s363
      %p370 = scmp.eq.s32.totalorder %s38, 1
      %p371 = por %p369, %p370
      %p372 = scmp.ne.s32.totalorder %s363, %s364
      %p373 = scmp.eq.s32.totalorder %s38, 0
      %p374 = por %p372, %p373
      %p375 = scmp.ne.s32.totalorder %s363, %s364
      %p376 = scmp.eq.s32.totalorder %s39, 1
      %p377 = por %p375, %p376
      %p379 = scmp.ne.s32.totalorder %s364, %s378
      %p380 = scmp.eq.s32.totalorder %s39, 0
      %p381 = por %p379, %p380
      %s383 = sadd.s32 %s382, 1
      %p386 = scmp.eq.s32.totalorder %s33, 1
      %p387 = scmp.ne.s32.totalorder %s382, %s384
      %p388 = scmp.eq.s32.totalorder %s33, 0
      %p389 = por %p387, %p388
      %p390 = scmp.ne.s32.totalorder %s382, %s384
      %p391 = scmp.eq.s32.totalorder %s38, 1
      %p392 = por %p390, %p391
      %p393 = scmp.ne.s32.totalorder %s384, %s385
      %p394 = scmp.eq.s32.totalorder %s38, 0
      %p395 = por %p393, %p394
      %p396 = scmp.ne.s32.totalorder %s384, %s385
      %p397 = scmp.eq.s32.totalorder %s39, 1
      %p398 = por %p396, %p397
      %p400 = scmp.ne.s32.totalorder %s385, %s399
      %p401 = scmp.eq.s32.totalorder %s39, 0
      %p402 = por %p400, %p401
      %s403 = ssub.s32 %s33, %s40
      %p404 = scmp.eq.s32.totalorder %s403, 0
      %s406 = sadd.s32 %s405, 1
      %s407 = scalar_select %p404, %s405, %s406
      %p410 = pneg %p404
      %p411 = scmp.eq.s32.totalorder %s33, 1
      %p412 = por %p410, %p411
      %p413 = scmp.ne.s32.totalorder %s405, %s408
      %p414 = scmp.eq.s32.totalorder %s33, 0
      %p415 = por %p413, %p414
      %p416 = scmp.ne.s32.totalorder %s405, %s408
      %p417 = scmp.eq.s32.totalorder %s38, 1
      %p418 = por %p416, %p417
      %p419 = scmp.ne.s32.totalorder %s408, %s409
      %p420 = scmp.eq.s32.totalorder %s38, 0
      %p421 = por %p419, %p420
      %p422 = scmp.ne.s32.totalorder %s408, %s409
      %p423 = scmp.eq.s32.totalorder %s39, 1
      %p424 = por %p422, %p423
      %p426 = scmp.ne.s32.totalorder %s409, %s425
      %p427 = scmp.eq.s32.totalorder %s39, 0
      %p428 = por %p426, %p427
      %p429 = scmp.le.s32.totalorder 1, %s33
      %p430 = scmp.lt.s32.totalorder %s33, 3
      %p431 = pnand %p429, %p430
      %p432 = pneg %p431
      // Predicated region
      $region9: #{tpu_custom_call.1} parent=5 // pred_check
        _
      $region10: #{tpu_custom_call.1} parent=5 // pred_check_branch
        %434 = sbr.rel (%p431) target = $region12
      $region11: #{tpu_custom_call.1} parent=5 // pred_region
        %s435 = ssub.s32 %s33, 1
        // Predicated region
        $region13: #{tpu_custom_call.1} parent=11 // pred_check
          %p436 = pneg %p80
        $region14: #{tpu_custom_call.1} parent=11 // pred_check_branch
          %438 = sbr.rel (%p436) target = $region16
        $region15: #{tpu_custom_call.1} parent=11 // pred_region
          %440 = vsyncadd [#allocation7], 0
          %s441 = sshll.u32 %s1, 4
          %s442 = int_to_ptr.hbm [resolvable:$true] %s441
          %s443 = sshll.u32 [#allocation6], 4
          %s444 = int_to_ptr.vmem [resolvable:$true] %s443
          %449 = dma.hbm_to_vmem [thread:$0]  %s442, 1024, %s444, [#allocation7], 64, 64, 4
        $region16: #{tpu_custom_call.1} parent=11 // pred_fallthru
          _
        // Predicated region
        $region17: #{tpu_custom_call.1} parent=11 // pred_check
          %p450 = pneg %p101
        $region18: #{tpu_custom_call.1} parent=11 // pred_check_branch
          %452 = sbr.rel (%p450) target = $region20
        $region19: #{tpu_custom_call.1} parent=11 // pred_region
          _
        $region20: #{tpu_custom_call.1} parent=11 // pred_fallthru
          _
        // Predicated region
        $region21: #{tpu_custom_call.1} parent=11 // pred_check
          %p453 = pneg %p122
        $region22: #{tpu_custom_call.1} parent=11 // pred_check_branch
          %455 = sbr.rel (%p453) target = $region24
        $region23: #{tpu_custom_call.1} parent=11 // pred_region
          %457 = vsyncadd [#allocation7], 0
          %s458 = sshll.u32 %s3, 4
          %s459 = int_to_ptr.hbm [resolvable:$true] %s458
          %s460 = sshll.u32 [#allocation8], 4
          %s461 = int_to_ptr.vmem [resolvable:$true] %s460
          %466 = dma.hbm_to_vmem [thread:$0]  %s459, 9216, %s461, [#allocation7], 64, 64, 4
        $region24: #{tpu_custom_call.1} parent=11 // pred_fallthru
          _
        // Predicated region
        $region25: #{tpu_custom_call.1} parent=11 // pred_check
          %p467 = pneg %p143
        $region26: #{tpu_custom_call.1} parent=11 // pred_check_branch
          %469 = sbr.rel (%p467) target = $region28
        $region27: #{tpu_custom_call.1} parent=11 // pred_region
          _
        $region28: #{tpu_custom_call.1} parent=11 // pred_fallthru
          _
        // Predicated region
        $region29: #{tpu_custom_call.1} parent=11 // pred_check
          %p470 = pneg %p164
        $region30: #{tpu_custom_call.1} parent=11 // pred_check_branch
          %472 = sbr.rel (%p470) target = $region32
        $region31: #{tpu_custom_call.1} parent=11 // pred_region
          %474 = vsyncadd [#allocation10], 0
          %s475 = sshll.u32 %s5, 4
          %s476 = int_to_ptr.hbm [resolvable:$true] %s475
          %s477 = sshll.u32 [#allocation9], 4
          %s478 = int_to_ptr.vmem [resolvable:$true] %s477
          %483 = dma.hbm_to_vmem [thread:$0]  %s476, 1024, %s478, [#allocation10], 64, 64, 4
        $region32: #{tpu_custom_call.1} parent=11 // pred_fallthru
          _
        // Predicated region
        $region33: #{tpu_custom_call.1} parent=11 // pred_check
          %p484 = pneg %p185
        $region34: #{tpu_custom_call.1} parent=11 // pred_check_branch
          %486 = sbr.rel (%p484) target = $region36
        $region35: #{tpu_custom_call.1} parent=11 // pred_region
          _
        $region36: #{tpu_custom_call.1} parent=11 // pred_fallthru
          _
        // Predicated region
        $region37: #{tpu_custom_call.1} parent=11 // pred_check
          %p487 = pneg %p206
        $region38: #{tpu_custom_call.1} parent=11 // pred_check_branch
          %489 = sbr.rel (%p487) target = $region40
        $region39: #{tpu_custom_call.1} parent=11 // pred_region
          %491 = vsyncadd [#allocation10], 0
          %s492 = sshll.u32 %s7, 4
          %s493 = int_to_ptr.hbm [resolvable:$true] %s492
          %s494 = sshll.u32 [#allocation11], 4
          %s495 = int_to_ptr.vmem [resolvable:$true] %s494
          %500 = dma.hbm_to_vmem [thread:$0]  %s493, 1024, %s495, [#allocation10], 64, 64, 4
        $region40: #{tpu_custom_call.1} parent=11 // pred_fallthru
          _
        // Predicated region
        $region41: #{tpu_custom_call.1} parent=11 // pred_check
          %p501 = pneg %p227
        $region42: #{tpu_custom_call.1} parent=11 // pred_check_branch
          %503 = sbr.rel (%p501) target = $region44
        $region43: #{tpu_custom_call.1} parent=11 // pred_region
          _
        $region44: #{tpu_custom_call.1} parent=11 // pred_fallthru
          _
        // Predicated region
        $region45: #{tpu_custom_call.1} parent=11 // pred_check
          %p504 = pneg %p248
        $region46: #{tpu_custom_call.1} parent=11 // pred_check_branch
          %506 = sbr.rel (%p504) target = $region48
        $region47: #{tpu_custom_call.1} parent=11 // pred_region
          %508 = vsyncadd [#allocation13], 0
          %s509 = sshll.u32 %s9, 4
          %s510 = int_to_ptr.hbm [resolvable:$true] %s509
          %s511 = sshll.u32 [#allocation12], 4
          %s512 = int_to_ptr.vmem [resolvable:$true] %s511
          %517 = dma.hbm_to_vmem [thread:$0]  %s510, 1024, %s512, [#allocation13], 64, 64, 4
        $region48: #{tpu_custom_call.1} parent=11 // pred_fallthru
          _
        // Predicated region
        $region49: #{tpu_custom_call.1} parent=11 // pred_check
          %p518 = pneg %p269
        $region50: #{tpu_custom_call.1} parent=11 // pred_check_branch
          %520 = sbr.rel (%p518) target = $region52
        $region51: #{tpu_custom_call.1} parent=11 // pred_region
          _
        $region52: #{tpu_custom_call.1} parent=11 // pred_fallthru
          _
        // Predicated region
        $region53: #{tpu_custom_call.1} parent=11 // pred_check
          %p521 = pneg %p290
        $region54: #{tpu_custom_call.1} parent=11 // pred_check_branch
          %523 = sbr.rel (%p521) target = $region56
        $region55: #{tpu_custom_call.1} parent=11 // pred_region
          %525 = vsyncadd [#allocation13], 0
          %s526 = sshll.u32 %s11, 4
          %s527 = int_to_ptr.hbm [resolvable:$true] %s526
          %s528 = sshll.u32 [#allocation14], 4
          %s529 = int_to_ptr.vmem [resolvable:$true] %s528
          %534 = dma.hbm_to_vmem [thread:$0]  %s527, 1024, %s529, [#allocation13], 64, 64, 4
        $region56: #{tpu_custom_call.1} parent=11 // pred_fallthru
          _
        // Predicated region
        $region57: #{tpu_custom_call.1} parent=11 // pred_check
          %p535 = pneg %p311
        $region58: #{tpu_custom_call.1} parent=11 // pred_check_branch
          %537 = sbr.rel (%p535) target = $region60
        $region59: #{tpu_custom_call.1} parent=11 // pred_region
          _
        $region60: #{tpu_custom_call.1} parent=11 // pred_fallthru
          _
        // Predicated region
        $region61: #{tpu_custom_call.1} parent=11 // pred_check
          %p538 = pneg %p332
        $region62: #{tpu_custom_call.1} parent=11 // pred_check_branch
          %540 = sbr.rel (%p538) target = $region64
        $region63: #{tpu_custom_call.1} parent=11 // pred_region
          %542 = vsyncadd [#allocation16], 0
          %s543 = sshll.u32 %s13, 4
          %s544 = int_to_ptr.hbm [resolvable:$true] %s543
          %s545 = sshll.u32 [#allocation15], 4
          %s546 = int_to_ptr.vmem [resolvable:$true] %s545
          %551 = dma.hbm_to_vmem [thread:$0]  %s544, 1024, %s546, [#allocation16], 64, 64, 4
        $region64: #{tpu_custom_call.1} parent=11 // pred_fallthru
          _
        // Predicated region
        $region65: #{tpu_custom_call.1} parent=11 // pred_check
          %p552 = pneg %p353
        $region66: #{tpu_custom_call.1} parent=11 // pred_check_branch
          %554 = sbr.rel (%p552) target = $region68
        $region67: #{tpu_custom_call.1} parent=11 // pred_region
          _
        $region68: #{tpu_custom_call.1} parent=11 // pred_fallthru
          _
        // Predicated region
        $region69: #{tpu_custom_call.1} parent=11 // pred_check
          %p555 = pneg %p374
        $region70: #{tpu_custom_call.1} parent=11 // pred_check_branch
          %557 = sbr.rel (%p555) target = $region72
        $region71: #{tpu_custom_call.1} parent=11 // pred_region
          %559 = vsyncadd [#allocation16], 0
          %s560 = sshll.u32 %s15, 4
          %s561 = int_to_ptr.hbm [resolvable:$true] %s560
          %s562 = sshll.u32 [#allocation17], 4
          %s563 = int_to_ptr.vmem [resolvable:$true] %s562
          %568 = dma.hbm_to_vmem [thread:$0]  %s561, 1024, %s563, [#allocation16], 64, 64, 4
        $region72: #{tpu_custom_call.1} parent=11 // pred_fallthru
          _
        // Predicated region
        $region73: #{tpu_custom_call.1} parent=11 // pred_check
          %p569 = pneg %p395
        $region74: #{tpu_custom_call.1} parent=11 // pred_check_branch
          %571 = sbr.rel (%p569) target = $region76
        $region75: #{tpu_custom_call.1} parent=11 // pred_region
          _
        $region76: #{tpu_custom_call.1} parent=11 // pred_fallthru
          _
      $region12: #{tpu_custom_call.1} parent=5 // pred_fallthru
        _
      %p572 = scmp.lt.s32.totalorder %s33, 2
      // Predicated region
      $region77: #{tpu_custom_call.1} parent=5 // pred_check
        %p573 = pneg %p572
      $region78: #{tpu_custom_call.1} parent=5 // pred_check_branch
        %575 = sbr.rel (%p573) target = $region80
      $region79: #{tpu_custom_call.1} parent=5 // pred_region
        // Predicated region
        $region81: #{tpu_custom_call.1} parent=79 // pred_check
          %p576 = pneg %p53
        $region82: #{tpu_custom_call.1} parent=79 // pred_check_branch
          %578 = sbr.rel (%p576) target = $region84
        $region83: #{tpu_custom_call.1} parent=79 // pred_region
          %s579 = sand.u32 %s43, 1
          %s580 = scalar_lea.sflag [#allocation4], %s579
          %s581 = sand.u32 %s43, 1
          %s582 = smul.addr %s581, 128
          %s583 = scalar_lea.vmem [#allocation3], %s582
          %585 = vsyncadd %s580, 0
          %s586 = smul.addr %s33, 32
          %s587 = smul.addr %s586, 4
          %s588 = scalar_lea.hbm %s0, %s587
          %s589 = sshll.u32 %s588, 4
          %s590 = int_to_ptr.hbm [resolvable:$true] %s589
          %s591 = sshll.u32 %s583, 4
          %s592 = int_to_ptr.vmem [resolvable:$true] %s591
          %597 = dma.hbm_to_vmem [thread:$0]  %s590, 2048, %s592, %s580, 64, 64, 4
        $region84: #{tpu_custom_call.1} parent=79 // pred_fallthru
          _
      $region80: #{tpu_custom_call.1} parent=5 // pred_fallthru
        _
      %p598 = scmp.le.s32.totalorder 1, %s33
      %p599 = scmp.lt.s32.totalorder %s33, 3
      %p600 = pnand %p598, %p599
      %p601 = pneg %p600
      // Predicated region
      $region85: #{tpu_custom_call.1} parent=5 // pred_check
        _
      $region86: #{tpu_custom_call.1} parent=5 // pred_check_branch
        %603 = sbr.rel (%p600) target = $region88
      $region87: #{tpu_custom_call.1} parent=5 // pred_region
        %s604 = ssub.s32 %s33, 1
        %s605 = sand.u32 %s46, 1
        %s606 = scalar_lea.sflag [#allocation4], %s605
        %s607 = sand.u32 %s46, 1
        %s608 = smul.addr %s607, 128
        %s609 = scalar_lea.vmem [#allocation3], %s608
        // Predicated region
        $region89: #{tpu_custom_call.1} parent=87 // pred_check
          %p610 = pneg %p59
        $region90: #{tpu_custom_call.1} parent=87 // pred_check_branch
          %612 = sbr.rel (%p610) target = $region92
        $region91: #{tpu_custom_call.1} parent=87 // pred_region
          %614 = dma.done %s606, 2048
        $region92: #{tpu_custom_call.1} parent=87 // pred_fallthru
          _
        // Predicated region
        $region93: #{tpu_custom_call.1} parent=87 // pred_check
          %p615 = pneg %p80
        $region94: #{tpu_custom_call.1} parent=87 // pred_check_branch
          %617 = sbr.rel (%p615) target = $region96
        $region95: #{tpu_custom_call.1} parent=87 // pred_region
          %619 = dma.done [#allocation7], 1024
        $region96: #{tpu_custom_call.1} parent=87 // pred_fallthru
          _
        // Predicated region
        $region97: #{tpu_custom_call.1} parent=87 // pred_check
          %p620 = pneg %p122
        $region98: #{tpu_custom_call.1} parent=87 // pred_check_branch
          %622 = sbr.rel (%p620) target = $region100
        $region99: #{tpu_custom_call.1} parent=87 // pred_region
          %624 = dma.done [#allocation7], 9216
        $region100: #{tpu_custom_call.1} parent=87 // pred_fallthru
          _
        // Predicated region
        $region101: #{tpu_custom_call.1} parent=87 // pred_check
          %p625 = pneg %p164
        $region102: #{tpu_custom_call.1} parent=87 // pred_check_branch
          %627 = sbr.rel (%p625) target = $region104
        $region103: #{tpu_custom_call.1} parent=87 // pred_region
          %629 = dma.done [#allocation10], 1024
        $region104: #{tpu_custom_call.1} parent=87 // pred_fallthru
          _
        // Predicated region
        $region105: #{tpu_custom_call.1} parent=87 // pred_check
          %p630 = pneg %p206
        $region106: #{tpu_custom_call.1} parent=87 // pred_check_branch
          %632 = sbr.rel (%p630) target = $region108
        $region107: #{tpu_custom_call.1} parent=87 // pred_region
          %634 = dma.done [#allocation10], 1024
        $region108: #{tpu_custom_call.1} parent=87 // pred_fallthru
          _
        // Predicated region
        $region109: #{tpu_custom_call.1} parent=87 // pred_check
          %p635 = pneg %p248
        $region110: #{tpu_custom_call.1} parent=87 // pred_check_branch
          %637 = sbr.rel (%p635) target = $region112
        $region111: #{tpu_custom_call.1} parent=87 // pred_region
          %639 = dma.done [#allocation13], 1024
        $region112: #{tpu_custom_call.1} parent=87 // pred_fallthru
          _
        // Predicated region
        $region113: #{tpu_custom_call.1} parent=87 // pred_check
          %p640 = pneg %p290
        $region114: #{tpu_custom_call.1} parent=87 // pred_check_branch
          %642 = sbr.rel (%p640) target = $region116
        $region115: #{tpu_custom_call.1} parent=87 // pred_region
          %644 = dma.done [#allocation13], 1024
        $region116: #{tpu_custom_call.1} parent=87 // pred_fallthru
          _
        // Predicated region
        $region117: #{tpu_custom_call.1} parent=87 // pred_check
          %p645 = pneg %p332
        $region118: #{tpu_custom_call.1} parent=87 // pred_check_branch
          %647 = sbr.rel (%p645) target = $region120
        $region119: #{tpu_custom_call.1} parent=87 // pred_region
          %649 = dma.done [#allocation16], 1024
        $region120: #{tpu_custom_call.1} parent=87 // pred_fallthru
          _
        // Predicated region
        $region121: #{tpu_custom_call.1} parent=87 // pred_check
          %p650 = pneg %p374
        $region122: #{tpu_custom_call.1} parent=87 // pred_check_branch
          %652 = sbr.rel (%p650) target = $region124
        $region123: #{tpu_custom_call.1} parent=87 // pred_region
          %654 = dma.done [#allocation16], 1024
        $region124: #{tpu_custom_call.1} parent=87 // pred_fallthru
          _
        %s655 = sand.u32 %s46, 1
        %s656 = scalar_lea.sflag [#allocation4], %s655
        %s657 = sand.u32 %s46, 1
        %s658 = smul.addr %s657, 128
        %s659 = scalar_lea.vmem [#allocation3], %s658
        %p660 = pneg %p59
        %p661 = pneg %p56
        %p662 = pneg %p80
        %p663 = pneg %p77
        %p664 = pneg %p101
        %p665 = pneg %p98
        %p666 = pneg %p122
        %p667 = pneg %p119
        %p668 = pneg %p143
        %p669 = pneg %p140
        %p670 = pneg %p164
        %p671 = pneg %p161
        %p672 = pneg %p185
        %p673 = pneg %p182
        %p674 = pneg %p206
        %p675 = pneg %p203
        %p676 = pneg %p227
        %p677 = pneg %p224
        %p678 = pneg %p248
        %p679 = pneg %p245
        %p680 = pneg %p269
        %p681 = pneg %p266
        %p682 = pneg %p290
        %p683 = pneg %p287
        %p684 = pneg %p311
        %p685 = pneg %p308
        %p686 = pneg %p332
        %p687 = pneg %p329
        %p688 = pneg %p353
        %p689 = pneg %p350
        %p690 = pneg %p374
        %p691 = pneg %p371
        %p692 = pneg %p395
        %p693 = pneg %p392
        %p694 = pneg %p421
        %p695 = pneg %p418
        %s696 = sand.u32 %s408, 1
        %s697 = scalar_lea.sflag [#allocation5], %s696
        %s698 = sand.u32 %s408, 1
        %s699 = smul.addr %s698, 256
        %s700 = scalar_lea.vmem [#allocation18], %s699
        %v702 = vld [vmem:[%s609] sm:$0xf]
        %v703 = vld [vmem:[%s609 + $0x4] sm:$0xf]
        %v704 = vld [vmem:[%s609 + $0x8] sm:$0xf]
        %v705 = vld [vmem:[%s609 + $0xc] sm:$0xf]
        %v706 = vld [vmem:[%s609 + $0x10] sm:$0xf]
        %v707 = vld [vmem:[%s609 + $0x14] sm:$0xf]
        %v708 = vld [vmem:[%s609 + $0x18] sm:$0xf]
        %v709 = vld [vmem:[%s609 + $0x1c] sm:$0xf]
        %v710 = vld [vmem:[%s609 + $0x20] sm:$0xf]
        %v711 = vld [vmem:[%s609 + $0x24] sm:$0xf]
        %v712 = vld [vmem:[%s609 + $0x28] sm:$0xf]
        %v713 = vld [vmem:[%s609 + $0x2c] sm:$0xf]
        %v714 = vld [vmem:[%s609 + $0x30] sm:$0xf]
        %v715 = vld [vmem:[%s609 + $0x34] sm:$0xf]
        %v716 = vld [vmem:[%s609 + $0x38] sm:$0xf]
        %v717 = vld [vmem:[%s609 + $0x3c] sm:$0xf]
        %v718 = vld [vmem:[%s609 + $0x40] sm:$0xf]
        %v719 = vld [vmem:[%s609 + $0x44] sm:$0xf]
        %v720 = vld [vmem:[%s609 + $0x48] sm:$0xf]
        %v721 = vld [vmem:[%s609 + $0x4c] sm:$0xf]
        %v722 = vld [vmem:[%s609 + $0x50] sm:$0xf]
        %v723 = vld [vmem:[%s609 + $0x54] sm:$0xf]
        %v724 = vld [vmem:[%s609 + $0x58] sm:$0xf]
        %v725 = vld [vmem:[%s609 + $0x5c] sm:$0xf]
        %v726 = vld [vmem:[%s609 + $0x60] sm:$0xf]
        %v727 = vld [vmem:[%s609 + $0x64] sm:$0xf]
        %v728 = vld [vmem:[%s609 + $0x68] sm:$0xf]
        %v729 = vld [vmem:[%s609 + $0x6c] sm:$0xf]
        %v730 = vld [vmem:[%s609 + $0x70] sm:$0xf]
        %v731 = vld [vmem:[%s609 + $0x74] sm:$0xf]
        %v732 = vld [vmem:[%s609 + $0x78] sm:$0xf]
        %v733 = vld [vmem:[%s609 + $0x7c] sm:$0xf]
        %v734 = vld [vmem:[#allocation6] sm:$0xf]
        %v735 = vld [vmem:[#allocation6 + $0x4] sm:$0xf]
        %v736 = vld [vmem:[#allocation6 + $0x8] sm:$0xf]
        %v737 = vld [vmem:[#allocation6 + $0xc] sm:$0xf]
        %v738 = vld [vmem:[#allocation6 + $0x10] sm:$0xf]
        %v739 = vld [vmem:[#allocation6 + $0x14] sm:$0xf]
        %v740 = vld [vmem:[#allocation6 + $0x18] sm:$0xf]
        %v741 = vld [vmem:[#allocation6 + $0x1c] sm:$0xf]
        %v742 = vld [vmem:[#allocation6 + $0x20] sm:$0xf]
        %v743 = vld [vmem:[#allocation6 + $0x24] sm:$0xf]
        %v744 = vld [vmem:[#allocation6 + $0x28] sm:$0xf]
        %v745 = vld [vmem:[#allocation6 + $0x2c] sm:$0xf]
        %v746 = vld [vmem:[#allocation6 + $0x30] sm:$0xf]
        %v747 = vld [vmem:[#allocation6 + $0x34] sm:$0xf]
        %v748 = vld [vmem:[#allocation6 + $0x38] sm:$0xf]
        %v749 = vld [vmem:[#allocation6 + $0x3c] sm:$0xf]
        %v750 = vld [vmem:[%s2] sm:$0x1]
        %v752 = vperm.slane %v750, 0
        %v786 = vunpack.c.l.b16 %v702
        %v787 = vunpack.c.l.b16 %v703
        %v788 = vunpack.c.l.b16 %v704
        %v789 = vunpack.c.l.b16 %v705
        %v790 = vunpack.c.l.b16 %v706
        %v791 = vunpack.c.l.b16 %v707
        %v792 = vunpack.c.l.b16 %v708
        %v793 = vunpack.c.l.b16 %v709
        %v794 = vunpack.c.l.b16 %v710
        %v795 = vunpack.c.l.b16 %v711
        %v796 = vunpack.c.l.b16 %v712
        %v797 = vunpack.c.l.b16 %v713
        %v798 = vunpack.c.l.b16 %v714
        %v799 = vunpack.c.l.b16 %v715
        %v800 = vunpack.c.l.b16 %v716
        %v801 = vunpack.c.l.b16 %v717
        %v802 = vunpack.c.l.b16 %v718
        %v803 = vunpack.c.l.b16 %v719
        %v804 = vunpack.c.l.b16 %v720
        %v805 = vunpack.c.l.b16 %v721
        %v806 = vunpack.c.l.b16 %v722
        %v807 = vunpack.c.l.b16 %v723
        %v808 = vunpack.c.l.b16 %v724
        %v809 = vunpack.c.l.b16 %v725
        %v810 = vunpack.c.l.b16 %v726
        %v811 = vunpack.c.l.b16 %v727
        %v812 = vunpack.c.l.b16 %v728
        %v813 = vunpack.c.l.b16 %v729
        %v814 = vunpack.c.l.b16 %v730
        %v815 = vunpack.c.l.b16 %v731
        %v816 = vunpack.c.l.b16 %v732
        %v817 = vunpack.c.l.b16 %v733
        %v818 = vpack.c.b16 %v787, %v786
        %v819 = vpack.c.b16 %v789, %v788
        %v820 = vpack.c.b16 %v791, %v790
        %v821 = vpack.c.b16 %v793, %v792
        %v822 = vpack.c.b16 %v795, %v794
        %v823 = vpack.c.b16 %v797, %v796
        %v824 = vpack.c.b16 %v799, %v798
        %v825 = vpack.c.b16 %v801, %v800
        %v826 = vpack.c.b16 %v803, %v802
        %v827 = vpack.c.b16 %v805, %v804
        %v828 = vpack.c.b16 %v807, %v806
        %v829 = vpack.c.b16 %v809, %v808
        %v830 = vpack.c.b16 %v811, %v810
        %v831 = vpack.c.b16 %v813, %v812
        %v832 = vpack.c.b16 %v815, %v814
        %v833 = vpack.c.b16 %v817, %v816
        %v866 = vunpack.c.l.b16 %v734
        %v867 = vunpack.c.l.b16 %v735
        %v868 = vunpack.c.l.b16 %v736
        %v869 = vunpack.c.l.b16 %v737
        %v870 = vunpack.c.l.b16 %v738
        %v871 = vunpack.c.l.b16 %v739
        %v872 = vunpack.c.l.b16 %v740
        %v873 = vunpack.c.l.b16 %v741
        %v874 = vunpack.c.l.b16 %v742
        %v875 = vunpack.c.l.b16 %v743
        %v876 = vunpack.c.l.b16 %v744
        %v877 = vunpack.c.l.b16 %v745
        %v878 = vunpack.c.l.b16 %v746
        %v879 = vunpack.c.l.b16 %v747
        %v880 = vunpack.c.l.b16 %v748
        %v881 = vunpack.c.l.b16 %v749
        %v882 = vpack.c.b16 %v867, %v866
        %v883 = vpack.c.b16 %v869, %v868
        %v884 = vpack.c.b16 %v871, %v870
        %v885 = vpack.c.b16 %v873, %v872
        %v886 = vpack.c.b16 %v875, %v874
        %v887 = vpack.c.b16 %v877, %v876
        %v888 = vpack.c.b16 %v879, %v878
        %v889 = vpack.c.b16 %v881, %v880
        %898 = vmatpush.bf16.msra.mxu0 %v889
        %899 = vmatpush.bf16.msra.mxu0 %v888
        %900 = vmatpush.bf16.msra.mxu0 %v887
        %901 = vmatpush.bf16.msra.mxu0 %v886
        %902 = vmatpush.bf16.msra.mxu0 %v885
        %903 = vmatpush.bf16.msra.mxu0 %v884
        %904 = vmatpush.bf16.msra.mxu0 %v883
        %905 = vmatpush.bf16.msra.mxu0 %v882
        %906 = vmatmul.bf16.gmra.mxu0 %v818
        %v907 = vpop.f32.mrf.mxu0
        %v908 = vadd.f32 %v752, %v907
        %v909 = vpop.f32.mrf.mxu0
        %v910 = vadd.f32 %v752, %v909
        %911 = vmatmul.bf16.gmra.mxu0 %v819
        %v912 = vpop.f32.mrf.mxu0
        %v913 = vadd.f32 %v752, %v912
        %v914 = vpop.f32.mrf.mxu0
        %v915 = vadd.f32 %v752, %v914
        %916 = vmatmul.bf16.gmra.mxu0 %v820
        %v917 = vpop.f32.mrf.mxu0
        %v918 = vadd.f32 %v752, %v917
        %v919 = vpop.f32.mrf.mxu0
        %v920 = vadd.f32 %v752, %v919
        %921 = vmatmul.bf16.gmra.mxu0 %v821
        %v922 = vpop.f32.mrf.mxu0
        %v923 = vadd.f32 %v752, %v922
        %v924 = vpop.f32.mrf.mxu0
        %v925 = vadd.f32 %v752, %v924
        %926 = vmatmul.bf16.gmra.mxu0 %v822
        %v927 = vpop.f32.mrf.mxu0
        %v928 = vadd.f32 %v752, %v927
        %v929 = vpop.f32.mrf.mxu0
        %v930 = vadd.f32 %v752, %v929
        %931 = vmatmul.bf16.gmra.mxu0 %v823
        %v932 = vpop.f32.mrf.mxu0
        %v933 = vadd.f32 %v752, %v932
        %v934 = vpop.f32.mrf.mxu0
        %v935 = vadd.f32 %v752, %v934
        %936 = vmatmul.bf16.gmra.mxu0 %v824
        %v937 = vpop.f32.mrf.mxu0
        %v938 = vadd.f32 %v752, %v937
        %v939 = vpop.f32.mrf.mxu0
        %v940 = vadd.f32 %v752, %v939
        %941 = vmatmul.bf16.gmra.mxu0 %v825
        %v942 = vpop.f32.mrf.mxu0
        %v943 = vadd.f32 %v752, %v942
        %v944 = vpop.f32.mrf.mxu0
        %v945 = vadd.f32 %v752, %v944
        %946 = vmatmul.bf16.gmra.mxu0 %v826
        %v947 = vpop.f32.mrf.mxu0
        %v948 = vadd.f32 %v752, %v947
        %v949 = vpop.f32.mrf.mxu0
        %v950 = vadd.f32 %v752, %v949
        %951 = vmatmul.bf16.gmra.mxu0 %v827
        %v952 = vpop.f32.mrf.mxu0
        %v953 = vadd.f32 %v752, %v952
        %v954 = vpop.f32.mrf.mxu0
        %v955 = vadd.f32 %v752, %v954
        %956 = vmatmul.bf16.gmra.mxu0 %v828
        %v957 = vpop.f32.mrf.mxu0
        %v958 = vadd.f32 %v752, %v957
        %v959 = vpop.f32.mrf.mxu0
        %v960 = vadd.f32 %v752, %v959
        %961 = vmatmul.bf16.gmra.mxu0 %v829
        %v962 = vpop.f32.mrf.mxu0
        %v963 = vadd.f32 %v752, %v962
        %v964 = vpop.f32.mrf.mxu0
        %v965 = vadd.f32 %v752, %v964
        %966 = vmatmul.bf16.gmra.mxu0 %v830
        %v967 = vpop.f32.mrf.mxu0
        %v968 = vadd.f32 %v752, %v967
        %v969 = vpop.f32.mrf.mxu0
        %v970 = vadd.f32 %v752, %v969
        %971 = vmatmul.bf16.gmra.mxu0 %v831
        %v972 = vpop.f32.mrf.mxu0
        %v973 = vadd.f32 %v752, %v972
        %v974 = vpop.f32.mrf.mxu0
        %v975 = vadd.f32 %v752, %v974
        %976 = vmatmul.bf16.gmra.mxu0 %v832
        %v977 = vpop.f32.mrf.mxu0
        %v978 = vadd.f32 %v752, %v977
        %v979 = vpop.f32.mrf.mxu0
        %v980 = vadd.f32 %v752, %v979
        %981 = vmatmul.bf16.gmra.mxu0 %v833
        %v982 = vpop.f32.mrf.mxu0
        %v983 = vadd.f32 %v752, %v982
        %v984 = vpop.f32.mrf.mxu0
        %v985 = vadd.f32 %v752, %v984
        %986 = vdwg.mxu0
        %v987 = vand.u32 2147483647, %v908
        %v988 = vand.u32 2147483647, %v910
        %v989 = vand.u32 2147483647, %v913
        %v990 = vand.u32 2147483647, %v915
        %v991 = vand.u32 2147483647, %v918
        %v992 = vand.u32 2147483647, %v920
        %v993 = vand.u32 2147483647, %v923
        %v994 = vand.u32 2147483647, %v925
        %v995 = vand.u32 2147483647, %v928
        %v996 = vand.u32 2147483647, %v930
        %v997 = vand.u32 2147483647, %v933
        %v998 = vand.u32 2147483647, %v935
        %v999 = vand.u32 2147483647, %v938
        %v1000 = vand.u32 2147483647, %v940
        %v1001 = vand.u32 2147483647, %v943
        %v1002 = vand.u32 2147483647, %v945
        %v1003 = vand.u32 2147483647, %v948
        %v1004 = vand.u32 2147483647, %v950
        %v1005 = vand.u32 2147483647, %v953
        %v1006 = vand.u32 2147483647, %v955
        %v1007 = vand.u32 2147483647, %v958
        %v1008 = vand.u32 2147483647, %v960
        %v1009 = vand.u32 2147483647, %v963
        %v1010 = vand.u32 2147483647, %v965
        %v1011 = vand.u32 2147483647, %v968
        %v1012 = vand.u32 2147483647, %v970
        %v1013 = vand.u32 2147483647, %v973
        %v1014 = vand.u32 2147483647, %v975
        %v1015 = vand.u32 2147483647, %v978
        %v1016 = vand.u32 2147483647, %v980
        %v1017 = vand.u32 2147483647, %v983
        %v1018 = vand.u32 2147483647, %v985
        %v1019 = vsub.f32 0.0, %v987
        %v1020 = vsub.f32 0.0, %v988
        %v1021 = vsub.f32 0.0, %v989
        %v1022 = vsub.f32 0.0, %v990
        %v1023 = vsub.f32 0.0, %v991
        %v1024 = vsub.f32 0.0, %v992
        %v1025 = vsub.f32 0.0, %v993
        %v1026 = vsub.f32 0.0, %v994
        %v1027 = vsub.f32 0.0, %v995
        %v1028 = vsub.f32 0.0, %v996
        %v1029 = vsub.f32 0.0, %v997
        %v1030 = vsub.f32 0.0, %v998
        %v1031 = vsub.f32 0.0, %v999
        %v1032 = vsub.f32 0.0, %v1000
        %v1033 = vsub.f32 0.0, %v1001
        %v1034 = vsub.f32 0.0, %v1002
        %v1035 = vsub.f32 0.0, %v1003
        %v1036 = vsub.f32 0.0, %v1004
        %v1037 = vsub.f32 0.0, %v1005
        %v1038 = vsub.f32 0.0, %v1006
        %v1039 = vsub.f32 0.0, %v1007
        %v1040 = vsub.f32 0.0, %v1008
        %v1041 = vsub.f32 0.0, %v1009
        %v1042 = vsub.f32 0.0, %v1010
        %v1043 = vsub.f32 0.0, %v1011
        %v1044 = vsub.f32 0.0, %v1012
        %v1045 = vsub.f32 0.0, %v1013
        %v1046 = vsub.f32 0.0, %v1014
        %v1047 = vsub.f32 0.0, %v1015
        %v1048 = vsub.f32 0.0, %v1016
        %v1049 = vsub.f32 0.0, %v1017
        %v1050 = vsub.f32 0.0, %v1018
        %v1051 = vmul.f32 %v1019, 1.442695
        %v1052 = vpow.pop %v1051
        %v1053 = vmul.f32 %v1020, 1.442695
        %v1054 = vpow.pop %v1053
        %v1055 = vmul.f32 %v1021, 1.442695
        %v1056 = vpow.pop %v1055
        %v1057 = vmul.f32 %v1022, 1.442695
        %v1058 = vpow.pop %v1057
        %v1059 = vmul.f32 %v1023, 1.442695
        %v1060 = vpow.pop %v1059
        %v1061 = vmul.f32 %v1024, 1.442695
        %v1062 = vpow.pop %v1061
        %v1063 = vmul.f32 %v1025, 1.442695
        %v1064 = vpow.pop %v1063
        %v1065 = vmul.f32 %v1026, 1.442695
        %v1066 = vpow.pop %v1065
        %v1067 = vmul.f32 %v1027, 1.442695
        %v1068 = vpow.pop %v1067
        %v1069 = vmul.f32 %v1028, 1.442695
        %v1070 = vpow.pop %v1069
        %v1071 = vmul.f32 %v1029, 1.442695
        %v1072 = vpow.pop %v1071
        %v1073 = vmul.f32 %v1030, 1.442695
        %v1074 = vpow.pop %v1073
        %v1075 = vmul.f32 %v1031, 1.442695
        %v1076 = vpow.pop %v1075
        %v1077 = vmul.f32 %v1032, 1.442695
        %v1078 = vpow.pop %v1077
        %v1079 = vmul.f32 %v1033, 1.442695
        %v1080 = vpow.pop %v1079
        %v1081 = vmul.f32 %v1034, 1.442695
        %v1082 = vpow.pop %v1081
        %v1083 = vmul.f32 %v1035, 1.442695
        %v1084 = vpow.pop %v1083
        %v1085 = vmul.f32 %v1036, 1.442695
        %v1086 = vpow.pop %v1085
        %v1087 = vmul.f32 %v1037, 1.442695
        %v1088 = vpow.pop %v1087
        %v1089 = vmul.f32 %v1038, 1.442695
        %v1090 = vpow.pop %v1089
        %v1091 = vmul.f32 %v1039, 1.442695
        %v1092 = vpow.pop %v1091
        %v1093 = vmul.f32 %v1040, 1.442695
        %v1094 = vpow.pop %v1093
        %v1095 = vmul.f32 %v1041, 1.442695
        %v1096 = vpow.pop %v1095
        %v1097 = vmul.f32 %v1042, 1.442695
        %v1098 = vpow.pop %v1097
        %v1099 = vmul.f32 %v1043, 1.442695
        %v1100 = vpow.pop %v1099
        %v1101 = vmul.f32 %v1044, 1.442695
        %v1102 = vpow.pop %v1101
        %v1103 = vmul.f32 %v1045, 1.442695
        %v1104 = vpow.pop %v1103
        %v1105 = vmul.f32 %v1046, 1.442695
        %v1106 = vpow.pop %v1105
        %v1107 = vmul.f32 %v1047, 1.442695
        %v1108 = vpow.pop %v1107
        %v1109 = vmul.f32 %v1048, 1.442695
        %v1110 = vpow.pop %v1109
        %v1111 = vmul.f32 %v1049, 1.442695
        %v1112 = vpow.pop %v1111
        %v1113 = vmul.f32 %v1050, 1.442695
        %v1114 = vpow.pop %v1113
        %v1115 = vadd.f32 %v1052, 1.0
        %v1116 = vadd.f32 %v1054, 1.0
        %v1117 = vadd.f32 %v1056, 1.0
        %v1118 = vadd.f32 %v1058, 1.0
        %v1119 = vadd.f32 %v1060, 1.0
        %v1120 = vadd.f32 %v1062, 1.0
        %v1121 = vadd.f32 %v1064, 1.0
        %v1122 = vadd.f32 %v1066, 1.0
        %v1123 = vadd.f32 %v1068, 1.0
        %v1124 = vadd.f32 %v1070, 1.0
        %v1125 = vadd.f32 %v1072, 1.0
        %v1126 = vadd.f32 %v1074, 1.0
        %v1127 = vadd.f32 %v1076, 1.0
        %v1128 = vadd.f32 %v1078, 1.0
        %v1129 = vadd.f32 %v1080, 1.0
        %v1130 = vadd.f32 %v1082, 1.0
        %v1131 = vadd.f32 %v1084, 1.0
        %v1132 = vadd.f32 %v1086, 1.0
        %v1133 = vadd.f32 %v1088, 1.0
        %v1134 = vadd.f32 %v1090, 1.0
        %v1135 = vadd.f32 %v1092, 1.0
        %v1136 = vadd.f32 %v1094, 1.0
        %v1137 = vadd.f32 %v1096, 1.0
        %v1138 = vadd.f32 %v1098, 1.0
        %v1139 = vadd.f32 %v1100, 1.0
        %v1140 = vadd.f32 %v1102, 1.0
        %v1141 = vadd.f32 %v1104, 1.0
        %v1142 = vadd.f32 %v1106, 1.0
        %v1143 = vadd.f32 %v1108, 1.0
        %v1144 = vadd.f32 %v1110, 1.0
        %v1145 = vadd.f32 %v1112, 1.0
        %v1146 = vadd.f32 %v1114, 1.0
        %v1147 = vrcp.pop %v1115
        %v1148 = vrcp.pop %v1116
        %v1149 = vrcp.pop %v1117
        %v1150 = vrcp.pop %v1118
        %v1151 = vrcp.pop %v1119
        %v1152 = vrcp.pop %v1120
        %v1153 = vrcp.pop %v1121
        %v1154 = vrcp.pop %v1122
        %v1155 = vrcp.pop %v1123
        %v1156 = vrcp.pop %v1124
        %v1157 = vrcp.pop %v1125
        %v1158 = vrcp.pop %v1126
        %v1159 = vrcp.pop %v1127
        %v1160 = vrcp.pop %v1128
        %v1161 = vrcp.pop %v1129
        %v1162 = vrcp.pop %v1130
        %v1163 = vrcp.pop %v1131
        %v1164 = vrcp.pop %v1132
        %v1165 = vrcp.pop %v1133
        %v1166 = vrcp.pop %v1134
        %v1167 = vrcp.pop %v1135
        %v1168 = vrcp.pop %v1136
        %v1169 = vrcp.pop %v1137
        %v1170 = vrcp.pop %v1138
        %v1171 = vrcp.pop %v1139
        %v1172 = vrcp.pop %v1140
        %v1173 = vrcp.pop %v1141
        %v1174 = vrcp.pop %v1142
        %v1175 = vrcp.pop %v1143
        %v1176 = vrcp.pop %v1144
        %v1177 = vrcp.pop %v1145
        %v1178 = vrcp.pop %v1146
        %vm1179 = vcmp.ge.f32.partialorder %v908, 0.0
        %vm1180 = vcmp.ge.f32.partialorder %v910, 0.0
        %vm1181 = vcmp.ge.f32.partialorder %v913, 0.0
        %vm1182 = vcmp.ge.f32.partialorder %v915, 0.0
        %vm1183 = vcmp.ge.f32.partialorder %v918, 0.0
        %vm1184 = vcmp.ge.f32.partialorder %v920, 0.0
        %vm1185 = vcmp.ge.f32.partialorder %v923, 0.0
        %vm1186 = vcmp.ge.f32.partialorder %v925, 0.0
        %vm1187 = vcmp.ge.f32.partialorder %v928, 0.0
        %vm1188 = vcmp.ge.f32.partialorder %v930, 0.0
        %vm1189 = vcmp.ge.f32.partialorder %v933, 0.0
        %vm1190 = vcmp.ge.f32.partialorder %v935, 0.0
        %vm1191 = vcmp.ge.f32.partialorder %v938, 0.0
        %vm1192 = vcmp.ge.f32.partialorder %v940, 0.0
        %vm1193 = vcmp.ge.f32.partialorder %v943, 0.0
        %vm1194 = vcmp.ge.f32.partialorder %v945, 0.0
        %vm1195 = vcmp.ge.f32.partialorder %v948, 0.0
        %vm1196 = vcmp.ge.f32.partialorder %v950, 0.0
        %vm1197 = vcmp.ge.f32.partialorder %v953, 0.0
        %vm1198 = vcmp.ge.f32.partialorder %v955, 0.0
        %vm1199 = vcmp.ge.f32.partialorder %v958, 0.0
        %vm1200 = vcmp.ge.f32.partialorder %v960, 0.0
        %vm1201 = vcmp.ge.f32.partialorder %v963, 0.0
        %vm1202 = vcmp.ge.f32.partialorder %v965, 0.0
        %vm1203 = vcmp.ge.f32.partialorder %v968, 0.0
        %vm1204 = vcmp.ge.f32.partialorder %v970, 0.0
        %vm1205 = vcmp.ge.f32.partialorder %v973, 0.0
        %vm1206 = vcmp.ge.f32.partialorder %v975, 0.0
        %vm1207 = vcmp.ge.f32.partialorder %v978, 0.0
        %vm1208 = vcmp.ge.f32.partialorder %v980, 0.0
        %vm1209 = vcmp.ge.f32.partialorder %v983, 0.0
        %vm1210 = vcmp.ge.f32.partialorder %v985, 0.0
        %v1211 = vmul.f32 %v1052, %v1147
        %v1212 = vmul.f32 %v1054, %v1148
        %v1213 = vmul.f32 %v1056, %v1149
        %v1214 = vmul.f32 %v1058, %v1150
        %v1215 = vmul.f32 %v1060, %v1151
        %v1216 = vmul.f32 %v1062, %v1152
        %v1217 = vmul.f32 %v1064, %v1153
        %v1218 = vmul.f32 %v1066, %v1154
        %v1219 = vmul.f32 %v1068, %v1155
        %v1220 = vmul.f32 %v1070, %v1156
        %v1221 = vmul.f32 %v1072, %v1157
        %v1222 = vmul.f32 %v1074, %v1158
        %v1223 = vmul.f32 %v1076, %v1159
        %v1224 = vmul.f32 %v1078, %v1160
        %v1225 = vmul.f32 %v1080, %v1161
        %v1226 = vmul.f32 %v1082, %v1162
        %v1227 = vmul.f32 %v1084, %v1163
        %v1228 = vmul.f32 %v1086, %v1164
        %v1229 = vmul.f32 %v1088, %v1165
        %v1230 = vmul.f32 %v1090, %v1166
        %v1231 = vmul.f32 %v1092, %v1167
        %v1232 = vmul.f32 %v1094, %v1168
        %v1233 = vmul.f32 %v1096, %v1169
        %v1234 = vmul.f32 %v1098, %v1170
        %v1235 = vmul.f32 %v1100, %v1171
        %v1236 = vmul.f32 %v1102, %v1172
        %v1237 = vmul.f32 %v1104, %v1173
        %v1238 = vmul.f32 %v1106, %v1174
        %v1239 = vmul.f32 %v1108, %v1175
        %v1240 = vmul.f32 %v1110, %v1176
        %v1241 = vmul.f32 %v1112, %v1177
        %v1242 = vmul.f32 %v1114, %v1178
        %v1243 = vsel %vm1179, %v1147, %v1211
        %v1244 = vsel %vm1180, %v1148, %v1212
        %v1245 = vsel %vm1181, %v1149, %v1213
        %v1246 = vsel %vm1182, %v1150, %v1214
        %v1247 = vsel %vm1183, %v1151, %v1215
        %v1248 = vsel %vm1184, %v1152, %v1216
        %v1249 = vsel %vm1185, %v1153, %v1217
        %v1250 = vsel %vm1186, %v1154, %v1218
        %v1251 = vsel %vm1187, %v1155, %v1219
        %v1252 = vsel %vm1188, %v1156, %v1220
        %v1253 = vsel %vm1189, %v1157, %v1221
        %v1254 = vsel %vm1190, %v1158, %v1222
        %v1255 = vsel %vm1191, %v1159, %v1223
        %v1256 = vsel %vm1192, %v1160, %v1224
        %v1257 = vsel %vm1193, %v1161, %v1225
        %v1258 = vsel %vm1194, %v1162, %v1226
        %v1259 = vsel %vm1195, %v1163, %v1227
        %v1260 = vsel %vm1196, %v1164, %v1228
        %v1261 = vsel %vm1197, %v1165, %v1229
        %v1262 = vsel %vm1198, %v1166, %v1230
        %v1263 = vsel %vm1199, %v1167, %v1231
        %v1264 = vsel %vm1200, %v1168, %v1232
        %v1265 = vsel %vm1201, %v1169, %v1233
        %v1266 = vsel %vm1202, %v1170, %v1234
        %v1267 = vsel %vm1203, %v1171, %v1235
        %v1268 = vsel %vm1204, %v1172, %v1236
        %v1269 = vsel %vm1205, %v1173, %v1237
        %v1270 = vsel %vm1206, %v1174, %v1238
        %v1271 = vsel %vm1207, %v1175, %v1239
        %v1272 = vsel %vm1208, %v1176, %v1240
        %v1273 = vsel %vm1209, %v1177, %v1241
        %v1274 = vsel %vm1210, %v1178, %v1242
        %v1275 = vmul.f32 %v908, %v1243
        %v1276 = vmul.f32 %v910, %v1244
        %v1277 = vmul.f32 %v913, %v1245
        %v1278 = vmul.f32 %v915, %v1246
        %v1279 = vmul.f32 %v918, %v1247
        %v1280 = vmul.f32 %v920, %v1248
        %v1281 = vmul.f32 %v923, %v1249
        %v1282 = vmul.f32 %v925, %v1250
        %v1283 = vmul.f32 %v928, %v1251
        %v1284 = vmul.f32 %v930, %v1252
        %v1285 = vmul.f32 %v933, %v1253
        %v1286 = vmul.f32 %v935, %v1254
        %v1287 = vmul.f32 %v938, %v1255
        %v1288 = vmul.f32 %v940, %v1256
        %v1289 = vmul.f32 %v943, %v1257
        %v1290 = vmul.f32 %v945, %v1258
        %v1291 = vmul.f32 %v948, %v1259
        %v1292 = vmul.f32 %v950, %v1260
        %v1293 = vmul.f32 %v953, %v1261
        %v1294 = vmul.f32 %v955, %v1262
        %v1295 = vmul.f32 %v958, %v1263
        %v1296 = vmul.f32 %v960, %v1264
        %v1297 = vmul.f32 %v963, %v1265
        %v1298 = vmul.f32 %v965, %v1266
        %v1299 = vmul.f32 %v968, %v1267
        %v1300 = vmul.f32 %v970, %v1268
        %v1301 = vmul.f32 %v973, %v1269
        %v1302 = vmul.f32 %v975, %v1270
        %v1303 = vmul.f32 %v978, %v1271
        %v1304 = vmul.f32 %v980, %v1272
        %v1305 = vmul.f32 %v983, %v1273
        %v1306 = vmul.f32 %v985, %v1274
        %v1307 = vpack.c.bf16 %v1275, %v1275
        %v1308 = vpack.c.bf16 %v1276, %v1276
        %v1309 = vpack.c.bf16 %v1277, %v1277
        %v1310 = vpack.c.bf16 %v1278, %v1278
        %v1311 = vpack.c.bf16 %v1279, %v1279
        %v1312 = vpack.c.bf16 %v1280, %v1280
        %v1313 = vpack.c.bf16 %v1281, %v1281
        %v1314 = vpack.c.bf16 %v1282, %v1282
        %v1315 = vpack.c.bf16 %v1283, %v1283
        %v1316 = vpack.c.bf16 %v1284, %v1284
        %v1317 = vpack.c.bf16 %v1285, %v1285
        %v1318 = vpack.c.bf16 %v1286, %v1286
        %v1319 = vpack.c.bf16 %v1287, %v1287
        %v1320 = vpack.c.bf16 %v1288, %v1288
        %v1321 = vpack.c.bf16 %v1289, %v1289
        %v1322 = vpack.c.bf16 %v1290, %v1290
        %v1323 = vpack.c.bf16 %v1291, %v1291
        %v1324 = vpack.c.bf16 %v1292, %v1292
        %v1325 = vpack.c.bf16 %v1293, %v1293
        %v1326 = vpack.c.bf16 %v1294, %v1294
        %v1327 = vpack.c.bf16 %v1295, %v1295
        %v1328 = vpack.c.bf16 %v1296, %v1296
        %v1329 = vpack.c.bf16 %v1297, %v1297
        %v1330 = vpack.c.bf16 %v1298, %v1298
        %v1331 = vpack.c.bf16 %v1299, %v1299
        %v1332 = vpack.c.bf16 %v1300, %v1300
        %v1333 = vpack.c.bf16 %v1301, %v1301
        %v1334 = vpack.c.bf16 %v1302, %v1302
        %v1335 = vpack.c.bf16 %v1303, %v1303
        %v1336 = vpack.c.bf16 %v1304, %v1304
        %v1337 = vpack.c.bf16 %v1305, %v1305
        %v1338 = vpack.c.bf16 %v1306, %v1306
        %1339 = vst [vmem:[#allocation2] sm:$0xf] 0
        %1340 = vst [vmem:[#allocation2 + $0x4] sm:$0xf] 0
        %1341 = vst [vmem:[#allocation2 + $0x8] sm:$0xf] 0
        %1342 = vst [vmem:[#allocation2 + $0xc] sm:$0xf] 0
        %1343 = vst [vmem:[#allocation2 + $0x90] sm:$0xf] 0
        %1344 = vst [vmem:[#allocation2 + $0x94] sm:$0xf] 0
        %1345 = vst [vmem:[#allocation2 + $0x98] sm:$0xf] 0
        %1346 = vst [vmem:[#allocation2 + $0x9c] sm:$0xf] 0
        %1347 = vst [vmem:[#allocation2 + $0x10] sm:$0xf] %v1307
        %1348 = vst [vmem:[#allocation2 + $0x14] sm:$0xf] %v1308
        %1349 = vst [vmem:[#allocation2 + $0x18] sm:$0xf] %v1309
        %1350 = vst [vmem:[#allocation2 + $0x1c] sm:$0xf] %v1310
        %1351 = vst [vmem:[#allocation2 + $0x20] sm:$0xf] %v1311
        %1352 = vst [vmem:[#allocation2 + $0x24] sm:$0xf] %v1312
        %1353 = vst [vmem:[#allocation2 + $0x28] sm:$0xf] %v1313
        %1354 = vst [vmem:[#allocation2 + $0x2c] sm:$0xf] %v1314
        %1355 = vst [vmem:[#allocation2 + $0x30] sm:$0xf] %v1315
        %1356 = vst [vmem:[#allocation2 + $0x34] sm:$0xf] %v1316
        %1357 = vst [vmem:[#allocation2 + $0x38] sm:$0xf] %v1317
        %1358 = vst [vmem:[#allocation2 + $0x3c] sm:$0xf] %v1318
        %1359 = vst [vmem:[#allocation2 + $0x40] sm:$0xf] %v1319
        %1360 = vst [vmem:[#allocation2 + $0x44] sm:$0xf] %v1320
        %1361 = vst [vmem:[#allocation2 + $0x48] sm:$0xf] %v1321
        %1362 = vst [vmem:[#allocation2 + $0x4c] sm:$0xf] %v1322
        %1363 = vst [vmem:[#allocation2 + $0x50] sm:$0xf] %v1323
        %1364 = vst [vmem:[#allocation2 + $0x54] sm:$0xf] %v1324
        %1365 = vst [vmem:[#allocation2 + $0x58] sm:$0xf] %v1325
        %1366 = vst [vmem:[#allocation2 + $0x5c] sm:$0xf] %v1326
        %1367 = vst [vmem:[#allocation2 + $0x60] sm:$0xf] %v1327
        %1368 = vst [vmem:[#allocation2 + $0x64] sm:$0xf] %v1328
        %1369 = vst [vmem:[#allocation2 + $0x68] sm:$0xf] %v1329
        %1370 = vst [vmem:[#allocation2 + $0x6c] sm:$0xf] %v1330
        %1371 = vst [vmem:[#allocation2 + $0x70] sm:$0xf] %v1331
        %1372 = vst [vmem:[#allocation2 + $0x74] sm:$0xf] %v1332
        %1373 = vst [vmem:[#allocation2 + $0x78] sm:$0xf] %v1333
        %1374 = vst [vmem:[#allocation2 + $0x7c] sm:$0xf] %v1334
        %1375 = vst [vmem:[#allocation2 + $0x80] sm:$0xf] %v1335
        %1376 = vst [vmem:[#allocation2 + $0x84] sm:$0xf] %v1336
        %1377 = vst [vmem:[#allocation2 + $0x88] sm:$0xf] %v1337
        %1378 = vst [vmem:[#allocation2 + $0x8c] sm:$0xf] %v1338
        %v1379 = vlaneseq
        %v1380 = vshrl.u32 %v1379, 7
        %v1381 = vadd.s32 %v1380, 8
        %v1382 = vadd.s32 %v1380, 16
        %v1383 = vadd.s32 %v1380, 24
        %v1384 = vadd.s32 %v1380, 32
        %v1385 = vadd.s32 %v1380, 40
        %v1386 = vadd.s32 %v1380, 48
        %v1387 = vadd.s32 %v1380, 56
        %v1388 = vadd.s32 %v1380, 64
        %v1389 = vadd.s32 %v1380, 72
        %v1390 = vadd.s32 %v1380, 80
        %v1391 = vadd.s32 %v1380, 88
        %v1392 = vadd.s32 %v1380, 96
        %v1393 = vadd.s32 %v1380, 104
        %v1394 = vadd.s32 %v1380, 112
        %v1395 = vadd.s32 %v1380, 120
        %v1396 = vadd.s32 %v1380, 128
        %v1397 = vadd.s32 %v1380, 136
        %v1398 = vadd.s32 %v1380, 144
        %v1399 = vadd.s32 %v1380, 152
        %v1400 = vadd.s32 %v1380, 160
        %v1401 = vadd.s32 %v1380, 168
        %v1402 = vadd.s32 %v1380, 176
        %v1403 = vadd.s32 %v1380, 184
        %v1404 = vadd.s32 %v1380, 192
        %v1405 = vadd.s32 %v1380, 200
        %v1406 = vadd.s32 %v1380, 208
        %v1407 = vadd.s32 %v1380, 216
        %v1408 = vadd.s32 %v1380, 224
        %v1409 = vadd.s32 %v1380, 232
        %v1410 = vadd.s32 %v1380, 240
        %v1411 = vadd.s32 %v1380, 248
        %vm1412 = vcmp.lt.s32.totalorder %v1380, 0
        %v1413 = vsub.s32 0, %v1380
        %v1414 = vsel %vm1412, %v1413, %v1380
        %v1415 = vshrl.u32 %v1414, 4
        %v1416 = vand.u32 %v1414, 15
        %v1417 = vsub.s32 0, %v1416
        %v1418 = vsel %vm1412, %v1417, %v1416
        %vm1419 = vcmp.lt.s32.totalorder %v1381, 0
        %v1420 = vsub.s32 0, %v1381
        %v1421 = vsel %vm1419, %v1420, %v1381
        %v1422 = vshrl.u32 %v1421, 4
        %v1423 = vand.u32 %v1421, 15
        %v1424 = vsub.s32 0, %v1423
        %v1425 = vsel %vm1419, %v1424, %v1423
        %vm1426 = vcmp.lt.s32.totalorder %v1382, 0
        %v1427 = vsub.s32 0, %v1382
        %v1428 = vsel %vm1426, %v1427, %v1382
        %v1429 = vshrl.u32 %v1428, 4
        %v1430 = vand.u32 %v1428, 15
        %v1431 = vsub.s32 0, %v1430
        %v1432 = vsel %vm1426, %v1431, %v1430
        %vm1433 = vcmp.lt.s32.totalorder %v1383, 0
        %v1434 = vsub.s32 0, %v1383
        %v1435 = vsel %vm1433, %v1434, %v1383
        %v1436 = vshrl.u32 %v1435, 4
        %v1437 = vand.u32 %v1435, 15
        %v1438 = vsub.s32 0, %v1437
        %v1439 = vsel %vm1433, %v1438, %v1437
        %vm1440 = vcmp.lt.s32.totalorder %v1384, 0
        %v1441 = vsub.s32 0, %v1384
        %v1442 = vsel %vm1440, %v1441, %v1384
        %v1443 = vshrl.u32 %v1442, 4
        %v1444 = vand.u32 %v1442, 15
        %v1445 = vsub.s32 0, %v1444
        %v1446 = vsel %vm1440, %v1445, %v1444
        %vm1447 = vcmp.lt.s32.totalorder %v1385, 0
        %v1448 = vsub.s32 0, %v1385
        %v1449 = vsel %vm1447, %v1448, %v1385
        %v1450 = vshrl.u32 %v1449, 4
        %v1451 = vand.u32 %v1449, 15
        %v1452 = vsub.s32 0, %v1451
        %v1453 = vsel %vm1447, %v1452, %v1451
        %vm1454 = vcmp.lt.s32.totalorder %v1386, 0
        %v1455 = vsub.s32 0, %v1386
        %v1456 = vsel %vm1454, %v1455, %v1386
        %v1457 = vshrl.u32 %v1456, 4
        %v1458 = vand.u32 %v1456, 15
        %v1459 = vsub.s32 0, %v1458
        %v1460 = vsel %vm1454, %v1459, %v1458
        %vm1461 = vcmp.lt.s32.totalorder %v1387, 0
        %v1462 = vsub.s32 0, %v1387
        %v1463 = vsel %vm1461, %v1462, %v1387
        %v1464 = vshrl.u32 %v1463, 4
        %v1465 = vand.u32 %v1463, 15
        %v1466 = vsub.s32 0, %v1465
        %v1467 = vsel %vm1461, %v1466, %v1465
        %vm1468 = vcmp.lt.s32.totalorder %v1388, 0
        %v1469 = vsub.s32 0, %v1388
        %v1470 = vsel %vm1468, %v1469, %v1388
        %v1471 = vshrl.u32 %v1470, 4
        %v1472 = vand.u32 %v1470, 15
        %v1473 = vsub.s32 0, %v1472
        %v1474 = vsel %vm1468, %v1473, %v1472
        %vm1475 = vcmp.lt.s32.totalorder %v1389, 0
        %v1476 = vsub.s32 0, %v1389
        %v1477 = vsel %vm1475, %v1476, %v1389
        %v1478 = vshrl.u32 %v1477, 4
        %v1479 = vand.u32 %v1477, 15
        %v1480 = vsub.s32 0, %v1479
        %v1481 = vsel %vm1475, %v1480, %v1479
        %vm1482 = vcmp.lt.s32.totalorder %v1390, 0
        %v1483 = vsub.s32 0, %v1390
        %v1484 = vsel %vm1482, %v1483, %v1390
        %v1485 = vshrl.u32 %v1484, 4
        %v1486 = vand.u32 %v1484, 15
        %v1487 = vsub.s32 0, %v1486
        %v1488 = vsel %vm1482, %v1487, %v1486
        %vm1489 = vcmp.lt.s32.totalorder %v1391, 0
        %v1490 = vsub.s32 0, %v1391
        %v1491 = vsel %vm1489, %v1490, %v1391
        %v1492 = vshrl.u32 %v1491, 4
        %v1493 = vand.u32 %v1491, 15
        %v1494 = vsub.s32 0, %v1493
        %v1495 = vsel %vm1489, %v1494, %v1493
        %vm1496 = vcmp.lt.s32.totalorder %v1392, 0
        %v1497 = vsub.s32 0, %v1392
        %v1498 = vsel %vm1496, %v1497, %v1392
        %v1499 = vshrl.u32 %v1498, 4
        %v1500 = vand.u32 %v1498, 15
        %v1501 = vsub.s32 0, %v1500
        %v1502 = vsel %vm1496, %v1501, %v1500
        %vm1503 = vcmp.lt.s32.totalorder %v1393, 0
        %v1504 = vsub.s32 0, %v1393
        %v1505 = vsel %vm1503, %v1504, %v1393
        %v1506 = vshrl.u32 %v1505, 4
        %v1507 = vand.u32 %v1505, 15
        %v1508 = vsub.s32 0, %v1507
        %v1509 = vsel %vm1503, %v1508, %v1507
        %vm1510 = vcmp.lt.s32.totalorder %v1394, 0
        %v1511 = vsub.s32 0, %v1394
        %v1512 = vsel %vm1510, %v1511, %v1394
        %v1513 = vshrl.u32 %v1512, 4
        %v1514 = vand.u32 %v1512, 15
        %v1515 = vsub.s32 0, %v1514
        %v1516 = vsel %vm1510, %v1515, %v1514
        %vm1517 = vcmp.lt.s32.totalorder %v1395, 0
        %v1518 = vsub.s32 0, %v1395
        %v1519 = vsel %vm1517, %v1518, %v1395
        %v1520 = vshrl.u32 %v1519, 4
        %v1521 = vand.u32 %v1519, 15
        %v1522 = vsub.s32 0, %v1521
        %v1523 = vsel %vm1517, %v1522, %v1521
        %vm1524 = vcmp.lt.s32.totalorder %v1396, 0
        %v1525 = vsub.s32 0, %v1396
        %v1526 = vsel %vm1524, %v1525, %v1396
        %v1527 = vshrl.u32 %v1526, 4
        %v1528 = vand.u32 %v1526, 15
        %v1529 = vsub.s32 0, %v1528
        %v1530 = vsel %vm1524, %v1529, %v1528
        %vm1531 = vcmp.lt.s32.totalorder %v1397, 0
        %v1532 = vsub.s32 0, %v1397
        %v1533 = vsel %vm1531, %v1532, %v1397
        %v1534 = vshrl.u32 %v1533, 4
        %v1535 = vand.u32 %v1533, 15
        %v1536 = vsub.s32 0, %v1535
        %v1537 = vsel %vm1531, %v1536, %v1535
        %vm1538 = vcmp.lt.s32.totalorder %v1398, 0
        %v1539 = vsub.s32 0, %v1398
        %v1540 = vsel %vm1538, %v1539, %v1398
        %v1541 = vshrl.u32 %v1540, 4
        %v1542 = vand.u32 %v1540, 15
        %v1543 = vsub.s32 0, %v1542
        %v1544 = vsel %vm1538, %v1543, %v1542
        %vm1545 = vcmp.lt.s32.totalorder %v1399, 0
        %v1546 = vsub.s32 0, %v1399
        %v1547 = vsel %vm1545, %v1546, %v1399
        %v1548 = vshrl.u32 %v1547, 4
        %v1549 = vand.u32 %v1547, 15
        %v1550 = vsub.s32 0, %v1549
        %v1551 = vsel %vm1545, %v1550, %v1549
        %vm1552 = vcmp.lt.s32.totalorder %v1400, 0
        %v1553 = vsub.s32 0, %v1400
        %v1554 = vsel %vm1552, %v1553, %v1400
        %v1555 = vshrl.u32 %v1554, 4
        %v1556 = vand.u32 %v1554, 15
        %v1557 = vsub.s32 0, %v1556
        %v1558 = vsel %vm1552, %v1557, %v1556
        %vm1559 = vcmp.lt.s32.totalorder %v1401, 0
        %v1560 = vsub.s32 0, %v1401
        %v1561 = vsel %vm1559, %v1560, %v1401
        %v1562 = vshrl.u32 %v1561, 4
        %v1563 = vand.u32 %v1561, 15
        %v1564 = vsub.s32 0, %v1563
        %v1565 = vsel %vm1559, %v1564, %v1563
        %vm1566 = vcmp.lt.s32.totalorder %v1402, 0
        %v1567 = vsub.s32 0, %v1402
        %v1568 = vsel %vm1566, %v1567, %v1402
        %v1569 = vshrl.u32 %v1568, 4
        %v1570 = vand.u32 %v1568, 15
        %v1571 = vsub.s32 0, %v1570
        %v1572 = vsel %vm1566, %v1571, %v1570
        %vm1573 = vcmp.lt.s32.totalorder %v1403, 0
        %v1574 = vsub.s32 0, %v1403
        %v1575 = vsel %vm1573, %v1574, %v1403
        %v1576 = vshrl.u32 %v1575, 4
        %v1577 = vand.u32 %v1575, 15
        %v1578 = vsub.s32 0, %v1577
        %v1579 = vsel %vm1573, %v1578, %v1577
        %vm1580 = vcmp.lt.s32.totalorder %v1404, 0
        %v1581 = vsub.s32 0, %v1404
        %v1582 = vsel %vm1580, %v1581, %v1404
        %v1583 = vshrl.u32 %v1582, 4
        %v1584 = vand.u32 %v1582, 15
        %v1585 = vsub.s32 0, %v1584
        %v1586 = vsel %vm1580, %v1585, %v1584
        %vm1587 = vcmp.lt.s32.totalorder %v1405, 0
        %v1588 = vsub.s32 0, %v1405
        %v1589 = vsel %vm1587, %v1588, %v1405
        %v1590 = vshrl.u32 %v1589, 4
        %v1591 = vand.u32 %v1589, 15
        %v1592 = vsub.s32 0, %v1591
        %v1593 = vsel %vm1587, %v1592, %v1591
        %vm1594 = vcmp.lt.s32.totalorder %v1406, 0
        %v1595 = vsub.s32 0, %v1406
        %v1596 = vsel %vm1594, %v1595, %v1406
        %v1597 = vshrl.u32 %v1596, 4
        %v1598 = vand.u32 %v1596, 15
        %v1599 = vsub.s32 0, %v1598
        %v1600 = vsel %vm1594, %v1599, %v1598
        %vm1601 = vcmp.lt.s32.totalorder %v1407, 0
        %v1602 = vsub.s32 0, %v1407
        %v1603 = vsel %vm1601, %v1602, %v1407
        %v1604 = vshrl.u32 %v1603, 4
        %v1605 = vand.u32 %v1603, 15
        %v1606 = vsub.s32 0, %v1605
        %v1607 = vsel %vm1601, %v1606, %v1605
        %vm1608 = vcmp.lt.s32.totalorder %v1408, 0
        %v1609 = vsub.s32 0, %v1408
        %v1610 = vsel %vm1608, %v1609, %v1408
        %v1611 = vshrl.u32 %v1610, 4
        %v1612 = vand.u32 %v1610, 15
        %v1613 = vsub.s32 0, %v1612
        %v1614 = vsel %vm1608, %v1613, %v1612
        %vm1615 = vcmp.lt.s32.totalorder %v1409, 0
        %v1616 = vsub.s32 0, %v1409
        %v1617 = vsel %vm1615, %v1616, %v1409
        %v1618 = vshrl.u32 %v1617, 4
        %v1619 = vand.u32 %v1617, 15
        %v1620 = vsub.s32 0, %v1619
        %v1621 = vsel %vm1615, %v1620, %v1619
        %vm1622 = vcmp.lt.s32.totalorder %v1410, 0
        %v1623 = vsub.s32 0, %v1410
        %v1624 = vsel %vm1622, %v1623, %v1410
        %v1625 = vshrl.u32 %v1624, 4
        %v1626 = vand.u32 %v1624, 15
        %v1627 = vsub.s32 0, %v1626
        %v1628 = vsel %vm1622, %v1627, %v1626
        %vm1629 = vcmp.lt.s32.totalorder %v1411, 0
        %v1630 = vsub.s32 0, %v1411
        %v1631 = vsel %vm1629, %v1630, %v1411
        %v1632 = vshrl.u32 %v1631, 4
        %v1633 = vand.u32 %v1631, 15
        %v1634 = vsub.s32 0, %v1633
        %v1635 = vsel %vm1629, %v1634, %v1633
        %vm1636 = vcmp.ne.s32.totalorder %v1418, 0
        %vm1637 = vcmp.ne.s32.totalorder %v1425, 0
        %vm1638 = vcmp.ne.s32.totalorder %v1432, 0
        %vm1639 = vcmp.ne.s32.totalorder %v1439, 0
        %vm1640 = vcmp.ne.s32.totalorder %v1446, 0
        %vm1641 = vcmp.ne.s32.totalorder %v1453, 0
        %vm1642 = vcmp.ne.s32.totalorder %v1460, 0
        %vm1643 = vcmp.ne.s32.totalorder %v1467, 0
        %vm1644 = vcmp.ne.s32.totalorder %v1474, 0
        %vm1645 = vcmp.ne.s32.totalorder %v1481, 0
        %vm1646 = vcmp.ne.s32.totalorder %v1488, 0
        %vm1647 = vcmp.ne.s32.totalorder %v1495, 0
        %vm1648 = vcmp.ne.s32.totalorder %v1502, 0
        %vm1649 = vcmp.ne.s32.totalorder %v1509, 0
        %vm1650 = vcmp.ne.s32.totalorder %v1516, 0
        %vm1651 = vcmp.ne.s32.totalorder %v1523, 0
        %vm1652 = vcmp.ne.s32.totalorder %v1530, 0
        %vm1653 = vcmp.ne.s32.totalorder %v1537, 0
        %vm1654 = vcmp.ne.s32.totalorder %v1544, 0
        %vm1655 = vcmp.ne.s32.totalorder %v1551, 0
        %vm1656 = vcmp.ne.s32.totalorder %v1558, 0
        %vm1657 = vcmp.ne.s32.totalorder %v1565, 0
        %vm1658 = vcmp.ne.s32.totalorder %v1572, 0
        %vm1659 = vcmp.ne.s32.totalorder %v1579, 0
        %vm1660 = vcmp.ne.s32.totalorder %v1586, 0
        %vm1661 = vcmp.ne.s32.totalorder %v1593, 0
        %vm1662 = vcmp.ne.s32.totalorder %v1600, 0
        %vm1663 = vcmp.ne.s32.totalorder %v1607, 0
        %vm1664 = vcmp.ne.s32.totalorder %v1614, 0
        %vm1665 = vcmp.ne.s32.totalorder %v1621, 0
        %vm1666 = vcmp.ne.s32.totalorder %v1628, 0
        %vm1667 = vcmp.ne.s32.totalorder %v1635, 0
        %vm1668 = vcmp.lt.s32.totalorder %v1418, 0
        %vm1669 = vcmp.lt.s32.totalorder %v1425, 0
        %vm1670 = vcmp.lt.s32.totalorder %v1432, 0
        %vm1671 = vcmp.lt.s32.totalorder %v1439, 0
        %vm1672 = vcmp.lt.s32.totalorder %v1446, 0
        %vm1673 = vcmp.lt.s32.totalorder %v1453, 0
        %vm1674 = vcmp.lt.s32.totalorder %v1460, 0
        %vm1675 = vcmp.lt.s32.totalorder %v1467, 0
        %vm1676 = vcmp.lt.s32.totalorder %v1474, 0
        %vm1677 = vcmp.lt.s32.totalorder %v1481, 0
        %vm1678 = vcmp.lt.s32.totalorder %v1488, 0
        %vm1679 = vcmp.lt.s32.totalorder %v1495, 0
        %vm1680 = vcmp.lt.s32.totalorder %v1502, 0
        %vm1681 = vcmp.lt.s32.totalorder %v1509, 0
        %vm1682 = vcmp.lt.s32.totalorder %v1516, 0
        %vm1683 = vcmp.lt.s32.totalorder %v1523, 0
        %vm1684 = vcmp.lt.s32.totalorder %v1530, 0
        %vm1685 = vcmp.lt.s32.totalorder %v1537, 0
        %vm1686 = vcmp.lt.s32.totalorder %v1544, 0
        %vm1687 = vcmp.lt.s32.totalorder %v1551, 0
        %vm1688 = vcmp.lt.s32.totalorder %v1558, 0
        %vm1689 = vcmp.lt.s32.totalorder %v1565, 0
        %vm1690 = vcmp.lt.s32.totalorder %v1572, 0
        %vm1691 = vcmp.lt.s32.totalorder %v1579, 0
        %vm1692 = vcmp.lt.s32.totalorder %v1586, 0
        %vm1693 = vcmp.lt.s32.totalorder %v1593, 0
        %vm1694 = vcmp.lt.s32.totalorder %v1600, 0
        %vm1695 = vcmp.lt.s32.totalorder %v1607, 0
        %vm1696 = vcmp.lt.s32.totalorder %v1614, 0
        %vm1697 = vcmp.lt.s32.totalorder %v1621, 0
        %vm1698 = vcmp.lt.s32.totalorder %v1628, 0
        %vm1699 = vcmp.lt.s32.totalorder %v1635, 0
        %vm1700 = vmand %vm1668, %vm1636
        %vm1701 = vmand %vm1669, %vm1637
        %vm1702 = vmand %vm1670, %vm1638
        %vm1703 = vmand %vm1671, %vm1639
        %vm1704 = vmand %vm1672, %vm1640
        %vm1705 = vmand %vm1673, %vm1641
        %vm1706 = vmand %vm1674, %vm1642
        %vm1707 = vmand %vm1675, %vm1643
        %vm1708 = vmand %vm1676, %vm1644
        %vm1709 = vmand %vm1677, %vm1645
        %vm1710 = vmand %vm1678, %vm1646
        %vm1711 = vmand %vm1679, %vm1647
        %vm1712 = vmand %vm1680, %vm1648
        %vm1713 = vmand %vm1681, %vm1649
        %vm1714 = vmand %vm1682, %vm1650
        %vm1715 = vmand %vm1683, %vm1651
        %vm1716 = vmand %vm1684, %vm1652
        %vm1717 = vmand %vm1685, %vm1653
        %vm1718 = vmand %vm1686, %vm1654
        %vm1719 = vmand %vm1687, %vm1655
        %vm1720 = vmand %vm1688, %vm1656
        %vm1721 = vmand %vm1689, %vm1657
        %vm1722 = vmand %vm1690, %vm1658
        %vm1723 = vmand %vm1691, %vm1659
        %vm1724 = vmand %vm1692, %vm1660
        %vm1725 = vmand %vm1693, %vm1661
        %vm1726 = vmand %vm1694, %vm1662
        %vm1727 = vmand %vm1695, %vm1663
        %vm1728 = vmand %vm1696, %vm1664
        %vm1729 = vmand %vm1697, %vm1665
        %vm1730 = vmand %vm1698, %vm1666
        %vm1731 = vmand %vm1699, %vm1667
        %v1732 = vadd.s32 %v1418, 16
        %v1733 = vadd.s32 %v1425, 16
        %v1734 = vadd.s32 %v1432, 16
        %v1735 = vadd.s32 %v1439, 16
        %v1736 = vadd.s32 %v1446, 16
        %v1737 = vadd.s32 %v1453, 16
        %v1738 = vadd.s32 %v1460, 16
        %v1739 = vadd.s32 %v1467, 16
        %v1740 = vadd.s32 %v1474, 16
        %v1741 = vadd.s32 %v1481, 16
        %v1742 = vadd.s32 %v1488, 16
        %v1743 = vadd.s32 %v1495, 16
        %v1744 = vadd.s32 %v1502, 16
        %v1745 = vadd.s32 %v1509, 16
        %v1746 = vadd.s32 %v1516, 16
        %v1747 = vadd.s32 %v1523, 16
        %v1748 = vadd.s32 %v1530, 16
        %v1749 = vadd.s32 %v1537, 16
        %v1750 = vadd.s32 %v1544, 16
        %v1751 = vadd.s32 %v1551, 16
        %v1752 = vadd.s32 %v1558, 16
        %v1753 = vadd.s32 %v1565, 16
        %v1754 = vadd.s32 %v1572, 16
        %v1755 = vadd.s32 %v1579, 16
        %v1756 = vadd.s32 %v1586, 16
        %v1757 = vadd.s32 %v1593, 16
        %v1758 = vadd.s32 %v1600, 16
        %v1759 = vadd.s32 %v1607, 16
        %v1760 = vadd.s32 %v1614, 16
        %v1761 = vadd.s32 %v1621, 16
        %v1762 = vadd.s32 %v1628, 16
        %v1763 = vadd.s32 %v1635, 16
        %v1764 = vsel %vm1700, %v1732, %v1418
        %v1765 = vsel %vm1701, %v1733, %v1425
        %v1766 = vsel %vm1702, %v1734, %v1432
        %v1767 = vsel %vm1703, %v1735, %v1439
        %v1768 = vsel %vm1704, %v1736, %v1446
        %v1769 = vsel %vm1705, %v1737, %v1453
        %v1770 = vsel %vm1706, %v1738, %v1460
        %v1771 = vsel %vm1707, %v1739, %v1467
        %v1772 = vsel %vm1708, %v1740, %v1474
        %v1773 = vsel %vm1709, %v1741, %v1481
        %v1774 = vsel %vm1710, %v1742, %v1488
        %v1775 = vsel %vm1711, %v1743, %v1495
        %v1776 = vsel %vm1712, %v1744, %v1502
        %v1777 = vsel %vm1713, %v1745, %v1509
        %v1778 = vsel %vm1714, %v1746, %v1516
        %v1779 = vsel %vm1715, %v1747, %v1523
        %v1780 = vsel %vm1716, %v1748, %v1530
        %v1781 = vsel %vm1717, %v1749, %v1537
        %v1782 = vsel %vm1718, %v1750, %v1544
        %v1783 = vsel %vm1719, %v1751, %v1551
        %v1784 = vsel %vm1720, %v1752, %v1558
        %v1785 = vsel %vm1721, %v1753, %v1565
        %v1786 = vsel %vm1722, %v1754, %v1572
        %v1787 = vsel %vm1723, %v1755, %v1579
        %v1788 = vsel %vm1724, %v1756, %v1586
        %v1789 = vsel %vm1725, %v1757, %v1593
        %v1790 = vsel %vm1726, %v1758, %v1600
        %v1791 = vsel %vm1727, %v1759, %v1607
        %v1792 = vsel %vm1728, %v1760, %v1614
        %v1793 = vsel %vm1729, %v1761, %v1621
        %v1794 = vsel %vm1730, %v1762, %v1628
        %v1795 = vsel %vm1731, %v1763, %v1635
        %vm1796 = vcmp.ge.s32.totalorder %v1764, 1
        %vm1797 = vcmp.ge.s32.totalorder %v1765, 1
        %vm1798 = vcmp.ge.s32.totalorder %v1766, 1
        %vm1799 = vcmp.ge.s32.totalorder %v1767, 1
        %vm1800 = vcmp.ge.s32.totalorder %v1768, 1
        %vm1801 = vcmp.ge.s32.totalorder %v1769, 1
        %vm1802 = vcmp.ge.s32.totalorder %v1770, 1
        %vm1803 = vcmp.ge.s32.totalorder %v1771, 1
        %vm1804 = vcmp.ge.s32.totalorder %v1772, 1
        %vm1805 = vcmp.ge.s32.totalorder %v1773, 1
        %vm1806 = vcmp.ge.s32.totalorder %v1774, 1
        %vm1807 = vcmp.ge.s32.totalorder %v1775, 1
        %vm1808 = vcmp.ge.s32.totalorder %v1776, 1
        %vm1809 = vcmp.ge.s32.totalorder %v1777, 1
        %vm1810 = vcmp.ge.s32.totalorder %v1778, 1
        %vm1811 = vcmp.ge.s32.totalorder %v1779, 1
        %vm1812 = vcmp.ge.s32.totalorder %v1780, 1
        %vm1813 = vcmp.ge.s32.totalorder %v1781, 1
        %vm1814 = vcmp.ge.s32.totalorder %v1782, 1
        %vm1815 = vcmp.ge.s32.totalorder %v1783, 1
        %vm1816 = vcmp.ge.s32.totalorder %v1784, 1
        %vm1817 = vcmp.ge.s32.totalorder %v1785, 1
        %vm1818 = vcmp.ge.s32.totalorder %v1786, 1
        %vm1819 = vcmp.ge.s32.totalorder %v1787, 1
        %vm1820 = vcmp.ge.s32.totalorder %v1788, 1
        %vm1821 = vcmp.ge.s32.totalorder %v1789, 1
        %vm1822 = vcmp.ge.s32.totalorder %v1790, 1
        %vm1823 = vcmp.ge.s32.totalorder %v1791, 1
        %vm1824 = vcmp.ge.s32.totalorder %v1792, 1
        %vm1825 = vcmp.ge.s32.totalorder %v1793, 1
        %vm1826 = vcmp.ge.s32.totalorder %v1794, 1
        %vm1827 = vcmp.ge.s32.totalorder %v1795, 1
        %v1828 = vsel %vm1796, 1, 0
        %v1829 = vsel %vm1797, 1, 0
        %v1830 = vsel %vm1798, 1, 0
        %v1831 = vsel %vm1799, 1, 0
        %v1832 = vsel %vm1800, 1, 0
        %v1833 = vsel %vm1801, 1, 0
        %v1834 = vsel %vm1802, 1, 0
        %v1835 = vsel %vm1803, 1, 0
        %v1836 = vsel %vm1804, 1, 0
        %v1837 = vsel %vm1805, 1, 0
        %v1838 = vsel %vm1806, 1, 0
        %v1839 = vsel %vm1807, 1, 0
        %v1840 = vsel %vm1808, 1, 0
        %v1841 = vsel %vm1809, 1, 0
        %v1842 = vsel %vm1810, 1, 0
        %v1843 = vsel %vm1811, 1, 0
        %v1844 = vsel %vm1812, 1, 0
        %v1845 = vsel %vm1813, 1, 0
        %v1846 = vsel %vm1814, 1, 0
        %v1847 = vsel %vm1815, 1, 0
        %v1848 = vsel %vm1816, 1, 0
        %v1849 = vsel %vm1817, 1, 0
        %v1850 = vsel %vm1818, 1, 0
        %v1851 = vsel %vm1819, 1, 0
        %v1852 = vsel %vm1820, 1, 0
        %v1853 = vsel %vm1821, 1, 0
        %v1854 = vsel %vm1822, 1, 0
        %v1855 = vsel %vm1823, 1, 0
        %v1856 = vsel %vm1824, 1, 0
        %v1857 = vsel %vm1825, 1, 0
        %v1858 = vsel %vm1826, 1, 0
        %v1859 = vsel %vm1827, 1, 0
        %v1860 = vcvt.s32.f32 %v1828
        %v1861 = vcvt.s32.f32 %v1829
        %v1862 = vcvt.s32.f32 %v1830
        %v1863 = vcvt.s32.f32 %v1831
        %v1864 = vcvt.s32.f32 %v1832
        %v1865 = vcvt.s32.f32 %v1833
        %v1866 = vcvt.s32.f32 %v1834
        %v1867 = vcvt.s32.f32 %v1835
        %v1868 = vcvt.s32.f32 %v1836
        %v1869 = vcvt.s32.f32 %v1837
        %v1870 = vcvt.s32.f32 %v1838
        %v1871 = vcvt.s32.f32 %v1839
        %v1872 = vcvt.s32.f32 %v1840
        %v1873 = vcvt.s32.f32 %v1841
        %v1874 = vcvt.s32.f32 %v1842
        %v1875 = vcvt.s32.f32 %v1843
        %v1876 = vcvt.s32.f32 %v1844
        %v1877 = vcvt.s32.f32 %v1845
        %v1878 = vcvt.s32.f32 %v1846
        %v1879 = vcvt.s32.f32 %v1847
        %v1880 = vcvt.s32.f32 %v1848
        %v1881 = vcvt.s32.f32 %v1849
        %v1882 = vcvt.s32.f32 %v1850
        %v1883 = vcvt.s32.f32 %v1851
        %v1884 = vcvt.s32.f32 %v1852
        %v1885 = vcvt.s32.f32 %v1853
        %v1886 = vcvt.s32.f32 %v1854
        %v1887 = vcvt.s32.f32 %v1855
        %v1888 = vcvt.s32.f32 %v1856
        %v1889 = vcvt.s32.f32 %v1857
        %v1890 = vcvt.s32.f32 %v1858
        %v1891 = vcvt.s32.f32 %v1859
        %v1892 = vpack.c.bf16 %v1860, %v1860
        %v1893 = vpack.c.bf16 %v1861, %v1861
        %v1894 = vpack.c.bf16 %v1862, %v1862
        %v1895 = vpack.c.bf16 %v1863, %v1863
        %v1896 = vpack.c.bf16 %v1864, %v1864
        %v1897 = vpack.c.bf16 %v1865, %v1865
        %v1898 = vpack.c.bf16 %v1866, %v1866
        %v1899 = vpack.c.bf16 %v1867, %v1867
        %v1900 = vpack.c.bf16 %v1868, %v1868
        %v1901 = vpack.c.bf16 %v1869, %v1869
        %v1902 = vpack.c.bf16 %v1870, %v1870
        %v1903 = vpack.c.bf16 %v1871, %v1871
        %v1904 = vpack.c.bf16 %v1872, %v1872
        %v1905 = vpack.c.bf16 %v1873, %v1873
        %v1906 = vpack.c.bf16 %v1874, %v1874
        %v1907 = vpack.c.bf16 %v1875, %v1875
        %v1908 = vpack.c.bf16 %v1876, %v1876
        %v1909 = vpack.c.bf16 %v1877, %v1877
        %v1910 = vpack.c.bf16 %v1878, %v1878
        %v1911 = vpack.c.bf16 %v1879, %v1879
        %v1912 = vpack.c.bf16 %v1880, %v1880
        %v1913 = vpack.c.bf16 %v1881, %v1881
        %v1914 = vpack.c.bf16 %v1882, %v1882
        %v1915 = vpack.c.bf16 %v1883, %v1883
        %v1916 = vpack.c.bf16 %v1884, %v1884
        %v1917 = vpack.c.bf16 %v1885, %v1885
        %v1918 = vpack.c.bf16 %v1886, %v1886
        %v1919 = vpack.c.bf16 %v1887, %v1887
        %v1920 = vpack.c.bf16 %v1888, %v1888
        %v1921 = vpack.c.bf16 %v1889, %v1889
        %v1922 = vpack.c.bf16 %v1890, %v1890
        %v1923 = vpack.c.bf16 %v1891, %v1891
        %vm1924 = vcmp.le.s32.totalorder %v1764, 14
        %vm1925 = vcmp.le.s32.totalorder %v1765, 14
        %vm1926 = vcmp.le.s32.totalorder %v1766, 14
        %vm1927 = vcmp.le.s32.totalorder %v1767, 14
        %vm1928 = vcmp.le.s32.totalorder %v1768, 14
        %vm1929 = vcmp.le.s32.totalorder %v1769, 14
        %vm1930 = vcmp.le.s32.totalorder %v1770, 14
        %vm1931 = vcmp.le.s32.totalorder %v1771, 14
        %vm1932 = vcmp.le.s32.totalorder %v1772, 14
        %vm1933 = vcmp.le.s32.totalorder %v1773, 14
        %vm1934 = vcmp.le.s32.totalorder %v1774, 14
        %vm1935 = vcmp.le.s32.totalorder %v1775, 14
        %vm1936 = vcmp.le.s32.totalorder %v1776, 14
        %vm1937 = vcmp.le.s32.totalorder %v1777, 14
        %vm1938 = vcmp.le.s32.totalorder %v1778, 14
        %vm1939 = vcmp.le.s32.totalorder %v1779, 14
        %vm1940 = vcmp.le.s32.totalorder %v1780, 14
        %vm1941 = vcmp.le.s32.totalorder %v1781, 14
        %vm1942 = vcmp.le.s32.totalorder %v1782, 14
        %vm1943 = vcmp.le.s32.totalorder %v1783, 14
        %vm1944 = vcmp.le.s32.totalorder %v1784, 14
        %vm1945 = vcmp.le.s32.totalorder %v1785, 14
        %vm1946 = vcmp.le.s32.totalorder %v1786, 14
        %vm1947 = vcmp.le.s32.totalorder %v1787, 14
        %vm1948 = vcmp.le.s32.totalorder %v1788, 14
        %vm1949 = vcmp.le.s32.totalorder %v1789, 14
        %vm1950 = vcmp.le.s32.totalorder %v1790, 14
        %vm1951 = vcmp.le.s32.totalorder %v1791, 14
        %vm1952 = vcmp.le.s32.totalorder %v1792, 14
        %vm1953 = vcmp.le.s32.totalorder %v1793, 14
        %vm1954 = vcmp.le.s32.totalorder %v1794, 14
        %vm1955 = vcmp.le.s32.totalorder %v1795, 14
        %v1956 = vsel %vm1924, 1, 0
        %v1957 = vsel %vm1925, 1, 0
        %v1958 = vsel %vm1926, 1, 0
        %v1959 = vsel %vm1927, 1, 0
        %v1960 = vsel %vm1928, 1, 0
        %v1961 = vsel %vm1929, 1, 0
        %v1962 = vsel %vm1930, 1, 0
        %v1963 = vsel %vm1931, 1, 0
        %v1964 = vsel %vm1932, 1, 0
        %v1965 = vsel %vm1933, 1, 0
        %v1966 = vsel %vm1934, 1, 0
        %v1967 = vsel %vm1935, 1, 0
        %v1968 = vsel %vm1936, 1, 0
        %v1969 = vsel %vm1937, 1, 0
        %v1970 = vsel %vm1938, 1, 0
        %v1971 = vsel %vm1939, 1, 0
        %v1972 = vsel %vm1940, 1, 0
        %v1973 = vsel %vm1941, 1, 0
        %v1974 = vsel %vm1942, 1, 0
        %v1975 = vsel %vm1943, 1, 0
        %v1976 = vsel %vm1944, 1, 0
        %v1977 = vsel %vm1945, 1, 0
        %v1978 = vsel %vm1946, 1, 0
        %v1979 = vsel %vm1947, 1, 0
        %v1980 = vsel %vm1948, 1, 0
        %v1981 = vsel %vm1949, 1, 0
        %v1982 = vsel %vm1950, 1, 0
        %v1983 = vsel %vm1951, 1, 0
        %v1984 = vsel %vm1952, 1, 0
        %v1985 = vsel %vm1953, 1, 0
        %v1986 = vsel %vm1954, 1, 0
        %v1987 = vsel %vm1955, 1, 0
        %v1988 = vcvt.s32.f32 %v1956
        %v1989 = vcvt.s32.f32 %v1957
        %v1990 = vcvt.s32.f32 %v1958
        %v1991 = vcvt.s32.f32 %v1959
        %v1992 = vcvt.s32.f32 %v1960
        %v1993 = vcvt.s32.f32 %v1961
        %v1994 = vcvt.s32.f32 %v1962
        %v1995 = vcvt.s32.f32 %v1963
        %v1996 = vcvt.s32.f32 %v1964
        %v1997 = vcvt.s32.f32 %v1965
        %v1998 = vcvt.s32.f32 %v1966
        %v1999 = vcvt.s32.f32 %v1967
        %v2000 = vcvt.s32.f32 %v1968
        %v2001 = vcvt.s32.f32 %v1969
        %v2002 = vcvt.s32.f32 %v1970
        %v2003 = vcvt.s32.f32 %v1971
        %v2004 = vcvt.s32.f32 %v1972
        %v2005 = vcvt.s32.f32 %v1973
        %v2006 = vcvt.s32.f32 %v1974
        %v2007 = vcvt.s32.f32 %v1975
        %v2008 = vcvt.s32.f32 %v1976
        %v2009 = vcvt.s32.f32 %v1977
        %v2010 = vcvt.s32.f32 %v1978
        %v2011 = vcvt.s32.f32 %v1979
        %v2012 = vcvt.s32.f32 %v1980
        %v2013 = vcvt.s32.f32 %v1981
        %v2014 = vcvt.s32.f32 %v1982
        %v2015 = vcvt.s32.f32 %v1983
        %v2016 = vcvt.s32.f32 %v1984
        %v2017 = vcvt.s32.f32 %v1985
        %v2018 = vcvt.s32.f32 %v1986
        %v2019 = vcvt.s32.f32 %v1987
        %v2020 = vpack.c.bf16 %v1988, %v1988
        %v2021 = vpack.c.bf16 %v1989, %v1989
        %v2022 = vpack.c.bf16 %v1990, %v1990
        %v2023 = vpack.c.bf16 %v1991, %v1991
        %v2024 = vpack.c.bf16 %v1992, %v1992
        %v2025 = vpack.c.bf16 %v1993, %v1993
        %v2026 = vpack.c.bf16 %v1994, %v1994
        %v2027 = vpack.c.bf16 %v1995, %v1995
        %v2028 = vpack.c.bf16 %v1996, %v1996
        %v2029 = vpack.c.bf16 %v1997, %v1997
        %v2030 = vpack.c.bf16 %v1998, %v1998
        %v2031 = vpack.c.bf16 %v1999, %v1999
        %v2032 = vpack.c.bf16 %v2000, %v2000
        %v2033 = vpack.c.bf16 %v2001, %v2001
        %v2034 = vpack.c.bf16 %v2002, %v2002
        %v2035 = vpack.c.bf16 %v2003, %v2003
        %v2036 = vpack.c.bf16 %v2004, %v2004
        %v2037 = vpack.c.bf16 %v2005, %v2005
        %v2038 = vpack.c.bf16 %v2006, %v2006
        %v2039 = vpack.c.bf16 %v2007, %v2007
        %v2040 = vpack.c.bf16 %v2008, %v2008
        %v2041 = vpack.c.bf16 %v2009, %v2009
        %v2042 = vpack.c.bf16 %v2010, %v2010
        %v2043 = vpack.c.bf16 %v2011, %v2011
        %v2044 = vpack.c.bf16 %v2012, %v2012
        %v2045 = vpack.c.bf16 %v2013, %v2013
        %v2046 = vpack.c.bf16 %v2014, %v2014
        %v2047 = vpack.c.bf16 %v2015, %v2015
        %v2048 = vpack.c.bf16 %v2016, %v2016
        %v2049 = vpack.c.bf16 %v2017, %v2017
        %v2050 = vpack.c.bf16 %v2018, %v2018
        %v2051 = vpack.c.bf16 %v2019, %v2019
        %v2052 = vld [vmem:[#allocation2 + $0x4] sm:$0x8]
        %v2053 = vld [vmem:[#allocation2 + $0x8] sm:$0xf]
        %v2054 = vld [vmem:[#allocation2 + $0xc] sm:$0xf]
        %v2055 = vld [vmem:[#allocation2 + $0x10] sm:$0xf]
        %v2056 = vld [vmem:[#allocation2 + $0x14] sm:$0xf]
        %v2057 = vld [vmem:[#allocation2 + $0x18] sm:$0xf]
        %v2058 = vld [vmem:[#allocation2 + $0x1c] sm:$0xf]
        %v2059 = vld [vmem:[#allocation2 + $0x20] sm:$0xf]
        %v2060 = vld [vmem:[#allocation2 + $0x24] sm:$0xf]
        %v2061 = vld [vmem:[#allocation2 + $0x28] sm:$0xf]
        %v2062 = vld [vmem:[#allocation2 + $0x2c] sm:$0xf]
        %v2063 = vld [vmem:[#allocation2 + $0x30] sm:$0xf]
        %v2064 = vld [vmem:[#allocation2 + $0x34] sm:$0xf]
        %v2065 = vld [vmem:[#allocation2 + $0x38] sm:$0xf]
        %v2066 = vld [vmem:[#allocation2 + $0x3c] sm:$0xf]
        %v2067 = vld [vmem:[#allocation2 + $0x40] sm:$0xf]
        %v2068 = vld [vmem:[#allocation2 + $0x44] sm:$0xf]
        %v2069 = vld [vmem:[#allocation2 + $0x48] sm:$0xf]
        %v2070 = vld [vmem:[#allocation2 + $0x4c] sm:$0xf]
        %v2071 = vld [vmem:[#allocation2 + $0x50] sm:$0xf]
        %v2072 = vld [vmem:[#allocation2 + $0x54] sm:$0xf]
        %v2073 = vld [vmem:[#allocation2 + $0x58] sm:$0xf]
        %v2074 = vld [vmem:[#allocation2 + $0x5c] sm:$0xf]
        %v2075 = vld [vmem:[#allocation2 + $0x60] sm:$0xf]
        %v2076 = vld [vmem:[#allocation2 + $0x64] sm:$0xf]
        %v2077 = vld [vmem:[#allocation2 + $0x68] sm:$0xf]
        %v2078 = vld [vmem:[#allocation2 + $0x6c] sm:$0xf]
        %v2079 = vld [vmem:[#allocation2 + $0x70] sm:$0xf]
        %v2080 = vld [vmem:[#allocation2 + $0x74] sm:$0xf]
        %v2081 = vld [vmem:[#allocation2 + $0x78] sm:$0xf]
        %v2082 = vld [vmem:[#allocation2 + $0x7c] sm:$0xf]
        %v2083 = vld [vmem:[#allocation2 + $0x80] sm:$0xf]
        %v2084 = vld [vmem:[#allocation2 + $0x84] sm:$0xf]
        %v2085 = vunpack.c.l.bf16 %v2052
        %v2086 = vunpack.c.l.bf16 %v2053
        %v2087 = vunpack.c.l.bf16 %v2054
        %v2088 = vunpack.c.l.bf16 %v2055
        %v2089 = vunpack.c.l.bf16 %v2056
        %v2090 = vunpack.c.l.bf16 %v2057
        %v2091 = vunpack.c.l.bf16 %v2058
        %v2092 = vunpack.c.l.bf16 %v2059
        %v2093 = vunpack.c.l.bf16 %v2060
        %v2094 = vunpack.c.l.bf16 %v2061
        %v2095 = vunpack.c.l.bf16 %v2062
        %v2096 = vunpack.c.l.bf16 %v2063
        %v2097 = vunpack.c.l.bf16 %v2064
        %v2098 = vunpack.c.l.bf16 %v2065
        %v2099 = vunpack.c.l.bf16 %v2066
        %v2100 = vunpack.c.l.bf16 %v2067
        %v2101 = vunpack.c.l.bf16 %v2068
        %v2102 = vunpack.c.l.bf16 %v2069
        %v2103 = vunpack.c.l.bf16 %v2070
        %v2104 = vunpack.c.l.bf16 %v2071
        %v2105 = vunpack.c.l.bf16 %v2072
        %v2106 = vunpack.c.l.bf16 %v2073
        %v2107 = vunpack.c.l.bf16 %v2074
        %v2108 = vunpack.c.l.bf16 %v2075
        %v2109 = vunpack.c.l.bf16 %v2076
        %v2110 = vunpack.c.l.bf16 %v2077
        %v2111 = vunpack.c.l.bf16 %v2078
        %v2112 = vunpack.c.l.bf16 %v2079
        %v2113 = vunpack.c.l.bf16 %v2080
        %v2114 = vunpack.c.l.bf16 %v2081
        %v2115 = vunpack.c.l.bf16 %v2082
        %v2116 = vunpack.c.l.bf16 %v2083
        %v2117 = vunpack.c.l.bf16 %v2084
        %v2118 = vunpack.c.l.bf16 %v1892
        %v2119 = vunpack.c.l.bf16 %v1893
        %v2120 = vunpack.c.l.bf16 %v1894
        %v2121 = vunpack.c.l.bf16 %v1895
        %v2122 = vunpack.c.l.bf16 %v1896
        %v2123 = vunpack.c.l.bf16 %v1897
        %v2124 = vunpack.c.l.bf16 %v1898
        %v2125 = vunpack.c.l.bf16 %v1899
        %v2126 = vunpack.c.l.bf16 %v1900
        %v2127 = vunpack.c.l.bf16 %v1901
        %v2128 = vunpack.c.l.bf16 %v1902
        %v2129 = vunpack.c.l.bf16 %v1903
        %v2130 = vunpack.c.l.bf16 %v1904
        %v2131 = vunpack.c.l.bf16 %v1905
        %v2132 = vunpack.c.l.bf16 %v1906
        %v2133 = vunpack.c.l.bf16 %v1907
        %v2134 = vunpack.c.l.bf16 %v1908
        %v2135 = vunpack.c.l.bf16 %v1909
        %v2136 = vunpack.c.l.bf16 %v1910
        %v2137 = vunpack.c.l.bf16 %v1911
        %v2138 = vunpack.c.l.bf16 %v1912
        %v2139 = vunpack.c.l.bf16 %v1913
        %v2140 = vunpack.c.l.bf16 %v1914
        %v2141 = vunpack.c.l.bf16 %v1915
        %v2142 = vunpack.c.l.bf16 %v1916
        %v2143 = vunpack.c.l.bf16 %v1917
        %v2144 = vunpack.c.l.bf16 %v1918
        %v2145 = vunpack.c.l.bf16 %v1919
        %v2146 = vunpack.c.l.bf16 %v1920
        %v2147 = vunpack.c.l.bf16 %v1921
        %v2148 = vunpack.c.l.bf16 %v1922
        %v2149 = vunpack.c.l.bf16 %v1923
        %vm2182 = vcmask 1046528
        %v2183 = vrot.slane %v2118, 1
        %v2184 = vrot.slane %v2119, 1
        %v2185 = vsel %vm2182, %v2183, %v2184
        %v2186 = vrot.slane %v2120, 1
        %v2187 = vsel %vm2182, %v2184, %v2186
        %v2188 = vrot.slane %v2121, 1
        %v2189 = vsel %vm2182, %v2186, %v2188
        %v2190 = vrot.slane %v2122, 1
        %v2191 = vsel %vm2182, %v2188, %v2190
        %v2192 = vrot.slane %v2123, 1
        %v2193 = vsel %vm2182, %v2190, %v2192
        %v2194 = vrot.slane %v2124, 1
        %v2195 = vsel %vm2182, %v2192, %v2194
        %v2196 = vrot.slane %v2125, 1
        %v2197 = vsel %vm2182, %v2194, %v2196
        %v2198 = vrot.slane %v2126, 1
        %v2199 = vsel %vm2182, %v2196, %v2198
        %v2200 = vrot.slane %v2127, 1
        %v2201 = vsel %vm2182, %v2198, %v2200
        %v2202 = vrot.slane %v2128, 1
        %v2203 = vsel %vm2182, %v2200, %v2202
        %v2204 = vrot.slane %v2129, 1
        %v2205 = vsel %vm2182, %v2202, %v2204
        %v2206 = vrot.slane %v2130, 1
        %v2207 = vsel %vm2182, %v2204, %v2206
        %v2208 = vrot.slane %v2131, 1
        %v2209 = vsel %vm2182, %v2206, %v2208
        %v2210 = vrot.slane %v2132, 1
        %v2211 = vsel %vm2182, %v2208, %v2210
        %v2212 = vrot.slane %v2133, 1
        %v2213 = vsel %vm2182, %v2210, %v2212
        %v2214 = vrot.slane %v2134, 1
        %v2215 = vsel %vm2182, %v2212, %v2214
        %v2216 = vrot.slane %v2135, 1
        %v2217 = vsel %vm2182, %v2214, %v2216
        %v2218 = vrot.slane %v2136, 1
        %v2219 = vsel %vm2182, %v2216, %v2218
        %v2220 = vrot.slane %v2137, 1
        %v2221 = vsel %vm2182, %v2218, %v2220
        %v2222 = vrot.slane %v2138, 1
        %v2223 = vsel %vm2182, %v2220, %v2222
        %v2224 = vrot.slane %v2139, 1
        %v2225 = vsel %vm2182, %v2222, %v2224
        %v2226 = vrot.slane %v2140, 1
        %v2227 = vsel %vm2182, %v2224, %v2226
        %v2228 = vrot.slane %v2141, 1
        %v2229 = vsel %vm2182, %v2226, %v2228
        %v2230 = vrot.slane %v2142, 1
        %v2231 = vsel %vm2182, %v2228, %v2230
        %v2232 = vrot.slane %v2143, 1
        %v2233 = vsel %vm2182, %v2230, %v2232
        %v2234 = vrot.slane %v2144, 1
        %v2235 = vsel %vm2182, %v2232, %v2234
        %v2236 = vrot.slane %v2145, 1
        %v2237 = vsel %vm2182, %v2234, %v2236
        %v2238 = vrot.slane %v2146, 1
        %v2239 = vsel %vm2182, %v2236, %v2238
        %v2240 = vrot.slane %v2147, 1
        %v2241 = vsel %vm2182, %v2238, %v2240
        %v2242 = vrot.slane %v2148, 1
        %v2243 = vsel %vm2182, %v2240, %v2242
        %v2244 = vrot.slane %v2149, 1
        %v2245 = vsel %vm2182, %v2242, %v2244
        %v2279 = vmul.f32 %v2085, %v2183
        %v2280 = vmul.f32 %v2086, %v2185
        %v2281 = vmul.f32 %v2087, %v2187
        %v2282 = vmul.f32 %v2088, %v2189
        %v2283 = vmul.f32 %v2089, %v2191
        %v2284 = vmul.f32 %v2090, %v2193
        %v2285 = vmul.f32 %v2091, %v2195
        %v2286 = vmul.f32 %v2092, %v2197
        %v2287 = vmul.f32 %v2093, %v2199
        %v2288 = vmul.f32 %v2094, %v2201
        %v2289 = vmul.f32 %v2095, %v2203
        %v2290 = vmul.f32 %v2096, %v2205
        %v2291 = vmul.f32 %v2097, %v2207
        %v2292 = vmul.f32 %v2098, %v2209
        %v2293 = vmul.f32 %v2099, %v2211
        %v2294 = vmul.f32 %v2100, %v2213
        %v2295 = vmul.f32 %v2101, %v2215
        %v2296 = vmul.f32 %v2102, %v2217
        %v2297 = vmul.f32 %v2103, %v2219
        %v2298 = vmul.f32 %v2104, %v2221
        %v2299 = vmul.f32 %v2105, %v2223
        %v2300 = vmul.f32 %v2106, %v2225
        %v2301 = vmul.f32 %v2107, %v2227
        %v2302 = vmul.f32 %v2108, %v2229
        %v2303 = vmul.f32 %v2109, %v2231
        %v2304 = vmul.f32 %v2110, %v2233
        %v2305 = vmul.f32 %v2111, %v2235
        %v2306 = vmul.f32 %v2112, %v2237
        %v2307 = vmul.f32 %v2113, %v2239
        %v2308 = vmul.f32 %v2114, %v2241
        %v2309 = vmul.f32 %v2115, %v2243
        %v2310 = vmul.f32 %v2116, %v2245
        %v2311 = vmul.f32 %v2117, %v2244
        %v2312 = vpack.c.bf16 %v2279, %v2279
        %v2313 = vpack.c.bf16 %v2280, %v2280
        %v2314 = vpack.c.bf16 %v2281, %v2281
        %v2315 = vpack.c.bf16 %v2282, %v2282
        %v2316 = vpack.c.bf16 %v2283, %v2283
        %v2317 = vpack.c.bf16 %v2284, %v2284
        %v2318 = vpack.c.bf16 %v2285, %v2285
        %v2319 = vpack.c.bf16 %v2286, %v2286
        %v2320 = vpack.c.bf16 %v2287, %v2287
        %v2321 = vpack.c.bf16 %v2288, %v2288
        %v2322 = vpack.c.bf16 %v2289, %v2289
        %v2323 = vpack.c.bf16 %v2290, %v2290
        %v2324 = vpack.c.bf16 %v2291, %v2291
        %v2325 = vpack.c.bf16 %v2292, %v2292
        %v2326 = vpack.c.bf16 %v2293, %v2293
        %v2327 = vpack.c.bf16 %v2294, %v2294
        %v2328 = vpack.c.bf16 %v2295, %v2295
        %v2329 = vpack.c.bf16 %v2296, %v2296
        %v2330 = vpack.c.bf16 %v2297, %v2297
        %v2331 = vpack.c.bf16 %v2298, %v2298
        %v2332 = vpack.c.bf16 %v2299, %v2299
        %v2333 = vpack.c.bf16 %v2300, %v2300
        %v2334 = vpack.c.bf16 %v2301, %v2301
        %v2335 = vpack.c.bf16 %v2302, %v2302
        %v2336 = vpack.c.bf16 %v2303, %v2303
        %v2337 = vpack.c.bf16 %v2304, %v2304
        %v2338 = vpack.c.bf16 %v2305, %v2305
        %v2339 = vpack.c.bf16 %v2306, %v2306
        %v2340 = vpack.c.bf16 %v2307, %v2307
        %v2341 = vpack.c.bf16 %v2308, %v2308
        %v2342 = vpack.c.bf16 %v2309, %v2309
        %v2343 = vpack.c.bf16 %v2310, %v2310
        %v2344 = vpack.c.bf16 %v2311, %v2311
        %v2345 = vld [vmem:[#allocation2 + $0x88] sm:$0x1]
        %v2346 = vunpack.c.l.bf16 %v2345
        %v2347 = vunpack.c.l.bf16 %v2020
        %v2348 = vunpack.c.l.bf16 %v2021
        %v2349 = vunpack.c.l.bf16 %v2022
        %v2350 = vunpack.c.l.bf16 %v2023
        %v2351 = vunpack.c.l.bf16 %v2024
        %v2352 = vunpack.c.l.bf16 %v2025
        %v2353 = vunpack.c.l.bf16 %v2026
        %v2354 = vunpack.c.l.bf16 %v2027
        %v2355 = vunpack.c.l.bf16 %v2028
        %v2356 = vunpack.c.l.bf16 %v2029
        %v2357 = vunpack.c.l.bf16 %v2030
        %v2358 = vunpack.c.l.bf16 %v2031
        %v2359 = vunpack.c.l.bf16 %v2032
        %v2360 = vunpack.c.l.bf16 %v2033
        %v2361 = vunpack.c.l.bf16 %v2034
        %v2362 = vunpack.c.l.bf16 %v2035
        %v2363 = vunpack.c.l.bf16 %v2036
        %v2364 = vunpack.c.l.bf16 %v2037
        %v2365 = vunpack.c.l.bf16 %v2038
        %v2366 = vunpack.c.l.bf16 %v2039
        %v2367 = vunpack.c.l.bf16 %v2040
        %v2368 = vunpack.c.l.bf16 %v2041
        %v2369 = vunpack.c.l.bf16 %v2042
        %v2370 = vunpack.c.l.bf16 %v2043
        %v2371 = vunpack.c.l.bf16 %v2044
        %v2372 = vunpack.c.l.bf16 %v2045
        %v2373 = vunpack.c.l.bf16 %v2046
        %v2374 = vunpack.c.l.bf16 %v2047
        %v2375 = vunpack.c.l.bf16 %v2048
        %v2376 = vunpack.c.l.bf16 %v2049
        %v2377 = vunpack.c.l.bf16 %v2050
        %v2378 = vunpack.c.l.bf16 %v2051
        %vm2411 = vcmask 1040384
        %v2412 = vrot.slane %v2347, 7
        %v2413 = vrot.slane %v2348, 7
        %v2414 = vsel %vm2411, %v2412, %v2413
        %v2415 = vrot.slane %v2349, 7
        %v2416 = vsel %vm2411, %v2413, %v2415
        %v2417 = vrot.slane %v2350, 7
        %v2418 = vsel %vm2411, %v2415, %v2417
        %v2419 = vrot.slane %v2351, 7
        %v2420 = vsel %vm2411, %v2417, %v2419
        %v2421 = vrot.slane %v2352, 7
        %v2422 = vsel %vm2411, %v2419, %v2421
        %v2423 = vrot.slane %v2353, 7
        %v2424 = vsel %vm2411, %v2421, %v2423
        %v2425 = vrot.slane %v2354, 7
        %v2426 = vsel %vm2411, %v2423, %v2425
        %v2427 = vrot.slane %v2355, 7
        %v2428 = vsel %vm2411, %v2425, %v2427
        %v2429 = vrot.slane %v2356, 7
        %v2430 = vsel %vm2411, %v2427, %v2429
        %v2431 = vrot.slane %v2357, 7
        %v2432 = vsel %vm2411, %v2429, %v2431
        %v2433 = vrot.slane %v2358, 7
        %v2434 = vsel %vm2411, %v2431, %v2433
        %v2435 = vrot.slane %v2359, 7
        %v2436 = vsel %vm2411, %v2433, %v2435
        %v2437 = vrot.slane %v2360, 7
        %v2438 = vsel %vm2411, %v2435, %v2437
        %v2439 = vrot.slane %v2361, 7
        %v2440 = vsel %vm2411, %v2437, %v2439
        %v2441 = vrot.slane %v2362, 7
        %v2442 = vsel %vm2411, %v2439, %v2441
        %v2443 = vrot.slane %v2363, 7
        %v2444 = vsel %vm2411, %v2441, %v2443
        %v2445 = vrot.slane %v2364, 7
        %v2446 = vsel %vm2411, %v2443, %v2445
        %v2447 = vrot.slane %v2365, 7
        %v2448 = vsel %vm2411, %v2445, %v2447
        %v2449 = vrot.slane %v2366, 7
        %v2450 = vsel %vm2411, %v2447, %v2449
        %v2451 = vrot.slane %v2367, 7
        %v2452 = vsel %vm2411, %v2449, %v2451
        %v2453 = vrot.slane %v2368, 7
        %v2454 = vsel %vm2411, %v2451, %v2453
        %v2455 = vrot.slane %v2369, 7
        %v2456 = vsel %vm2411, %v2453, %v2455
        %v2457 = vrot.slane %v2370, 7
        %v2458 = vsel %vm2411, %v2455, %v2457
        %v2459 = vrot.slane %v2371, 7
        %v2460 = vsel %vm2411, %v2457, %v2459
        %v2461 = vrot.slane %v2372, 7
        %v2462 = vsel %vm2411, %v2459, %v2461
        %v2463 = vrot.slane %v2373, 7
        %v2464 = vsel %vm2411, %v2461, %v2463
        %v2465 = vrot.slane %v2374, 7
        %v2466 = vsel %vm2411, %v2463, %v2465
        %v2467 = vrot.slane %v2375, 7
        %v2468 = vsel %vm2411, %v2465, %v2467
        %v2469 = vrot.slane %v2376, 7
        %v2470 = vsel %vm2411, %v2467, %v2469
        %v2471 = vrot.slane %v2377, 7
        %v2472 = vsel %vm2411, %v2469, %v2471
        %v2473 = vrot.slane %v2378, 7
        %v2474 = vsel %vm2411, %v2471, %v2473
        %v2508 = vmul.f32 %v2086, %v2412
        %v2509 = vmul.f32 %v2087, %v2414
        %v2510 = vmul.f32 %v2088, %v2416
        %v2511 = vmul.f32 %v2089, %v2418
        %v2512 = vmul.f32 %v2090, %v2420
        %v2513 = vmul.f32 %v2091, %v2422
        %v2514 = vmul.f32 %v2092, %v2424
        %v2515 = vmul.f32 %v2093, %v2426
        %v2516 = vmul.f32 %v2094, %v2428
        %v2517 = vmul.f32 %v2095, %v2430
        %v2518 = vmul.f32 %v2096, %v2432
        %v2519 = vmul.f32 %v2097, %v2434
        %v2520 = vmul.f32 %v2098, %v2436
        %v2521 = vmul.f32 %v2099, %v2438
        %v2522 = vmul.f32 %v2100, %v2440
        %v2523 = vmul.f32 %v2101, %v2442
        %v2524 = vmul.f32 %v2102, %v2444
        %v2525 = vmul.f32 %v2103, %v2446
        %v2526 = vmul.f32 %v2104, %v2448
        %v2527 = vmul.f32 %v2105, %v2450
        %v2528 = vmul.f32 %v2106, %v2452
        %v2529 = vmul.f32 %v2107, %v2454
        %v2530 = vmul.f32 %v2108, %v2456
        %v2531 = vmul.f32 %v2109, %v2458
        %v2532 = vmul.f32 %v2110, %v2460
        %v2533 = vmul.f32 %v2111, %v2462
        %v2534 = vmul.f32 %v2112, %v2464
        %v2535 = vmul.f32 %v2113, %v2466
        %v2536 = vmul.f32 %v2114, %v2468
        %v2537 = vmul.f32 %v2115, %v2470
        %v2538 = vmul.f32 %v2116, %v2472
        %v2539 = vmul.f32 %v2117, %v2474
        %v2540 = vmul.f32 %v2346, %v2473
        %v2541 = vpack.c.bf16 %v2508, %v2508
        %v2542 = vpack.c.bf16 %v2509, %v2509
        %v2543 = vpack.c.bf16 %v2510, %v2510
        %v2544 = vpack.c.bf16 %v2511, %v2511
        %v2545 = vpack.c.bf16 %v2512, %v2512
        %v2546 = vpack.c.bf16 %v2513, %v2513
        %v2547 = vpack.c.bf16 %v2514, %v2514
        %v2548 = vpack.c.bf16 %v2515, %v2515
        %v2549 = vpack.c.bf16 %v2516, %v2516
        %v2550 = vpack.c.bf16 %v2517, %v2517
        %v2551 = vpack.c.bf16 %v2518, %v2518
        %v2552 = vpack.c.bf16 %v2519, %v2519
        %v2553 = vpack.c.bf16 %v2520, %v2520
        %v2554 = vpack.c.bf16 %v2521, %v2521
        %v2555 = vpack.c.bf16 %v2522, %v2522
        %v2556 = vpack.c.bf16 %v2523, %v2523
        %v2557 = vpack.c.bf16 %v2524, %v2524
        %v2558 = vpack.c.bf16 %v2525, %v2525
        %v2559 = vpack.c.bf16 %v2526, %v2526
        %v2560 = vpack.c.bf16 %v2527, %v2527
        %v2561 = vpack.c.bf16 %v2528, %v2528
        %v2562 = vpack.c.bf16 %v2529, %v2529
        %v2563 = vpack.c.bf16 %v2530, %v2530
        %v2564 = vpack.c.bf16 %v2531, %v2531
        %v2565 = vpack.c.bf16 %v2532, %v2532
        %v2566 = vpack.c.bf16 %v2533, %v2533
        %v2567 = vpack.c.bf16 %v2534, %v2534
        %v2568 = vpack.c.bf16 %v2535, %v2535
        %v2569 = vpack.c.bf16 %v2536, %v2536
        %v2570 = vpack.c.bf16 %v2537, %v2537
        %v2571 = vpack.c.bf16 %v2538, %v2538
        %v2572 = vpack.c.bf16 %v2539, %v2539
        %v2573 = vpack.c.bf16 %v2540, %v2540
        %v2607 = vunpack.c.l.b16 %v2312
        %v2608 = vunpack.c.l.b16 %v2313
        %v2609 = vunpack.c.l.b16 %v2314
        %v2610 = vunpack.c.l.b16 %v2315
        %v2611 = vunpack.c.l.b16 %v2316
        %v2612 = vunpack.c.l.b16 %v2317
        %v2613 = vunpack.c.l.b16 %v2318
        %v2614 = vunpack.c.l.b16 %v2319
        %v2615 = vunpack.c.l.b16 %v2320
        %v2616 = vunpack.c.l.b16 %v2321
        %v2617 = vunpack.c.l.b16 %v2322
        %v2618 = vunpack.c.l.b16 %v2323
        %v2619 = vunpack.c.l.b16 %v2324
        %v2620 = vunpack.c.l.b16 %v2325
        %v2621 = vunpack.c.l.b16 %v2326
        %v2622 = vunpack.c.l.b16 %v2327
        %v2623 = vunpack.c.l.b16 %v2328
        %v2624 = vunpack.c.l.b16 %v2329
        %v2625 = vunpack.c.l.b16 %v2330
        %v2626 = vunpack.c.l.b16 %v2331
        %v2627 = vunpack.c.l.b16 %v2332
        %v2628 = vunpack.c.l.b16 %v2333
        %v2629 = vunpack.c.l.b16 %v2334
        %v2630 = vunpack.c.l.b16 %v2335
        %v2631 = vunpack.c.l.b16 %v2336
        %v2632 = vunpack.c.l.b16 %v2337
        %v2633 = vunpack.c.l.b16 %v2338
        %v2634 = vunpack.c.l.b16 %v2339
        %v2635 = vunpack.c.l.b16 %v2340
        %v2636 = vunpack.c.l.b16 %v2341
        %v2637 = vunpack.c.l.b16 %v2342
        %v2638 = vunpack.c.l.b16 %v2343
        %v2639 = vunpack.c.l.b16 %v2344
        %v2640 = vpack.c.b16 %v2608, %v2607
        %v2641 = vpack.c.b16 %v2610, %v2609
        %v2642 = vpack.c.b16 %v2612, %v2611
        %v2643 = vpack.c.b16 %v2614, %v2613
        %v2644 = vpack.c.b16 %v2616, %v2615
        %v2645 = vpack.c.b16 %v2618, %v2617
        %v2646 = vpack.c.b16 %v2620, %v2619
        %v2647 = vpack.c.b16 %v2622, %v2621
        %v2648 = vpack.c.b16 %v2624, %v2623
        %v2649 = vpack.c.b16 %v2626, %v2625
        %v2650 = vpack.c.b16 %v2628, %v2627
        %v2651 = vpack.c.b16 %v2630, %v2629
        %v2652 = vpack.c.b16 %v2632, %v2631
        %v2653 = vpack.c.b16 %v2634, %v2633
        %v2654 = vpack.c.b16 %v2636, %v2635
        %v2655 = vpack.c.b16 %v2638, %v2637
        %v2656 = vpack.c.b16 %v2639, %v2639
        %v2689 = vunpack.c.l.b16 %v2053
        %v2690 = vunpack.c.l.b16 %v2054
        %v2691 = vunpack.c.l.b16 %v2055
        %v2692 = vunpack.c.l.b16 %v2056
        %v2693 = vunpack.c.l.b16 %v2057
        %v2694 = vunpack.c.l.b16 %v2058
        %v2695 = vunpack.c.l.b16 %v2059
        %v2696 = vunpack.c.l.b16 %v2060
        %v2697 = vunpack.c.l.b16 %v2061
        %v2698 = vunpack.c.l.b16 %v2062
        %v2699 = vunpack.c.l.b16 %v2063
        %v2700 = vunpack.c.l.b16 %v2064
        %v2701 = vunpack.c.l.b16 %v2065
        %v2702 = vunpack.c.l.b16 %v2066
        %v2703 = vunpack.c.l.b16 %v2067
        %v2704 = vunpack.c.l.b16 %v2068
        %v2705 = vunpack.c.l.b16 %v2069
        %v2706 = vunpack.c.l.b16 %v2070
        %v2707 = vunpack.c.l.b16 %v2071
        %v2708 = vunpack.c.l.b16 %v2072
        %v2709 = vunpack.c.l.b16 %v2073
        %v2710 = vunpack.c.l.b16 %v2074
        %v2711 = vunpack.c.l.b16 %v2075
        %v2712 = vunpack.c.l.b16 %v2076
        %v2713 = vunpack.c.l.b16 %v2077
        %v2714 = vunpack.c.l.b16 %v2078
        %v2715 = vunpack.c.l.b16 %v2079
        %v2716 = vunpack.c.l.b16 %v2080
        %v2717 = vunpack.c.l.b16 %v2081
        %v2718 = vunpack.c.l.b16 %v2082
        %v2719 = vunpack.c.l.b16 %v2083
        %v2720 = vunpack.c.l.b16 %v2084
        %v2721 = vpack.c.b16 %v2690, %v2689
        %v2722 = vpack.c.b16 %v2692, %v2691
        %v2723 = vpack.c.b16 %v2694, %v2693
        %v2724 = vpack.c.b16 %v2696, %v2695
        %v2725 = vpack.c.b16 %v2698, %v2697
        %v2726 = vpack.c.b16 %v2700, %v2699
        %v2727 = vpack.c.b16 %v2702, %v2701
        %v2728 = vpack.c.b16 %v2704, %v2703
        %v2729 = vpack.c.b16 %v2706, %v2705
        %v2730 = vpack.c.b16 %v2708, %v2707
        %v2731 = vpack.c.b16 %v2710, %v2709
        %v2732 = vpack.c.b16 %v2712, %v2711
        %v2733 = vpack.c.b16 %v2714, %v2713
        %v2734 = vpack.c.b16 %v2716, %v2715
        %v2735 = vpack.c.b16 %v2718, %v2717
        %v2736 = vpack.c.b16 %v2720, %v2719
        %vm2737 = vsmask.f32 3328
        %v2739 = vshrl.u32 %v2721, 16
        %v2741 = vrot.slane %v2739, 4
        %v2742 = vshll.u32 %v2721, 16
        %v2744 = vrot.slane %v2742, 5
        %v2745 = vor.u32 %v2741, %v2744
        %v2747 = vshrl.u32 %v2722, 16
        %v2749 = vrot.slane %v2747, 4
        %v2750 = vshll.u32 %v2722, 16
        %v2752 = vrot.slane %v2750, 5
        %v2753 = vor.u32 %v2749, %v2752
        %v2754 = vsel %vm2737, %v2745, %v2753
        %v2756 = vshrl.u32 %v2723, 16
        %v2758 = vrot.slane %v2756, 4
        %v2759 = vshll.u32 %v2723, 16
        %v2761 = vrot.slane %v2759, 5
        %v2762 = vor.u32 %v2758, %v2761
        %v2763 = vsel %vm2737, %v2753, %v2762
        %v2765 = vshrl.u32 %v2724, 16
        %v2767 = vrot.slane %v2765, 4
        %v2768 = vshll.u32 %v2724, 16
        %v2770 = vrot.slane %v2768, 5
        %v2771 = vor.u32 %v2767, %v2770
        %v2772 = vsel %vm2737, %v2762, %v2771
        %v2774 = vshrl.u32 %v2725, 16
        %v2776 = vrot.slane %v2774, 4
        %v2777 = vshll.u32 %v2725, 16
        %v2779 = vrot.slane %v2777, 5
        %v2780 = vor.u32 %v2776, %v2779
        %v2781 = vsel %vm2737, %v2771, %v2780
        %v2783 = vshrl.u32 %v2726, 16
        %v2785 = vrot.slane %v2783, 4
        %v2786 = vshll.u32 %v2726, 16
        %v2788 = vrot.slane %v2786, 5
        %v2789 = vor.u32 %v2785, %v2788
        %v2790 = vsel %vm2737, %v2780, %v2789
        %v2792 = vshrl.u32 %v2727, 16
        %v2794 = vrot.slane %v2792, 4
        %v2795 = vshll.u32 %v2727, 16
        %v2797 = vrot.slane %v2795, 5
        %v2798 = vor.u32 %v2794, %v2797
        %v2799 = vsel %vm2737, %v2789, %v2798
        %v2801 = vshrl.u32 %v2728, 16
        %v2803 = vrot.slane %v2801, 4
        %v2804 = vshll.u32 %v2728, 16
        %v2806 = vrot.slane %v2804, 5
        %v2807 = vor.u32 %v2803, %v2806
        %v2808 = vsel %vm2737, %v2798, %v2807
        %v2810 = vshrl.u32 %v2729, 16
        %v2812 = vrot.slane %v2810, 4
        %v2813 = vshll.u32 %v2729, 16
        %v2815 = vrot.slane %v2813, 5
        %v2816 = vor.u32 %v2812, %v2815
        %v2817 = vsel %vm2737, %v2807, %v2816
        %v2819 = vshrl.u32 %v2730, 16
        %v2821 = vrot.slane %v2819, 4
        %v2822 = vshll.u32 %v2730, 16
        %v2824 = vrot.slane %v2822, 5
        %v2825 = vor.u32 %v2821, %v2824
        %v2826 = vsel %vm2737, %v2816, %v2825
        %v2828 = vshrl.u32 %v2731, 16
        %v2830 = vrot.slane %v2828, 4
        %v2831 = vshll.u32 %v2731, 16
        %v2833 = vrot.slane %v2831, 5
        %v2834 = vor.u32 %v2830, %v2833
        %v2835 = vsel %vm2737, %v2825, %v2834
        %v2837 = vshrl.u32 %v2732, 16
        %v2839 = vrot.slane %v2837, 4
        %v2840 = vshll.u32 %v2732, 16
        %v2842 = vrot.slane %v2840, 5
        %v2843 = vor.u32 %v2839, %v2842
        %v2844 = vsel %vm2737, %v2834, %v2843
        %v2846 = vshrl.u32 %v2733, 16
        %v2848 = vrot.slane %v2846, 4
        %v2849 = vshll.u32 %v2733, 16
        %v2851 = vrot.slane %v2849, 5
        %v2852 = vor.u32 %v2848, %v2851
        %v2853 = vsel %vm2737, %v2843, %v2852
        %v2855 = vshrl.u32 %v2734, 16
        %v2857 = vrot.slane %v2855, 4
        %v2858 = vshll.u32 %v2734, 16
        %v2860 = vrot.slane %v2858, 5
        %v2861 = vor.u32 %v2857, %v2860
        %v2862 = vsel %vm2737, %v2852, %v2861
        %v2864 = vshrl.u32 %v2735, 16
        %v2866 = vrot.slane %v2864, 4
        %v2867 = vshll.u32 %v2735, 16
        %v2869 = vrot.slane %v2867, 5
        %v2870 = vor.u32 %v2866, %v2869
        %v2871 = vsel %vm2737, %v2861, %v2870
        %v2873 = vshrl.u32 %v2736, 16
        %v2875 = vrot.slane %v2873, 4
        %v2876 = vshll.u32 %v2736, 16
        %v2878 = vrot.slane %v2876, 5
        %v2879 = vor.u32 %v2875, %v2878
        %v2880 = vsel %vm2737, %v2870, %v2879
        %v2914 = vunpack.c.l.b16 %v2541
        %v2915 = vunpack.c.l.b16 %v2542
        %v2916 = vunpack.c.l.b16 %v2543
        %v2917 = vunpack.c.l.b16 %v2544
        %v2918 = vunpack.c.l.b16 %v2545
        %v2919 = vunpack.c.l.b16 %v2546
        %v2920 = vunpack.c.l.b16 %v2547
        %v2921 = vunpack.c.l.b16 %v2548
        %v2922 = vunpack.c.l.b16 %v2549
        %v2923 = vunpack.c.l.b16 %v2550
        %v2924 = vunpack.c.l.b16 %v2551
        %v2925 = vunpack.c.l.b16 %v2552
        %v2926 = vunpack.c.l.b16 %v2553
        %v2927 = vunpack.c.l.b16 %v2554
        %v2928 = vunpack.c.l.b16 %v2555
        %v2929 = vunpack.c.l.b16 %v2556
        %v2930 = vunpack.c.l.b16 %v2557
        %v2931 = vunpack.c.l.b16 %v2558
        %v2932 = vunpack.c.l.b16 %v2559
        %v2933 = vunpack.c.l.b16 %v2560
        %v2934 = vunpack.c.l.b16 %v2561
        %v2935 = vunpack.c.l.b16 %v2562
        %v2936 = vunpack.c.l.b16 %v2563
        %v2937 = vunpack.c.l.b16 %v2564
        %v2938 = vunpack.c.l.b16 %v2565
        %v2939 = vunpack.c.l.b16 %v2566
        %v2940 = vunpack.c.l.b16 %v2567
        %v2941 = vunpack.c.l.b16 %v2568
        %v2942 = vunpack.c.l.b16 %v2569
        %v2943 = vunpack.c.l.b16 %v2570
        %v2944 = vunpack.c.l.b16 %v2571
        %v2945 = vunpack.c.l.b16 %v2572
        %v2946 = vunpack.c.l.b16 %v2573
        %v2947 = vpack.c.b16 %v2915, %v2914
        %v2948 = vpack.c.b16 %v2917, %v2916
        %v2949 = vpack.c.b16 %v2919, %v2918
        %v2950 = vpack.c.b16 %v2921, %v2920
        %v2951 = vpack.c.b16 %v2923, %v2922
        %v2952 = vpack.c.b16 %v2925, %v2924
        %v2953 = vpack.c.b16 %v2927, %v2926
        %v2954 = vpack.c.b16 %v2929, %v2928
        %v2955 = vpack.c.b16 %v2931, %v2930
        %v2956 = vpack.c.b16 %v2933, %v2932
        %v2957 = vpack.c.b16 %v2935, %v2934
        %v2958 = vpack.c.b16 %v2937, %v2936
        %v2959 = vpack.c.b16 %v2939, %v2938
        %v2960 = vpack.c.b16 %v2941, %v2940
        %v2961 = vpack.c.b16 %v2943, %v2942
        %v2962 = vpack.c.b16 %v2945, %v2944
        %v2963 = vpack.c.b16 %v2946, %v2946
        %vm2964 = vcmask 1042432
        %v2965 = vrot.slane %v2947, 5
        %v2966 = vrot.slane %v2948, 5
        %v2967 = vsel %vm2964, %v2965, %v2966
        %v2968 = vrot.slane %v2949, 5
        %v2969 = vsel %vm2964, %v2966, %v2968
        %v2970 = vrot.slane %v2950, 5
        %v2971 = vsel %vm2964, %v2968, %v2970
        %v2972 = vrot.slane %v2951, 5
        %v2973 = vsel %vm2964, %v2970, %v2972
        %v2974 = vrot.slane %v2952, 5
        %v2975 = vsel %vm2964, %v2972, %v2974
        %v2976 = vrot.slane %v2953, 5
        %v2977 = vsel %vm2964, %v2974, %v2976
        %v2978 = vrot.slane %v2954, 5
        %v2979 = vsel %vm2964, %v2976, %v2978
        %v2980 = vrot.slane %v2955, 5
        %v2981 = vsel %vm2964, %v2978, %v2980
        %v2982 = vrot.slane %v2956, 5
        %v2983 = vsel %vm2964, %v2980, %v2982
        %v2984 = vrot.slane %v2957, 5
        %v2985 = vsel %vm2964, %v2982, %v2984
        %v2986 = vrot.slane %v2958, 5
        %v2987 = vsel %vm2964, %v2984, %v2986
        %v2988 = vrot.slane %v2959, 5
        %v2989 = vsel %vm2964, %v2986, %v2988
        %v2990 = vrot.slane %v2960, 5
        %v2991 = vsel %vm2964, %v2988, %v2990
        %v2992 = vrot.slane %v2961, 5
        %v2993 = vsel %vm2964, %v2990, %v2992
        %v2994 = vrot.slane %v2962, 5
        %v2995 = vsel %vm2964, %v2992, %v2994
        %v2996 = vrot.slane %v2963, 5
        %v2997 = vsel %vm2964, %v2994, %v2996
        %v2998 = vld [vmem:[#allocation8] sm:$0xf]
        %v2999 = vld [vmem:[#allocation8 + $0x4] sm:$0xf]
        %v3000 = vld [vmem:[#allocation8 + $0x8] sm:$0xf]
        %v3001 = vld [vmem:[#allocation8 + $0xc] sm:$0xf]
        %v3002 = vld [vmem:[#allocation8 + $0x10] sm:$0xf]
        %v3003 = vld [vmem:[#allocation8 + $0x14] sm:$0xf]
        %v3004 = vld [vmem:[#allocation8 + $0x18] sm:$0xf]
        %v3005 = vld [vmem:[#allocation8 + $0x1c] sm:$0xf]
        %v3006 = vld [vmem:[#allocation8 + $0x20] sm:$0xf]
        %v3007 = vld [vmem:[#allocation8 + $0x24] sm:$0xf]
        %v3008 = vld [vmem:[#allocation8 + $0x28] sm:$0xf]
        %v3009 = vld [vmem:[#allocation8 + $0x2c] sm:$0xf]
        %v3010 = vld [vmem:[#allocation8 + $0x30] sm:$0xf]
        %v3011 = vld [vmem:[#allocation8 + $0x34] sm:$0xf]
        %v3012 = vld [vmem:[#allocation8 + $0x38] sm:$0xf]
        %v3013 = vld [vmem:[#allocation8 + $0x3c] sm:$0xf]
        %v3014 = vld [vmem:[#allocation8 + $0x40] sm:$0xf]
        %v3015 = vld [vmem:[#allocation8 + $0x44] sm:$0xf]
        %v3016 = vld [vmem:[#allocation8 + $0x48] sm:$0xf]
        %v3017 = vld [vmem:[#allocation8 + $0x4c] sm:$0xf]
        %v3018 = vld [vmem:[#allocation8 + $0x50] sm:$0xf]
        %v3019 = vld [vmem:[#allocation8 + $0x54] sm:$0xf]
        %v3020 = vld [vmem:[#allocation8 + $0x58] sm:$0xf]
        %v3021 = vld [vmem:[#allocation8 + $0x5c] sm:$0xf]
        %v3022 = vld [vmem:[#allocation8 + $0x60] sm:$0xf]
        %v3023 = vld [vmem:[#allocation8 + $0x64] sm:$0xf]
        %v3024 = vld [vmem:[#allocation8 + $0x68] sm:$0xf]
        %v3025 = vld [vmem:[#allocation8 + $0x6c] sm:$0xf]
        %v3026 = vld [vmem:[#allocation8 + $0x70] sm:$0xf]
        %v3027 = vld [vmem:[#allocation8 + $0x74] sm:$0xf]
        %v3028 = vld [vmem:[#allocation8 + $0x78] sm:$0xf]
        %v3029 = vld [vmem:[#allocation8 + $0x7c] sm:$0xf]
        %v3030 = vld [vmem:[#allocation8 + $0x80] sm:$0xf]
        %v3031 = vld [vmem:[#allocation8 + $0x84] sm:$0xf]
        %v3032 = vld [vmem:[#allocation8 + $0x88] sm:$0xf]
        %v3033 = vld [vmem:[#allocation8 + $0x8c] sm:$0xf]
        %v3034 = vld [vmem:[#allocation8 + $0x90] sm:$0xf]
        %v3035 = vld [vmem:[#allocation8 + $0x94] sm:$0xf]
        %v3036 = vld [vmem:[#allocation8 + $0x98] sm:$0xf]
        %v3037 = vld [vmem:[#allocation8 + $0x9c] sm:$0xf]
        %v3038 = vld [vmem:[#allocation8 + $0xa0] sm:$0xf]
        %v3039 = vld [vmem:[#allocation8 + $0xa4] sm:$0xf]
        %v3040 = vld [vmem:[#allocation8 + $0xa8] sm:$0xf]
        %v3041 = vld [vmem:[#allocation8 + $0xac] sm:$0xf]
        %v3042 = vld [vmem:[#allocation8 + $0xb0] sm:$0xf]
        %v3043 = vld [vmem:[#allocation8 + $0xb4] sm:$0xf]
        %v3044 = vld [vmem:[#allocation8 + $0xb8] sm:$0xf]
        %v3045 = vld [vmem:[#allocation8 + $0xbc] sm:$0xf]
        %v3046 = vld [vmem:[#allocation2 + $0xc] sm:$0x8]
        %v3047 = vld [vmem:[#allocation2 + $0x88] sm:$0xf]
        %v3048 = vld [vmem:[#allocation2 + $0x8c] sm:$0xf]
        %v3049 = vunpack.c.l.bf16 %v3046
        %v3050 = vunpack.c.l.bf16 %v3047
        %v3051 = vunpack.c.l.bf16 %v3048
        %v3052 = vmul.f32 %v3049, %v2183
        %v3053 = vmul.f32 %v2088, %v2185
        %v3054 = vmul.f32 %v2089, %v2187
        %v3055 = vmul.f32 %v2090, %v2189
        %v3056 = vmul.f32 %v2091, %v2191
        %v3057 = vmul.f32 %v2092, %v2193
        %v3058 = vmul.f32 %v2093, %v2195
        %v3059 = vmul.f32 %v2094, %v2197
        %v3060 = vmul.f32 %v2095, %v2199
        %v3061 = vmul.f32 %v2096, %v2201
        %v3062 = vmul.f32 %v2097, %v2203
        %v3063 = vmul.f32 %v2098, %v2205
        %v3064 = vmul.f32 %v2099, %v2207
        %v3065 = vmul.f32 %v2100, %v2209
        %v3066 = vmul.f32 %v2101, %v2211
        %v3067 = vmul.f32 %v2102, %v2213
        %v3068 = vmul.f32 %v2103, %v2215
        %v3069 = vmul.f32 %v2104, %v2217
        %v3070 = vmul.f32 %v2105, %v2219
        %v3071 = vmul.f32 %v2106, %v2221
        %v3072 = vmul.f32 %v2107, %v2223
        %v3073 = vmul.f32 %v2108, %v2225
        %v3074 = vmul.f32 %v2109, %v2227
        %v3075 = vmul.f32 %v2110, %v2229
        %v3076 = vmul.f32 %v2111, %v2231
        %v3077 = vmul.f32 %v2112, %v2233
        %v3078 = vmul.f32 %v2113, %v2235
        %v3079 = vmul.f32 %v2114, %v2237
        %v3080 = vmul.f32 %v2115, %v2239
        %v3081 = vmul.f32 %v2116, %v2241
        %v3082 = vmul.f32 %v2117, %v2243
        %v3083 = vmul.f32 %v3050, %v2245
        %v3084 = vmul.f32 %v3051, %v2244
        %v3085 = vpack.c.bf16 %v3052, %v3052
        %v3086 = vpack.c.bf16 %v3053, %v3053
        %v3087 = vpack.c.bf16 %v3054, %v3054
        %v3088 = vpack.c.bf16 %v3055, %v3055
        %v3089 = vpack.c.bf16 %v3056, %v3056
        %v3090 = vpack.c.bf16 %v3057, %v3057
        %v3091 = vpack.c.bf16 %v3058, %v3058
        %v3092 = vpack.c.bf16 %v3059, %v3059
        %v3093 = vpack.c.bf16 %v3060, %v3060
        %v3094 = vpack.c.bf16 %v3061, %v3061
        %v3095 = vpack.c.bf16 %v3062, %v3062
        %v3096 = vpack.c.bf16 %v3063, %v3063
        %v3097 = vpack.c.bf16 %v3064, %v3064
        %v3098 = vpack.c.bf16 %v3065, %v3065
        %v3099 = vpack.c.bf16 %v3066, %v3066
        %v3100 = vpack.c.bf16 %v3067, %v3067
        %v3101 = vpack.c.bf16 %v3068, %v3068
        %v3102 = vpack.c.bf16 %v3069, %v3069
        %v3103 = vpack.c.bf16 %v3070, %v3070
        %v3104 = vpack.c.bf16 %v3071, %v3071
        %v3105 = vpack.c.bf16 %v3072, %v3072
        %v3106 = vpack.c.bf16 %v3073, %v3073
        %v3107 = vpack.c.bf16 %v3074, %v3074
        %v3108 = vpack.c.bf16 %v3075, %v3075
        %v3109 = vpack.c.bf16 %v3076, %v3076
        %v3110 = vpack.c.bf16 %v3077, %v3077
        %v3111 = vpack.c.bf16 %v3078, %v3078
        %v3112 = vpack.c.bf16 %v3079, %v3079
        %v3113 = vpack.c.bf16 %v3080, %v3080
        %v3114 = vpack.c.bf16 %v3081, %v3081
        %v3115 = vpack.c.bf16 %v3082, %v3082
        %v3116 = vpack.c.bf16 %v3083, %v3083
        %v3117 = vpack.c.bf16 %v3084, %v3084
        %v3118 = vld [vmem:[#allocation2 + $0x90] sm:$0x1]
        %v3119 = vunpack.c.l.bf16 %v3118
        %v3120 = vmul.f32 %v2088, %v2412
        %v3121 = vmul.f32 %v2089, %v2414
        %v3122 = vmul.f32 %v2090, %v2416
        %v3123 = vmul.f32 %v2091, %v2418
        %v3124 = vmul.f32 %v2092, %v2420
        %v3125 = vmul.f32 %v2093, %v2422
        %v3126 = vmul.f32 %v2094, %v2424
        %v3127 = vmul.f32 %v2095, %v2426
        %v3128 = vmul.f32 %v2096, %v2428
        %v3129 = vmul.f32 %v2097, %v2430
        %v3130 = vmul.f32 %v2098, %v2432
        %v3131 = vmul.f32 %v2099, %v2434
        %v3132 = vmul.f32 %v2100, %v2436
        %v3133 = vmul.f32 %v2101, %v2438
        %v3134 = vmul.f32 %v2102, %v2440
        %v3135 = vmul.f32 %v2103, %v2442
        %v3136 = vmul.f32 %v2104, %v2444
        %v3137 = vmul.f32 %v2105, %v2446
        %v3138 = vmul.f32 %v2106, %v2448
        %v3139 = vmul.f32 %v2107, %v2450
        %v3140 = vmul.f32 %v2108, %v2452
        %v3141 = vmul.f32 %v2109, %v2454
        %v3142 = vmul.f32 %v2110, %v2456
        %v3143 = vmul.f32 %v2111, %v2458
        %v3144 = vmul.f32 %v2112, %v2460
        %v3145 = vmul.f32 %v2113, %v2462
        %v3146 = vmul.f32 %v2114, %v2464
        %v3147 = vmul.f32 %v2115, %v2466
        %v3148 = vmul.f32 %v2116, %v2468
        %v3149 = vmul.f32 %v2117, %v2470
        %v3150 = vmul.f32 %v3050, %v2472
        %v3151 = vmul.f32 %v3051, %v2474
        %v3152 = vmul.f32 %v3119, %v2473
        %v3153 = vpack.c.bf16 %v3120, %v3120
        %v3154 = vpack.c.bf16 %v3121, %v3121
        %v3155 = vpack.c.bf16 %v3122, %v3122
        %v3156 = vpack.c.bf16 %v3123, %v3123
        %v3157 = vpack.c.bf16 %v3124, %v3124
        %v3158 = vpack.c.bf16 %v3125, %v3125
        %v3159 = vpack.c.bf16 %v3126, %v3126
        %v3160 = vpack.c.bf16 %v3127, %v3127
        %v3161 = vpack.c.bf16 %v3128, %v3128
        %v3162 = vpack.c.bf16 %v3129, %v3129
        %v3163 = vpack.c.bf16 %v3130, %v3130
        %v3164 = vpack.c.bf16 %v3131, %v3131
        %v3165 = vpack.c.bf16 %v3132, %v3132
        %v3166 = vpack.c.bf16 %v3133, %v3133
        %v3167 = vpack.c.bf16 %v3134, %v3134
        %v3168 = vpack.c.bf16 %v3135, %v3135
        %v3169 = vpack.c.bf16 %v3136, %v3136
        %v3170 = vpack.c.bf16 %v3137, %v3137
        %v3171 = vpack.c.bf16 %v3138, %v3138
        %v3172 = vpack.c.bf16 %v3139, %v3139
        %v3173 = vpack.c.bf16 %v3140, %v3140
        %v3174 = vpack.c.bf16 %v3141, %v3141
        %v3175 = vpack.c.bf16 %v3142, %v3142
        %v3176 = vpack.c.bf16 %v3143, %v3143
        %v3177 = vpack.c.bf16 %v3144, %v3144
        %v3178 = vpack.c.bf16 %v3145, %v3145
        %v3179 = vpack.c.bf16 %v3146, %v3146
        %v3180 = vpack.c.bf16 %v3147, %v3147
        %v3181 = vpack.c.bf16 %v3148, %v3148
        %v3182 = vpack.c.bf16 %v3149, %v3149
        %v3183 = vpack.c.bf16 %v3150, %v3150
        %v3184 = vpack.c.bf16 %v3151, %v3151
        %v3185 = vpack.c.bf16 %v3152, %v3152
        %v3219 = vunpack.c.l.b16 %v3085
        %v3220 = vunpack.c.l.b16 %v3086
        %v3221 = vunpack.c.l.b16 %v3087
        %v3222 = vunpack.c.l.b16 %v3088
        %v3223 = vunpack.c.l.b16 %v3089
        %v3224 = vunpack.c.l.b16 %v3090
        %v3225 = vunpack.c.l.b16 %v3091
        %v3226 = vunpack.c.l.b16 %v3092
        %v3227 = vunpack.c.l.b16 %v3093
        %v3228 = vunpack.c.l.b16 %v3094
        %v3229 = vunpack.c.l.b16 %v3095
        %v3230 = vunpack.c.l.b16 %v3096
        %v3231 = vunpack.c.l.b16 %v3097
        %v3232 = vunpack.c.l.b16 %v3098
        %v3233 = vunpack.c.l.b16 %v3099
        %v3234 = vunpack.c.l.b16 %v3100
        %v3235 = vunpack.c.l.b16 %v3101
        %v3236 = vunpack.c.l.b16 %v3102
        %v3237 = vunpack.c.l.b16 %v3103
        %v3238 = vunpack.c.l.b16 %v3104
        %v3239 = vunpack.c.l.b16 %v3105
        %v3240 = vunpack.c.l.b16 %v3106
        %v3241 = vunpack.c.l.b16 %v3107
        %v3242 = vunpack.c.l.b16 %v3108
        %v3243 = vunpack.c.l.b16 %v3109
        %v3244 = vunpack.c.l.b16 %v3110
        %v3245 = vunpack.c.l.b16 %v3111
        %v3246 = vunpack.c.l.b16 %v3112
        %v3247 = vunpack.c.l.b16 %v3113
        %v3248 = vunpack.c.l.b16 %v3114
        %v3249 = vunpack.c.l.b16 %v3115
        %v3250 = vunpack.c.l.b16 %v3116
        %v3251 = vunpack.c.l.b16 %v3117
        %v3252 = vpack.c.b16 %v3220, %v3219
        %v3253 = vpack.c.b16 %v3222, %v3221
        %v3254 = vpack.c.b16 %v3224, %v3223
        %v3255 = vpack.c.b16 %v3226, %v3225
        %v3256 = vpack.c.b16 %v3228, %v3227
        %v3257 = vpack.c.b16 %v3230, %v3229
        %v3258 = vpack.c.b16 %v3232, %v3231
        %v3259 = vpack.c.b16 %v3234, %v3233
        %v3260 = vpack.c.b16 %v3236, %v3235
        %v3261 = vpack.c.b16 %v3238, %v3237
        %v3262 = vpack.c.b16 %v3240, %v3239
        %v3263 = vpack.c.b16 %v3242, %v3241
        %v3264 = vpack.c.b16 %v3244, %v3243
        %v3265 = vpack.c.b16 %v3246, %v3245
        %v3266 = vpack.c.b16 %v3248, %v3247
        %v3267 = vpack.c.b16 %v3250, %v3249
        %v3268 = vpack.c.b16 %v3251, %v3251
        %v3271 = vunpack.c.l.b16 %v3047
        %v3272 = vunpack.c.l.b16 %v3048
        %v3273 = vpack.c.b16 %v3272, %v3271
        %v3275 = vshrl.u32 %v3273, 16
        %v3277 = vrot.slane %v3275, 4
        %v3278 = vshll.u32 %v3273, 16
        %v3280 = vrot.slane %v3278, 5
        %v3281 = vor.u32 %v3277, %v3280
        %v3282 = vsel %vm2737, %v2879, %v3281
        %v3316 = vunpack.c.l.b16 %v3153
        %v3317 = vunpack.c.l.b16 %v3154
        %v3318 = vunpack.c.l.b16 %v3155
        %v3319 = vunpack.c.l.b16 %v3156
        %v3320 = vunpack.c.l.b16 %v3157
        %v3321 = vunpack.c.l.b16 %v3158
        %v3322 = vunpack.c.l.b16 %v3159
        %v3323 = vunpack.c.l.b16 %v3160
        %v3324 = vunpack.c.l.b16 %v3161
        %v3325 = vunpack.c.l.b16 %v3162
        %v3326 = vunpack.c.l.b16 %v3163
        %v3327 = vunpack.c.l.b16 %v3164
        %v3328 = vunpack.c.l.b16 %v3165
        %v3329 = vunpack.c.l.b16 %v3166
        %v3330 = vunpack.c.l.b16 %v3167
        %v3331 = vunpack.c.l.b16 %v3168
        %v3332 = vunpack.c.l.b16 %v3169
        %v3333 = vunpack.c.l.b16 %v3170
        %v3334 = vunpack.c.l.b16 %v3171
        %v3335 = vunpack.c.l.b16 %v3172
        %v3336 = vunpack.c.l.b16 %v3173
        %v3337 = vunpack.c.l.b16 %v3174
        %v3338 = vunpack.c.l.b16 %v3175
        %v3339 = vunpack.c.l.b16 %v3176
        %v3340 = vunpack.c.l.b16 %v3177
        %v3341 = vunpack.c.l.b16 %v3178
        %v3342 = vunpack.c.l.b16 %v3179
        %v3343 = vunpack.c.l.b16 %v3180
        %v3344 = vunpack.c.l.b16 %v3181
        %v3345 = vunpack.c.l.b16 %v3182
        %v3346 = vunpack.c.l.b16 %v3183
        %v3347 = vunpack.c.l.b16 %v3184
        %v3348 = vunpack.c.l.b16 %v3185
        %v3349 = vpack.c.b16 %v3317, %v3316
        %v3350 = vpack.c.b16 %v3319, %v3318
        %v3351 = vpack.c.b16 %v3321, %v3320
        %v3352 = vpack.c.b16 %v3323, %v3322
        %v3353 = vpack.c.b16 %v3325, %v3324
        %v3354 = vpack.c.b16 %v3327, %v3326
        %v3355 = vpack.c.b16 %v3329, %v3328
        %v3356 = vpack.c.b16 %v3331, %v3330
        %v3357 = vpack.c.b16 %v3333, %v3332
        %v3358 = vpack.c.b16 %v3335, %v3334
        %v3359 = vpack.c.b16 %v3337, %v3336
        %v3360 = vpack.c.b16 %v3339, %v3338
        %v3361 = vpack.c.b16 %v3341, %v3340
        %v3362 = vpack.c.b16 %v3343, %v3342
        %v3363 = vpack.c.b16 %v3345, %v3344
        %v3364 = vpack.c.b16 %v3347, %v3346
        %v3365 = vpack.c.b16 %v3348, %v3348
        %v3366 = vrot.slane %v3349, 5
        %v3367 = vrot.slane %v3350, 5
        %v3368 = vsel %vm2964, %v3366, %v3367
        %v3369 = vrot.slane %v3351, 5
        %v3370 = vsel %vm2964, %v3367, %v3369
        %v3371 = vrot.slane %v3352, 5
        %v3372 = vsel %vm2964, %v3369, %v3371
        %v3373 = vrot.slane %v3353, 5
        %v3374 = vsel %vm2964, %v3371, %v3373
        %v3375 = vrot.slane %v3354, 5
        %v3376 = vsel %vm2964, %v3373, %v3375
        %v3377 = vrot.slane %v3355, 5
        %v3378 = vsel %vm2964, %v3375, %v3377
        %v3379 = vrot.slane %v3356, 5
        %v3380 = vsel %vm2964, %v3377, %v3379
        %v3381 = vrot.slane %v3357, 5
        %v3382 = vsel %vm2964, %v3379, %v3381
        %v3383 = vrot.slane %v3358, 5
        %v3384 = vsel %vm2964, %v3381, %v3383
        %v3385 = vrot.slane %v3359, 5
        %v3386 = vsel %vm2964, %v3383, %v3385
        %v3387 = vrot.slane %v3360, 5
        %v3388 = vsel %vm2964, %v3385, %v3387
        %v3389 = vrot.slane %v3361, 5
        %v3390 = vsel %vm2964, %v3387, %v3389
        %v3391 = vrot.slane %v3362, 5
        %v3392 = vsel %vm2964, %v3389, %v3391
        %v3393 = vrot.slane %v3363, 5
        %v3394 = vsel %vm2964, %v3391, %v3393
        %v3395 = vrot.slane %v3364, 5
        %v3396 = vsel %vm2964, %v3393, %v3395
        %v3397 = vrot.slane %v3365, 5
        %v3398 = vsel %vm2964, %v3395, %v3397
        %v3399 = vld [vmem:[#allocation8 + $0xc0] sm:$0xf]
        %v3400 = vld [vmem:[#allocation8 + $0xc4] sm:$0xf]
        %v3401 = vld [vmem:[#allocation8 + $0xc8] sm:$0xf]
        %v3402 = vld [vmem:[#allocation8 + $0xcc] sm:$0xf]
        %v3403 = vld [vmem:[#allocation8 + $0xd0] sm:$0xf]
        %v3404 = vld [vmem:[#allocation8 + $0xd4] sm:$0xf]
        %v3405 = vld [vmem:[#allocation8 + $0xd8] sm:$0xf]
        %v3406 = vld [vmem:[#allocation8 + $0xdc] sm:$0xf]
        %v3407 = vld [vmem:[#allocation8 + $0xe0] sm:$0xf]
        %v3408 = vld [vmem:[#allocation8 + $0xe4] sm:$0xf]
        %v3409 = vld [vmem:[#allocation8 + $0xe8] sm:$0xf]
        %v3410 = vld [vmem:[#allocation8 + $0xec] sm:$0xf]
        %v3411 = vld [vmem:[#allocation8 + $0xf0] sm:$0xf]
        %v3412 = vld [vmem:[#allocation8 + $0xf4] sm:$0xf]
        %v3413 = vld [vmem:[#allocation8 + $0xf8] sm:$0xf]
        %v3414 = vld [vmem:[#allocation8 + $0xfc] sm:$0xf]
        %v3415 = vld [vmem:[#allocation8 + $0x100] sm:$0xf]
        %v3416 = vld [vmem:[#allocation8 + $0x104] sm:$0xf]
        %v3417 = vld [vmem:[#allocation8 + $0x108] sm:$0xf]
        %v3418 = vld [vmem:[#allocation8 + $0x10c] sm:$0xf]
        %v3419 = vld [vmem:[#allocation8 + $0x110] sm:$0xf]
        %v3420 = vld [vmem:[#allocation8 + $0x114] sm:$0xf]
        %v3421 = vld [vmem:[#allocation8 + $0x118] sm:$0xf]
        %v3422 = vld [vmem:[#allocation8 + $0x11c] sm:$0xf]
        %v3423 = vld [vmem:[#allocation8 + $0x120] sm:$0xf]
        %v3424 = vld [vmem:[#allocation8 + $0x124] sm:$0xf]
        %v3425 = vld [vmem:[#allocation8 + $0x128] sm:$0xf]
        %v3426 = vld [vmem:[#allocation8 + $0x12c] sm:$0xf]
        %v3427 = vld [vmem:[#allocation8 + $0x130] sm:$0xf]
        %v3428 = vld [vmem:[#allocation8 + $0x134] sm:$0xf]
        %v3429 = vld [vmem:[#allocation8 + $0x138] sm:$0xf]
        %v3430 = vld [vmem:[#allocation8 + $0x13c] sm:$0xf]
        %v3431 = vld [vmem:[#allocation8 + $0x140] sm:$0xf]
        %v3432 = vld [vmem:[#allocation8 + $0x144] sm:$0xf]
        %v3433 = vld [vmem:[#allocation8 + $0x148] sm:$0xf]
        %v3434 = vld [vmem:[#allocation8 + $0x14c] sm:$0xf]
        %v3435 = vld [vmem:[#allocation8 + $0x150] sm:$0xf]
        %v3436 = vld [vmem:[#allocation8 + $0x154] sm:$0xf]
        %v3437 = vld [vmem:[#allocation8 + $0x158] sm:$0xf]
        %v3438 = vld [vmem:[#allocation8 + $0x15c] sm:$0xf]
        %v3439 = vld [vmem:[#allocation8 + $0x160] sm:$0xf]
        %v3440 = vld [vmem:[#allocation8 + $0x164] sm:$0xf]
        %v3441 = vld [vmem:[#allocation8 + $0x168] sm:$0xf]
        %v3442 = vld [vmem:[#allocation8 + $0x16c] sm:$0xf]
        %v3443 = vld [vmem:[#allocation8 + $0x170] sm:$0xf]
        %v3444 = vld [vmem:[#allocation8 + $0x174] sm:$0xf]
        %v3445 = vld [vmem:[#allocation8 + $0x178] sm:$0xf]
        %v3446 = vld [vmem:[#allocation8 + $0x17c] sm:$0xf]
        %vm3447 = vsmask.f32 4352
        %v3449 = vshrl.u32 %v3252, 16
        %v3451 = vrot.slane %v3449, 3
        %v3452 = vshll.u32 %v3252, 16
        %v3454 = vrot.slane %v3452, 4
        %v3455 = vor.u32 %v3451, %v3454
        %v3457 = vshrl.u32 %v3253, 16
        %v3459 = vrot.slane %v3457, 3
        %v3460 = vshll.u32 %v3253, 16
        %v3462 = vrot.slane %v3460, 4
        %v3463 = vor.u32 %v3459, %v3462
        %v3464 = vsel %vm3447, %v3455, %v3463
        %v3466 = vshrl.u32 %v2753, 16
        %v3468 = vrot.slane %v3466, 3
        %v3469 = vshll.u32 %v2753, 16
        %v3471 = vrot.slane %v3469, 4
        %v3472 = vor.u32 %v3468, %v3471
        %v3474 = vshrl.u32 %v2763, 16
        %v3476 = vrot.slane %v3474, 3
        %v3477 = vshll.u32 %v2763, 16
        %v3479 = vrot.slane %v3477, 4
        %v3480 = vor.u32 %v3476, %v3479
        %v3481 = vsel %vm3447, %v3472, %v3480
        %v3483 = vshrl.u32 %v3366, 16
        %v3485 = vrot.slane %v3483, 3
        %v3486 = vshll.u32 %v3366, 16
        %v3488 = vrot.slane %v3486, 4
        %v3489 = vor.u32 %v3485, %v3488
        %v3491 = vshrl.u32 %v3368, 16
        %v3493 = vrot.slane %v3491, 3
        %v3494 = vshll.u32 %v3368, 16
        %v3496 = vrot.slane %v3494, 4
        %v3497 = vor.u32 %v3493, %v3496
        %v3498 = vsel %vm3447, %v3489, %v3497
        %v3500 = vshrl.u32 %v3254, 16
        %v3502 = vrot.slane %v3500, 3
        %v3503 = vshll.u32 %v3254, 16
        %v3505 = vrot.slane %v3503, 4
        %v3506 = vor.u32 %v3502, %v3505
        %v3507 = vsel %vm3447, %v3463, %v3506
        %v3509 = vshrl.u32 %v2772, 16
        %v3511 = vrot.slane %v3509, 3
        %v3512 = vshll.u32 %v2772, 16
        %v3514 = vrot.slane %v3512, 4
        %v3515 = vor.u32 %v3511, %v3514
        %v3516 = vsel %vm3447, %v3480, %v3515
        %v3518 = vshrl.u32 %v3370, 16
        %v3520 = vrot.slane %v3518, 3
        %v3521 = vshll.u32 %v3370, 16
        %v3523 = vrot.slane %v3521, 4
        %v3524 = vor.u32 %v3520, %v3523
        %v3525 = vsel %vm3447, %v3497, %v3524
        %v3527 = vshrl.u32 %v3255, 16
        %v3529 = vrot.slane %v3527, 3
        %v3530 = vshll.u32 %v3255, 16
        %v3532 = vrot.slane %v3530, 4
        %v3533 = vor.u32 %v3529, %v3532
        %v3534 = vsel %vm3447, %v3506, %v3533
        %v3536 = vshrl.u32 %v2781, 16
        %v3538 = vrot.slane %v3536, 3
        %v3539 = vshll.u32 %v2781, 16
        %v3541 = vrot.slane %v3539, 4
        %v3542 = vor.u32 %v3538, %v3541
        %v3543 = vsel %vm3447, %v3515, %v3542
        %v3545 = vshrl.u32 %v3372, 16
        %v3547 = vrot.slane %v3545, 3
        %v3548 = vshll.u32 %v3372, 16
        %v3550 = vrot.slane %v3548, 4
        %v3551 = vor.u32 %v3547, %v3550
        %v3552 = vsel %vm3447, %v3524, %v3551
        %v3554 = vshrl.u32 %v3256, 16
        %v3556 = vrot.slane %v3554, 3
        %v3557 = vshll.u32 %v3256, 16
        %v3559 = vrot.slane %v3557, 4
        %v3560 = vor.u32 %v3556, %v3559
        %v3561 = vsel %vm3447, %v3533, %v3560
        %v3563 = vshrl.u32 %v2790, 16
        %v3565 = vrot.slane %v3563, 3
        %v3566 = vshll.u32 %v2790, 16
        %v3568 = vrot.slane %v3566, 4
        %v3569 = vor.u32 %v3565, %v3568
        %v3570 = vsel %vm3447, %v3542, %v3569
        %v3572 = vshrl.u32 %v3374, 16
        %v3574 = vrot.slane %v3572, 3
        %v3575 = vshll.u32 %v3374, 16
        %v3577 = vrot.slane %v3575, 4
        %v3578 = vor.u32 %v3574, %v3577
        %v3579 = vsel %vm3447, %v3551, %v3578
        %v3581 = vshrl.u32 %v3257, 16
        %v3583 = vrot.slane %v3581, 3
        %v3584 = vshll.u32 %v3257, 16
        %v3586 = vrot.slane %v3584, 4
        %v3587 = vor.u32 %v3583, %v3586
        %v3588 = vsel %vm3447, %v3560, %v3587
        %v3590 = vshrl.u32 %v2799, 16
        %v3592 = vrot.slane %v3590, 3
        %v3593 = vshll.u32 %v2799, 16
        %v3595 = vrot.slane %v3593, 4
        %v3596 = vor.u32 %v3592, %v3595
        %v3597 = vsel %vm3447, %v3569, %v3596
        %v3599 = vshrl.u32 %v3376, 16
        %v3601 = vrot.slane %v3599, 3
        %v3602 = vshll.u32 %v3376, 16
        %v3604 = vrot.slane %v3602, 4
        %v3605 = vor.u32 %v3601, %v3604
        %v3606 = vsel %vm3447, %v3578, %v3605
        %v3608 = vshrl.u32 %v3258, 16
        %v3610 = vrot.slane %v3608, 3
        %v3611 = vshll.u32 %v3258, 16
        %v3613 = vrot.slane %v3611, 4
        %v3614 = vor.u32 %v3610, %v3613
        %v3615 = vsel %vm3447, %v3587, %v3614
        %v3617 = vshrl.u32 %v2808, 16
        %v3619 = vrot.slane %v3617, 3
        %v3620 = vshll.u32 %v2808, 16
        %v3622 = vrot.slane %v3620, 4
        %v3623 = vor.u32 %v3619, %v3622
        %v3624 = vsel %vm3447, %v3596, %v3623
        %v3626 = vshrl.u32 %v3378, 16
        %v3628 = vrot.slane %v3626, 3
        %v3629 = vshll.u32 %v3378, 16
        %v3631 = vrot.slane %v3629, 4
        %v3632 = vor.u32 %v3628, %v3631
        %v3633 = vsel %vm3447, %v3605, %v3632
        %v3635 = vshrl.u32 %v3259, 16
        %v3637 = vrot.slane %v3635, 3
        %v3638 = vshll.u32 %v3259, 16
        %v3640 = vrot.slane %v3638, 4
        %v3641 = vor.u32 %v3637, %v3640
        %v3642 = vsel %vm3447, %v3614, %v3641
        %v3644 = vshrl.u32 %v2817, 16
        %v3646 = vrot.slane %v3644, 3
        %v3647 = vshll.u32 %v2817, 16
        %v3649 = vrot.slane %v3647, 4
        %v3650 = vor.u32 %v3646, %v3649
        %v3651 = vsel %vm3447, %v3623, %v3650
        %v3653 = vshrl.u32 %v3380, 16
        %v3655 = vrot.slane %v3653, 3
        %v3656 = vshll.u32 %v3380, 16
        %v3658 = vrot.slane %v3656, 4
        %v3659 = vor.u32 %v3655, %v3658
        %v3660 = vsel %vm3447, %v3632, %v3659
        %v3662 = vshrl.u32 %v3260, 16
        %v3664 = vrot.slane %v3662, 3
        %v3665 = vshll.u32 %v3260, 16
        %v3667 = vrot.slane %v3665, 4
        %v3668 = vor.u32 %v3664, %v3667
        %v3669 = vsel %vm3447, %v3641, %v3668
        %v3671 = vshrl.u32 %v2826, 16
        %v3673 = vrot.slane %v3671, 3
        %v3674 = vshll.u32 %v2826, 16
        %v3676 = vrot.slane %v3674, 4
        %v3677 = vor.u32 %v3673, %v3676
        %v3678 = vsel %vm3447, %v3650, %v3677
        %v3680 = vshrl.u32 %v3382, 16
        %v3682 = vrot.slane %v3680, 3
        %v3683 = vshll.u32 %v3382, 16
        %v3685 = vrot.slane %v3683, 4
        %v3686 = vor.u32 %v3682, %v3685
        %v3687 = vsel %vm3447, %v3659, %v3686
        %v3689 = vshrl.u32 %v3261, 16
        %v3691 = vrot.slane %v3689, 3
        %v3692 = vshll.u32 %v3261, 16
        %v3694 = vrot.slane %v3692, 4
        %v3695 = vor.u32 %v3691, %v3694
        %v3696 = vsel %vm3447, %v3668, %v3695
        %v3698 = vshrl.u32 %v2835, 16
        %v3700 = vrot.slane %v3698, 3
        %v3701 = vshll.u32 %v2835, 16
        %v3703 = vrot.slane %v3701, 4
        %v3704 = vor.u32 %v3700, %v3703
        %v3705 = vsel %vm3447, %v3677, %v3704
        %v3707 = vshrl.u32 %v3384, 16
        %v3709 = vrot.slane %v3707, 3
        %v3710 = vshll.u32 %v3384, 16
        %v3712 = vrot.slane %v3710, 4
        %v3713 = vor.u32 %v3709, %v3712
        %v3714 = vsel %vm3447, %v3686, %v3713
        %v3716 = vshrl.u32 %v3262, 16
        %v3718 = vrot.slane %v3716, 3
        %v3719 = vshll.u32 %v3262, 16
        %v3721 = vrot.slane %v3719, 4
        %v3722 = vor.u32 %v3718, %v3721
        %v3723 = vsel %vm3447, %v3695, %v3722
        %v3725 = vshrl.u32 %v2844, 16
        %v3727 = vrot.slane %v3725, 3
        %v3728 = vshll.u32 %v2844, 16
        %v3730 = vrot.slane %v3728, 4
        %v3731 = vor.u32 %v3727, %v3730
        %v3732 = vsel %vm3447, %v3704, %v3731
        %v3734 = vshrl.u32 %v3386, 16
        %v3736 = vrot.slane %v3734, 3
        %v3737 = vshll.u32 %v3386, 16
        %v3739 = vrot.slane %v3737, 4
        %v3740 = vor.u32 %v3736, %v3739
        %v3741 = vsel %vm3447, %v3713, %v3740
        %v3743 = vshrl.u32 %v3263, 16
        %v3745 = vrot.slane %v3743, 3
        %v3746 = vshll.u32 %v3263, 16
        %v3748 = vrot.slane %v3746, 4
        %v3749 = vor.u32 %v3745, %v3748
        %v3750 = vsel %vm3447, %v3722, %v3749
        %v3752 = vshrl.u32 %v2853, 16
        %v3754 = vrot.slane %v3752, 3
        %v3755 = vshll.u32 %v2853, 16
        %v3757 = vrot.slane %v3755, 4
        %v3758 = vor.u32 %v3754, %v3757
        %v3759 = vsel %vm3447, %v3731, %v3758
        %v3761 = vshrl.u32 %v3388, 16
        %v3763 = vrot.slane %v3761, 3
        %v3764 = vshll.u32 %v3388, 16
        %v3766 = vrot.slane %v3764, 4
        %v3767 = vor.u32 %v3763, %v3766
        %v3768 = vsel %vm3447, %v3740, %v3767
        %v3770 = vshrl.u32 %v3264, 16
        %v3772 = vrot.slane %v3770, 3
        %v3773 = vshll.u32 %v3264, 16
        %v3775 = vrot.slane %v3773, 4
        %v3776 = vor.u32 %v3772, %v3775
        %v3777 = vsel %vm3447, %v3749, %v3776
        %v3779 = vshrl.u32 %v2862, 16
        %v3781 = vrot.slane %v3779, 3
        %v3782 = vshll.u32 %v2862, 16
        %v3784 = vrot.slane %v3782, 4
        %v3785 = vor.u32 %v3781, %v3784
        %v3786 = vsel %vm3447, %v3758, %v3785
        %v3788 = vshrl.u32 %v3390, 16
        %v3790 = vrot.slane %v3788, 3
        %v3791 = vshll.u32 %v3390, 16
        %v3793 = vrot.slane %v3791, 4
        %v3794 = vor.u32 %v3790, %v3793
        %v3795 = vsel %vm3447, %v3767, %v3794
        %v3797 = vshrl.u32 %v3265, 16
        %v3799 = vrot.slane %v3797, 3
        %v3800 = vshll.u32 %v3265, 16
        %v3802 = vrot.slane %v3800, 4
        %v3803 = vor.u32 %v3799, %v3802
        %v3804 = vsel %vm3447, %v3776, %v3803
        %v3806 = vshrl.u32 %v2871, 16
        %v3808 = vrot.slane %v3806, 3
        %v3809 = vshll.u32 %v2871, 16
        %v3811 = vrot.slane %v3809, 4
        %v3812 = vor.u32 %v3808, %v3811
        %v3813 = vsel %vm3447, %v3785, %v3812
        %v3815 = vshrl.u32 %v3392, 16
        %v3817 = vrot.slane %v3815, 3
        %v3818 = vshll.u32 %v3392, 16
        %v3820 = vrot.slane %v3818, 4
        %v3821 = vor.u32 %v3817, %v3820
        %v3822 = vsel %vm3447, %v3794, %v3821
        %v3824 = vshrl.u32 %v3266, 16
        %v3826 = vrot.slane %v3824, 3
        %v3827 = vshll.u32 %v3266, 16
        %v3829 = vrot.slane %v3827, 4
        %v3830 = vor.u32 %v3826, %v3829
        %v3831 = vsel %vm3447, %v3803, %v3830
        %v3833 = vshrl.u32 %v2880, 16
        %v3835 = vrot.slane %v3833, 3
        %v3836 = vshll.u32 %v2880, 16
        %v3838 = vrot.slane %v3836, 4
        %v3839 = vor.u32 %v3835, %v3838
        %v3840 = vsel %vm3447, %v3812, %v3839
        %v3842 = vshrl.u32 %v3394, 16
        %v3844 = vrot.slane %v3842, 3
        %v3845 = vshll.u32 %v3394, 16
        %v3847 = vrot.slane %v3845, 4
        %v3848 = vor.u32 %v3844, %v3847
        %v3849 = vsel %vm3447, %v3821, %v3848
        %v3851 = vshrl.u32 %v3267, 16
        %v3853 = vrot.slane %v3851, 3
        %v3854 = vshll.u32 %v3267, 16
        %v3856 = vrot.slane %v3854, 4
        %v3857 = vor.u32 %v3853, %v3856
        %v3858 = vsel %vm3447, %v3830, %v3857
        %v3860 = vshrl.u32 %v3282, 16
        %v3862 = vrot.slane %v3860, 3
        %v3863 = vshll.u32 %v3282, 16
        %v3865 = vrot.slane %v3863, 4
        %v3866 = vor.u32 %v3862, %v3865
        %v3867 = vsel %vm3447, %v3839, %v3866
        %v3869 = vshrl.u32 %v3396, 16
        %v3871 = vrot.slane %v3869, 3
        %v3872 = vshll.u32 %v3396, 16
        %v3874 = vrot.slane %v3872, 4
        %v3875 = vor.u32 %v3871, %v3874
        %v3876 = vsel %vm3447, %v3848, %v3875
        %v3878 = vshrl.u32 %v3268, 16
        %v3880 = vrot.slane %v3878, 3
        %v3881 = vshll.u32 %v3268, 16
        %v3883 = vrot.slane %v3881, 4
        %v3884 = vor.u32 %v3880, %v3883
        %v3885 = vsel %vm3447, %v3857, %v3884
        %v3887 = vshrl.u32 %v3281, 16
        %v3889 = vrot.slane %v3887, 3
        %v3890 = vshll.u32 %v3281, 16
        %v3892 = vrot.slane %v3890, 4
        %v3893 = vor.u32 %v3889, %v3892
        %v3894 = vsel %vm3447, %v3866, %v3893
        %v3896 = vshrl.u32 %v3398, 16
        %v3898 = vrot.slane %v3896, 3
        %v3899 = vshll.u32 %v3398, 16
        %v3901 = vrot.slane %v3899, 4
        %v3902 = vor.u32 %v3898, %v3901
        %v3903 = vsel %vm3447, %v3875, %v3902
        %v4000 = vunpack.c.l.b16 %v3399
        %v4001 = vunpack.c.l.b16 %v3400
        %v4002 = vunpack.c.l.b16 %v3401
        %v4003 = vunpack.c.l.b16 %v3402
        %v4004 = vunpack.c.l.b16 %v3403
        %v4005 = vunpack.c.l.b16 %v3404
        %v4006 = vunpack.c.l.b16 %v3405
        %v4007 = vunpack.c.l.b16 %v3406
        %v4008 = vunpack.c.l.b16 %v3407
        %v4009 = vunpack.c.l.b16 %v3408
        %v4010 = vunpack.c.l.b16 %v3409
        %v4011 = vunpack.c.l.b16 %v3410
        %v4012 = vunpack.c.l.b16 %v3411
        %v4013 = vunpack.c.l.b16 %v3412
        %v4014 = vunpack.c.l.b16 %v3413
        %v4015 = vunpack.c.l.b16 %v3414
        %v4016 = vunpack.c.l.b16 %v3415
        %v4017 = vunpack.c.l.b16 %v3416
        %v4018 = vunpack.c.l.b16 %v3417
        %v4019 = vunpack.c.l.b16 %v3418
        %v4020 = vunpack.c.l.b16 %v3419
        %v4021 = vunpack.c.l.b16 %v3420
        %v4022 = vunpack.c.l.b16 %v3421
        %v4023 = vunpack.c.l.b16 %v3422
        %v4024 = vunpack.c.l.b16 %v3423
        %v4025 = vunpack.c.l.b16 %v3424
        %v4026 = vunpack.c.l.b16 %v3425
        %v4027 = vunpack.c.l.b16 %v3426
        %v4028 = vunpack.c.l.b16 %v3427
        %v4029 = vunpack.c.l.b16 %v3428
        %v4030 = vunpack.c.l.b16 %v3429
        %v4031 = vunpack.c.l.b16 %v3430
        %v4032 = vunpack.c.l.b16 %v3431
        %v4033 = vunpack.c.l.b16 %v3432
        %v4034 = vunpack.c.l.b16 %v3433
        %v4035 = vunpack.c.l.b16 %v3434
        %v4036 = vunpack.c.l.b16 %v3435
        %v4037 = vunpack.c.l.b16 %v3436
        %v4038 = vunpack.c.l.b16 %v3437
        %v4039 = vunpack.c.l.b16 %v3438
        %v4040 = vunpack.c.l.b16 %v3439
        %v4041 = vunpack.c.l.b16 %v3440
        %v4042 = vunpack.c.l.b16 %v3441
        %v4043 = vunpack.c.l.b16 %v3442
        %v4044 = vunpack.c.l.b16 %v3443
        %v4045 = vunpack.c.l.b16 %v3444
        %v4046 = vunpack.c.l.b16 %v3445
        %v4047 = vunpack.c.l.b16 %v3446
        %v4048 = vpack.c.b16 %v4001, %v4000
        %v4049 = vpack.c.b16 %v4003, %v4002
        %v4050 = vpack.c.b16 %v4005, %v4004
        %v4051 = vpack.c.b16 %v4007, %v4006
        %v4052 = vpack.c.b16 %v4009, %v4008
        %v4053 = vpack.c.b16 %v4011, %v4010
        %v4054 = vpack.c.b16 %v4013, %v4012
        %v4055 = vpack.c.b16 %v4015, %v4014
        %v4056 = vpack.c.b16 %v4017, %v4016
        %v4057 = vpack.c.b16 %v4019, %v4018
        %v4058 = vpack.c.b16 %v4021, %v4020
        %v4059 = vpack.c.b16 %v4023, %v4022
        %v4060 = vpack.c.b16 %v4025, %v4024
        %v4061 = vpack.c.b16 %v4027, %v4026
        %v4062 = vpack.c.b16 %v4029, %v4028
        %v4063 = vpack.c.b16 %v4031, %v4030
        %v4064 = vpack.c.b16 %v4033, %v4032
        %v4065 = vpack.c.b16 %v4035, %v4034
        %v4066 = vpack.c.b16 %v4037, %v4036
        %v4067 = vpack.c.b16 %v4039, %v4038
        %v4068 = vpack.c.b16 %v4041, %v4040
        %v4069 = vpack.c.b16 %v4043, %v4042
        %v4070 = vpack.c.b16 %v4045, %v4044
        %v4071 = vpack.c.b16 %v4047, %v4046
        %4096 = vmatpush.bf16.msra.mxu0 %v4055
        %4097 = vmatpush.bf16.msra.mxu0 %v4054
        %4098 = vmatpush.bf16.msra.mxu0 %v4053
        %4099 = vmatpush.bf16.msra.mxu0 %v4052
        %4100 = vmatpush.bf16.msra.mxu0 %v4051
        %4101 = vmatpush.bf16.msra.mxu0 %v4050
        %4102 = vmatpush.bf16.msra.mxu0 %v4049
        %4103 = vmatpush.bf16.msra.mxu0 %v4048
        %4104 = vmatmul.bf16.gmra.mxu0 %v3464
        %v4105 = vpop.f32.mrf.mxu0
        %v4106 = vadd.f32 0.0, %v4105
        %v4107 = vpop.f32.mrf.mxu0
        %v4108 = vadd.f32 0.0, %v4107
        %4109 = vmatmul.bf16.gmra.mxu0 %v3507
        %v4110 = vpop.f32.mrf.mxu0
        %v4111 = vadd.f32 0.0, %v4110
        %v4112 = vpop.f32.mrf.mxu0
        %v4113 = vadd.f32 0.0, %v4112
        %4114 = vmatmul.bf16.gmra.mxu0 %v3534
        %v4115 = vpop.f32.mrf.mxu0
        %v4116 = vadd.f32 0.0, %v4115
        %v4117 = vpop.f32.mrf.mxu0
        %v4118 = vadd.f32 0.0, %v4117
        %4119 = vmatmul.bf16.gmra.mxu0 %v3561
        %v4120 = vpop.f32.mrf.mxu0
        %v4121 = vadd.f32 0.0, %v4120
        %v4122 = vpop.f32.mrf.mxu0
        %v4123 = vadd.f32 0.0, %v4122
        %4124 = vmatmul.bf16.gmra.mxu0 %v3588
        %v4125 = vpop.f32.mrf.mxu0
        %v4126 = vadd.f32 0.0, %v4125
        %v4127 = vpop.f32.mrf.mxu0
        %v4128 = vadd.f32 0.0, %v4127
        %4129 = vmatmul.bf16.gmra.mxu0 %v3615
        %v4130 = vpop.f32.mrf.mxu0
        %v4131 = vadd.f32 0.0, %v4130
        %v4132 = vpop.f32.mrf.mxu0
        %v4133 = vadd.f32 0.0, %v4132
        %4134 = vmatmul.bf16.gmra.mxu0 %v3642
        %v4135 = vpop.f32.mrf.mxu0
        %v4136 = vadd.f32 0.0, %v4135
        %v4137 = vpop.f32.mrf.mxu0
        %v4138 = vadd.f32 0.0, %v4137
        %4139 = vmatmul.bf16.gmra.mxu0 %v3669
        %v4140 = vpop.f32.mrf.mxu0
        %v4141 = vadd.f32 0.0, %v4140
        %v4142 = vpop.f32.mrf.mxu0
        %v4143 = vadd.f32 0.0, %v4142
        %4144 = vmatmul.bf16.gmra.mxu0 %v3696
        %v4145 = vpop.f32.mrf.mxu0
        %v4146 = vadd.f32 0.0, %v4145
        %v4147 = vpop.f32.mrf.mxu0
        %v4148 = vadd.f32 0.0, %v4147
        %4149 = vmatmul.bf16.gmra.mxu0 %v3723
        %v4150 = vpop.f32.mrf.mxu0
        %v4151 = vadd.f32 0.0, %v4150
        %v4152 = vpop.f32.mrf.mxu0
        %v4153 = vadd.f32 0.0, %v4152
        %4154 = vmatmul.bf16.gmra.mxu0 %v3750
        %v4155 = vpop.f32.mrf.mxu0
        %v4156 = vadd.f32 0.0, %v4155
        %v4157 = vpop.f32.mrf.mxu0
        %v4158 = vadd.f32 0.0, %v4157
        %4159 = vmatmul.bf16.gmra.mxu0 %v3777
        %v4160 = vpop.f32.mrf.mxu0
        %v4161 = vadd.f32 0.0, %v4160
        %v4162 = vpop.f32.mrf.mxu0
        %v4163 = vadd.f32 0.0, %v4162
        %4164 = vmatmul.bf16.gmra.mxu0 %v3804
        %v4165 = vpop.f32.mrf.mxu0
        %v4166 = vadd.f32 0.0, %v4165
        %v4167 = vpop.f32.mrf.mxu0
        %v4168 = vadd.f32 0.0, %v4167
        %4169 = vmatmul.bf16.gmra.mxu0 %v3831
        %v4170 = vpop.f32.mrf.mxu0
        %v4171 = vadd.f32 0.0, %v4170
        %v4172 = vpop.f32.mrf.mxu0
        %v4173 = vadd.f32 0.0, %v4172
        %4174 = vmatmul.bf16.gmra.mxu0 %v3858
        %v4175 = vpop.f32.mrf.mxu0
        %v4176 = vadd.f32 0.0, %v4175
        %v4177 = vpop.f32.mrf.mxu0
        %v4178 = vadd.f32 0.0, %v4177
        %4179 = vmatmul.bf16.gmra.mxu0 %v3885
        %v4180 = vpop.f32.mrf.mxu0
        %v4181 = vadd.f32 0.0, %v4180
        %v4182 = vpop.f32.mrf.mxu0
        %v4183 = vadd.f32 0.0, %v4182
        %4184 = vdwg.mxu0
        %4185 = vmatpush.bf16.msra.mxu0 %v4063
        %4186 = vmatpush.bf16.msra.mxu0 %v4062
        %4187 = vmatpush.bf16.msra.mxu0 %v4061
        %4188 = vmatpush.bf16.msra.mxu0 %v4060
        %4189 = vmatpush.bf16.msra.mxu0 %v4059
        %4190 = vmatpush.bf16.msra.mxu0 %v4058
        %4191 = vmatpush.bf16.msra.mxu0 %v4057
        %4192 = vmatpush.bf16.msra.mxu0 %v4056
        %4193 = vmatmul.bf16.gmra.mxu0 %v3481
        %v4194 = vpop.f32.mrf.mxu0
        %v4195 = vadd.f32 %v4106, %v4194
        %v4196 = vpop.f32.mrf.mxu0
        %v4197 = vadd.f32 %v4108, %v4196
        %4198 = vmatmul.bf16.gmra.mxu0 %v3516
        %v4199 = vpop.f32.mrf.mxu0
        %v4200 = vadd.f32 %v4111, %v4199
        %v4201 = vpop.f32.mrf.mxu0
        %v4202 = vadd.f32 %v4113, %v4201
        %4203 = vmatmul.bf16.gmra.mxu0 %v3543
        %v4204 = vpop.f32.mrf.mxu0
        %v4205 = vadd.f32 %v4116, %v4204
        %v4206 = vpop.f32.mrf.mxu0
        %v4207 = vadd.f32 %v4118, %v4206
        %4208 = vmatmul.bf16.gmra.mxu0 %v3570
        %v4209 = vpop.f32.mrf.mxu0
        %v4210 = vadd.f32 %v4121, %v4209
        %v4211 = vpop.f32.mrf.mxu0
        %v4212 = vadd.f32 %v4123, %v4211
        %4213 = vmatmul.bf16.gmra.mxu0 %v3597
        %v4214 = vpop.f32.mrf.mxu0
        %v4215 = vadd.f32 %v4126, %v4214
        %v4216 = vpop.f32.mrf.mxu0
        %v4217 = vadd.f32 %v4128, %v4216
        %4218 = vmatmul.bf16.gmra.mxu0 %v3624
        %v4219 = vpop.f32.mrf.mxu0
        %v4220 = vadd.f32 %v4131, %v4219
        %v4221 = vpop.f32.mrf.mxu0
        %v4222 = vadd.f32 %v4133, %v4221
        %4223 = vmatmul.bf16.gmra.mxu0 %v3651
        %v4224 = vpop.f32.mrf.mxu0
        %v4225 = vadd.f32 %v4136, %v4224
        %v4226 = vpop.f32.mrf.mxu0
        %v4227 = vadd.f32 %v4138, %v4226
        %4228 = vmatmul.bf16.gmra.mxu0 %v3678
        %v4229 = vpop.f32.mrf.mxu0
        %v4230 = vadd.f32 %v4141, %v4229
        %v4231 = vpop.f32.mrf.mxu0
        %v4232 = vadd.f32 %v4143, %v4231
        %4233 = vmatmul.bf16.gmra.mxu0 %v3705
        %v4234 = vpop.f32.mrf.mxu0
        %v4235 = vadd.f32 %v4146, %v4234
        %v4236 = vpop.f32.mrf.mxu0
        %v4237 = vadd.f32 %v4148, %v4236
        %4238 = vmatmul.bf16.gmra.mxu0 %v3732
        %v4239 = vpop.f32.mrf.mxu0
        %v4240 = vadd.f32 %v4151, %v4239
        %v4241 = vpop.f32.mrf.mxu0
        %v4242 = vadd.f32 %v4153, %v4241
        %4243 = vmatmul.bf16.gmra.mxu0 %v3759
        %v4244 = vpop.f32.mrf.mxu0
        %v4245 = vadd.f32 %v4156, %v4244
        %v4246 = vpop.f32.mrf.mxu0
        %v4247 = vadd.f32 %v4158, %v4246
        %4248 = vmatmul.bf16.gmra.mxu0 %v3786
        %v4249 = vpop.f32.mrf.mxu0
        %v4250 = vadd.f32 %v4161, %v4249
        %v4251 = vpop.f32.mrf.mxu0
        %v4252 = vadd.f32 %v4163, %v4251
        %4253 = vmatmul.bf16.gmra.mxu0 %v3813
        %v4254 = vpop.f32.mrf.mxu0
        %v4255 = vadd.f32 %v4166, %v4254
        %v4256 = vpop.f32.mrf.mxu0
        %v4257 = vadd.f32 %v4168, %v4256
        %4258 = vmatmul.bf16.gmra.mxu0 %v3840
        %v4259 = vpop.f32.mrf.mxu0
        %v4260 = vadd.f32 %v4171, %v4259
        %v4261 = vpop.f32.mrf.mxu0
        %v4262 = vadd.f32 %v4173, %v4261
        %4263 = vmatmul.bf16.gmra.mxu0 %v3867
        %v4264 = vpop.f32.mrf.mxu0
        %v4265 = vadd.f32 %v4176, %v4264
        %v4266 = vpop.f32.mrf.mxu0
        %v4267 = vadd.f32 %v4178, %v4266
        %4268 = vmatmul.bf16.gmra.mxu0 %v3894
        %v4269 = vpop.f32.mrf.mxu0
        %v4270 = vadd.f32 %v4181, %v4269
        %v4271 = vpop.f32.mrf.mxu0
        %v4272 = vadd.f32 %v4183, %v4271
        %4273 = vdwg.mxu0
        %4274 = vmatpush.bf16.msra.mxu0 %v4071
        %4275 = vmatpush.bf16.msra.mxu0 %v4070
        %4276 = vmatpush.bf16.msra.mxu0 %v4069
        %4277 = vmatpush.bf16.msra.mxu0 %v4068
        %4278 = vmatpush.bf16.msra.mxu0 %v4067
        %4279 = vmatpush.bf16.msra.mxu0 %v4066
        %4280 = vmatpush.bf16.msra.mxu0 %v4065
        %4281 = vmatpush.bf16.msra.mxu0 %v4064
        %4282 = vmatmul.bf16.gmra.mxu0 %v3498
        %v4283 = vpop.f32.mrf.mxu0
        %v4284 = vadd.f32 %v4195, %v4283
        %v4285 = vpop.f32.mrf.mxu0
        %v4286 = vadd.f32 %v4197, %v4285
        %4287 = vmatmul.bf16.gmra.mxu0 %v3525
        %v4288 = vpop.f32.mrf.mxu0
        %v4289 = vadd.f32 %v4200, %v4288
        %v4290 = vpop.f32.mrf.mxu0
        %v4291 = vadd.f32 %v4202, %v4290
        %4292 = vmatmul.bf16.gmra.mxu0 %v3552
        %v4293 = vpop.f32.mrf.mxu0
        %v4294 = vadd.f32 %v4205, %v4293
        %v4295 = vpop.f32.mrf.mxu0
        %v4296 = vadd.f32 %v4207, %v4295
        %4297 = vmatmul.bf16.gmra.mxu0 %v3579
        %v4298 = vpop.f32.mrf.mxu0
        %v4299 = vadd.f32 %v4210, %v4298
        %v4300 = vpop.f32.mrf.mxu0
        %v4301 = vadd.f32 %v4212, %v4300
        %4302 = vmatmul.bf16.gmra.mxu0 %v3606
        %v4303 = vpop.f32.mrf.mxu0
        %v4304 = vadd.f32 %v4215, %v4303
        %v4305 = vpop.f32.mrf.mxu0
        %v4306 = vadd.f32 %v4217, %v4305
        %4307 = vmatmul.bf16.gmra.mxu0 %v3633
        %v4308 = vpop.f32.mrf.mxu0
        %v4309 = vadd.f32 %v4220, %v4308
        %v4310 = vpop.f32.mrf.mxu0
        %v4311 = vadd.f32 %v4222, %v4310
        %4312 = vmatmul.bf16.gmra.mxu0 %v3660
        %v4313 = vpop.f32.mrf.mxu0
        %v4314 = vadd.f32 %v4225, %v4313
        %v4315 = vpop.f32.mrf.mxu0
        %v4316 = vadd.f32 %v4227, %v4315
        %4317 = vmatmul.bf16.gmra.mxu0 %v3687
        %v4318 = vpop.f32.mrf.mxu0
        %v4319 = vadd.f32 %v4230, %v4318
        %v4320 = vpop.f32.mrf.mxu0
        %v4321 = vadd.f32 %v4232, %v4320
        %4322 = vmatmul.bf16.gmra.mxu0 %v3714
        %v4323 = vpop.f32.mrf.mxu0
        %v4324 = vadd.f32 %v4235, %v4323
        %v4325 = vpop.f32.mrf.mxu0
        %v4326 = vadd.f32 %v4237, %v4325
        %4327 = vmatmul.bf16.gmra.mxu0 %v3741
        %v4328 = vpop.f32.mrf.mxu0
        %v4329 = vadd.f32 %v4240, %v4328
        %v4330 = vpop.f32.mrf.mxu0
        %v4331 = vadd.f32 %v4242, %v4330
        %4332 = vmatmul.bf16.gmra.mxu0 %v3768
        %v4333 = vpop.f32.mrf.mxu0
        %v4334 = vadd.f32 %v4245, %v4333
        %v4335 = vpop.f32.mrf.mxu0
        %v4336 = vadd.f32 %v4247, %v4335
        %4337 = vmatmul.bf16.gmra.mxu0 %v3795
        %v4338 = vpop.f32.mrf.mxu0
        %v4339 = vadd.f32 %v4250, %v4338
        %v4340 = vpop.f32.mrf.mxu0
        %v4341 = vadd.f32 %v4252, %v4340
        %4342 = vmatmul.bf16.gmra.mxu0 %v3822
        %v4343 = vpop.f32.mrf.mxu0
        %v4344 = vadd.f32 %v4255, %v4343
        %v4345 = vpop.f32.mrf.mxu0
        %v4346 = vadd.f32 %v4257, %v4345
        %4347 = vmatmul.bf16.gmra.mxu0 %v3849
        %v4348 = vpop.f32.mrf.mxu0
        %v4349 = vadd.f32 %v4260, %v4348
        %v4350 = vpop.f32.mrf.mxu0
        %v4351 = vadd.f32 %v4262, %v4350
        %4352 = vmatmul.bf16.gmra.mxu0 %v3876
        %v4353 = vpop.f32.mrf.mxu0
        %v4354 = vadd.f32 %v4265, %v4353
        %v4355 = vpop.f32.mrf.mxu0
        %v4356 = vadd.f32 %v4267, %v4355
        %4357 = vmatmul.bf16.gmra.mxu0 %v3903
        %v4358 = vpop.f32.mrf.mxu0
        %v4359 = vadd.f32 %v4270, %v4358
        %v4360 = vpop.f32.mrf.mxu0
        %v4361 = vadd.f32 %v4272, %v4360
        %4362 = vdwg.mxu0
        %v4364 = vshrl.u32 %v2640, 16
        %v4366 = vrot.slane %v4364, 3
        %v4367 = vshll.u32 %v2640, 16
        %v4369 = vrot.slane %v4367, 4
        %v4370 = vor.u32 %v4366, %v4369
        %v4372 = vshrl.u32 %v2641, 16
        %v4374 = vrot.slane %v4372, 3
        %v4375 = vshll.u32 %v2641, 16
        %v4377 = vrot.slane %v4375, 4
        %v4378 = vor.u32 %v4374, %v4377
        %v4379 = vsel %vm3447, %v4370, %v4378
        %v4381 = vshrl.u32 %v2745, 16
        %v4383 = vrot.slane %v4381, 3
        %v4384 = vshll.u32 %v2745, 16
        %v4386 = vrot.slane %v4384, 4
        %v4387 = vor.u32 %v4383, %v4386
        %v4389 = vshrl.u32 %v2754, 16
        %v4391 = vrot.slane %v4389, 3
        %v4392 = vshll.u32 %v2754, 16
        %v4394 = vrot.slane %v4392, 4
        %v4395 = vor.u32 %v4391, %v4394
        %v4396 = vsel %vm3447, %v4387, %v4395
        %v4398 = vshrl.u32 %v2965, 16
        %v4400 = vrot.slane %v4398, 3
        %v4401 = vshll.u32 %v2965, 16
        %v4403 = vrot.slane %v4401, 4
        %v4404 = vor.u32 %v4400, %v4403
        %v4406 = vshrl.u32 %v2967, 16
        %v4408 = vrot.slane %v4406, 3
        %v4409 = vshll.u32 %v2967, 16
        %v4411 = vrot.slane %v4409, 4
        %v4412 = vor.u32 %v4408, %v4411
        %v4413 = vsel %vm3447, %v4404, %v4412
        %v4415 = vshrl.u32 %v2642, 16
        %v4417 = vrot.slane %v4415, 3
        %v4418 = vshll.u32 %v2642, 16
        %v4420 = vrot.slane %v4418, 4
        %v4421 = vor.u32 %v4417, %v4420
        %v4422 = vsel %vm3447, %v4378, %v4421
        %v4423 = vsel %vm3447, %v4395, %v3480
        %v4425 = vshrl.u32 %v2969, 16
        %v4427 = vrot.slane %v4425, 3
        %v4428 = vshll.u32 %v2969, 16
        %v4430 = vrot.slane %v4428, 4
        %v4431 = vor.u32 %v4427, %v4430
        %v4432 = vsel %vm3447, %v4412, %v4431
        %v4434 = vshrl.u32 %v2643, 16
        %v4436 = vrot.slane %v4434, 3
        %v4437 = vshll.u32 %v2643, 16
        %v4439 = vrot.slane %v4437, 4
        %v4440 = vor.u32 %v4436, %v4439
        %v4441 = vsel %vm3447, %v4421, %v4440
        %v4443 = vshrl.u32 %v2971, 16
        %v4445 = vrot.slane %v4443, 3
        %v4446 = vshll.u32 %v2971, 16
        %v4448 = vrot.slane %v4446, 4
        %v4449 = vor.u32 %v4445, %v4448
        %v4450 = vsel %vm3447, %v4431, %v4449
        %v4452 = vshrl.u32 %v2644, 16
        %v4454 = vrot.slane %v4452, 3
        %v4455 = vshll.u32 %v2644, 16
        %v4457 = vrot.slane %v4455, 4
        %v4458 = vor.u32 %v4454, %v4457
        %v4459 = vsel %vm3447, %v4440, %v4458
        %v4461 = vshrl.u32 %v2973, 16
        %v4463 = vrot.slane %v4461, 3
        %v4464 = vshll.u32 %v2973, 16
        %v4466 = vrot.slane %v4464, 4
        %v4467 = vor.u32 %v4463, %v4466
        %v4468 = vsel %vm3447, %v4449, %v4467
        %v4470 = vshrl.u32 %v2645, 16
        %v4472 = vrot.slane %v4470, 3
        %v4473 = vshll.u32 %v2645, 16
        %v4475 = vrot.slane %v4473, 4
        %v4476 = vor.u32 %v4472, %v4475
        %v4477 = vsel %vm3447, %v4458, %v4476
        %v4479 = vshrl.u32 %v2975, 16
        %v4481 = vrot.slane %v4479, 3
        %v4482 = vshll.u32 %v2975, 16
        %v4484 = vrot.slane %v4482, 4
        %v4485 = vor.u32 %v4481, %v4484
        %v4486 = vsel %vm3447, %v4467, %v4485
        %v4488 = vshrl.u32 %v2646, 16
        %v4490 = vrot.slane %v4488, 3
        %v4491 = vshll.u32 %v2646, 16
        %v4493 = vrot.slane %v4491, 4
        %v4494 = vor.u32 %v4490, %v4493
        %v4495 = vsel %vm3447, %v4476, %v4494
        %v4497 = vshrl.u32 %v2977, 16
        %v4499 = vrot.slane %v4497, 3
        %v4500 = vshll.u32 %v2977, 16
        %v4502 = vrot.slane %v4500, 4
        %v4503 = vor.u32 %v4499, %v4502
        %v4504 = vsel %vm3447, %v4485, %v4503
        %v4506 = vshrl.u32 %v2647, 16
        %v4508 = vrot.slane %v4506, 3
        %v4509 = vshll.u32 %v2647, 16
        %v4511 = vrot.slane %v4509, 4
        %v4512 = vor.u32 %v4508, %v4511
        %v4513 = vsel %vm3447, %v4494, %v4512
        %v4515 = vshrl.u32 %v2979, 16
        %v4517 = vrot.slane %v4515, 3
        %v4518 = vshll.u32 %v2979, 16
        %v4520 = vrot.slane %v4518, 4
        %v4521 = vor.u32 %v4517, %v4520
        %v4522 = vsel %vm3447, %v4503, %v4521
        %v4524 = vshrl.u32 %v2648, 16
        %v4526 = vrot.slane %v4524, 3
        %v4527 = vshll.u32 %v2648, 16
        %v4529 = vrot.slane %v4527, 4
        %v4530 = vor.u32 %v4526, %v4529
        %v4531 = vsel %vm3447, %v4512, %v4530
        %v4533 = vshrl.u32 %v2981, 16
        %v4535 = vrot.slane %v4533, 3
        %v4536 = vshll.u32 %v2981, 16
        %v4538 = vrot.slane %v4536, 4
        %v4539 = vor.u32 %v4535, %v4538
        %v4540 = vsel %vm3447, %v4521, %v4539
        %v4542 = vshrl.u32 %v2649, 16
        %v4544 = vrot.slane %v4542, 3
        %v4545 = vshll.u32 %v2649, 16
        %v4547 = vrot.slane %v4545, 4
        %v4548 = vor.u32 %v4544, %v4547
        %v4549 = vsel %vm3447, %v4530, %v4548
        %v4551 = vshrl.u32 %v2983, 16
        %v4553 = vrot.slane %v4551, 3
        %v4554 = vshll.u32 %v2983, 16
        %v4556 = vrot.slane %v4554, 4
        %v4557 = vor.u32 %v4553, %v4556
        %v4558 = vsel %vm3447, %v4539, %v4557
        %v4560 = vshrl.u32 %v2650, 16
        %v4562 = vrot.slane %v4560, 3
        %v4563 = vshll.u32 %v2650, 16
        %v4565 = vrot.slane %v4563, 4
        %v4566 = vor.u32 %v4562, %v4565
        %v4567 = vsel %vm3447, %v4548, %v4566
        %v4569 = vshrl.u32 %v2985, 16
        %v4571 = vrot.slane %v4569, 3
        %v4572 = vshll.u32 %v2985, 16
        %v4574 = vrot.slane %v4572, 4
        %v4575 = vor.u32 %v4571, %v4574
        %v4576 = vsel %vm3447, %v4557, %v4575
        %v4578 = vshrl.u32 %v2651, 16
        %v4580 = vrot.slane %v4578, 3
        %v4581 = vshll.u32 %v2651, 16
        %v4583 = vrot.slane %v4581, 4
        %v4584 = vor.u32 %v4580, %v4583
        %v4585 = vsel %vm3447, %v4566, %v4584
        %v4587 = vshrl.u32 %v2987, 16
        %v4589 = vrot.slane %v4587, 3
        %v4590 = vshll.u32 %v2987, 16
        %v4592 = vrot.slane %v4590, 4
        %v4593 = vor.u32 %v4589, %v4592
        %v4594 = vsel %vm3447, %v4575, %v4593
        %v4596 = vshrl.u32 %v2652, 16
        %v4598 = vrot.slane %v4596, 3
        %v4599 = vshll.u32 %v2652, 16
        %v4601 = vrot.slane %v4599, 4
        %v4602 = vor.u32 %v4598, %v4601
        %v4603 = vsel %vm3447, %v4584, %v4602
        %v4605 = vshrl.u32 %v2989, 16
        %v4607 = vrot.slane %v4605, 3
        %v4608 = vshll.u32 %v2989, 16
        %v4610 = vrot.slane %v4608, 4
        %v4611 = vor.u32 %v4607, %v4610
        %v4612 = vsel %vm3447, %v4593, %v4611
        %v4614 = vshrl.u32 %v2653, 16
        %v4616 = vrot.slane %v4614, 3
        %v4617 = vshll.u32 %v2653, 16
        %v4619 = vrot.slane %v4617, 4
        %v4620 = vor.u32 %v4616, %v4619
        %v4621 = vsel %vm3447, %v4602, %v4620
        %v4623 = vshrl.u32 %v2991, 16
        %v4625 = vrot.slane %v4623, 3
        %v4626 = vshll.u32 %v2991, 16
        %v4628 = vrot.slane %v4626, 4
        %v4629 = vor.u32 %v4625, %v4628
        %v4630 = vsel %vm3447, %v4611, %v4629
        %v4632 = vshrl.u32 %v2654, 16
        %v4634 = vrot.slane %v4632, 3
        %v4635 = vshll.u32 %v2654, 16
        %v4637 = vrot.slane %v4635, 4
        %v4638 = vor.u32 %v4634, %v4637
        %v4639 = vsel %vm3447, %v4620, %v4638
        %v4641 = vshrl.u32 %v2993, 16
        %v4643 = vrot.slane %v4641, 3
        %v4644 = vshll.u32 %v2993, 16
        %v4646 = vrot.slane %v4644, 4
        %v4647 = vor.u32 %v4643, %v4646
        %v4648 = vsel %vm3447, %v4629, %v4647
        %v4650 = vshrl.u32 %v2655, 16
        %v4652 = vrot.slane %v4650, 3
        %v4653 = vshll.u32 %v2655, 16
        %v4655 = vrot.slane %v4653, 4
        %v4656 = vor.u32 %v4652, %v4655
        %v4657 = vsel %vm3447, %v4638, %v4656
        %v4659 = vshrl.u32 %v2995, 16
        %v4661 = vrot.slane %v4659, 3
        %v4662 = vshll.u32 %v2995, 16
        %v4664 = vrot.slane %v4662, 4
        %v4665 = vor.u32 %v4661, %v4664
        %v4666 = vsel %vm3447, %v4647, %v4665
        %v4668 = vshrl.u32 %v2656, 16
        %v4670 = vrot.slane %v4668, 3
        %v4671 = vshll.u32 %v2656, 16
        %v4673 = vrot.slane %v4671, 4
        %v4674 = vor.u32 %v4670, %v4673
        %v4675 = vsel %vm3447, %v4656, %v4674
        %v4677 = vshrl.u32 %v2879, 16
        %v4679 = vrot.slane %v4677, 3
        %v4680 = vshll.u32 %v2879, 16
        %v4682 = vrot.slane %v4680, 4
        %v4683 = vor.u32 %v4679, %v4682
        %v4684 = vsel %vm3447, %v3839, %v4683
        %v4686 = vshrl.u32 %v2997, 16
        %v4688 = vrot.slane %v4686, 3
        %v4689 = vshll.u32 %v2997, 16
        %v4691 = vrot.slane %v4689, 4
        %v4692 = vor.u32 %v4688, %v4691
        %v4693 = vsel %vm3447, %v4665, %v4692
        %v4777 = vunpack.c.l.b16 %v2998
        %v4778 = vunpack.c.l.b16 %v2999
        %v4779 = vunpack.c.l.b16 %v3000
        %v4780 = vunpack.c.l.b16 %v3001
        %v4781 = vunpack.c.l.b16 %v3002
        %v4782 = vunpack.c.l.b16 %v3003
        %v4783 = vunpack.c.l.b16 %v3004
        %v4784 = vunpack.c.l.b16 %v3005
        %v4785 = vunpack.c.l.b16 %v3006
        %v4786 = vunpack.c.l.b16 %v3007
        %v4787 = vunpack.c.l.b16 %v3008
        %v4788 = vunpack.c.l.b16 %v3009
        %v4789 = vunpack.c.l.b16 %v3010
        %v4790 = vunpack.c.l.b16 %v3011
        %v4791 = vunpack.c.l.b16 %v3012
        %v4792 = vunpack.c.l.b16 %v3013
        %v4793 = vunpack.c.l.b16 %v3014
        %v4794 = vunpack.c.l.b16 %v3015
        %v4795 = vunpack.c.l.b16 %v3016
        %v4796 = vunpack.c.l.b16 %v3017
        %v4797 = vunpack.c.l.b16 %v3018
        %v4798 = vunpack.c.l.b16 %v3019
        %v4799 = vunpack.c.l.b16 %v3020
        %v4800 = vunpack.c.l.b16 %v3021
        %v4801 = vunpack.c.l.b16 %v3022
        %v4802 = vunpack.c.l.b16 %v3023
        %v4803 = vunpack.c.l.b16 %v3024
        %v4804 = vunpack.c.l.b16 %v3025
        %v4805 = vunpack.c.l.b16 %v3026
        %v4806 = vunpack.c.l.b16 %v3027
        %v4807 = vunpack.c.l.b16 %v3028
        %v4808 = vunpack.c.l.b16 %v3029
        %v4809 = vunpack.c.l.b16 %v3030
        %v4810 = vunpack.c.l.b16 %v3031
        %v4811 = vunpack.c.l.b16 %v3032
        %v4812 = vunpack.c.l.b16 %v3033
        %v4813 = vunpack.c.l.b16 %v3034
        %v4814 = vunpack.c.l.b16 %v3035
        %v4815 = vunpack.c.l.b16 %v3036
        %v4816 = vunpack.c.l.b16 %v3037
        %v4817 = vunpack.c.l.b16 %v3038
        %v4818 = vunpack.c.l.b16 %v3039
        %v4819 = vunpack.c.l.b16 %v3040
        %v4820 = vunpack.c.l.b16 %v3041
        %v4821 = vunpack.c.l.b16 %v3042
        %v4822 = vunpack.c.l.b16 %v3043
        %v4823 = vunpack.c.l.b16 %v3044
        %v4824 = vunpack.c.l.b16 %v3045
        %v4825 = vpack.c.b16 %v4778, %v4777
        %v4826 = vpack.c.b16 %v4780, %v4779
        %v4827 = vpack.c.b16 %v4782, %v4781
        %v4828 = vpack.c.b16 %v4784, %v4783
        %v4829 = vpack.c.b16 %v4786, %v4785
        %v4830 = vpack.c.b16 %v4788, %v4787
        %v4831 = vpack.c.b16 %v4790, %v4789
        %v4832 = vpack.c.b16 %v4792, %v4791
        %v4833 = vpack.c.b16 %v4794, %v4793
        %v4834 = vpack.c.b16 %v4796, %v4795
        %v4835 = vpack.c.b16 %v4798, %v4797
        %v4836 = vpack.c.b16 %v4800, %v4799
        %v4837 = vpack.c.b16 %v4802, %v4801
        %v4838 = vpack.c.b16 %v4804, %v4803
        %v4839 = vpack.c.b16 %v4806, %v4805
        %v4840 = vpack.c.b16 %v4808, %v4807
        %v4841 = vpack.c.b16 %v4810, %v4809
        %v4842 = vpack.c.b16 %v4812, %v4811
        %v4843 = vpack.c.b16 %v4814, %v4813
        %v4844 = vpack.c.b16 %v4816, %v4815
        %v4845 = vpack.c.b16 %v4818, %v4817
        %v4846 = vpack.c.b16 %v4820, %v4819
        %v4847 = vpack.c.b16 %v4822, %v4821
        %v4848 = vpack.c.b16 %v4824, %v4823
        %4873 = vmatpush.bf16.msra.mxu0 %v4832
        %4874 = vmatpush.bf16.msra.mxu0 %v4831
        %4875 = vmatpush.bf16.msra.mxu0 %v4830
        %4876 = vmatpush.bf16.msra.mxu0 %v4829
        %4877 = vmatpush.bf16.msra.mxu0 %v4828
        %4878 = vmatpush.bf16.msra.mxu0 %v4827
        %4879 = vmatpush.bf16.msra.mxu0 %v4826
        %4880 = vmatpush.bf16.msra.mxu0 %v4825
        %4881 = vmatmul.bf16.gmra.mxu0 %v4379
        %v4882 = vpop.f32.mrf.mxu0
        %v4883 = vadd.f32 %v4284, %v4882
        %v4884 = vpop.f32.mrf.mxu0
        %v4885 = vadd.f32 %v4286, %v4884
        %4886 = vmatmul.bf16.gmra.mxu0 %v4422
        %v4887 = vpop.f32.mrf.mxu0
        %v4888 = vadd.f32 %v4289, %v4887
        %v4889 = vpop.f32.mrf.mxu0
        %v4890 = vadd.f32 %v4291, %v4889
        %4891 = vmatmul.bf16.gmra.mxu0 %v4441
        %v4892 = vpop.f32.mrf.mxu0
        %v4893 = vadd.f32 %v4294, %v4892
        %v4894 = vpop.f32.mrf.mxu0
        %v4895 = vadd.f32 %v4296, %v4894
        %4896 = vmatmul.bf16.gmra.mxu0 %v4459
        %v4897 = vpop.f32.mrf.mxu0
        %v4898 = vadd.f32 %v4299, %v4897
        %v4899 = vpop.f32.mrf.mxu0
        %v4900 = vadd.f32 %v4301, %v4899
        %4901 = vmatmul.bf16.gmra.mxu0 %v4477
        %v4902 = vpop.f32.mrf.mxu0
        %v4903 = vadd.f32 %v4304, %v4902
        %v4904 = vpop.f32.mrf.mxu0
        %v4905 = vadd.f32 %v4306, %v4904
        %4906 = vmatmul.bf16.gmra.mxu0 %v4495
        %v4907 = vpop.f32.mrf.mxu0
        %v4908 = vadd.f32 %v4309, %v4907
        %v4909 = vpop.f32.mrf.mxu0
        %v4910 = vadd.f32 %v4311, %v4909
        %4911 = vmatmul.bf16.gmra.mxu0 %v4513
        %v4912 = vpop.f32.mrf.mxu0
        %v4913 = vadd.f32 %v4314, %v4912
        %v4914 = vpop.f32.mrf.mxu0
        %v4915 = vadd.f32 %v4316, %v4914
        %4916 = vmatmul.bf16.gmra.mxu0 %v4531
        %v4917 = vpop.f32.mrf.mxu0
        %v4918 = vadd.f32 %v4319, %v4917
        %v4919 = vpop.f32.mrf.mxu0
        %v4920 = vadd.f32 %v4321, %v4919
        %4921 = vmatmul.bf16.gmra.mxu0 %v4549
        %v4922 = vpop.f32.mrf.mxu0
        %v4923 = vadd.f32 %v4324, %v4922
        %v4924 = vpop.f32.mrf.mxu0
        %v4925 = vadd.f32 %v4326, %v4924
        %4926 = vmatmul.bf16.gmra.mxu0 %v4567
        %v4927 = vpop.f32.mrf.mxu0
        %v4928 = vadd.f32 %v4329, %v4927
        %v4929 = vpop.f32.mrf.mxu0
        %v4930 = vadd.f32 %v4331, %v4929
        %4931 = vmatmul.bf16.gmra.mxu0 %v4585
        %v4932 = vpop.f32.mrf.mxu0
        %v4933 = vadd.f32 %v4334, %v4932
        %v4934 = vpop.f32.mrf.mxu0
        %v4935 = vadd.f32 %v4336, %v4934
        %4936 = vmatmul.bf16.gmra.mxu0 %v4603
        %v4937 = vpop.f32.mrf.mxu0
        %v4938 = vadd.f32 %v4339, %v4937
        %v4939 = vpop.f32.mrf.mxu0
        %v4940 = vadd.f32 %v4341, %v4939
        %4941 = vmatmul.bf16.gmra.mxu0 %v4621
        %v4942 = vpop.f32.mrf.mxu0
        %v4943 = vadd.f32 %v4344, %v4942
        %v4944 = vpop.f32.mrf.mxu0
        %v4945 = vadd.f32 %v4346, %v4944
        %4946 = vmatmul.bf16.gmra.mxu0 %v4639
        %v4947 = vpop.f32.mrf.mxu0
        %v4948 = vadd.f32 %v4349, %v4947
        %v4949 = vpop.f32.mrf.mxu0
        %v4950 = vadd.f32 %v4351, %v4949
        %4951 = vmatmul.bf16.gmra.mxu0 %v4657
        %v4952 = vpop.f32.mrf.mxu0
        %v4953 = vadd.f32 %v4354, %v4952
        %v4954 = vpop.f32.mrf.mxu0
        %v4955 = vadd.f32 %v4356, %v4954
        %4956 = vmatmul.bf16.gmra.mxu0 %v4675
        %v4957 = vpop.f32.mrf.mxu0
        %v4958 = vadd.f32 %v4359, %v4957
        %v4959 = vpop.f32.mrf.mxu0
        %v4960 = vadd.f32 %v4361, %v4959
        %4961 = vdwg.mxu0
        %4962 = vmatpush.bf16.msra.mxu0 %v4840
        %4963 = vmatpush.bf16.msra.mxu0 %v4839
        %4964 = vmatpush.bf16.msra.mxu0 %v4838
        %4965 = vmatpush.bf16.msra.mxu0 %v4837
        %4966 = vmatpush.bf16.msra.mxu0 %v4836
        %4967 = vmatpush.bf16.msra.mxu0 %v4835
        %4968 = vmatpush.bf16.msra.mxu0 %v4834
        %4969 = vmatpush.bf16.msra.mxu0 %v4833
        %4970 = vmatmul.bf16.gmra.mxu0 %v4396
        %v4971 = vpop.f32.mrf.mxu0
        %v4972 = vadd.f32 %v4883, %v4971
        %v4973 = vpop.f32.mrf.mxu0
        %v4974 = vadd.f32 %v4885, %v4973
        %4975 = vmatmul.bf16.gmra.mxu0 %v4423
        %v4976 = vpop.f32.mrf.mxu0
        %v4977 = vadd.f32 %v4888, %v4976
        %v4978 = vpop.f32.mrf.mxu0
        %v4979 = vadd.f32 %v4890, %v4978
        %4980 = vmatmul.bf16.gmra.mxu0 %v3516
        %v4981 = vpop.f32.mrf.mxu0
        %v4982 = vadd.f32 %v4893, %v4981
        %v4983 = vpop.f32.mrf.mxu0
        %v4984 = vadd.f32 %v4895, %v4983
        %4985 = vmatmul.bf16.gmra.mxu0 %v3543
        %v4986 = vpop.f32.mrf.mxu0
        %v4987 = vadd.f32 %v4898, %v4986
        %v4988 = vpop.f32.mrf.mxu0
        %v4989 = vadd.f32 %v4900, %v4988
        %4990 = vmatmul.bf16.gmra.mxu0 %v3570
        %v4991 = vpop.f32.mrf.mxu0
        %v4992 = vadd.f32 %v4903, %v4991
        %v4993 = vpop.f32.mrf.mxu0
        %v4994 = vadd.f32 %v4905, %v4993
        %4995 = vmatmul.bf16.gmra.mxu0 %v3597
        %v4996 = vpop.f32.mrf.mxu0
        %v4997 = vadd.f32 %v4908, %v4996
        %v4998 = vpop.f32.mrf.mxu0
        %v4999 = vadd.f32 %v4910, %v4998
        %5000 = vmatmul.bf16.gmra.mxu0 %v3624
        %v5001 = vpop.f32.mrf.mxu0
        %v5002 = vadd.f32 %v4913, %v5001
        %v5003 = vpop.f32.mrf.mxu0
        %v5004 = vadd.f32 %v4915, %v5003
        %5005 = vmatmul.bf16.gmra.mxu0 %v3651
        %v5006 = vpop.f32.mrf.mxu0
        %v5007 = vadd.f32 %v4918, %v5006
        %v5008 = vpop.f32.mrf.mxu0
        %v5009 = vadd.f32 %v4920, %v5008
        %5010 = vmatmul.bf16.gmra.mxu0 %v3678
        %v5011 = vpop.f32.mrf.mxu0
        %v5012 = vadd.f32 %v4923, %v5011
        %v5013 = vpop.f32.mrf.mxu0
        %v5014 = vadd.f32 %v4925, %v5013
        %5015 = vmatmul.bf16.gmra.mxu0 %v3705
        %v5016 = vpop.f32.mrf.mxu0
        %v5017 = vadd.f32 %v4928, %v5016
        %v5018 = vpop.f32.mrf.mxu0
        %v5019 = vadd.f32 %v4930, %v5018
        %5020 = vmatmul.bf16.gmra.mxu0 %v3732
        %v5021 = vpop.f32.mrf.mxu0
        %v5022 = vadd.f32 %v4933, %v5021
        %v5023 = vpop.f32.mrf.mxu0
        %v5024 = vadd.f32 %v4935, %v5023
        %5025 = vmatmul.bf16.gmra.mxu0 %v3759
        %v5026 = vpop.f32.mrf.mxu0
        %v5027 = vadd.f32 %v4938, %v5026
        %v5028 = vpop.f32.mrf.mxu0
        %v5029 = vadd.f32 %v4940, %v5028
        %5030 = vmatmul.bf16.gmra.mxu0 %v3786
        %v5031 = vpop.f32.mrf.mxu0
        %v5032 = vadd.f32 %v4943, %v5031
        %v5033 = vpop.f32.mrf.mxu0
        %v5034 = vadd.f32 %v4945, %v5033
        %5035 = vmatmul.bf16.gmra.mxu0 %v3813
        %v5036 = vpop.f32.mrf.mxu0
        %v5037 = vadd.f32 %v4948, %v5036
        %v5038 = vpop.f32.mrf.mxu0
        %v5039 = vadd.f32 %v4950, %v5038
        %5040 = vmatmul.bf16.gmra.mxu0 %v3840
        %v5041 = vpop.f32.mrf.mxu0
        %v5042 = vadd.f32 %v4953, %v5041
        %v5043 = vpop.f32.mrf.mxu0
        %v5044 = vadd.f32 %v4955, %v5043
        %5045 = vmatmul.bf16.gmra.mxu0 %v4684
        %v5046 = vpop.f32.mrf.mxu0
        %v5047 = vadd.f32 %v4958, %v5046
        %v5048 = vpop.f32.mrf.mxu0
        %v5049 = vadd.f32 %v4960, %v5048
        %5050 = vdwg.mxu0
        %5051 = vmatpush.bf16.msra.mxu0 %v4848
        %5052 = vmatpush.bf16.msra.mxu0 %v4847
        %5053 = vmatpush.bf16.msra.mxu0 %v4846
        %5054 = vmatpush.bf16.msra.mxu0 %v4845
        %5055 = vmatpush.bf16.msra.mxu0 %v4844
        %5056 = vmatpush.bf16.msra.mxu0 %v4843
        %5057 = vmatpush.bf16.msra.mxu0 %v4842
        %5058 = vmatpush.bf16.msra.mxu0 %v4841
        %5059 = vmatmul.bf16.gmra.mxu0 %v4413
        %v5060 = vpop.f32.mrf.mxu0
        %v5061 = vadd.f32 %v4972, %v5060
        %v5062 = vpop.f32.mrf.mxu0
        %v5063 = vadd.f32 %v4974, %v5062
        %5064 = vmatmul.bf16.gmra.mxu0 %v4432
        %v5065 = vpop.f32.mrf.mxu0
        %v5066 = vadd.f32 %v4977, %v5065
        %v5067 = vpop.f32.mrf.mxu0
        %v5068 = vadd.f32 %v4979, %v5067
        %5069 = vmatmul.bf16.gmra.mxu0 %v4450
        %v5070 = vpop.f32.mrf.mxu0
        %v5071 = vadd.f32 %v4982, %v5070
        %v5072 = vpop.f32.mrf.mxu0
        %v5073 = vadd.f32 %v4984, %v5072
        %5074 = vmatmul.bf16.gmra.mxu0 %v4468
        %v5075 = vpop.f32.mrf.mxu0
        %v5076 = vadd.f32 %v4987, %v5075
        %v5077 = vpop.f32.mrf.mxu0
        %v5078 = vadd.f32 %v4989, %v5077
        %5079 = vmatmul.bf16.gmra.mxu0 %v4486
        %v5080 = vpop.f32.mrf.mxu0
        %v5081 = vadd.f32 %v4992, %v5080
        %v5082 = vpop.f32.mrf.mxu0
        %v5083 = vadd.f32 %v4994, %v5082
        %5084 = vmatmul.bf16.gmra.mxu0 %v4504
        %v5085 = vpop.f32.mrf.mxu0
        %v5086 = vadd.f32 %v4997, %v5085
        %v5087 = vpop.f32.mrf.mxu0
        %v5088 = vadd.f32 %v4999, %v5087
        %5089 = vmatmul.bf16.gmra.mxu0 %v4522
        %v5090 = vpop.f32.mrf.mxu0
        %v5091 = vadd.f32 %v5002, %v5090
        %v5092 = vpop.f32.mrf.mxu0
        %v5093 = vadd.f32 %v5004, %v5092
        %5094 = vmatmul.bf16.gmra.mxu0 %v4540
        %v5095 = vpop.f32.mrf.mxu0
        %v5096 = vadd.f32 %v5007, %v5095
        %v5097 = vpop.f32.mrf.mxu0
        %v5098 = vadd.f32 %v5009, %v5097
        %5099 = vmatmul.bf16.gmra.mxu0 %v4558
        %v5100 = vpop.f32.mrf.mxu0
        %v5101 = vadd.f32 %v5012, %v5100
        %v5102 = vpop.f32.mrf.mxu0
        %v5103 = vadd.f32 %v5014, %v5102
        %5104 = vmatmul.bf16.gmra.mxu0 %v4576
        %v5105 = vpop.f32.mrf.mxu0
        %v5106 = vadd.f32 %v5017, %v5105
        %v5107 = vpop.f32.mrf.mxu0
        %v5108 = vadd.f32 %v5019, %v5107
        %5109 = vmatmul.bf16.gmra.mxu0 %v4594
        %v5110 = vpop.f32.mrf.mxu0
        %v5111 = vadd.f32 %v5022, %v5110
        %v5112 = vpop.f32.mrf.mxu0
        %v5113 = vadd.f32 %v5024, %v5112
        %5114 = vmatmul.bf16.gmra.mxu0 %v4612
        %v5115 = vpop.f32.mrf.mxu0
        %v5116 = vadd.f32 %v5027, %v5115
        %v5117 = vpop.f32.mrf.mxu0
        %v5118 = vadd.f32 %v5029, %v5117
        %5119 = vmatmul.bf16.gmra.mxu0 %v4630
        %v5120 = vpop.f32.mrf.mxu0
        %v5121 = vadd.f32 %v5032, %v5120
        %v5122 = vpop.f32.mrf.mxu0
        %v5123 = vadd.f32 %v5034, %v5122
        %5124 = vmatmul.bf16.gmra.mxu0 %v4648
        %v5125 = vpop.f32.mrf.mxu0
        %v5126 = vadd.f32 %v5037, %v5125
        %v5127 = vpop.f32.mrf.mxu0
        %v5128 = vadd.f32 %v5039, %v5127
        %5129 = vmatmul.bf16.gmra.mxu0 %v4666
        %v5130 = vpop.f32.mrf.mxu0
        %v5131 = vadd.f32 %v5042, %v5130
        %v5132 = vpop.f32.mrf.mxu0
        %v5133 = vadd.f32 %v5044, %v5132
        %5134 = vmatmul.bf16.gmra.mxu0 %v4693
        %v5135 = vpop.f32.mrf.mxu0
        %v5136 = vadd.f32 %v5047, %v5135
        %v5137 = vpop.f32.mrf.mxu0
        %v5138 = vadd.f32 %v5049, %v5137
        %5139 = vdwg.mxu0
        %v5140 = vld [vmem:[#allocation2 + $0x14] sm:$0x8]
        %v5141 = vld [vmem:[#allocation2 + $0x18] sm:$0xf]
        %v5142 = vld [vmem:[#allocation2 + $0x1c] sm:$0xf]
        %v5143 = vld [vmem:[#allocation2 + $0x20] sm:$0xf]
        %v5144 = vld [vmem:[#allocation2 + $0x24] sm:$0xf]
        %v5145 = vld [vmem:[#allocation2 + $0x28] sm:$0xf]
        %v5146 = vld [vmem:[#allocation2 + $0x2c] sm:$0xf]
        %v5147 = vld [vmem:[#allocation2 + $0x30] sm:$0xf]
        %v5148 = vld [vmem:[#allocation2 + $0x34] sm:$0xf]
        %v5149 = vld [vmem:[#allocation2 + $0x38] sm:$0xf]
        %v5150 = vld [vmem:[#allocation2 + $0x3c] sm:$0xf]
        %v5151 = vld [vmem:[#allocation2 + $0x40] sm:$0xf]
        %v5152 = vld [vmem:[#allocation2 + $0x44] sm:$0xf]
        %v5153 = vld [vmem:[#allocation2 + $0x48] sm:$0xf]
        %v5154 = vld [vmem:[#allocation2 + $0x4c] sm:$0xf]
        %v5155 = vld [vmem:[#allocation2 + $0x50] sm:$0xf]
        %v5156 = vld [vmem:[#allocation2 + $0x54] sm:$0xf]
        %v5157 = vld [vmem:[#allocation2 + $0x58] sm:$0xf]
        %v5158 = vld [vmem:[#allocation2 + $0x5c] sm:$0xf]
        %v5159 = vld [vmem:[#allocation2 + $0x60] sm:$0xf]
        %v5160 = vld [vmem:[#allocation2 + $0x64] sm:$0xf]
        %v5161 = vld [vmem:[#allocation2 + $0x68] sm:$0xf]
        %v5162 = vld [vmem:[#allocation2 + $0x6c] sm:$0xf]
        %v5163 = vld [vmem:[#allocation2 + $0x70] sm:$0xf]
        %v5164 = vld [vmem:[#allocation2 + $0x74] sm:$0xf]
        %v5165 = vld [vmem:[#allocation2 + $0x78] sm:$0xf]
        %v5166 = vld [vmem:[#allocation2 + $0x7c] sm:$0xf]
        %v5167 = vld [vmem:[#allocation2 + $0x80] sm:$0xf]
        %v5168 = vld [vmem:[#allocation2 + $0x84] sm:$0xf]
        %v5169 = vld [vmem:[#allocation2 + $0x88] sm:$0xf]
        %v5170 = vld [vmem:[#allocation2 + $0x8c] sm:$0xf]
        %v5171 = vld [vmem:[#allocation2 + $0x90] sm:$0xf]
        %v5172 = vld [vmem:[#allocation2 + $0x94] sm:$0xf]
        %v5173 = vunpack.c.l.bf16 %v5140
        %v5174 = vunpack.c.l.bf16 %v5141
        %v5175 = vunpack.c.l.bf16 %v5142
        %v5176 = vunpack.c.l.bf16 %v5143
        %v5177 = vunpack.c.l.bf16 %v5144
        %v5178 = vunpack.c.l.bf16 %v5145
        %v5179 = vunpack.c.l.bf16 %v5146
        %v5180 = vunpack.c.l.bf16 %v5147
        %v5181 = vunpack.c.l.bf16 %v5148
        %v5182 = vunpack.c.l.bf16 %v5149
        %v5183 = vunpack.c.l.bf16 %v5150
        %v5184 = vunpack.c.l.bf16 %v5151
        %v5185 = vunpack.c.l.bf16 %v5152
        %v5186 = vunpack.c.l.bf16 %v5153
        %v5187 = vunpack.c.l.bf16 %v5154
        %v5188 = vunpack.c.l.bf16 %v5155
        %v5189 = vunpack.c.l.bf16 %v5156
        %v5190 = vunpack.c.l.bf16 %v5157
        %v5191 = vunpack.c.l.bf16 %v5158
        %v5192 = vunpack.c.l.bf16 %v5159
        %v5193 = vunpack.c.l.bf16 %v5160
        %v5194 = vunpack.c.l.bf16 %v5161
        %v5195 = vunpack.c.l.bf16 %v5162
        %v5196 = vunpack.c.l.bf16 %v5163
        %v5197 = vunpack.c.l.bf16 %v5164
        %v5198 = vunpack.c.l.bf16 %v5165
        %v5199 = vunpack.c.l.bf16 %v5166
        %v5200 = vunpack.c.l.bf16 %v5167
        %v5201 = vunpack.c.l.bf16 %v5168
        %v5202 = vunpack.c.l.bf16 %v5169
        %v5203 = vunpack.c.l.bf16 %v5170
        %v5204 = vunpack.c.l.bf16 %v5171
        %v5205 = vunpack.c.l.bf16 %v5172
        %v5206 = vmul.f32 %v5173, %v2183
        %v5207 = vmul.f32 %v5174, %v2185
        %v5208 = vmul.f32 %v5175, %v2187
        %v5209 = vmul.f32 %v5176, %v2189
        %v5210 = vmul.f32 %v5177, %v2191
        %v5211 = vmul.f32 %v5178, %v2193
        %v5212 = vmul.f32 %v5179, %v2195
        %v5213 = vmul.f32 %v5180, %v2197
        %v5214 = vmul.f32 %v5181, %v2199
        %v5215 = vmul.f32 %v5182, %v2201
        %v5216 = vmul.f32 %v5183, %v2203
        %v5217 = vmul.f32 %v5184, %v2205
        %v5218 = vmul.f32 %v5185, %v2207
        %v5219 = vmul.f32 %v5186, %v2209
        %v5220 = vmul.f32 %v5187, %v2211
        %v5221 = vmul.f32 %v5188, %v2213
        %v5222 = vmul.f32 %v5189, %v2215
        %v5223 = vmul.f32 %v5190, %v2217
        %v5224 = vmul.f32 %v5191, %v2219
        %v5225 = vmul.f32 %v5192, %v2221
        %v5226 = vmul.f32 %v5193, %v2223
        %v5227 = vmul.f32 %v5194, %v2225
        %v5228 = vmul.f32 %v5195, %v2227
        %v5229 = vmul.f32 %v5196, %v2229
        %v5230 = vmul.f32 %v5197, %v2231
        %v5231 = vmul.f32 %v5198, %v2233
        %v5232 = vmul.f32 %v5199, %v2235
        %v5233 = vmul.f32 %v5200, %v2237
        %v5234 = vmul.f32 %v5201, %v2239
        %v5235 = vmul.f32 %v5202, %v2241
        %v5236 = vmul.f32 %v5203, %v2243
        %v5237 = vmul.f32 %v5204, %v2245
        %v5238 = vmul.f32 %v5205, %v2244
        %v5239 = vpack.c.bf16 %v5206, %v5206
        %v5240 = vpack.c.bf16 %v5207, %v5207
        %v5241 = vpack.c.bf16 %v5208, %v5208
        %v5242 = vpack.c.bf16 %v5209, %v5209
        %v5243 = vpack.c.bf16 %v5210, %v5210
        %v5244 = vpack.c.bf16 %v5211, %v5211
        %v5245 = vpack.c.bf16 %v5212, %v5212
        %v5246 = vpack.c.bf16 %v5213, %v5213
        %v5247 = vpack.c.bf16 %v5214, %v5214
        %v5248 = vpack.c.bf16 %v5215, %v5215
        %v5249 = vpack.c.bf16 %v5216, %v5216
        %v5250 = vpack.c.bf16 %v5217, %v5217
        %v5251 = vpack.c.bf16 %v5218, %v5218
        %v5252 = vpack.c.bf16 %v5219, %v5219
        %v5253 = vpack.c.bf16 %v5220, %v5220
        %v5254 = vpack.c.bf16 %v5221, %v5221
        %v5255 = vpack.c.bf16 %v5222, %v5222
        %v5256 = vpack.c.bf16 %v5223, %v5223
        %v5257 = vpack.c.bf16 %v5224, %v5224
        %v5258 = vpack.c.bf16 %v5225, %v5225
        %v5259 = vpack.c.bf16 %v5226, %v5226
        %v5260 = vpack.c.bf16 %v5227, %v5227
        %v5261 = vpack.c.bf16 %v5228, %v5228
        %v5262 = vpack.c.bf16 %v5229, %v5229
        %v5263 = vpack.c.bf16 %v5230, %v5230
        %v5264 = vpack.c.bf16 %v5231, %v5231
        %v5265 = vpack.c.bf16 %v5232, %v5232
        %v5266 = vpack.c.bf16 %v5233, %v5233
        %v5267 = vpack.c.bf16 %v5234, %v5234
        %v5268 = vpack.c.bf16 %v5235, %v5235
        %v5269 = vpack.c.bf16 %v5236, %v5236
        %v5270 = vpack.c.bf16 %v5237, %v5237
        %v5271 = vpack.c.bf16 %v5238, %v5238
        %v5272 = vld [vmem:[#allocation2 + $0x98] sm:$0x1]
        %v5273 = vunpack.c.l.bf16 %v5272
        %v5274 = vmul.f32 %v5174, %v2412
        %v5275 = vmul.f32 %v5175, %v2414
        %v5276 = vmul.f32 %v5176, %v2416
        %v5277 = vmul.f32 %v5177, %v2418
        %v5278 = vmul.f32 %v5178, %v2420
        %v5279 = vmul.f32 %v5179, %v2422
        %v5280 = vmul.f32 %v5180, %v2424
        %v5281 = vmul.f32 %v5181, %v2426
        %v5282 = vmul.f32 %v5182, %v2428
        %v5283 = vmul.f32 %v5183, %v2430
        %v5284 = vmul.f32 %v5184, %v2432
        %v5285 = vmul.f32 %v5185, %v2434
        %v5286 = vmul.f32 %v5186, %v2436
        %v5287 = vmul.f32 %v5187, %v2438
        %v5288 = vmul.f32 %v5188, %v2440
        %v5289 = vmul.f32 %v5189, %v2442
        %v5290 = vmul.f32 %v5190, %v2444
        %v5291 = vmul.f32 %v5191, %v2446
        %v5292 = vmul.f32 %v5192, %v2448
        %v5293 = vmul.f32 %v5193, %v2450
        %v5294 = vmul.f32 %v5194, %v2452
        %v5295 = vmul.f32 %v5195, %v2454
        %v5296 = vmul.f32 %v5196, %v2456
        %v5297 = vmul.f32 %v5197, %v2458
        %v5298 = vmul.f32 %v5198, %v2460
        %v5299 = vmul.f32 %v5199, %v2462
        %v5300 = vmul.f32 %v5200, %v2464
        %v5301 = vmul.f32 %v5201, %v2466
        %v5302 = vmul.f32 %v5202, %v2468
        %v5303 = vmul.f32 %v5203, %v2470
        %v5304 = vmul.f32 %v5204, %v2472
        %v5305 = vmul.f32 %v5205, %v2474
        %v5306 = vmul.f32 %v5273, %v2473
        %v5307 = vpack.c.bf16 %v5274, %v5274
        %v5308 = vpack.c.bf16 %v5275, %v5275
        %v5309 = vpack.c.bf16 %v5276, %v5276
        %v5310 = vpack.c.bf16 %v5277, %v5277
        %v5311 = vpack.c.bf16 %v5278, %v5278
        %v5312 = vpack.c.bf16 %v5279, %v5279
        %v5313 = vpack.c.bf16 %v5280, %v5280
        %v5314 = vpack.c.bf16 %v5281, %v5281
        %v5315 = vpack.c.bf16 %v5282, %v5282
        %v5316 = vpack.c.bf16 %v5283, %v5283
        %v5317 = vpack.c.bf16 %v5284, %v5284
        %v5318 = vpack.c.bf16 %v5285, %v5285
        %v5319 = vpack.c.bf16 %v5286, %v5286
        %v5320 = vpack.c.bf16 %v5287, %v5287
        %v5321 = vpack.c.bf16 %v5288, %v5288
        %v5322 = vpack.c.bf16 %v5289, %v5289
        %v5323 = vpack.c.bf16 %v5290, %v5290
        %v5324 = vpack.c.bf16 %v5291, %v5291
        %v5325 = vpack.c.bf16 %v5292, %v5292
        %v5326 = vpack.c.bf16 %v5293, %v5293
        %v5327 = vpack.c.bf16 %v5294, %v5294
        %v5328 = vpack.c.bf16 %v5295, %v5295
        %v5329 = vpack.c.bf16 %v5296, %v5296
        %v5330 = vpack.c.bf16 %v5297, %v5297
        %v5331 = vpack.c.bf16 %v5298, %v5298
        %v5332 = vpack.c.bf16 %v5299, %v5299
        %v5333 = vpack.c.bf16 %v5300, %v5300
        %v5334 = vpack.c.bf16 %v5301, %v5301
        %v5335 = vpack.c.bf16 %v5302, %v5302
        %v5336 = vpack.c.bf16 %v5303, %v5303
        %v5337 = vpack.c.bf16 %v5304, %v5304
        %v5338 = vpack.c.bf16 %v5305, %v5305
        %v5339 = vpack.c.bf16 %v5306, %v5306
        %v5373 = vunpack.c.l.b16 %v5239
        %v5374 = vunpack.c.l.b16 %v5240
        %v5375 = vunpack.c.l.b16 %v5241
        %v5376 = vunpack.c.l.b16 %v5242
        %v5377 = vunpack.c.l.b16 %v5243
        %v5378 = vunpack.c.l.b16 %v5244
        %v5379 = vunpack.c.l.b16 %v5245
        %v5380 = vunpack.c.l.b16 %v5246
        %v5381 = vunpack.c.l.b16 %v5247
        %v5382 = vunpack.c.l.b16 %v5248
        %v5383 = vunpack.c.l.b16 %v5249
        %v5384 = vunpack.c.l.b16 %v5250
        %v5385 = vunpack.c.l.b16 %v5251
        %v5386 = vunpack.c.l.b16 %v5252
        %v5387 = vunpack.c.l.b16 %v5253
        %v5388 = vunpack.c.l.b16 %v5254
        %v5389 = vunpack.c.l.b16 %v5255
        %v5390 = vunpack.c.l.b16 %v5256
        %v5391 = vunpack.c.l.b16 %v5257
        %v5392 = vunpack.c.l.b16 %v5258
        %v5393 = vunpack.c.l.b16 %v5259
        %v5394 = vunpack.c.l.b16 %v5260
        %v5395 = vunpack.c.l.b16 %v5261
        %v5396 = vunpack.c.l.b16 %v5262
        %v5397 = vunpack.c.l.b16 %v5263
        %v5398 = vunpack.c.l.b16 %v5264
        %v5399 = vunpack.c.l.b16 %v5265
        %v5400 = vunpack.c.l.b16 %v5266
        %v5401 = vunpack.c.l.b16 %v5267
        %v5402 = vunpack.c.l.b16 %v5268
        %v5403 = vunpack.c.l.b16 %v5269
        %v5404 = vunpack.c.l.b16 %v5270
        %v5405 = vunpack.c.l.b16 %v5271
        %v5406 = vpack.c.b16 %v5374, %v5373
        %v5407 = vpack.c.b16 %v5376, %v5375
        %v5408 = vpack.c.b16 %v5378, %v5377
        %v5409 = vpack.c.b16 %v5380, %v5379
        %v5410 = vpack.c.b16 %v5382, %v5381
        %v5411 = vpack.c.b16 %v5384, %v5383
        %v5412 = vpack.c.b16 %v5386, %v5385
        %v5413 = vpack.c.b16 %v5388, %v5387
        %v5414 = vpack.c.b16 %v5390, %v5389
        %v5415 = vpack.c.b16 %v5392, %v5391
        %v5416 = vpack.c.b16 %v5394, %v5393
        %v5417 = vpack.c.b16 %v5396, %v5395
        %v5418 = vpack.c.b16 %v5398, %v5397
        %v5419 = vpack.c.b16 %v5400, %v5399
        %v5420 = vpack.c.b16 %v5402, %v5401
        %v5421 = vpack.c.b16 %v5404, %v5403
        %v5422 = vpack.c.b16 %v5405, %v5405
        %v5455 = vunpack.c.l.b16 %v5141
        %v5456 = vunpack.c.l.b16 %v5142
        %v5457 = vunpack.c.l.b16 %v5143
        %v5458 = vunpack.c.l.b16 %v5144
        %v5459 = vunpack.c.l.b16 %v5145
        %v5460 = vunpack.c.l.b16 %v5146
        %v5461 = vunpack.c.l.b16 %v5147
        %v5462 = vunpack.c.l.b16 %v5148
        %v5463 = vunpack.c.l.b16 %v5149
        %v5464 = vunpack.c.l.b16 %v5150
        %v5465 = vunpack.c.l.b16 %v5151
        %v5466 = vunpack.c.l.b16 %v5152
        %v5467 = vunpack.c.l.b16 %v5153
        %v5468 = vunpack.c.l.b16 %v5154
        %v5469 = vunpack.c.l.b16 %v5155
        %v5470 = vunpack.c.l.b16 %v5156
        %v5471 = vunpack.c.l.b16 %v5157
        %v5472 = vunpack.c.l.b16 %v5158
        %v5473 = vunpack.c.l.b16 %v5159
        %v5474 = vunpack.c.l.b16 %v5160
        %v5475 = vunpack.c.l.b16 %v5161
        %v5476 = vunpack.c.l.b16 %v5162
        %v5477 = vunpack.c.l.b16 %v5163
        %v5478 = vunpack.c.l.b16 %v5164
        %v5479 = vunpack.c.l.b16 %v5165
        %v5480 = vunpack.c.l.b16 %v5166
        %v5481 = vunpack.c.l.b16 %v5167
        %v5482 = vunpack.c.l.b16 %v5168
        %v5483 = vunpack.c.l.b16 %v5169
        %v5484 = vunpack.c.l.b16 %v5170
        %v5485 = vunpack.c.l.b16 %v5171
        %v5486 = vunpack.c.l.b16 %v5172
        %v5487 = vpack.c.b16 %v5456, %v5455
        %v5488 = vpack.c.b16 %v5458, %v5457
        %v5489 = vpack.c.b16 %v5460, %v5459
        %v5490 = vpack.c.b16 %v5462, %v5461
        %v5491 = vpack.c.b16 %v5464, %v5463
        %v5492 = vpack.c.b16 %v5466, %v5465
        %v5493 = vpack.c.b16 %v5468, %v5467
        %v5494 = vpack.c.b16 %v5470, %v5469
        %v5495 = vpack.c.b16 %v5472, %v5471
        %v5496 = vpack.c.b16 %v5474, %v5473
        %v5497 = vpack.c.b16 %v5476, %v5475
        %v5498 = vpack.c.b16 %v5478, %v5477
        %v5499 = vpack.c.b16 %v5480, %v5479
        %v5500 = vpack.c.b16 %v5482, %v5481
        %v5501 = vpack.c.b16 %v5484, %v5483
        %v5502 = vpack.c.b16 %v5486, %v5485
        %v5504 = vshrl.u32 %v5487, 16
        %v5506 = vrot.slane %v5504, 4
        %v5507 = vshll.u32 %v5487, 16
        %v5509 = vrot.slane %v5507, 5
        %v5510 = vor.u32 %v5506, %v5509
        %v5512 = vshrl.u32 %v5488, 16
        %v5514 = vrot.slane %v5512, 4
        %v5515 = vshll.u32 %v5488, 16
        %v5517 = vrot.slane %v5515, 5
        %v5518 = vor.u32 %v5514, %v5517
        %v5519 = vsel %vm2737, %v5510, %v5518
        %v5521 = vshrl.u32 %v5489, 16
        %v5523 = vrot.slane %v5521, 4
        %v5524 = vshll.u32 %v5489, 16
        %v5526 = vrot.slane %v5524, 5
        %v5527 = vor.u32 %v5523, %v5526
        %v5528 = vsel %vm2737, %v5518, %v5527
        %v5530 = vshrl.u32 %v5490, 16
        %v5532 = vrot.slane %v5530, 4
        %v5533 = vshll.u32 %v5490, 16
        %v5535 = vrot.slane %v5533, 5
        %v5536 = vor.u32 %v5532, %v5535
        %v5537 = vsel %vm2737, %v5527, %v5536
        %v5539 = vshrl.u32 %v5491, 16
        %v5541 = vrot.slane %v5539, 4
        %v5542 = vshll.u32 %v5491, 16
        %v5544 = vrot.slane %v5542, 5
        %v5545 = vor.u32 %v5541, %v5544
        %v5546 = vsel %vm2737, %v5536, %v5545
        %v5548 = vshrl.u32 %v5492, 16
        %v5550 = vrot.slane %v5548, 4
        %v5551 = vshll.u32 %v5492, 16
        %v5553 = vrot.slane %v5551, 5
        %v5554 = vor.u32 %v5550, %v5553
        %v5555 = vsel %vm2737, %v5545, %v5554
        %v5557 = vshrl.u32 %v5493, 16
        %v5559 = vrot.slane %v5557, 4
        %v5560 = vshll.u32 %v5493, 16
        %v5562 = vrot.slane %v5560, 5
        %v5563 = vor.u32 %v5559, %v5562
        %v5564 = vsel %vm2737, %v5554, %v5563
        %v5566 = vshrl.u32 %v5494, 16
        %v5568 = vrot.slane %v5566, 4
        %v5569 = vshll.u32 %v5494, 16
        %v5571 = vrot.slane %v5569, 5
        %v5572 = vor.u32 %v5568, %v5571
        %v5573 = vsel %vm2737, %v5563, %v5572
        %v5575 = vshrl.u32 %v5495, 16
        %v5577 = vrot.slane %v5575, 4
        %v5578 = vshll.u32 %v5495, 16
        %v5580 = vrot.slane %v5578, 5
        %v5581 = vor.u32 %v5577, %v5580
        %v5582 = vsel %vm2737, %v5572, %v5581
        %v5584 = vshrl.u32 %v5496, 16
        %v5586 = vrot.slane %v5584, 4
        %v5587 = vshll.u32 %v5496, 16
        %v5589 = vrot.slane %v5587, 5
        %v5590 = vor.u32 %v5586, %v5589
        %v5591 = vsel %vm2737, %v5581, %v5590
        %v5593 = vshrl.u32 %v5497, 16
        %v5595 = vrot.slane %v5593, 4
        %v5596 = vshll.u32 %v5497, 16
        %v5598 = vrot.slane %v5596, 5
        %v5599 = vor.u32 %v5595, %v5598
        %v5600 = vsel %vm2737, %v5590, %v5599
        %v5602 = vshrl.u32 %v5498, 16
        %v5604 = vrot.slane %v5602, 4
        %v5605 = vshll.u32 %v5498, 16
        %v5607 = vrot.slane %v5605, 5
        %v5608 = vor.u32 %v5604, %v5607
        %v5609 = vsel %vm2737, %v5599, %v5608
        %v5611 = vshrl.u32 %v5499, 16
        %v5613 = vrot.slane %v5611, 4
        %v5614 = vshll.u32 %v5499, 16
        %v5616 = vrot.slane %v5614, 5
        %v5617 = vor.u32 %v5613, %v5616
        %v5618 = vsel %vm2737, %v5608, %v5617
        %v5620 = vshrl.u32 %v5500, 16
        %v5622 = vrot.slane %v5620, 4
        %v5623 = vshll.u32 %v5500, 16
        %v5625 = vrot.slane %v5623, 5
        %v5626 = vor.u32 %v5622, %v5625
        %v5627 = vsel %vm2737, %v5617, %v5626
        %v5629 = vshrl.u32 %v5501, 16
        %v5631 = vrot.slane %v5629, 4
        %v5632 = vshll.u32 %v5501, 16
        %v5634 = vrot.slane %v5632, 5
        %v5635 = vor.u32 %v5631, %v5634
        %v5636 = vsel %vm2737, %v5626, %v5635
        %v5638 = vshrl.u32 %v5502, 16
        %v5640 = vrot.slane %v5638, 4
        %v5641 = vshll.u32 %v5502, 16
        %v5643 = vrot.slane %v5641, 5
        %v5644 = vor.u32 %v5640, %v5643
        %v5645 = vsel %vm2737, %v5635, %v5644
        %v5679 = vunpack.c.l.b16 %v5307
        %v5680 = vunpack.c.l.b16 %v5308
        %v5681 = vunpack.c.l.b16 %v5309
        %v5682 = vunpack.c.l.b16 %v5310
        %v5683 = vunpack.c.l.b16 %v5311
        %v5684 = vunpack.c.l.b16 %v5312
        %v5685 = vunpack.c.l.b16 %v5313
        %v5686 = vunpack.c.l.b16 %v5314
        %v5687 = vunpack.c.l.b16 %v5315
        %v5688 = vunpack.c.l.b16 %v5316
        %v5689 = vunpack.c.l.b16 %v5317
        %v5690 = vunpack.c.l.b16 %v5318
        %v5691 = vunpack.c.l.b16 %v5319
        %v5692 = vunpack.c.l.b16 %v5320
        %v5693 = vunpack.c.l.b16 %v5321
        %v5694 = vunpack.c.l.b16 %v5322
        %v5695 = vunpack.c.l.b16 %v5323
        %v5696 = vunpack.c.l.b16 %v5324
        %v5697 = vunpack.c.l.b16 %v5325
        %v5698 = vunpack.c.l.b16 %v5326
        %v5699 = vunpack.c.l.b16 %v5327
        %v5700 = vunpack.c.l.b16 %v5328
        %v5701 = vunpack.c.l.b16 %v5329
        %v5702 = vunpack.c.l.b16 %v5330
        %v5703 = vunpack.c.l.b16 %v5331
        %v5704 = vunpack.c.l.b16 %v5332
        %v5705 = vunpack.c.l.b16 %v5333
        %v5706 = vunpack.c.l.b16 %v5334
        %v5707 = vunpack.c.l.b16 %v5335
        %v5708 = vunpack.c.l.b16 %v5336
        %v5709 = vunpack.c.l.b16 %v5337
        %v5710 = vunpack.c.l.b16 %v5338
        %v5711 = vunpack.c.l.b16 %v5339
        %v5712 = vpack.c.b16 %v5680, %v5679
        %v5713 = vpack.c.b16 %v5682, %v5681
        %v5714 = vpack.c.b16 %v5684, %v5683
        %v5715 = vpack.c.b16 %v5686, %v5685
        %v5716 = vpack.c.b16 %v5688, %v5687
        %v5717 = vpack.c.b16 %v5690, %v5689
        %v5718 = vpack.c.b16 %v5692, %v5691
        %v5719 = vpack.c.b16 %v5694, %v5693
        %v5720 = vpack.c.b16 %v5696, %v5695
        %v5721 = vpack.c.b16 %v5698, %v5697
        %v5722 = vpack.c.b16 %v5700, %v5699
        %v5723 = vpack.c.b16 %v5702, %v5701
        %v5724 = vpack.c.b16 %v5704, %v5703
        %v5725 = vpack.c.b16 %v5706, %v5705
        %v5726 = vpack.c.b16 %v5708, %v5707
        %v5727 = vpack.c.b16 %v5710, %v5709
        %v5728 = vpack.c.b16 %v5711, %v5711
        %v5729 = vrot.slane %v5712, 5
        %v5730 = vrot.slane %v5713, 5
        %v5731 = vsel %vm2964, %v5729, %v5730
        %v5732 = vrot.slane %v5714, 5
        %v5733 = vsel %vm2964, %v5730, %v5732
        %v5734 = vrot.slane %v5715, 5
        %v5735 = vsel %vm2964, %v5732, %v5734
        %v5736 = vrot.slane %v5716, 5
        %v5737 = vsel %vm2964, %v5734, %v5736
        %v5738 = vrot.slane %v5717, 5
        %v5739 = vsel %vm2964, %v5736, %v5738
        %v5740 = vrot.slane %v5718, 5
        %v5741 = vsel %vm2964, %v5738, %v5740
        %v5742 = vrot.slane %v5719, 5
        %v5743 = vsel %vm2964, %v5740, %v5742
        %v5744 = vrot.slane %v5720, 5
        %v5745 = vsel %vm2964, %v5742, %v5744
        %v5746 = vrot.slane %v5721, 5
        %v5747 = vsel %vm2964, %v5744, %v5746
        %v5748 = vrot.slane %v5722, 5
        %v5749 = vsel %vm2964, %v5746, %v5748
        %v5750 = vrot.slane %v5723, 5
        %v5751 = vsel %vm2964, %v5748, %v5750
        %v5752 = vrot.slane %v5724, 5
        %v5753 = vsel %vm2964, %v5750, %v5752
        %v5754 = vrot.slane %v5725, 5
        %v5755 = vsel %vm2964, %v5752, %v5754
        %v5756 = vrot.slane %v5726, 5
        %v5757 = vsel %vm2964, %v5754, %v5756
        %v5758 = vrot.slane %v5727, 5
        %v5759 = vsel %vm2964, %v5756, %v5758
        %v5760 = vrot.slane %v5728, 5
        %v5761 = vsel %vm2964, %v5758, %v5760
        %v5762 = vld [vmem:[#allocation8 + $0x180] sm:$0xf]
        %v5763 = vld [vmem:[#allocation8 + $0x184] sm:$0xf]
        %v5764 = vld [vmem:[#allocation8 + $0x188] sm:$0xf]
        %v5765 = vld [vmem:[#allocation8 + $0x18c] sm:$0xf]
        %v5766 = vld [vmem:[#allocation8 + $0x190] sm:$0xf]
        %v5767 = vld [vmem:[#allocation8 + $0x194] sm:$0xf]
        %v5768 = vld [vmem:[#allocation8 + $0x198] sm:$0xf]
        %v5769 = vld [vmem:[#allocation8 + $0x19c] sm:$0xf]
        %v5770 = vld [vmem:[#allocation8 + $0x1a0] sm:$0xf]
        %v5771 = vld [vmem:[#allocation8 + $0x1a4] sm:$0xf]
        %v5772 = vld [vmem:[#allocation8 + $0x1a8] sm:$0xf]
        %v5773 = vld [vmem:[#allocation8 + $0x1ac] sm:$0xf]
        %v5774 = vld [vmem:[#allocation8 + $0x1b0] sm:$0xf]
        %v5775 = vld [vmem:[#allocation8 + $0x1b4] sm:$0xf]
        %v5776 = vld [vmem:[#allocation8 + $0x1b8] sm:$0xf]
        %v5777 = vld [vmem:[#allocation8 + $0x1bc] sm:$0xf]
        %v5778 = vld [vmem:[#allocation8 + $0x1c0] sm:$0xf]
        %v5779 = vld [vmem:[#allocation8 + $0x1c4] sm:$0xf]
        %v5780 = vld [vmem:[#allocation8 + $0x1c8] sm:$0xf]
        %v5781 = vld [vmem:[#allocation8 + $0x1cc] sm:$0xf]
        %v5782 = vld [vmem:[#allocation8 + $0x1d0] sm:$0xf]
        %v5783 = vld [vmem:[#allocation8 + $0x1d4] sm:$0xf]
        %v5784 = vld [vmem:[#allocation8 + $0x1d8] sm:$0xf]
        %v5785 = vld [vmem:[#allocation8 + $0x1dc] sm:$0xf]
        %v5786 = vld [vmem:[#allocation8 + $0x1e0] sm:$0xf]
        %v5787 = vld [vmem:[#allocation8 + $0x1e4] sm:$0xf]
        %v5788 = vld [vmem:[#allocation8 + $0x1e8] sm:$0xf]
        %v5789 = vld [vmem:[#allocation8 + $0x1ec] sm:$0xf]
        %v5790 = vld [vmem:[#allocation8 + $0x1f0] sm:$0xf]
        %v5791 = vld [vmem:[#allocation8 + $0x1f4] sm:$0xf]
        %v5792 = vld [vmem:[#allocation8 + $0x1f8] sm:$0xf]
        %v5793 = vld [vmem:[#allocation8 + $0x1fc] sm:$0xf]
        %v5794 = vld [vmem:[#allocation8 + $0x200] sm:$0xf]
        %v5795 = vld [vmem:[#allocation8 + $0x204] sm:$0xf]
        %v5796 = vld [vmem:[#allocation8 + $0x208] sm:$0xf]
        %v5797 = vld [vmem:[#allocation8 + $0x20c] sm:$0xf]
        %v5798 = vld [vmem:[#allocation8 + $0x210] sm:$0xf]
        %v5799 = vld [vmem:[#allocation8 + $0x214] sm:$0xf]
        %v5800 = vld [vmem:[#allocation8 + $0x218] sm:$0xf]
        %v5801 = vld [vmem:[#allocation8 + $0x21c] sm:$0xf]
        %v5802 = vld [vmem:[#allocation8 + $0x220] sm:$0xf]
        %v5803 = vld [vmem:[#allocation8 + $0x224] sm:$0xf]
        %v5804 = vld [vmem:[#allocation8 + $0x228] sm:$0xf]
        %v5805 = vld [vmem:[#allocation8 + $0x22c] sm:$0xf]
        %v5806 = vld [vmem:[#allocation8 + $0x230] sm:$0xf]
        %v5807 = vld [vmem:[#allocation8 + $0x234] sm:$0xf]
        %v5808 = vld [vmem:[#allocation8 + $0x238] sm:$0xf]
        %v5809 = vld [vmem:[#allocation8 + $0x23c] sm:$0xf]
        %v5811 = vshrl.u32 %v5406, 16
        %v5813 = vrot.slane %v5811, 3
        %v5814 = vshll.u32 %v5406, 16
        %v5816 = vrot.slane %v5814, 4
        %v5817 = vor.u32 %v5813, %v5816
        %v5819 = vshrl.u32 %v5407, 16
        %v5821 = vrot.slane %v5819, 3
        %v5822 = vshll.u32 %v5407, 16
        %v5824 = vrot.slane %v5822, 4
        %v5825 = vor.u32 %v5821, %v5824
        %v5826 = vsel %vm3447, %v5817, %v5825
        %v5828 = vshrl.u32 %v5510, 16
        %v5830 = vrot.slane %v5828, 3
        %v5831 = vshll.u32 %v5510, 16
        %v5833 = vrot.slane %v5831, 4
        %v5834 = vor.u32 %v5830, %v5833
        %v5836 = vshrl.u32 %v5519, 16
        %v5838 = vrot.slane %v5836, 3
        %v5839 = vshll.u32 %v5519, 16
        %v5841 = vrot.slane %v5839, 4
        %v5842 = vor.u32 %v5838, %v5841
        %v5843 = vsel %vm3447, %v5834, %v5842
        %v5845 = vshrl.u32 %v5729, 16
        %v5847 = vrot.slane %v5845, 3
        %v5848 = vshll.u32 %v5729, 16
        %v5850 = vrot.slane %v5848, 4
        %v5851 = vor.u32 %v5847, %v5850
        %v5853 = vshrl.u32 %v5731, 16
        %v5855 = vrot.slane %v5853, 3
        %v5856 = vshll.u32 %v5731, 16
        %v5858 = vrot.slane %v5856, 4
        %v5859 = vor.u32 %v5855, %v5858
        %v5860 = vsel %vm3447, %v5851, %v5859
        %v5862 = vshrl.u32 %v5408, 16
        %v5864 = vrot.slane %v5862, 3
        %v5865 = vshll.u32 %v5408, 16
        %v5867 = vrot.slane %v5865, 4
        %v5868 = vor.u32 %v5864, %v5867
        %v5869 = vsel %vm3447, %v5825, %v5868
        %v5871 = vshrl.u32 %v5528, 16
        %v5873 = vrot.slane %v5871, 3
        %v5874 = vshll.u32 %v5528, 16
        %v5876 = vrot.slane %v5874, 4
        %v5877 = vor.u32 %v5873, %v5876
        %v5878 = vsel %vm3447, %v5842, %v5877
        %v5880 = vshrl.u32 %v5733, 16
        %v5882 = vrot.slane %v5880, 3
        %v5883 = vshll.u32 %v5733, 16
        %v5885 = vrot.slane %v5883, 4
        %v5886 = vor.u32 %v5882, %v5885
        %v5887 = vsel %vm3447, %v5859, %v5886
        %v5889 = vshrl.u32 %v5409, 16
        %v5891 = vrot.slane %v5889, 3
        %v5892 = vshll.u32 %v5409, 16
        %v5894 = vrot.slane %v5892, 4
        %v5895 = vor.u32 %v5891, %v5894
        %v5896 = vsel %vm3447, %v5868, %v5895
        %v5898 = vshrl.u32 %v5537, 16
        %v5900 = vrot.slane %v5898, 3
        %v5901 = vshll.u32 %v5537, 16
        %v5903 = vrot.slane %v5901, 4
        %v5904 = vor.u32 %v5900, %v5903
        %v5905 = vsel %vm3447, %v5877, %v5904
        %v5907 = vshrl.u32 %v5735, 16
        %v5909 = vrot.slane %v5907, 3
        %v5910 = vshll.u32 %v5735, 16
        %v5912 = vrot.slane %v5910, 4
        %v5913 = vor.u32 %v5909, %v5912
        %v5914 = vsel %vm3447, %v5886, %v5913
        %v5916 = vshrl.u32 %v5410, 16
        %v5918 = vrot.slane %v5916, 3
        %v5919 = vshll.u32 %v5410, 16
        %v5921 = vrot.slane %v5919, 4
        %v5922 = vor.u32 %v5918, %v5921
        %v5923 = vsel %vm3447, %v5895, %v5922
        %v5925 = vshrl.u32 %v5546, 16
        %v5927 = vrot.slane %v5925, 3
        %v5928 = vshll.u32 %v5546, 16
        %v5930 = vrot.slane %v5928, 4
        %v5931 = vor.u32 %v5927, %v5930
        %v5932 = vsel %vm3447, %v5904, %v5931
        %v5934 = vshrl.u32 %v5737, 16
        %v5936 = vrot.slane %v5934, 3
        %v5937 = vshll.u32 %v5737, 16
        %v5939 = vrot.slane %v5937, 4
        %v5940 = vor.u32 %v5936, %v5939
        %v5941 = vsel %vm3447, %v5913, %v5940
        %v5943 = vshrl.u32 %v5411, 16
        %v5945 = vrot.slane %v5943, 3
        %v5946 = vshll.u32 %v5411, 16
        %v5948 = vrot.slane %v5946, 4
        %v5949 = vor.u32 %v5945, %v5948
        %v5950 = vsel %vm3447, %v5922, %v5949
        %v5952 = vshrl.u32 %v5555, 16
        %v5954 = vrot.slane %v5952, 3
        %v5955 = vshll.u32 %v5555, 16
        %v5957 = vrot.slane %v5955, 4
        %v5958 = vor.u32 %v5954, %v5957
        %v5959 = vsel %vm3447, %v5931, %v5958
        %v5961 = vshrl.u32 %v5739, 16
        %v5963 = vrot.slane %v5961, 3
        %v5964 = vshll.u32 %v5739, 16
        %v5966 = vrot.slane %v5964, 4
        %v5967 = vor.u32 %v5963, %v5966
        %v5968 = vsel %vm3447, %v5940, %v5967
        %v5970 = vshrl.u32 %v5412, 16
        %v5972 = vrot.slane %v5970, 3
        %v5973 = vshll.u32 %v5412, 16
        %v5975 = vrot.slane %v5973, 4
        %v5976 = vor.u32 %v5972, %v5975
        %v5977 = vsel %vm3447, %v5949, %v5976
        %v5979 = vshrl.u32 %v5564, 16
        %v5981 = vrot.slane %v5979, 3
        %v5982 = vshll.u32 %v5564, 16
        %v5984 = vrot.slane %v5982, 4
        %v5985 = vor.u32 %v5981, %v5984
        %v5986 = vsel %vm3447, %v5958, %v5985
        %v5988 = vshrl.u32 %v5741, 16
        %v5990 = vrot.slane %v5988, 3
        %v5991 = vshll.u32 %v5741, 16
        %v5993 = vrot.slane %v5991, 4
        %v5994 = vor.u32 %v5990, %v5993
        %v5995 = vsel %vm3447, %v5967, %v5994
        %v5997 = vshrl.u32 %v5413, 16
        %v5999 = vrot.slane %v5997, 3
        %v6000 = vshll.u32 %v5413, 16
        %v6002 = vrot.slane %v6000, 4
        %v6003 = vor.u32 %v5999, %v6002
        %v6004 = vsel %vm3447, %v5976, %v6003
        %v6006 = vshrl.u32 %v5573, 16
        %v6008 = vrot.slane %v6006, 3
        %v6009 = vshll.u32 %v5573, 16
        %v6011 = vrot.slane %v6009, 4
        %v6012 = vor.u32 %v6008, %v6011
        %v6013 = vsel %vm3447, %v5985, %v6012
        %v6015 = vshrl.u32 %v5743, 16
        %v6017 = vrot.slane %v6015, 3
        %v6018 = vshll.u32 %v5743, 16
        %v6020 = vrot.slane %v6018, 4
        %v6021 = vor.u32 %v6017, %v6020
        %v6022 = vsel %vm3447, %v5994, %v6021
        %v6024 = vshrl.u32 %v5414, 16
        %v6026 = vrot.slane %v6024, 3
        %v6027 = vshll.u32 %v5414, 16
        %v6029 = vrot.slane %v6027, 4
        %v6030 = vor.u32 %v6026, %v6029
        %v6031 = vsel %vm3447, %v6003, %v6030
        %v6033 = vshrl.u32 %v5582, 16
        %v6035 = vrot.slane %v6033, 3
        %v6036 = vshll.u32 %v5582, 16
        %v6038 = vrot.slane %v6036, 4
        %v6039 = vor.u32 %v6035, %v6038
        %v6040 = vsel %vm3447, %v6012, %v6039
        %v6042 = vshrl.u32 %v5745, 16
        %v6044 = vrot.slane %v6042, 3
        %v6045 = vshll.u32 %v5745, 16
        %v6047 = vrot.slane %v6045, 4
        %v6048 = vor.u32 %v6044, %v6047
        %v6049 = vsel %vm3447, %v6021, %v6048
        %v6051 = vshrl.u32 %v5415, 16
        %v6053 = vrot.slane %v6051, 3
        %v6054 = vshll.u32 %v5415, 16
        %v6056 = vrot.slane %v6054, 4
        %v6057 = vor.u32 %v6053, %v6056
        %v6058 = vsel %vm3447, %v6030, %v6057
        %v6060 = vshrl.u32 %v5591, 16
        %v6062 = vrot.slane %v6060, 3
        %v6063 = vshll.u32 %v5591, 16
        %v6065 = vrot.slane %v6063, 4
        %v6066 = vor.u32 %v6062, %v6065
        %v6067 = vsel %vm3447, %v6039, %v6066
        %v6069 = vshrl.u32 %v5747, 16
        %v6071 = vrot.slane %v6069, 3
        %v6072 = vshll.u32 %v5747, 16
        %v6074 = vrot.slane %v6072, 4
        %v6075 = vor.u32 %v6071, %v6074
        %v6076 = vsel %vm3447, %v6048, %v6075
        %v6078 = vshrl.u32 %v5416, 16
        %v6080 = vrot.slane %v6078, 3
        %v6081 = vshll.u32 %v5416, 16
        %v6083 = vrot.slane %v6081, 4
        %v6084 = vor.u32 %v6080, %v6083
        %v6085 = vsel %vm3447, %v6057, %v6084
        %v6087 = vshrl.u32 %v5600, 16
        %v6089 = vrot.slane %v6087, 3
        %v6090 = vshll.u32 %v5600, 16
        %v6092 = vrot.slane %v6090, 4
        %v6093 = vor.u32 %v6089, %v6092
        %v6094 = vsel %vm3447, %v6066, %v6093
        %v6096 = vshrl.u32 %v5749, 16
        %v6098 = vrot.slane %v6096, 3
        %v6099 = vshll.u32 %v5749, 16
        %v6101 = vrot.slane %v6099, 4
        %v6102 = vor.u32 %v6098, %v6101
        %v6103 = vsel %vm3447, %v6075, %v6102
        %v6105 = vshrl.u32 %v5417, 16
        %v6107 = vrot.slane %v6105, 3
        %v6108 = vshll.u32 %v5417, 16
        %v6110 = vrot.slane %v6108, 4
        %v6111 = vor.u32 %v6107, %v6110
        %v6112 = vsel %vm3447, %v6084, %v6111
        %v6114 = vshrl.u32 %v5609, 16
        %v6116 = vrot.slane %v6114, 3
        %v6117 = vshll.u32 %v5609, 16
        %v6119 = vrot.slane %v6117, 4
        %v6120 = vor.u32 %v6116, %v6119
        %v6121 = vsel %vm3447, %v6093, %v6120
        %v6123 = vshrl.u32 %v5751, 16
        %v6125 = vrot.slane %v6123, 3
        %v6126 = vshll.u32 %v5751, 16
        %v6128 = vrot.slane %v6126, 4
        %v6129 = vor.u32 %v6125, %v6128
        %v6130 = vsel %vm3447, %v6102, %v6129
        %v6132 = vshrl.u32 %v5418, 16
        %v6134 = vrot.slane %v6132, 3
        %v6135 = vshll.u32 %v5418, 16
        %v6137 = vrot.slane %v6135, 4
        %v6138 = vor.u32 %v6134, %v6137
        %v6139 = vsel %vm3447, %v6111, %v6138
        %v6141 = vshrl.u32 %v5618, 16
        %v6143 = vrot.slane %v6141, 3
        %v6144 = vshll.u32 %v5618, 16
        %v6146 = vrot.slane %v6144, 4
        %v6147 = vor.u32 %v6143, %v6146
        %v6148 = vsel %vm3447, %v6120, %v6147
        %v6150 = vshrl.u32 %v5753, 16
        %v6152 = vrot.slane %v6150, 3
        %v6153 = vshll.u32 %v5753, 16
        %v6155 = vrot.slane %v6153, 4
        %v6156 = vor.u32 %v6152, %v6155
        %v6157 = vsel %vm3447, %v6129, %v6156
        %v6159 = vshrl.u32 %v5419, 16
        %v6161 = vrot.slane %v6159, 3
        %v6162 = vshll.u32 %v5419, 16
        %v6164 = vrot.slane %v6162, 4
        %v6165 = vor.u32 %v6161, %v6164
        %v6166 = vsel %vm3447, %v6138, %v6165
        %v6168 = vshrl.u32 %v5627, 16
        %v6170 = vrot.slane %v6168, 3
        %v6171 = vshll.u32 %v5627, 16
        %v6173 = vrot.slane %v6171, 4
        %v6174 = vor.u32 %v6170, %v6173
        %v6175 = vsel %vm3447, %v6147, %v6174
        %v6177 = vshrl.u32 %v5755, 16
        %v6179 = vrot.slane %v6177, 3
        %v6180 = vshll.u32 %v5755, 16
        %v6182 = vrot.slane %v6180, 4
        %v6183 = vor.u32 %v6179, %v6182
        %v6184 = vsel %vm3447, %v6156, %v6183
        %v6186 = vshrl.u32 %v5420, 16
        %v6188 = vrot.slane %v6186, 3
        %v6189 = vshll.u32 %v5420, 16
        %v6191 = vrot.slane %v6189, 4
        %v6192 = vor.u32 %v6188, %v6191
        %v6193 = vsel %vm3447, %v6165, %v6192
        %v6195 = vshrl.u32 %v5636, 16
        %v6197 = vrot.slane %v6195, 3
        %v6198 = vshll.u32 %v5636, 16
        %v6200 = vrot.slane %v6198, 4
        %v6201 = vor.u32 %v6197, %v6200
        %v6202 = vsel %vm3447, %v6174, %v6201
        %v6204 = vshrl.u32 %v5757, 16
        %v6206 = vrot.slane %v6204, 3
        %v6207 = vshll.u32 %v5757, 16
        %v6209 = vrot.slane %v6207, 4
        %v6210 = vor.u32 %v6206, %v6209
        %v6211 = vsel %vm3447, %v6183, %v6210
        %v6213 = vshrl.u32 %v5421, 16
        %v6215 = vrot.slane %v6213, 3
        %v6216 = vshll.u32 %v5421, 16
        %v6218 = vrot.slane %v6216, 4
        %v6219 = vor.u32 %v6215, %v6218
        %v6220 = vsel %vm3447, %v6192, %v6219
        %v6222 = vshrl.u32 %v5645, 16
        %v6224 = vrot.slane %v6222, 3
        %v6225 = vshll.u32 %v5645, 16
        %v6227 = vrot.slane %v6225, 4
        %v6228 = vor.u32 %v6224, %v6227
        %v6229 = vsel %vm3447, %v6201, %v6228
        %v6231 = vshrl.u32 %v5759, 16
        %v6233 = vrot.slane %v6231, 3
        %v6234 = vshll.u32 %v5759, 16
        %v6236 = vrot.slane %v6234, 4
        %v6237 = vor.u32 %v6233, %v6236
        %v6238 = vsel %vm3447, %v6210, %v6237
        %v6240 = vshrl.u32 %v5422, 16
        %v6242 = vrot.slane %v6240, 3
        %v6243 = vshll.u32 %v5422, 16
        %v6245 = vrot.slane %v6243, 4
        %v6246 = vor.u32 %v6242, %v6245
        %v6247 = vsel %vm3447, %v6219, %v6246
        %v6249 = vshrl.u32 %v5644, 16
        %v6251 = vrot.slane %v6249, 3
        %v6252 = vshll.u32 %v5644, 16
        %v6254 = vrot.slane %v6252, 4
        %v6255 = vor.u32 %v6251, %v6254
        %v6256 = vsel %vm3447, %v6228, %v6255
        %v6258 = vshrl.u32 %v5761, 16
        %v6260 = vrot.slane %v6258, 3
        %v6261 = vshll.u32 %v5761, 16
        %v6263 = vrot.slane %v6261, 4
        %v6264 = vor.u32 %v6260, %v6263
        %v6265 = vsel %vm3447, %v6237, %v6264
        %v6362 = vunpack.c.l.b16 %v5762
        %v6363 = vunpack.c.l.b16 %v5763
        %v6364 = vunpack.c.l.b16 %v5764
        %v6365 = vunpack.c.l.b16 %v5765
        %v6366 = vunpack.c.l.b16 %v5766
        %v6367 = vunpack.c.l.b16 %v5767
        %v6368 = vunpack.c.l.b16 %v5768
        %v6369 = vunpack.c.l.b16 %v5769
        %v6370 = vunpack.c.l.b16 %v5770
        %v6371 = vunpack.c.l.b16 %v5771
        %v6372 = vunpack.c.l.b16 %v5772
        %v6373 = vunpack.c.l.b16 %v5773
        %v6374 = vunpack.c.l.b16 %v5774
        %v6375 = vunpack.c.l.b16 %v5775
        %v6376 = vunpack.c.l.b16 %v5776
        %v6377 = vunpack.c.l.b16 %v5777
        %v6378 = vunpack.c.l.b16 %v5778
        %v6379 = vunpack.c.l.b16 %v5779
        %v6380 = vunpack.c.l.b16 %v5780
        %v6381 = vunpack.c.l.b16 %v5781
        %v6382 = vunpack.c.l.b16 %v5782
        %v6383 = vunpack.c.l.b16 %v5783
        %v6384 = vunpack.c.l.b16 %v5784
        %v6385 = vunpack.c.l.b16 %v5785
        %v6386 = vunpack.c.l.b16 %v5786
        %v6387 = vunpack.c.l.b16 %v5787
        %v6388 = vunpack.c.l.b16 %v5788
        %v6389 = vunpack.c.l.b16 %v5789
        %v6390 = vunpack.c.l.b16 %v5790
        %v6391 = vunpack.c.l.b16 %v5791
        %v6392 = vunpack.c.l.b16 %v5792
        %v6393 = vunpack.c.l.b16 %v5793
        %v6394 = vunpack.c.l.b16 %v5794
        %v6395 = vunpack.c.l.b16 %v5795
        %v6396 = vunpack.c.l.b16 %v5796
        %v6397 = vunpack.c.l.b16 %v5797
        %v6398 = vunpack.c.l.b16 %v5798
        %v6399 = vunpack.c.l.b16 %v5799
        %v6400 = vunpack.c.l.b16 %v5800
        %v6401 = vunpack.c.l.b16 %v5801
        %v6402 = vunpack.c.l.b16 %v5802
        %v6403 = vunpack.c.l.b16 %v5803
        %v6404 = vunpack.c.l.b16 %v5804
        %v6405 = vunpack.c.l.b16 %v5805
        %v6406 = vunpack.c.l.b16 %v5806
        %v6407 = vunpack.c.l.b16 %v5807
        %v6408 = vunpack.c.l.b16 %v5808
        %v6409 = vunpack.c.l.b16 %v5809
        %v6410 = vpack.c.b16 %v6363, %v6362
        %v6411 = vpack.c.b16 %v6365, %v6364
        %v6412 = vpack.c.b16 %v6367, %v6366
        %v6413 = vpack.c.b16 %v6369, %v6368
        %v6414 = vpack.c.b16 %v6371, %v6370
        %v6415 = vpack.c.b16 %v6373, %v6372
        %v6416 = vpack.c.b16 %v6375, %v6374
        %v6417 = vpack.c.b16 %v6377, %v6376
        %v6418 = vpack.c.b16 %v6379, %v6378
        %v6419 = vpack.c.b16 %v6381, %v6380
        %v6420 = vpack.c.b16 %v6383, %v6382
        %v6421 = vpack.c.b16 %v6385, %v6384
        %v6422 = vpack.c.b16 %v6387, %v6386
        %v6423 = vpack.c.b16 %v6389, %v6388
        %v6424 = vpack.c.b16 %v6391, %v6390
        %v6425 = vpack.c.b16 %v6393, %v6392
        %v6426 = vpack.c.b16 %v6395, %v6394
        %v6427 = vpack.c.b16 %v6397, %v6396
        %v6428 = vpack.c.b16 %v6399, %v6398
        %v6429 = vpack.c.b16 %v6401, %v6400
        %v6430 = vpack.c.b16 %v6403, %v6402
        %v6431 = vpack.c.b16 %v6405, %v6404
        %v6432 = vpack.c.b16 %v6407, %v6406
        %v6433 = vpack.c.b16 %v6409, %v6408
        %6458 = vmatpush.bf16.msra.mxu0 %v6417
        %6459 = vmatpush.bf16.msra.mxu0 %v6416
        %6460 = vmatpush.bf16.msra.mxu0 %v6415
        %6461 = vmatpush.bf16.msra.mxu0 %v6414
        %6462 = vmatpush.bf16.msra.mxu0 %v6413
        %6463 = vmatpush.bf16.msra.mxu0 %v6412
        %6464 = vmatpush.bf16.msra.mxu0 %v6411
        %6465 = vmatpush.bf16.msra.mxu0 %v6410
        %6466 = vmatmul.bf16.gmra.mxu0 %v5826
        %v6467 = vpop.f32.mrf.mxu0
        %v6468 = vadd.f32 0.0, %v6467
        %v6469 = vpop.f32.mrf.mxu0
        %v6470 = vadd.f32 0.0, %v6469
        %6471 = vmatmul.bf16.gmra.mxu0 %v5869
        %v6472 = vpop.f32.mrf.mxu0
        %v6473 = vadd.f32 0.0, %v6472
        %v6474 = vpop.f32.mrf.mxu0
        %v6475 = vadd.f32 0.0, %v6474
        %6476 = vmatmul.bf16.gmra.mxu0 %v5896
        %v6477 = vpop.f32.mrf.mxu0
        %v6478 = vadd.f32 0.0, %v6477
        %v6479 = vpop.f32.mrf.mxu0
        %v6480 = vadd.f32 0.0, %v6479
        %6481 = vmatmul.bf16.gmra.mxu0 %v5923
        %v6482 = vpop.f32.mrf.mxu0
        %v6483 = vadd.f32 0.0, %v6482
        %v6484 = vpop.f32.mrf.mxu0
        %v6485 = vadd.f32 0.0, %v6484
        %6486 = vmatmul.bf16.gmra.mxu0 %v5950
        %v6487 = vpop.f32.mrf.mxu0
        %v6488 = vadd.f32 0.0, %v6487
        %v6489 = vpop.f32.mrf.mxu0
        %v6490 = vadd.f32 0.0, %v6489
        %6491 = vmatmul.bf16.gmra.mxu0 %v5977
        %v6492 = vpop.f32.mrf.mxu0
        %v6493 = vadd.f32 0.0, %v6492
        %v6494 = vpop.f32.mrf.mxu0
        %v6495 = vadd.f32 0.0, %v6494
        %6496 = vmatmul.bf16.gmra.mxu0 %v6004
        %v6497 = vpop.f32.mrf.mxu0
        %v6498 = vadd.f32 0.0, %v6497
        %v6499 = vpop.f32.mrf.mxu0
        %v6500 = vadd.f32 0.0, %v6499
        %6501 = vmatmul.bf16.gmra.mxu0 %v6031
        %v6502 = vpop.f32.mrf.mxu0
        %v6503 = vadd.f32 0.0, %v6502
        %v6504 = vpop.f32.mrf.mxu0
        %v6505 = vadd.f32 0.0, %v6504
        %6506 = vmatmul.bf16.gmra.mxu0 %v6058
        %v6507 = vpop.f32.mrf.mxu0
        %v6508 = vadd.f32 0.0, %v6507
        %v6509 = vpop.f32.mrf.mxu0
        %v6510 = vadd.f32 0.0, %v6509
        %6511 = vmatmul.bf16.gmra.mxu0 %v6085
        %v6512 = vpop.f32.mrf.mxu0
        %v6513 = vadd.f32 0.0, %v6512
        %v6514 = vpop.f32.mrf.mxu0
        %v6515 = vadd.f32 0.0, %v6514
        %6516 = vmatmul.bf16.gmra.mxu0 %v6112
        %v6517 = vpop.f32.mrf.mxu0
        %v6518 = vadd.f32 0.0, %v6517
        %v6519 = vpop.f32.mrf.mxu0
        %v6520 = vadd.f32 0.0, %v6519
        %6521 = vmatmul.bf16.gmra.mxu0 %v6139
        %v6522 = vpop.f32.mrf.mxu0
        %v6523 = vadd.f32 0.0, %v6522
        %v6524 = vpop.f32.mrf.mxu0
        %v6525 = vadd.f32 0.0, %v6524
        %6526 = vmatmul.bf16.gmra.mxu0 %v6166
        %v6527 = vpop.f32.mrf.mxu0
        %v6528 = vadd.f32 0.0, %v6527
        %v6529 = vpop.f32.mrf.mxu0
        %v6530 = vadd.f32 0.0, %v6529
        %6531 = vmatmul.bf16.gmra.mxu0 %v6193
        %v6532 = vpop.f32.mrf.mxu0
        %v6533 = vadd.f32 0.0, %v6532
        %v6534 = vpop.f32.mrf.mxu0
        %v6535 = vadd.f32 0.0, %v6534
        %6536 = vmatmul.bf16.gmra.mxu0 %v6220
        %v6537 = vpop.f32.mrf.mxu0
        %v6538 = vadd.f32 0.0, %v6537
        %v6539 = vpop.f32.mrf.mxu0
        %v6540 = vadd.f32 0.0, %v6539
        %6541 = vmatmul.bf16.gmra.mxu0 %v6247
        %v6542 = vpop.f32.mrf.mxu0
        %v6543 = vadd.f32 0.0, %v6542
        %v6544 = vpop.f32.mrf.mxu0
        %v6545 = vadd.f32 0.0, %v6544
        %6546 = vdwg.mxu0
        %6547 = vmatpush.bf16.msra.mxu0 %v6425
        %6548 = vmatpush.bf16.msra.mxu0 %v6424
        %6549 = vmatpush.bf16.msra.mxu0 %v6423
        %6550 = vmatpush.bf16.msra.mxu0 %v6422
        %6551 = vmatpush.bf16.msra.mxu0 %v6421
        %6552 = vmatpush.bf16.msra.mxu0 %v6420
        %6553 = vmatpush.bf16.msra.mxu0 %v6419
        %6554 = vmatpush.bf16.msra.mxu0 %v6418
        %6555 = vmatmul.bf16.gmra.mxu0 %v5843
        %v6556 = vpop.f32.mrf.mxu0
        %v6557 = vadd.f32 %v6468, %v6556
        %v6558 = vpop.f32.mrf.mxu0
        %v6559 = vadd.f32 %v6470, %v6558
        %6560 = vmatmul.bf16.gmra.mxu0 %v5878
        %v6561 = vpop.f32.mrf.mxu0
        %v6562 = vadd.f32 %v6473, %v6561
        %v6563 = vpop.f32.mrf.mxu0
        %v6564 = vadd.f32 %v6475, %v6563
        %6565 = vmatmul.bf16.gmra.mxu0 %v5905
        %v6566 = vpop.f32.mrf.mxu0
        %v6567 = vadd.f32 %v6478, %v6566
        %v6568 = vpop.f32.mrf.mxu0
        %v6569 = vadd.f32 %v6480, %v6568
        %6570 = vmatmul.bf16.gmra.mxu0 %v5932
        %v6571 = vpop.f32.mrf.mxu0
        %v6572 = vadd.f32 %v6483, %v6571
        %v6573 = vpop.f32.mrf.mxu0
        %v6574 = vadd.f32 %v6485, %v6573
        %6575 = vmatmul.bf16.gmra.mxu0 %v5959
        %v6576 = vpop.f32.mrf.mxu0
        %v6577 = vadd.f32 %v6488, %v6576
        %v6578 = vpop.f32.mrf.mxu0
        %v6579 = vadd.f32 %v6490, %v6578
        %6580 = vmatmul.bf16.gmra.mxu0 %v5986
        %v6581 = vpop.f32.mrf.mxu0
        %v6582 = vadd.f32 %v6493, %v6581
        %v6583 = vpop.f32.mrf.mxu0
        %v6584 = vadd.f32 %v6495, %v6583
        %6585 = vmatmul.bf16.gmra.mxu0 %v6013
        %v6586 = vpop.f32.mrf.mxu0
        %v6587 = vadd.f32 %v6498, %v6586
        %v6588 = vpop.f32.mrf.mxu0
        %v6589 = vadd.f32 %v6500, %v6588
        %6590 = vmatmul.bf16.gmra.mxu0 %v6040
        %v6591 = vpop.f32.mrf.mxu0
        %v6592 = vadd.f32 %v6503, %v6591
        %v6593 = vpop.f32.mrf.mxu0
        %v6594 = vadd.f32 %v6505, %v6593
        %6595 = vmatmul.bf16.gmra.mxu0 %v6067
        %v6596 = vpop.f32.mrf.mxu0
        %v6597 = vadd.f32 %v6508, %v6596
        %v6598 = vpop.f32.mrf.mxu0
        %v6599 = vadd.f32 %v6510, %v6598
        %6600 = vmatmul.bf16.gmra.mxu0 %v6094
        %v6601 = vpop.f32.mrf.mxu0
        %v6602 = vadd.f32 %v6513, %v6601
        %v6603 = vpop.f32.mrf.mxu0
        %v6604 = vadd.f32 %v6515, %v6603
        %6605 = vmatmul.bf16.gmra.mxu0 %v6121
        %v6606 = vpop.f32.mrf.mxu0
        %v6607 = vadd.f32 %v6518, %v6606
        %v6608 = vpop.f32.mrf.mxu0
        %v6609 = vadd.f32 %v6520, %v6608
        %6610 = vmatmul.bf16.gmra.mxu0 %v6148
        %v6611 = vpop.f32.mrf.mxu0
        %v6612 = vadd.f32 %v6523, %v6611
        %v6613 = vpop.f32.mrf.mxu0
        %v6614 = vadd.f32 %v6525, %v6613
        %6615 = vmatmul.bf16.gmra.mxu0 %v6175
        %v6616 = vpop.f32.mrf.mxu0
        %v6617 = vadd.f32 %v6528, %v6616
        %v6618 = vpop.f32.mrf.mxu0
        %v6619 = vadd.f32 %v6530, %v6618
        %6620 = vmatmul.bf16.gmra.mxu0 %v6202
        %v6621 = vpop.f32.mrf.mxu0
        %v6622 = vadd.f32 %v6533, %v6621
        %v6623 = vpop.f32.mrf.mxu0
        %v6624 = vadd.f32 %v6535, %v6623
        %6625 = vmatmul.bf16.gmra.mxu0 %v6229
        %v6626 = vpop.f32.mrf.mxu0
        %v6627 = vadd.f32 %v6538, %v6626
        %v6628 = vpop.f32.mrf.mxu0
        %v6629 = vadd.f32 %v6540, %v6628
        %6630 = vmatmul.bf16.gmra.mxu0 %v6256
        %v6631 = vpop.f32.mrf.mxu0
        %v6632 = vadd.f32 %v6543, %v6631
        %v6633 = vpop.f32.mrf.mxu0
        %v6634 = vadd.f32 %v6545, %v6633
        %6635 = vdwg.mxu0
        %6636 = vmatpush.bf16.msra.mxu0 %v6433
        %6637 = vmatpush.bf16.msra.mxu0 %v6432
        %6638 = vmatpush.bf16.msra.mxu0 %v6431
        %6639 = vmatpush.bf16.msra.mxu0 %v6430
        %6640 = vmatpush.bf16.msra.mxu0 %v6429
        %6641 = vmatpush.bf16.msra.mxu0 %v6428
        %6642 = vmatpush.bf16.msra.mxu0 %v6427
        %6643 = vmatpush.bf16.msra.mxu0 %v6426
        %6644 = vmatmul.bf16.gmra.mxu0 %v5860
        %v6645 = vpop.f32.mrf.mxu0
        %v6646 = vadd.f32 %v6557, %v6645
        %v6647 = vpop.f32.mrf.mxu0
        %v6648 = vadd.f32 %v6559, %v6647
        %6649 = vmatmul.bf16.gmra.mxu0 %v5887
        %v6650 = vpop.f32.mrf.mxu0
        %v6651 = vadd.f32 %v6562, %v6650
        %v6652 = vpop.f32.mrf.mxu0
        %v6653 = vadd.f32 %v6564, %v6652
        %6654 = vmatmul.bf16.gmra.mxu0 %v5914
        %v6655 = vpop.f32.mrf.mxu0
        %v6656 = vadd.f32 %v6567, %v6655
        %v6657 = vpop.f32.mrf.mxu0
        %v6658 = vadd.f32 %v6569, %v6657
        %6659 = vmatmul.bf16.gmra.mxu0 %v5941
        %v6660 = vpop.f32.mrf.mxu0
        %v6661 = vadd.f32 %v6572, %v6660
        %v6662 = vpop.f32.mrf.mxu0
        %v6663 = vadd.f32 %v6574, %v6662
        %6664 = vmatmul.bf16.gmra.mxu0 %v5968
        %v6665 = vpop.f32.mrf.mxu0
        %v6666 = vadd.f32 %v6577, %v6665
        %v6667 = vpop.f32.mrf.mxu0
        %v6668 = vadd.f32 %v6579, %v6667
        %6669 = vmatmul.bf16.gmra.mxu0 %v5995
        %v6670 = vpop.f32.mrf.mxu0
        %v6671 = vadd.f32 %v6582, %v6670
        %v6672 = vpop.f32.mrf.mxu0
        %v6673 = vadd.f32 %v6584, %v6672
        %6674 = vmatmul.bf16.gmra.mxu0 %v6022
        %v6675 = vpop.f32.mrf.mxu0
        %v6676 = vadd.f32 %v6587, %v6675
        %v6677 = vpop.f32.mrf.mxu0
        %v6678 = vadd.f32 %v6589, %v6677
        %6679 = vmatmul.bf16.gmra.mxu0 %v6049
        %v6680 = vpop.f32.mrf.mxu0
        %v6681 = vadd.f32 %v6592, %v6680
        %v6682 = vpop.f32.mrf.mxu0
        %v6683 = vadd.f32 %v6594, %v6682
        %6684 = vmatmul.bf16.gmra.mxu0 %v6076
        %v6685 = vpop.f32.mrf.mxu0
        %v6686 = vadd.f32 %v6597, %v6685
        %v6687 = vpop.f32.mrf.mxu0
        %v6688 = vadd.f32 %v6599, %v6687
        %6689 = vmatmul.bf16.gmra.mxu0 %v6103
        %v6690 = vpop.f32.mrf.mxu0
        %v6691 = vadd.f32 %v6602, %v6690
        %v6692 = vpop.f32.mrf.mxu0
        %v6693 = vadd.f32 %v6604, %v6692
        %6694 = vmatmul.bf16.gmra.mxu0 %v6130
        %v6695 = vpop.f32.mrf.mxu0
        %v6696 = vadd.f32 %v6607, %v6695
        %v6697 = vpop.f32.mrf.mxu0
        %v6698 = vadd.f32 %v6609, %v6697
        %6699 = vmatmul.bf16.gmra.mxu0 %v6157
        %v6700 = vpop.f32.mrf.mxu0
        %v6701 = vadd.f32 %v6612, %v6700
        %v6702 = vpop.f32.mrf.mxu0
        %v6703 = vadd.f32 %v6614, %v6702
        %6704 = vmatmul.bf16.gmra.mxu0 %v6184
        %v6705 = vpop.f32.mrf.mxu0
        %v6706 = vadd.f32 %v6617, %v6705
        %v6707 = vpop.f32.mrf.mxu0
        %v6708 = vadd.f32 %v6619, %v6707
        %6709 = vmatmul.bf16.gmra.mxu0 %v6211
        %v6710 = vpop.f32.mrf.mxu0
        %v6711 = vadd.f32 %v6622, %v6710
        %v6712 = vpop.f32.mrf.mxu0
        %v6713 = vadd.f32 %v6624, %v6712
        %6714 = vmatmul.bf16.gmra.mxu0 %v6238
        %v6715 = vpop.f32.mrf.mxu0
        %v6716 = vadd.f32 %v6627, %v6715
        %v6717 = vpop.f32.mrf.mxu0
        %v6718 = vadd.f32 %v6629, %v6717
        %6719 = vmatmul.bf16.gmra.mxu0 %v6265
        %v6720 = vpop.f32.mrf.mxu0
        %v6721 = vadd.f32 %v6632, %v6720
        %v6722 = vpop.f32.mrf.mxu0
        %v6723 = vadd.f32 %v6634, %v6722
        %6724 = vdwg.mxu0
        %v6725 = vadd.f32 %v5061, %v6646
        %v6726 = vadd.f32 %v5063, %v6648
        %v6727 = vadd.f32 %v5066, %v6651
        %v6728 = vadd.f32 %v5068, %v6653
        %v6729 = vadd.f32 %v5071, %v6656
        %v6730 = vadd.f32 %v5073, %v6658
        %v6731 = vadd.f32 %v5076, %v6661
        %v6732 = vadd.f32 %v5078, %v6663
        %v6733 = vadd.f32 %v5081, %v6666
        %v6734 = vadd.f32 %v5083, %v6668
        %v6735 = vadd.f32 %v5086, %v6671
        %v6736 = vadd.f32 %v5088, %v6673
        %v6737 = vadd.f32 %v5091, %v6676
        %v6738 = vadd.f32 %v5093, %v6678
        %v6739 = vadd.f32 %v5096, %v6681
        %v6740 = vadd.f32 %v5098, %v6683
        %v6741 = vadd.f32 %v5101, %v6686
        %v6742 = vadd.f32 %v5103, %v6688
        %v6743 = vadd.f32 %v5106, %v6691
        %v6744 = vadd.f32 %v5108, %v6693
        %v6745 = vadd.f32 %v5111, %v6696
        %v6746 = vadd.f32 %v5113, %v6698
        %v6747 = vadd.f32 %v5116, %v6701
        %v6748 = vadd.f32 %v5118, %v6703
        %v6749 = vadd.f32 %v5121, %v6706
        %v6750 = vadd.f32 %v5123, %v6708
        %v6751 = vadd.f32 %v5126, %v6711
        %v6752 = vadd.f32 %v5128, %v6713
        %v6753 = vadd.f32 %v5131, %v6716
        %v6754 = vadd.f32 %v5133, %v6718
        %v6755 = vadd.f32 %v5136, %v6721
        %v6756 = vadd.f32 %v5138, %v6723
        %v6757 = vld [vmem:[%s4] sm:$0x1]
        %v6759 = vperm.slane %v6757, 0
        %v6761 = vadd.f32 %v6725, %v6759
        %v6762 = vadd.f32 %v6726, %v6759
        %v6763 = vadd.f32 %v6727, %v6759
        %v6764 = vadd.f32 %v6728, %v6759
        %v6765 = vadd.f32 %v6729, %v6759
        %v6766 = vadd.f32 %v6730, %v6759
        %v6767 = vadd.f32 %v6731, %v6759
        %v6768 = vadd.f32 %v6732, %v6759
        %v6769 = vadd.f32 %v6733, %v6759
        %v6770 = vadd.f32 %v6734, %v6759
        %v6771 = vadd.f32 %v6735, %v6759
        %v6772 = vadd.f32 %v6736, %v6759
        %v6773 = vadd.f32 %v6737, %v6759
        %v6774 = vadd.f32 %v6738, %v6759
        %v6775 = vadd.f32 %v6739, %v6759
        %v6776 = vadd.f32 %v6740, %v6759
        %v6777 = vadd.f32 %v6741, %v6759
        %v6778 = vadd.f32 %v6742, %v6759
        %v6779 = vadd.f32 %v6743, %v6759
        %v6780 = vadd.f32 %v6744, %v6759
        %v6781 = vadd.f32 %v6745, %v6759
        %v6782 = vadd.f32 %v6746, %v6759
        %v6783 = vadd.f32 %v6747, %v6759
        %v6784 = vadd.f32 %v6748, %v6759
        %v6785 = vadd.f32 %v6749, %v6759
        %v6786 = vadd.f32 %v6750, %v6759
        %v6787 = vadd.f32 %v6751, %v6759
        %v6788 = vadd.f32 %v6752, %v6759
        %v6789 = vadd.f32 %v6753, %v6759
        %v6790 = vadd.f32 %v6754, %v6759
        %v6791 = vadd.f32 %v6755, %v6759
        %v6792 = vadd.f32 %v6756, %v6759
        %v6793 = vand.u32 2147483647, %v6761
        %v6794 = vand.u32 2147483647, %v6762
        %v6795 = vand.u32 2147483647, %v6763
        %v6796 = vand.u32 2147483647, %v6764
        %v6797 = vand.u32 2147483647, %v6765
        %v6798 = vand.u32 2147483647, %v6766
        %v6799 = vand.u32 2147483647, %v6767
        %v6800 = vand.u32 2147483647, %v6768
        %v6801 = vand.u32 2147483647, %v6769
        %v6802 = vand.u32 2147483647, %v6770
        %v6803 = vand.u32 2147483647, %v6771
        %v6804 = vand.u32 2147483647, %v6772
        %v6805 = vand.u32 2147483647, %v6773
        %v6806 = vand.u32 2147483647, %v6774
        %v6807 = vand.u32 2147483647, %v6775
        %v6808 = vand.u32 2147483647, %v6776
        %v6809 = vand.u32 2147483647, %v6777
        %v6810 = vand.u32 2147483647, %v6778
        %v6811 = vand.u32 2147483647, %v6779
        %v6812 = vand.u32 2147483647, %v6780
        %v6813 = vand.u32 2147483647, %v6781
        %v6814 = vand.u32 2147483647, %v6782
        %v6815 = vand.u32 2147483647, %v6783
        %v6816 = vand.u32 2147483647, %v6784
        %v6817 = vand.u32 2147483647, %v6785
        %v6818 = vand.u32 2147483647, %v6786
        %v6819 = vand.u32 2147483647, %v6787
        %v6820 = vand.u32 2147483647, %v6788
        %v6821 = vand.u32 2147483647, %v6789
        %v6822 = vand.u32 2147483647, %v6790
        %v6823 = vand.u32 2147483647, %v6791
        %v6824 = vand.u32 2147483647, %v6792
        %v6825 = vsub.f32 0.0, %v6793
        %v6826 = vsub.f32 0.0, %v6794
        %v6827 = vsub.f32 0.0, %v6795
        %v6828 = vsub.f32 0.0, %v6796
        %v6829 = vsub.f32 0.0, %v6797
        %v6830 = vsub.f32 0.0, %v6798
        %v6831 = vsub.f32 0.0, %v6799
        %v6832 = vsub.f32 0.0, %v6800
        %v6833 = vsub.f32 0.0, %v6801
        %v6834 = vsub.f32 0.0, %v6802
        %v6835 = vsub.f32 0.0, %v6803
        %v6836 = vsub.f32 0.0, %v6804
        %v6837 = vsub.f32 0.0, %v6805
        %v6838 = vsub.f32 0.0, %v6806
        %v6839 = vsub.f32 0.0, %v6807
        %v6840 = vsub.f32 0.0, %v6808
        %v6841 = vsub.f32 0.0, %v6809
        %v6842 = vsub.f32 0.0, %v6810
        %v6843 = vsub.f32 0.0, %v6811
        %v6844 = vsub.f32 0.0, %v6812
        %v6845 = vsub.f32 0.0, %v6813
        %v6846 = vsub.f32 0.0, %v6814
        %v6847 = vsub.f32 0.0, %v6815
        %v6848 = vsub.f32 0.0, %v6816
        %v6849 = vsub.f32 0.0, %v6817
        %v6850 = vsub.f32 0.0, %v6818
        %v6851 = vsub.f32 0.0, %v6819
        %v6852 = vsub.f32 0.0, %v6820
        %v6853 = vsub.f32 0.0, %v6821
        %v6854 = vsub.f32 0.0, %v6822
        %v6855 = vsub.f32 0.0, %v6823
        %v6856 = vsub.f32 0.0, %v6824
        %v6857 = vmul.f32 %v6825, 1.442695
        %v6858 = vpow.pop %v6857
        %v6859 = vmul.f32 %v6826, 1.442695
        %v6860 = vpow.pop %v6859
        %v6861 = vmul.f32 %v6827, 1.442695
        %v6862 = vpow.pop %v6861
        %v6863 = vmul.f32 %v6828, 1.442695
        %v6864 = vpow.pop %v6863
        %v6865 = vmul.f32 %v6829, 1.442695
        %v6866 = vpow.pop %v6865
        %v6867 = vmul.f32 %v6830, 1.442695
        %v6868 = vpow.pop %v6867
        %v6869 = vmul.f32 %v6831, 1.442695
        %v6870 = vpow.pop %v6869
        %v6871 = vmul.f32 %v6832, 1.442695
        %v6872 = vpow.pop %v6871
        %v6873 = vmul.f32 %v6833, 1.442695
        %v6874 = vpow.pop %v6873
        %v6875 = vmul.f32 %v6834, 1.442695
        %v6876 = vpow.pop %v6875
        %v6877 = vmul.f32 %v6835, 1.442695
        %v6878 = vpow.pop %v6877
        %v6879 = vmul.f32 %v6836, 1.442695
        %v6880 = vpow.pop %v6879
        %v6881 = vmul.f32 %v6837, 1.442695
        %v6882 = vpow.pop %v6881
        %v6883 = vmul.f32 %v6838, 1.442695
        %v6884 = vpow.pop %v6883
        %v6885 = vmul.f32 %v6839, 1.442695
        %v6886 = vpow.pop %v6885
        %v6887 = vmul.f32 %v6840, 1.442695
        %v6888 = vpow.pop %v6887
        %v6889 = vmul.f32 %v6841, 1.442695
        %v6890 = vpow.pop %v6889
        %v6891 = vmul.f32 %v6842, 1.442695
        %v6892 = vpow.pop %v6891
        %v6893 = vmul.f32 %v6843, 1.442695
        %v6894 = vpow.pop %v6893
        %v6895 = vmul.f32 %v6844, 1.442695
        %v6896 = vpow.pop %v6895
        %v6897 = vmul.f32 %v6845, 1.442695
        %v6898 = vpow.pop %v6897
        %v6899 = vmul.f32 %v6846, 1.442695
        %v6900 = vpow.pop %v6899
        %v6901 = vmul.f32 %v6847, 1.442695
        %v6902 = vpow.pop %v6901
        %v6903 = vmul.f32 %v6848, 1.442695
        %v6904 = vpow.pop %v6903
        %v6905 = vmul.f32 %v6849, 1.442695
        %v6906 = vpow.pop %v6905
        %v6907 = vmul.f32 %v6850, 1.442695
        %v6908 = vpow.pop %v6907
        %v6909 = vmul.f32 %v6851, 1.442695
        %v6910 = vpow.pop %v6909
        %v6911 = vmul.f32 %v6852, 1.442695
        %v6912 = vpow.pop %v6911
        %v6913 = vmul.f32 %v6853, 1.442695
        %v6914 = vpow.pop %v6913
        %v6915 = vmul.f32 %v6854, 1.442695
        %v6916 = vpow.pop %v6915
        %v6917 = vmul.f32 %v6855, 1.442695
        %v6918 = vpow.pop %v6917
        %v6919 = vmul.f32 %v6856, 1.442695
        %v6920 = vpow.pop %v6919
        %v6921 = vadd.f32 %v6858, 1.0
        %v6922 = vadd.f32 %v6860, 1.0
        %v6923 = vadd.f32 %v6862, 1.0
        %v6924 = vadd.f32 %v6864, 1.0
        %v6925 = vadd.f32 %v6866, 1.0
        %v6926 = vadd.f32 %v6868, 1.0
        %v6927 = vadd.f32 %v6870, 1.0
        %v6928 = vadd.f32 %v6872, 1.0
        %v6929 = vadd.f32 %v6874, 1.0
        %v6930 = vadd.f32 %v6876, 1.0
        %v6931 = vadd.f32 %v6878, 1.0
        %v6932 = vadd.f32 %v6880, 1.0
        %v6933 = vadd.f32 %v6882, 1.0
        %v6934 = vadd.f32 %v6884, 1.0
        %v6935 = vadd.f32 %v6886, 1.0
        %v6936 = vadd.f32 %v6888, 1.0
        %v6937 = vadd.f32 %v6890, 1.0
        %v6938 = vadd.f32 %v6892, 1.0
        %v6939 = vadd.f32 %v6894, 1.0
        %v6940 = vadd.f32 %v6896, 1.0
        %v6941 = vadd.f32 %v6898, 1.0
        %v6942 = vadd.f32 %v6900, 1.0
        %v6943 = vadd.f32 %v6902, 1.0
        %v6944 = vadd.f32 %v6904, 1.0
        %v6945 = vadd.f32 %v6906, 1.0
        %v6946 = vadd.f32 %v6908, 1.0
        %v6947 = vadd.f32 %v6910, 1.0
        %v6948 = vadd.f32 %v6912, 1.0
        %v6949 = vadd.f32 %v6914, 1.0
        %v6950 = vadd.f32 %v6916, 1.0
        %v6951 = vadd.f32 %v6918, 1.0
        %v6952 = vadd.f32 %v6920, 1.0
        %v6953 = vrcp.pop %v6921
        %v6954 = vrcp.pop %v6922
        %v6955 = vrcp.pop %v6923
        %v6956 = vrcp.pop %v6924
        %v6957 = vrcp.pop %v6925
        %v6958 = vrcp.pop %v6926
        %v6959 = vrcp.pop %v6927
        %v6960 = vrcp.pop %v6928
        %v6961 = vrcp.pop %v6929
        %v6962 = vrcp.pop %v6930
        %v6963 = vrcp.pop %v6931
        %v6964 = vrcp.pop %v6932
        %v6965 = vrcp.pop %v6933
        %v6966 = vrcp.pop %v6934
        %v6967 = vrcp.pop %v6935
        %v6968 = vrcp.pop %v6936
        %v6969 = vrcp.pop %v6937
        %v6970 = vrcp.pop %v6938
        %v6971 = vrcp.pop %v6939
        %v6972 = vrcp.pop %v6940
        %v6973 = vrcp.pop %v6941
        %v6974 = vrcp.pop %v6942
        %v6975 = vrcp.pop %v6943
        %v6976 = vrcp.pop %v6944
        %v6977 = vrcp.pop %v6945
        %v6978 = vrcp.pop %v6946
        %v6979 = vrcp.pop %v6947
        %v6980 = vrcp.pop %v6948
        %v6981 = vrcp.pop %v6949
        %v6982 = vrcp.pop %v6950
        %v6983 = vrcp.pop %v6951
        %v6984 = vrcp.pop %v6952
        %vm6985 = vcmp.ge.f32.partialorder %v6761, 0.0
        %vm6986 = vcmp.ge.f32.partialorder %v6762, 0.0
        %vm6987 = vcmp.ge.f32.partialorder %v6763, 0.0
        %vm6988 = vcmp.ge.f32.partialorder %v6764, 0.0
        %vm6989 = vcmp.ge.f32.partialorder %v6765, 0.0
        %vm6990 = vcmp.ge.f32.partialorder %v6766, 0.0
        %vm6991 = vcmp.ge.f32.partialorder %v6767, 0.0
        %vm6992 = vcmp.ge.f32.partialorder %v6768, 0.0
        %vm6993 = vcmp.ge.f32.partialorder %v6769, 0.0
        %vm6994 = vcmp.ge.f32.partialorder %v6770, 0.0
        %vm6995 = vcmp.ge.f32.partialorder %v6771, 0.0
        %vm6996 = vcmp.ge.f32.partialorder %v6772, 0.0
        %vm6997 = vcmp.ge.f32.partialorder %v6773, 0.0
        %vm6998 = vcmp.ge.f32.partialorder %v6774, 0.0
        %vm6999 = vcmp.ge.f32.partialorder %v6775, 0.0
        %vm7000 = vcmp.ge.f32.partialorder %v6776, 0.0
        %vm7001 = vcmp.ge.f32.partialorder %v6777, 0.0
        %vm7002 = vcmp.ge.f32.partialorder %v6778, 0.0
        %vm7003 = vcmp.ge.f32.partialorder %v6779, 0.0
        %vm7004 = vcmp.ge.f32.partialorder %v6780, 0.0
        %vm7005 = vcmp.ge.f32.partialorder %v6781, 0.0
        %vm7006 = vcmp.ge.f32.partialorder %v6782, 0.0
        %vm7007 = vcmp.ge.f32.partialorder %v6783, 0.0
        %vm7008 = vcmp.ge.f32.partialorder %v6784, 0.0
        %vm7009 = vcmp.ge.f32.partialorder %v6785, 0.0
        %vm7010 = vcmp.ge.f32.partialorder %v6786, 0.0
        %vm7011 = vcmp.ge.f32.partialorder %v6787, 0.0
        %vm7012 = vcmp.ge.f32.partialorder %v6788, 0.0
        %vm7013 = vcmp.ge.f32.partialorder %v6789, 0.0
        %vm7014 = vcmp.ge.f32.partialorder %v6790, 0.0
        %vm7015 = vcmp.ge.f32.partialorder %v6791, 0.0
        %vm7016 = vcmp.ge.f32.partialorder %v6792, 0.0
        %v7017 = vmul.f32 %v6858, %v6953
        %v7018 = vmul.f32 %v6860, %v6954
        %v7019 = vmul.f32 %v6862, %v6955
        %v7020 = vmul.f32 %v6864, %v6956
        %v7021 = vmul.f32 %v6866, %v6957
        %v7022 = vmul.f32 %v6868, %v6958
        %v7023 = vmul.f32 %v6870, %v6959
        %v7024 = vmul.f32 %v6872, %v6960
        %v7025 = vmul.f32 %v6874, %v6961
        %v7026 = vmul.f32 %v6876, %v6962
        %v7027 = vmul.f32 %v6878, %v6963
        %v7028 = vmul.f32 %v6880, %v6964
        %v7029 = vmul.f32 %v6882, %v6965
        %v7030 = vmul.f32 %v6884, %v6966
        %v7031 = vmul.f32 %v6886, %v6967
        %v7032 = vmul.f32 %v6888, %v6968
        %v7033 = vmul.f32 %v6890, %v6969
        %v7034 = vmul.f32 %v6892, %v6970
        %v7035 = vmul.f32 %v6894, %v6971
        %v7036 = vmul.f32 %v6896, %v6972
        %v7037 = vmul.f32 %v6898, %v6973
        %v7038 = vmul.f32 %v6900, %v6974
        %v7039 = vmul.f32 %v6902, %v6975
        %v7040 = vmul.f32 %v6904, %v6976
        %v7041 = vmul.f32 %v6906, %v6977
        %v7042 = vmul.f32 %v6908, %v6978
        %v7043 = vmul.f32 %v6910, %v6979
        %v7044 = vmul.f32 %v6912, %v6980
        %v7045 = vmul.f32 %v6914, %v6981
        %v7046 = vmul.f32 %v6916, %v6982
        %v7047 = vmul.f32 %v6918, %v6983
        %v7048 = vmul.f32 %v6920, %v6984
        %v7049 = vsel %vm6985, %v6953, %v7017
        %v7050 = vsel %vm6986, %v6954, %v7018
        %v7051 = vsel %vm6987, %v6955, %v7019
        %v7052 = vsel %vm6988, %v6956, %v7020
        %v7053 = vsel %vm6989, %v6957, %v7021
        %v7054 = vsel %vm6990, %v6958, %v7022
        %v7055 = vsel %vm6991, %v6959, %v7023
        %v7056 = vsel %vm6992, %v6960, %v7024
        %v7057 = vsel %vm6993, %v6961, %v7025
        %v7058 = vsel %vm6994, %v6962, %v7026
        %v7059 = vsel %vm6995, %v6963, %v7027
        %v7060 = vsel %vm6996, %v6964, %v7028
        %v7061 = vsel %vm6997, %v6965, %v7029
        %v7062 = vsel %vm6998, %v6966, %v7030
        %v7063 = vsel %vm6999, %v6967, %v7031
        %v7064 = vsel %vm7000, %v6968, %v7032
        %v7065 = vsel %vm7001, %v6969, %v7033
        %v7066 = vsel %vm7002, %v6970, %v7034
        %v7067 = vsel %vm7003, %v6971, %v7035
        %v7068 = vsel %vm7004, %v6972, %v7036
        %v7069 = vsel %vm7005, %v6973, %v7037
        %v7070 = vsel %vm7006, %v6974, %v7038
        %v7071 = vsel %vm7007, %v6975, %v7039
        %v7072 = vsel %vm7008, %v6976, %v7040
        %v7073 = vsel %vm7009, %v6977, %v7041
        %v7074 = vsel %vm7010, %v6978, %v7042
        %v7075 = vsel %vm7011, %v6979, %v7043
        %v7076 = vsel %vm7012, %v6980, %v7044
        %v7077 = vsel %vm7013, %v6981, %v7045
        %v7078 = vsel %vm7014, %v6982, %v7046
        %v7079 = vsel %vm7015, %v6983, %v7047
        %v7080 = vsel %vm7016, %v6984, %v7048
        %v7081 = vmul.f32 %v6761, %v7049
        %v7082 = vmul.f32 %v6762, %v7050
        %v7083 = vmul.f32 %v6763, %v7051
        %v7084 = vmul.f32 %v6764, %v7052
        %v7085 = vmul.f32 %v6765, %v7053
        %v7086 = vmul.f32 %v6766, %v7054
        %v7087 = vmul.f32 %v6767, %v7055
        %v7088 = vmul.f32 %v6768, %v7056
        %v7089 = vmul.f32 %v6769, %v7057
        %v7090 = vmul.f32 %v6770, %v7058
        %v7091 = vmul.f32 %v6771, %v7059
        %v7092 = vmul.f32 %v6772, %v7060
        %v7093 = vmul.f32 %v6773, %v7061
        %v7094 = vmul.f32 %v6774, %v7062
        %v7095 = vmul.f32 %v6775, %v7063
        %v7096 = vmul.f32 %v6776, %v7064
        %v7097 = vmul.f32 %v6777, %v7065
        %v7098 = vmul.f32 %v6778, %v7066
        %v7099 = vmul.f32 %v6779, %v7067
        %v7100 = vmul.f32 %v6780, %v7068
        %v7101 = vmul.f32 %v6781, %v7069
        %v7102 = vmul.f32 %v6782, %v7070
        %v7103 = vmul.f32 %v6783, %v7071
        %v7104 = vmul.f32 %v6784, %v7072
        %v7105 = vmul.f32 %v6785, %v7073
        %v7106 = vmul.f32 %v6786, %v7074
        %v7107 = vmul.f32 %v6787, %v7075
        %v7108 = vmul.f32 %v6788, %v7076
        %v7109 = vmul.f32 %v6789, %v7077
        %v7110 = vmul.f32 %v6790, %v7078
        %v7111 = vmul.f32 %v6791, %v7079
        %v7112 = vmul.f32 %v6792, %v7080
        %v7113 = vld [vmem:[%s609] sm:$0xf]
        %v7114 = vld [vmem:[%s609 + $0x4] sm:$0xf]
        %v7115 = vld [vmem:[%s609 + $0x8] sm:$0xf]
        %v7116 = vld [vmem:[%s609 + $0xc] sm:$0xf]
        %v7117 = vld [vmem:[%s609 + $0x10] sm:$0xf]
        %v7118 = vld [vmem:[%s609 + $0x14] sm:$0xf]
        %v7119 = vld [vmem:[%s609 + $0x18] sm:$0xf]
        %v7120 = vld [vmem:[%s609 + $0x1c] sm:$0xf]
        %v7121 = vld [vmem:[%s609 + $0x20] sm:$0xf]
        %v7122 = vld [vmem:[%s609 + $0x24] sm:$0xf]
        %v7123 = vld [vmem:[%s609 + $0x28] sm:$0xf]
        %v7124 = vld [vmem:[%s609 + $0x2c] sm:$0xf]
        %v7125 = vld [vmem:[%s609 + $0x30] sm:$0xf]
        %v7126 = vld [vmem:[%s609 + $0x34] sm:$0xf]
        %v7127 = vld [vmem:[%s609 + $0x38] sm:$0xf]
        %v7128 = vld [vmem:[%s609 + $0x3c] sm:$0xf]
        %v7129 = vld [vmem:[%s609 + $0x40] sm:$0xf]
        %v7130 = vld [vmem:[%s609 + $0x44] sm:$0xf]
        %v7131 = vld [vmem:[%s609 + $0x48] sm:$0xf]
        %v7132 = vld [vmem:[%s609 + $0x4c] sm:$0xf]
        %v7133 = vld [vmem:[%s609 + $0x50] sm:$0xf]
        %v7134 = vld [vmem:[%s609 + $0x54] sm:$0xf]
        %v7135 = vld [vmem:[%s609 + $0x58] sm:$0xf]
        %v7136 = vld [vmem:[%s609 + $0x5c] sm:$0xf]
        %v7137 = vld [vmem:[%s609 + $0x60] sm:$0xf]
        %v7138 = vld [vmem:[%s609 + $0x64] sm:$0xf]
        %v7139 = vld [vmem:[%s609 + $0x68] sm:$0xf]
        %v7140 = vld [vmem:[%s609 + $0x6c] sm:$0xf]
        %v7141 = vld [vmem:[%s609 + $0x70] sm:$0xf]
        %v7142 = vld [vmem:[%s609 + $0x74] sm:$0xf]
        %v7143 = vld [vmem:[%s609 + $0x78] sm:$0xf]
        %v7144 = vld [vmem:[%s609 + $0x7c] sm:$0xf]
        %v7145 = vunpack.c.l.bf16 %v7113
        %v7146 = vunpack.c.l.bf16 %v7114
        %v7147 = vunpack.c.l.bf16 %v7115
        %v7148 = vunpack.c.l.bf16 %v7116
        %v7149 = vunpack.c.l.bf16 %v7117
        %v7150 = vunpack.c.l.bf16 %v7118
        %v7151 = vunpack.c.l.bf16 %v7119
        %v7152 = vunpack.c.l.bf16 %v7120
        %v7153 = vunpack.c.l.bf16 %v7121
        %v7154 = vunpack.c.l.bf16 %v7122
        %v7155 = vunpack.c.l.bf16 %v7123
        %v7156 = vunpack.c.l.bf16 %v7124
        %v7157 = vunpack.c.l.bf16 %v7125
        %v7158 = vunpack.c.l.bf16 %v7126
        %v7159 = vunpack.c.l.bf16 %v7127
        %v7160 = vunpack.c.l.bf16 %v7128
        %v7161 = vunpack.c.l.bf16 %v7129
        %v7162 = vunpack.c.l.bf16 %v7130
        %v7163 = vunpack.c.l.bf16 %v7131
        %v7164 = vunpack.c.l.bf16 %v7132
        %v7165 = vunpack.c.l.bf16 %v7133
        %v7166 = vunpack.c.l.bf16 %v7134
        %v7167 = vunpack.c.l.bf16 %v7135
        %v7168 = vunpack.c.l.bf16 %v7136
        %v7169 = vunpack.c.l.bf16 %v7137
        %v7170 = vunpack.c.l.bf16 %v7138
        %v7171 = vunpack.c.l.bf16 %v7139
        %v7172 = vunpack.c.l.bf16 %v7140
        %v7173 = vunpack.c.l.bf16 %v7141
        %v7174 = vunpack.c.l.bf16 %v7142
        %v7175 = vunpack.c.l.bf16 %v7143
        %v7176 = vunpack.c.l.bf16 %v7144
        %v7177 = vadd.f32 %v7145, %v7081
        %v7178 = vadd.f32 %v7146, %v7082
        %v7179 = vadd.f32 %v7147, %v7083
        %v7180 = vadd.f32 %v7148, %v7084
        %v7181 = vadd.f32 %v7149, %v7085
        %v7182 = vadd.f32 %v7150, %v7086
        %v7183 = vadd.f32 %v7151, %v7087
        %v7184 = vadd.f32 %v7152, %v7088
        %v7185 = vadd.f32 %v7153, %v7089
        %v7186 = vadd.f32 %v7154, %v7090
        %v7187 = vadd.f32 %v7155, %v7091
        %v7188 = vadd.f32 %v7156, %v7092
        %v7189 = vadd.f32 %v7157, %v7093
        %v7190 = vadd.f32 %v7158, %v7094
        %v7191 = vadd.f32 %v7159, %v7095
        %v7192 = vadd.f32 %v7160, %v7096
        %v7193 = vadd.f32 %v7161, %v7097
        %v7194 = vadd.f32 %v7162, %v7098
        %v7195 = vadd.f32 %v7163, %v7099
        %v7196 = vadd.f32 %v7164, %v7100
        %v7197 = vadd.f32 %v7165, %v7101
        %v7198 = vadd.f32 %v7166, %v7102
        %v7199 = vadd.f32 %v7167, %v7103
        %v7200 = vadd.f32 %v7168, %v7104
        %v7201 = vadd.f32 %v7169, %v7105
        %v7202 = vadd.f32 %v7170, %v7106
        %v7203 = vadd.f32 %v7171, %v7107
        %v7204 = vadd.f32 %v7172, %v7108
        %v7205 = vadd.f32 %v7173, %v7109
        %v7206 = vadd.f32 %v7174, %v7110
        %v7207 = vadd.f32 %v7175, %v7111
        %v7208 = vadd.f32 %v7176, %v7112
        %v7209 = vpack.c.bf16 %v7178, %v7177
        %v7210 = vpack.c.bf16 %v7180, %v7179
        %v7211 = vpack.c.bf16 %v7182, %v7181
        %v7212 = vpack.c.bf16 %v7184, %v7183
        %v7213 = vpack.c.bf16 %v7186, %v7185
        %v7214 = vpack.c.bf16 %v7188, %v7187
        %v7215 = vpack.c.bf16 %v7190, %v7189
        %v7216 = vpack.c.bf16 %v7192, %v7191
        %v7217 = vpack.c.bf16 %v7194, %v7193
        %v7218 = vpack.c.bf16 %v7196, %v7195
        %v7219 = vpack.c.bf16 %v7198, %v7197
        %v7220 = vpack.c.bf16 %v7200, %v7199
        %v7221 = vpack.c.bf16 %v7202, %v7201
        %v7222 = vpack.c.bf16 %v7204, %v7203
        %v7223 = vpack.c.bf16 %v7206, %v7205
        %v7224 = vpack.c.bf16 %v7208, %v7207
        %v7225 = vld [vmem:[#allocation9] sm:$0xf]
        %v7226 = vld [vmem:[#allocation9 + $0x4] sm:$0xf]
        %v7227 = vld [vmem:[#allocation9 + $0x8] sm:$0xf]
        %v7228 = vld [vmem:[#allocation9 + $0xc] sm:$0xf]
        %v7229 = vld [vmem:[#allocation9 + $0x10] sm:$0xf]
        %v7230 = vld [vmem:[#allocation9 + $0x14] sm:$0xf]
        %v7231 = vld [vmem:[#allocation9 + $0x18] sm:$0xf]
        %v7232 = vld [vmem:[#allocation9 + $0x1c] sm:$0xf]
        %v7233 = vld [vmem:[#allocation9 + $0x20] sm:$0xf]
        %v7234 = vld [vmem:[#allocation9 + $0x24] sm:$0xf]
        %v7235 = vld [vmem:[#allocation9 + $0x28] sm:$0xf]
        %v7236 = vld [vmem:[#allocation9 + $0x2c] sm:$0xf]
        %v7237 = vld [vmem:[#allocation9 + $0x30] sm:$0xf]
        %v7238 = vld [vmem:[#allocation9 + $0x34] sm:$0xf]
        %v7239 = vld [vmem:[#allocation9 + $0x38] sm:$0xf]
        %v7240 = vld [vmem:[#allocation9 + $0x3c] sm:$0xf]
        %v7241 = vld [vmem:[%s6] sm:$0x1]
        %v7243 = vperm.slane %v7241, 0
        %v7261 = vunpack.c.l.b16 %v7225
        %v7262 = vunpack.c.l.b16 %v7226
        %v7263 = vunpack.c.l.b16 %v7227
        %v7264 = vunpack.c.l.b16 %v7228
        %v7265 = vunpack.c.l.b16 %v7229
        %v7266 = vunpack.c.l.b16 %v7230
        %v7267 = vunpack.c.l.b16 %v7231
        %v7268 = vunpack.c.l.b16 %v7232
        %v7269 = vunpack.c.l.b16 %v7233
        %v7270 = vunpack.c.l.b16 %v7234
        %v7271 = vunpack.c.l.b16 %v7235
        %v7272 = vunpack.c.l.b16 %v7236
        %v7273 = vunpack.c.l.b16 %v7237
        %v7274 = vunpack.c.l.b16 %v7238
        %v7275 = vunpack.c.l.b16 %v7239
        %v7276 = vunpack.c.l.b16 %v7240
        %v7277 = vpack.c.b16 %v7262, %v7261
        %v7278 = vpack.c.b16 %v7264, %v7263
        %v7279 = vpack.c.b16 %v7266, %v7265
        %v7280 = vpack.c.b16 %v7268, %v7267
        %v7281 = vpack.c.b16 %v7270, %v7269
        %v7282 = vpack.c.b16 %v7272, %v7271
        %v7283 = vpack.c.b16 %v7274, %v7273
        %v7284 = vpack.c.b16 %v7276, %v7275
        %7293 = vmatpush.bf16.msra.mxu0 %v7284
        %7294 = vmatpush.bf16.msra.mxu0 %v7283
        %7295 = vmatpush.bf16.msra.mxu0 %v7282
        %7296 = vmatpush.bf16.msra.mxu0 %v7281
        %7297 = vmatpush.bf16.msra.mxu0 %v7280
        %7298 = vmatpush.bf16.msra.mxu0 %v7279
        %7299 = vmatpush.bf16.msra.mxu0 %v7278
        %7300 = vmatpush.bf16.msra.mxu0 %v7277
        %7301 = vmatmul.bf16.gmra.mxu0 %v7209
        %v7302 = vpop.f32.mrf.mxu0
        %v7303 = vadd.f32 %v7243, %v7302
        %v7304 = vpop.f32.mrf.mxu0
        %v7305 = vadd.f32 %v7243, %v7304
        %7306 = vmatmul.bf16.gmra.mxu0 %v7210
        %v7307 = vpop.f32.mrf.mxu0
        %v7308 = vadd.f32 %v7243, %v7307
        %v7309 = vpop.f32.mrf.mxu0
        %v7310 = vadd.f32 %v7243, %v7309
        %7311 = vmatmul.bf16.gmra.mxu0 %v7211
        %v7312 = vpop.f32.mrf.mxu0
        %v7313 = vadd.f32 %v7243, %v7312
        %v7314 = vpop.f32.mrf.mxu0
        %v7315 = vadd.f32 %v7243, %v7314
        %7316 = vmatmul.bf16.gmra.mxu0 %v7212
        %v7317 = vpop.f32.mrf.mxu0
        %v7318 = vadd.f32 %v7243, %v7317
        %v7319 = vpop.f32.mrf.mxu0
        %v7320 = vadd.f32 %v7243, %v7319
        %7321 = vmatmul.bf16.gmra.mxu0 %v7213
        %v7322 = vpop.f32.mrf.mxu0
        %v7323 = vadd.f32 %v7243, %v7322
        %v7324 = vpop.f32.mrf.mxu0
        %v7325 = vadd.f32 %v7243, %v7324
        %7326 = vmatmul.bf16.gmra.mxu0 %v7214
        %v7327 = vpop.f32.mrf.mxu0
        %v7328 = vadd.f32 %v7243, %v7327
        %v7329 = vpop.f32.mrf.mxu0
        %v7330 = vadd.f32 %v7243, %v7329
        %7331 = vmatmul.bf16.gmra.mxu0 %v7215
        %v7332 = vpop.f32.mrf.mxu0
        %v7333 = vadd.f32 %v7243, %v7332
        %v7334 = vpop.f32.mrf.mxu0
        %v7335 = vadd.f32 %v7243, %v7334
        %7336 = vmatmul.bf16.gmra.mxu0 %v7216
        %v7337 = vpop.f32.mrf.mxu0
        %v7338 = vadd.f32 %v7243, %v7337
        %v7339 = vpop.f32.mrf.mxu0
        %v7340 = vadd.f32 %v7243, %v7339
        %7341 = vmatmul.bf16.gmra.mxu0 %v7217
        %v7342 = vpop.f32.mrf.mxu0
        %v7343 = vadd.f32 %v7243, %v7342
        %v7344 = vpop.f32.mrf.mxu0
        %v7345 = vadd.f32 %v7243, %v7344
        %7346 = vmatmul.bf16.gmra.mxu0 %v7218
        %v7347 = vpop.f32.mrf.mxu0
        %v7348 = vadd.f32 %v7243, %v7347
        %v7349 = vpop.f32.mrf.mxu0
        %v7350 = vadd.f32 %v7243, %v7349
        %7351 = vmatmul.bf16.gmra.mxu0 %v7219
        %v7352 = vpop.f32.mrf.mxu0
        %v7353 = vadd.f32 %v7243, %v7352
        %v7354 = vpop.f32.mrf.mxu0
        %v7355 = vadd.f32 %v7243, %v7354
        %7356 = vmatmul.bf16.gmra.mxu0 %v7220
        %v7357 = vpop.f32.mrf.mxu0
        %v7358 = vadd.f32 %v7243, %v7357
        %v7359 = vpop.f32.mrf.mxu0
        %v7360 = vadd.f32 %v7243, %v7359
        %7361 = vmatmul.bf16.gmra.mxu0 %v7221
        %v7362 = vpop.f32.mrf.mxu0
        %v7363 = vadd.f32 %v7243, %v7362
        %v7364 = vpop.f32.mrf.mxu0
        %v7365 = vadd.f32 %v7243, %v7364
        %7366 = vmatmul.bf16.gmra.mxu0 %v7222
        %v7367 = vpop.f32.mrf.mxu0
        %v7368 = vadd.f32 %v7243, %v7367
        %v7369 = vpop.f32.mrf.mxu0
        %v7370 = vadd.f32 %v7243, %v7369
        %7371 = vmatmul.bf16.gmra.mxu0 %v7223
        %v7372 = vpop.f32.mrf.mxu0
        %v7373 = vadd.f32 %v7243, %v7372
        %v7374 = vpop.f32.mrf.mxu0
        %v7375 = vadd.f32 %v7243, %v7374
        %7376 = vmatmul.bf16.gmra.mxu0 %v7224
        %v7377 = vpop.f32.mrf.mxu0
        %v7378 = vadd.f32 %v7243, %v7377
        %v7379 = vpop.f32.mrf.mxu0
        %v7380 = vadd.f32 %v7243, %v7379
        %7381 = vdwg.mxu0
        %v7382 = vmax.f32 %v7303, 0.0
        %v7383 = vmax.f32 %v7305, 0.0
        %v7384 = vmax.f32 %v7308, 0.0
        %v7385 = vmax.f32 %v7310, 0.0
        %v7386 = vmax.f32 %v7313, 0.0
        %v7387 = vmax.f32 %v7315, 0.0
        %v7388 = vmax.f32 %v7318, 0.0
        %v7389 = vmax.f32 %v7320, 0.0
        %v7390 = vmax.f32 %v7323, 0.0
        %v7391 = vmax.f32 %v7325, 0.0
        %v7392 = vmax.f32 %v7328, 0.0
        %v7393 = vmax.f32 %v7330, 0.0
        %v7394 = vmax.f32 %v7333, 0.0
        %v7395 = vmax.f32 %v7335, 0.0
        %v7396 = vmax.f32 %v7338, 0.0
        %v7397 = vmax.f32 %v7340, 0.0
        %v7398 = vmax.f32 %v7343, 0.0
        %v7399 = vmax.f32 %v7345, 0.0
        %v7400 = vmax.f32 %v7348, 0.0
        %v7401 = vmax.f32 %v7350, 0.0
        %v7402 = vmax.f32 %v7353, 0.0
        %v7403 = vmax.f32 %v7355, 0.0
        %v7404 = vmax.f32 %v7358, 0.0
        %v7405 = vmax.f32 %v7360, 0.0
        %v7406 = vmax.f32 %v7363, 0.0
        %v7407 = vmax.f32 %v7365, 0.0
        %v7408 = vmax.f32 %v7368, 0.0
        %v7409 = vmax.f32 %v7370, 0.0
        %v7410 = vmax.f32 %v7373, 0.0
        %v7411 = vmax.f32 %v7375, 0.0
        %v7412 = vmax.f32 %v7378, 0.0
        %v7413 = vmax.f32 %v7380, 0.0
        %v7414 = vpack.c.bf16 %v7383, %v7382
        %v7415 = vpack.c.bf16 %v7385, %v7384
        %v7416 = vpack.c.bf16 %v7387, %v7386
        %v7417 = vpack.c.bf16 %v7389, %v7388
        %v7418 = vpack.c.bf16 %v7391, %v7390
        %v7419 = vpack.c.bf16 %v7393, %v7392
        %v7420 = vpack.c.bf16 %v7395, %v7394
        %v7421 = vpack.c.bf16 %v7397, %v7396
        %v7422 = vpack.c.bf16 %v7399, %v7398
        %v7423 = vpack.c.bf16 %v7401, %v7400
        %v7424 = vpack.c.bf16 %v7403, %v7402
        %v7425 = vpack.c.bf16 %v7405, %v7404
        %v7426 = vpack.c.bf16 %v7407, %v7406
        %v7427 = vpack.c.bf16 %v7409, %v7408
        %v7428 = vpack.c.bf16 %v7411, %v7410
        %v7429 = vpack.c.bf16 %v7413, %v7412
        %v7430 = vld [vmem:[#allocation11] sm:$0xf]
        %v7431 = vld [vmem:[#allocation11 + $0x4] sm:$0xf]
        %v7432 = vld [vmem:[#allocation11 + $0x8] sm:$0xf]
        %v7433 = vld [vmem:[#allocation11 + $0xc] sm:$0xf]
        %v7434 = vld [vmem:[#allocation11 + $0x10] sm:$0xf]
        %v7435 = vld [vmem:[#allocation11 + $0x14] sm:$0xf]
        %v7436 = vld [vmem:[#allocation11 + $0x18] sm:$0xf]
        %v7437 = vld [vmem:[#allocation11 + $0x1c] sm:$0xf]
        %v7438 = vld [vmem:[#allocation11 + $0x20] sm:$0xf]
        %v7439 = vld [vmem:[#allocation11 + $0x24] sm:$0xf]
        %v7440 = vld [vmem:[#allocation11 + $0x28] sm:$0xf]
        %v7441 = vld [vmem:[#allocation11 + $0x2c] sm:$0xf]
        %v7442 = vld [vmem:[#allocation11 + $0x30] sm:$0xf]
        %v7443 = vld [vmem:[#allocation11 + $0x34] sm:$0xf]
        %v7444 = vld [vmem:[#allocation11 + $0x38] sm:$0xf]
        %v7445 = vld [vmem:[#allocation11 + $0x3c] sm:$0xf]
        %v7446 = vld [vmem:[%s8] sm:$0x1]
        %v7448 = vperm.slane %v7446, 0
        %v7466 = vunpack.c.l.b16 %v7430
        %v7467 = vunpack.c.l.b16 %v7431
        %v7468 = vunpack.c.l.b16 %v7432
        %v7469 = vunpack.c.l.b16 %v7433
        %v7470 = vunpack.c.l.b16 %v7434
        %v7471 = vunpack.c.l.b16 %v7435
        %v7472 = vunpack.c.l.b16 %v7436
        %v7473 = vunpack.c.l.b16 %v7437
        %v7474 = vunpack.c.l.b16 %v7438
        %v7475 = vunpack.c.l.b16 %v7439
        %v7476 = vunpack.c.l.b16 %v7440
        %v7477 = vunpack.c.l.b16 %v7441
        %v7478 = vunpack.c.l.b16 %v7442
        %v7479 = vunpack.c.l.b16 %v7443
        %v7480 = vunpack.c.l.b16 %v7444
        %v7481 = vunpack.c.l.b16 %v7445
        %v7482 = vpack.c.b16 %v7467, %v7466
        %v7483 = vpack.c.b16 %v7469, %v7468
        %v7484 = vpack.c.b16 %v7471, %v7470
        %v7485 = vpack.c.b16 %v7473, %v7472
        %v7486 = vpack.c.b16 %v7475, %v7474
        %v7487 = vpack.c.b16 %v7477, %v7476
        %v7488 = vpack.c.b16 %v7479, %v7478
        %v7489 = vpack.c.b16 %v7481, %v7480
        %7498 = vmatpush.bf16.msra.mxu0 %v7489
        %7499 = vmatpush.bf16.msra.mxu0 %v7488
        %7500 = vmatpush.bf16.msra.mxu0 %v7487
        %7501 = vmatpush.bf16.msra.mxu0 %v7486
        %7502 = vmatpush.bf16.msra.mxu0 %v7485
        %7503 = vmatpush.bf16.msra.mxu0 %v7484
        %7504 = vmatpush.bf16.msra.mxu0 %v7483
        %7505 = vmatpush.bf16.msra.mxu0 %v7482
        %7506 = vmatmul.bf16.gmra.mxu0 %v7414
        %v7507 = vpop.f32.mrf.mxu0
        %v7508 = vadd.f32 %v7448, %v7507
        %v7509 = vpop.f32.mrf.mxu0
        %v7510 = vadd.f32 %v7448, %v7509
        %7511 = vmatmul.bf16.gmra.mxu0 %v7415
        %v7512 = vpop.f32.mrf.mxu0
        %v7513 = vadd.f32 %v7448, %v7512
        %v7514 = vpop.f32.mrf.mxu0
        %v7515 = vadd.f32 %v7448, %v7514
        %7516 = vmatmul.bf16.gmra.mxu0 %v7416
        %v7517 = vpop.f32.mrf.mxu0
        %v7518 = vadd.f32 %v7448, %v7517
        %v7519 = vpop.f32.mrf.mxu0
        %v7520 = vadd.f32 %v7448, %v7519
        %7521 = vmatmul.bf16.gmra.mxu0 %v7417
        %v7522 = vpop.f32.mrf.mxu0
        %v7523 = vadd.f32 %v7448, %v7522
        %v7524 = vpop.f32.mrf.mxu0
        %v7525 = vadd.f32 %v7448, %v7524
        %7526 = vmatmul.bf16.gmra.mxu0 %v7418
        %v7527 = vpop.f32.mrf.mxu0
        %v7528 = vadd.f32 %v7448, %v7527
        %v7529 = vpop.f32.mrf.mxu0
        %v7530 = vadd.f32 %v7448, %v7529
        %7531 = vmatmul.bf16.gmra.mxu0 %v7419
        %v7532 = vpop.f32.mrf.mxu0
        %v7533 = vadd.f32 %v7448, %v7532
        %v7534 = vpop.f32.mrf.mxu0
        %v7535 = vadd.f32 %v7448, %v7534
        %7536 = vmatmul.bf16.gmra.mxu0 %v7420
        %v7537 = vpop.f32.mrf.mxu0
        %v7538 = vadd.f32 %v7448, %v7537
        %v7539 = vpop.f32.mrf.mxu0
        %v7540 = vadd.f32 %v7448, %v7539
        %7541 = vmatmul.bf16.gmra.mxu0 %v7421
        %v7542 = vpop.f32.mrf.mxu0
        %v7543 = vadd.f32 %v7448, %v7542
        %v7544 = vpop.f32.mrf.mxu0
        %v7545 = vadd.f32 %v7448, %v7544
        %7546 = vmatmul.bf16.gmra.mxu0 %v7422
        %v7547 = vpop.f32.mrf.mxu0
        %v7548 = vadd.f32 %v7448, %v7547
        %v7549 = vpop.f32.mrf.mxu0
        %v7550 = vadd.f32 %v7448, %v7549
        %7551 = vmatmul.bf16.gmra.mxu0 %v7423
        %v7552 = vpop.f32.mrf.mxu0
        %v7553 = vadd.f32 %v7448, %v7552
        %v7554 = vpop.f32.mrf.mxu0
        %v7555 = vadd.f32 %v7448, %v7554
        %7556 = vmatmul.bf16.gmra.mxu0 %v7424
        %v7557 = vpop.f32.mrf.mxu0
        %v7558 = vadd.f32 %v7448, %v7557
        %v7559 = vpop.f32.mrf.mxu0
        %v7560 = vadd.f32 %v7448, %v7559
        %7561 = vmatmul.bf16.gmra.mxu0 %v7425
        %v7562 = vpop.f32.mrf.mxu0
        %v7563 = vadd.f32 %v7448, %v7562
        %v7564 = vpop.f32.mrf.mxu0
        %v7565 = vadd.f32 %v7448, %v7564
        %7566 = vmatmul.bf16.gmra.mxu0 %v7426
        %v7567 = vpop.f32.mrf.mxu0
        %v7568 = vadd.f32 %v7448, %v7567
        %v7569 = vpop.f32.mrf.mxu0
        %v7570 = vadd.f32 %v7448, %v7569
        %7571 = vmatmul.bf16.gmra.mxu0 %v7427
        %v7572 = vpop.f32.mrf.mxu0
        %v7573 = vadd.f32 %v7448, %v7572
        %v7574 = vpop.f32.mrf.mxu0
        %v7575 = vadd.f32 %v7448, %v7574
        %7576 = vmatmul.bf16.gmra.mxu0 %v7428
        %v7577 = vpop.f32.mrf.mxu0
        %v7578 = vadd.f32 %v7448, %v7577
        %v7579 = vpop.f32.mrf.mxu0
        %v7580 = vadd.f32 %v7448, %v7579
        %7581 = vmatmul.bf16.gmra.mxu0 %v7429
        %v7582 = vpop.f32.mrf.mxu0
        %v7583 = vadd.f32 %v7448, %v7582
        %v7584 = vpop.f32.mrf.mxu0
        %v7585 = vadd.f32 %v7448, %v7584
        %7586 = vdwg.mxu0
        %v7587 = vunpack.c.l.bf16 %v7209
        %v7588 = vunpack.c.h.bf16 %v7209
        %v7589 = vunpack.c.l.bf16 %v7210
        %v7590 = vunpack.c.h.bf16 %v7210
        %v7591 = vunpack.c.l.bf16 %v7211
        %v7592 = vunpack.c.h.bf16 %v7211
        %v7593 = vunpack.c.l.bf16 %v7212
        %v7594 = vunpack.c.h.bf16 %v7212
        %v7595 = vunpack.c.l.bf16 %v7213
        %v7596 = vunpack.c.h.bf16 %v7213
        %v7597 = vunpack.c.l.bf16 %v7214
        %v7598 = vunpack.c.h.bf16 %v7214
        %v7599 = vunpack.c.l.bf16 %v7215
        %v7600 = vunpack.c.h.bf16 %v7215
        %v7601 = vunpack.c.l.bf16 %v7216
        %v7602 = vunpack.c.h.bf16 %v7216
        %v7603 = vunpack.c.l.bf16 %v7217
        %v7604 = vunpack.c.h.bf16 %v7217
        %v7605 = vunpack.c.l.bf16 %v7218
        %v7606 = vunpack.c.h.bf16 %v7218
        %v7607 = vunpack.c.l.bf16 %v7219
        %v7608 = vunpack.c.h.bf16 %v7219
        %v7609 = vunpack.c.l.bf16 %v7220
        %v7610 = vunpack.c.h.bf16 %v7220
        %v7611 = vunpack.c.l.bf16 %v7221
        %v7612 = vunpack.c.h.bf16 %v7221
        %v7613 = vunpack.c.l.bf16 %v7222
        %v7614 = vunpack.c.h.bf16 %v7222
        %v7615 = vunpack.c.l.bf16 %v7223
        %v7616 = vunpack.c.h.bf16 %v7223
        %v7617 = vunpack.c.l.bf16 %v7224
        %v7618 = vunpack.c.h.bf16 %v7224
        %v7619 = vadd.f32 %v7587, %v7588
        %v7620 = vadd.f32 %v7619, %v7589
        %v7621 = vadd.f32 %v7620, %v7590
        %v7622 = vadd.f32 %v7621, %v7591
        %v7623 = vadd.f32 %v7622, %v7592
        %v7624 = vadd.f32 %v7623, %v7593
        %v7625 = vadd.f32 %v7624, %v7594
        %v7626 = vadd.f32 %v7625, %v7595
        %v7627 = vadd.f32 %v7626, %v7596
        %v7628 = vadd.f32 %v7627, %v7597
        %v7629 = vadd.f32 %v7628, %v7598
        %v7630 = vadd.f32 %v7629, %v7599
        %v7631 = vadd.f32 %v7630, %v7600
        %v7632 = vadd.f32 %v7631, %v7601
        %v7633 = vadd.f32 %v7632, %v7602
        %v7634 = vadd.f32 %v7633, %v7603
        %v7635 = vadd.f32 %v7634, %v7604
        %v7636 = vadd.f32 %v7635, %v7605
        %v7637 = vadd.f32 %v7636, %v7606
        %v7638 = vadd.f32 %v7637, %v7607
        %v7639 = vadd.f32 %v7638, %v7608
        %v7640 = vadd.f32 %v7639, %v7609
        %v7641 = vadd.f32 %v7640, %v7610
        %v7642 = vadd.f32 %v7641, %v7611
        %v7643 = vadd.f32 %v7642, %v7612
        %v7644 = vadd.f32 %v7643, %v7613
        %v7645 = vadd.f32 %v7644, %v7614
        %v7646 = vadd.f32 %v7645, %v7615
        %v7647 = vadd.f32 %v7646, %v7616
        %v7648 = vadd.f32 %v7647, %v7617
        %v7649 = vadd.f32 %v7648, %v7618
        %v7650 = vrot.slane %v7649, 4
        %v7651 = vadd.f32 %v7649, %v7650
        %v7652 = vrot.slane %v7651, 2
        %v7653 = vadd.f32 %v7651, %v7652
        %v7654 = vrot.slane %v7653, 1
        %v7655 = vadd.f32 %v7653, %v7654
        %v7656 = vmul.f32 %v7655, 0.00390625
        %v7657 = vpack.c.bf16 %v7656, %v7656
        %v7658 = vld [vmem:[#allocation12] sm:$0xf]
        %v7659 = vld [vmem:[#allocation12 + $0x4] sm:$0xf]
        %v7660 = vld [vmem:[#allocation12 + $0x8] sm:$0xf]
        %v7661 = vld [vmem:[#allocation12 + $0xc] sm:$0xf]
        %v7662 = vld [vmem:[#allocation12 + $0x10] sm:$0xf]
        %v7663 = vld [vmem:[#allocation12 + $0x14] sm:$0xf]
        %v7664 = vld [vmem:[#allocation12 + $0x18] sm:$0xf]
        %v7665 = vld [vmem:[#allocation12 + $0x1c] sm:$0xf]
        %v7666 = vld [vmem:[#allocation12 + $0x20] sm:$0xf]
        %v7667 = vld [vmem:[#allocation12 + $0x24] sm:$0xf]
        %v7668 = vld [vmem:[#allocation12 + $0x28] sm:$0xf]
        %v7669 = vld [vmem:[#allocation12 + $0x2c] sm:$0xf]
        %v7670 = vld [vmem:[#allocation12 + $0x30] sm:$0xf]
        %v7671 = vld [vmem:[#allocation12 + $0x34] sm:$0xf]
        %v7672 = vld [vmem:[#allocation12 + $0x38] sm:$0xf]
        %v7673 = vld [vmem:[#allocation12 + $0x3c] sm:$0xf]
        %v7674 = vld [vmem:[%s10] sm:$0x1]
        %v7691 = vunpack.c.l.b16 %v7658
        %v7692 = vunpack.c.l.b16 %v7659
        %v7693 = vunpack.c.l.b16 %v7660
        %v7694 = vunpack.c.l.b16 %v7661
        %v7695 = vunpack.c.l.b16 %v7662
        %v7696 = vunpack.c.l.b16 %v7663
        %v7697 = vunpack.c.l.b16 %v7664
        %v7698 = vunpack.c.l.b16 %v7665
        %v7699 = vunpack.c.l.b16 %v7666
        %v7700 = vunpack.c.l.b16 %v7667
        %v7701 = vunpack.c.l.b16 %v7668
        %v7702 = vunpack.c.l.b16 %v7669
        %v7703 = vunpack.c.l.b16 %v7670
        %v7704 = vunpack.c.l.b16 %v7671
        %v7705 = vunpack.c.l.b16 %v7672
        %v7706 = vunpack.c.l.b16 %v7673
        %v7707 = vpack.c.b16 %v7692, %v7691
        %v7708 = vpack.c.b16 %v7694, %v7693
        %v7709 = vpack.c.b16 %v7696, %v7695
        %v7710 = vpack.c.b16 %v7698, %v7697
        %v7711 = vpack.c.b16 %v7700, %v7699
        %v7712 = vpack.c.b16 %v7702, %v7701
        %v7713 = vpack.c.b16 %v7704, %v7703
        %v7714 = vpack.c.b16 %v7706, %v7705
        %7723 = vmatpush.bf16.msra.mxu0 %v7714
        %7724 = vmatpush.bf16.msra.mxu0 %v7713
        %7725 = vmatpush.bf16.msra.mxu0 %v7712
        %7726 = vmatpush.bf16.msra.mxu0 %v7711
        %7727 = vmatpush.bf16.msra.mxu0 %v7710
        %7728 = vmatpush.bf16.msra.mxu0 %v7709
        %7729 = vmatpush.bf16.msra.mxu0 %v7708
        %7730 = vmatpush.bf16.msra.mxu0 %v7707
        %7731 = vmatmul.bf16.gmra.mxu0 %v7657
        %v7732 = vpop.f32.mrf.mxu0
        %v7733 = vadd.f32 %v7674, %v7732
        %v7734 = vpop.f32.mrf.mxu0
        %7735 = vdwg.mxu0
        %v7736 = vmax.f32 %v7733, 0.0
        %v7737 = vpack.c.bf16 %v7736, %v7736
        %v7738 = vld [vmem:[#allocation14] sm:$0xf]
        %v7739 = vld [vmem:[#allocation14 + $0x4] sm:$0xf]
        %v7740 = vld [vmem:[#allocation14 + $0x8] sm:$0xf]
        %v7741 = vld [vmem:[#allocation14 + $0xc] sm:$0xf]
        %v7742 = vld [vmem:[#allocation14 + $0x10] sm:$0xf]
        %v7743 = vld [vmem:[#allocation14 + $0x14] sm:$0xf]
        %v7744 = vld [vmem:[#allocation14 + $0x18] sm:$0xf]
        %v7745 = vld [vmem:[#allocation14 + $0x1c] sm:$0xf]
        %v7746 = vld [vmem:[#allocation14 + $0x20] sm:$0xf]
        %v7747 = vld [vmem:[#allocation14 + $0x24] sm:$0xf]
        %v7748 = vld [vmem:[#allocation14 + $0x28] sm:$0xf]
        %v7749 = vld [vmem:[#allocation14 + $0x2c] sm:$0xf]
        %v7750 = vld [vmem:[#allocation14 + $0x30] sm:$0xf]
        %v7751 = vld [vmem:[#allocation14 + $0x34] sm:$0xf]
        %v7752 = vld [vmem:[#allocation14 + $0x38] sm:$0xf]
        %v7753 = vld [vmem:[#allocation14 + $0x3c] sm:$0xf]
        %v7754 = vld [vmem:[%s12] sm:$0x1]
        %v7771 = vunpack.c.l.b16 %v7738
        %v7772 = vunpack.c.l.b16 %v7739
        %v7773 = vunpack.c.l.b16 %v7740
        %v7774 = vunpack.c.l.b16 %v7741
        %v7775 = vunpack.c.l.b16 %v7742
        %v7776 = vunpack.c.l.b16 %v7743
        %v7777 = vunpack.c.l.b16 %v7744
        %v7778 = vunpack.c.l.b16 %v7745
        %v7779 = vunpack.c.l.b16 %v7746
        %v7780 = vunpack.c.l.b16 %v7747
        %v7781 = vunpack.c.l.b16 %v7748
        %v7782 = vunpack.c.l.b16 %v7749
        %v7783 = vunpack.c.l.b16 %v7750
        %v7784 = vunpack.c.l.b16 %v7751
        %v7785 = vunpack.c.l.b16 %v7752
        %v7786 = vunpack.c.l.b16 %v7753
        %v7787 = vpack.c.b16 %v7772, %v7771
        %v7788 = vpack.c.b16 %v7774, %v7773
        %v7789 = vpack.c.b16 %v7776, %v7775
        %v7790 = vpack.c.b16 %v7778, %v7777
        %v7791 = vpack.c.b16 %v7780, %v7779
        %v7792 = vpack.c.b16 %v7782, %v7781
        %v7793 = vpack.c.b16 %v7784, %v7783
        %v7794 = vpack.c.b16 %v7786, %v7785
        %7803 = vmatpush.bf16.msra.mxu0 %v7794
        %7804 = vmatpush.bf16.msra.mxu0 %v7793
        %7805 = vmatpush.bf16.msra.mxu0 %v7792
        %7806 = vmatpush.bf16.msra.mxu0 %v7791
        %7807 = vmatpush.bf16.msra.mxu0 %v7790
        %7808 = vmatpush.bf16.msra.mxu0 %v7789
        %7809 = vmatpush.bf16.msra.mxu0 %v7788
        %7810 = vmatpush.bf16.msra.mxu0 %v7787
        %7811 = vmatmul.bf16.gmra.mxu0 %v7737
        %v7812 = vpop.f32.mrf.mxu0
        %v7813 = vadd.f32 %v7754, %v7812
        %v7814 = vpop.f32.mrf.mxu0
        %7815 = vdwg.mxu0
        %v7816 = vperm.slane %v7813, 0
        %v7817 = vadd.f32 %v7508, %v7816
        %v7818 = vadd.f32 %v7510, %v7816
        %v7819 = vadd.f32 %v7513, %v7816
        %v7820 = vadd.f32 %v7515, %v7816
        %v7821 = vadd.f32 %v7518, %v7816
        %v7822 = vadd.f32 %v7520, %v7816
        %v7823 = vadd.f32 %v7523, %v7816
        %v7824 = vadd.f32 %v7525, %v7816
        %v7825 = vadd.f32 %v7528, %v7816
        %v7826 = vadd.f32 %v7530, %v7816
        %v7827 = vadd.f32 %v7533, %v7816
        %v7828 = vadd.f32 %v7535, %v7816
        %v7829 = vadd.f32 %v7538, %v7816
        %v7830 = vadd.f32 %v7540, %v7816
        %v7831 = vadd.f32 %v7543, %v7816
        %v7832 = vadd.f32 %v7545, %v7816
        %v7833 = vadd.f32 %v7548, %v7816
        %v7834 = vadd.f32 %v7550, %v7816
        %v7835 = vadd.f32 %v7553, %v7816
        %v7836 = vadd.f32 %v7555, %v7816
        %v7837 = vadd.f32 %v7558, %v7816
        %v7838 = vadd.f32 %v7560, %v7816
        %v7839 = vadd.f32 %v7563, %v7816
        %v7840 = vadd.f32 %v7565, %v7816
        %v7841 = vadd.f32 %v7568, %v7816
        %v7842 = vadd.f32 %v7570, %v7816
        %v7843 = vadd.f32 %v7573, %v7816
        %v7844 = vadd.f32 %v7575, %v7816
        %v7845 = vadd.f32 %v7578, %v7816
        %v7846 = vadd.f32 %v7580, %v7816
        %v7847 = vadd.f32 %v7583, %v7816
        %v7848 = vadd.f32 %v7585, %v7816
        %v7849 = vand.u32 2147483647, %v7817
        %v7850 = vand.u32 2147483647, %v7818
        %v7851 = vand.u32 2147483647, %v7819
        %v7852 = vand.u32 2147483647, %v7820
        %v7853 = vand.u32 2147483647, %v7821
        %v7854 = vand.u32 2147483647, %v7822
        %v7855 = vand.u32 2147483647, %v7823
        %v7856 = vand.u32 2147483647, %v7824
        %v7857 = vand.u32 2147483647, %v7825
        %v7858 = vand.u32 2147483647, %v7826
        %v7859 = vand.u32 2147483647, %v7827
        %v7860 = vand.u32 2147483647, %v7828
        %v7861 = vand.u32 2147483647, %v7829
        %v7862 = vand.u32 2147483647, %v7830
        %v7863 = vand.u32 2147483647, %v7831
        %v7864 = vand.u32 2147483647, %v7832
        %v7865 = vand.u32 2147483647, %v7833
        %v7866 = vand.u32 2147483647, %v7834
        %v7867 = vand.u32 2147483647, %v7835
        %v7868 = vand.u32 2147483647, %v7836
        %v7869 = vand.u32 2147483647, %v7837
        %v7870 = vand.u32 2147483647, %v7838
        %v7871 = vand.u32 2147483647, %v7839
        %v7872 = vand.u32 2147483647, %v7840
        %v7873 = vand.u32 2147483647, %v7841
        %v7874 = vand.u32 2147483647, %v7842
        %v7875 = vand.u32 2147483647, %v7843
        %v7876 = vand.u32 2147483647, %v7844
        %v7877 = vand.u32 2147483647, %v7845
        %v7878 = vand.u32 2147483647, %v7846
        %v7879 = vand.u32 2147483647, %v7847
        %v7880 = vand.u32 2147483647, %v7848
        %v7881 = vsub.f32 0.0, %v7849
        %v7882 = vsub.f32 0.0, %v7850
        %v7883 = vsub.f32 0.0, %v7851
        %v7884 = vsub.f32 0.0, %v7852
        %v7885 = vsub.f32 0.0, %v7853
        %v7886 = vsub.f32 0.0, %v7854
        %v7887 = vsub.f32 0.0, %v7855
        %v7888 = vsub.f32 0.0, %v7856
        %v7889 = vsub.f32 0.0, %v7857
        %v7890 = vsub.f32 0.0, %v7858
        %v7891 = vsub.f32 0.0, %v7859
        %v7892 = vsub.f32 0.0, %v7860
        %v7893 = vsub.f32 0.0, %v7861
        %v7894 = vsub.f32 0.0, %v7862
        %v7895 = vsub.f32 0.0, %v7863
        %v7896 = vsub.f32 0.0, %v7864
        %v7897 = vsub.f32 0.0, %v7865
        %v7898 = vsub.f32 0.0, %v7866
        %v7899 = vsub.f32 0.0, %v7867
        %v7900 = vsub.f32 0.0, %v7868
        %v7901 = vsub.f32 0.0, %v7869
        %v7902 = vsub.f32 0.0, %v7870
        %v7903 = vsub.f32 0.0, %v7871
        %v7904 = vsub.f32 0.0, %v7872
        %v7905 = vsub.f32 0.0, %v7873
        %v7906 = vsub.f32 0.0, %v7874
        %v7907 = vsub.f32 0.0, %v7875
        %v7908 = vsub.f32 0.0, %v7876
        %v7909 = vsub.f32 0.0, %v7877
        %v7910 = vsub.f32 0.0, %v7878
        %v7911 = vsub.f32 0.0, %v7879
        %v7912 = vsub.f32 0.0, %v7880
        %v7913 = vmul.f32 %v7881, 1.442695
        %v7914 = vpow.pop %v7913
        %v7915 = vmul.f32 %v7882, 1.442695
        %v7916 = vpow.pop %v7915
        %v7917 = vmul.f32 %v7883, 1.442695
        %v7918 = vpow.pop %v7917
        %v7919 = vmul.f32 %v7884, 1.442695
        %v7920 = vpow.pop %v7919
        %v7921 = vmul.f32 %v7885, 1.442695
        %v7922 = vpow.pop %v7921
        %v7923 = vmul.f32 %v7886, 1.442695
        %v7924 = vpow.pop %v7923
        %v7925 = vmul.f32 %v7887, 1.442695
        %v7926 = vpow.pop %v7925
        %v7927 = vmul.f32 %v7888, 1.442695
        %v7928 = vpow.pop %v7927
        %v7929 = vmul.f32 %v7889, 1.442695
        %v7930 = vpow.pop %v7929
        %v7931 = vmul.f32 %v7890, 1.442695
        %v7932 = vpow.pop %v7931
        %v7933 = vmul.f32 %v7891, 1.442695
        %v7934 = vpow.pop %v7933
        %v7935 = vmul.f32 %v7892, 1.442695
        %v7936 = vpow.pop %v7935
        %v7937 = vmul.f32 %v7893, 1.442695
        %v7938 = vpow.pop %v7937
        %v7939 = vmul.f32 %v7894, 1.442695
        %v7940 = vpow.pop %v7939
        %v7941 = vmul.f32 %v7895, 1.442695
        %v7942 = vpow.pop %v7941
        %v7943 = vmul.f32 %v7896, 1.442695
        %v7944 = vpow.pop %v7943
        %v7945 = vmul.f32 %v7897, 1.442695
        %v7946 = vpow.pop %v7945
        %v7947 = vmul.f32 %v7898, 1.442695
        %v7948 = vpow.pop %v7947
        %v7949 = vmul.f32 %v7899, 1.442695
        %v7950 = vpow.pop %v7949
        %v7951 = vmul.f32 %v7900, 1.442695
        %v7952 = vpow.pop %v7951
        %v7953 = vmul.f32 %v7901, 1.442695
        %v7954 = vpow.pop %v7953
        %v7955 = vmul.f32 %v7902, 1.442695
        %v7956 = vpow.pop %v7955
        %v7957 = vmul.f32 %v7903, 1.442695
        %v7958 = vpow.pop %v7957
        %v7959 = vmul.f32 %v7904, 1.442695
        %v7960 = vpow.pop %v7959
        %v7961 = vmul.f32 %v7905, 1.442695
        %v7962 = vpow.pop %v7961
        %v7963 = vmul.f32 %v7906, 1.442695
        %v7964 = vpow.pop %v7963
        %v7965 = vmul.f32 %v7907, 1.442695
        %v7966 = vpow.pop %v7965
        %v7967 = vmul.f32 %v7908, 1.442695
        %v7968 = vpow.pop %v7967
        %v7969 = vmul.f32 %v7909, 1.442695
        %v7970 = vpow.pop %v7969
        %v7971 = vmul.f32 %v7910, 1.442695
        %v7972 = vpow.pop %v7971
        %v7973 = vmul.f32 %v7911, 1.442695
        %v7974 = vpow.pop %v7973
        %v7975 = vmul.f32 %v7912, 1.442695
        %v7976 = vpow.pop %v7975
        %v7977 = vadd.f32 %v7914, 1.0
        %v7978 = vadd.f32 %v7916, 1.0
        %v7979 = vadd.f32 %v7918, 1.0
        %v7980 = vadd.f32 %v7920, 1.0
        %v7981 = vadd.f32 %v7922, 1.0
        %v7982 = vadd.f32 %v7924, 1.0
        %v7983 = vadd.f32 %v7926, 1.0
        %v7984 = vadd.f32 %v7928, 1.0
        %v7985 = vadd.f32 %v7930, 1.0
        %v7986 = vadd.f32 %v7932, 1.0
        %v7987 = vadd.f32 %v7934, 1.0
        %v7988 = vadd.f32 %v7936, 1.0
        %v7989 = vadd.f32 %v7938, 1.0
        %v7990 = vadd.f32 %v7940, 1.0
        %v7991 = vadd.f32 %v7942, 1.0
        %v7992 = vadd.f32 %v7944, 1.0
        %v7993 = vadd.f32 %v7946, 1.0
        %v7994 = vadd.f32 %v7948, 1.0
        %v7995 = vadd.f32 %v7950, 1.0
        %v7996 = vadd.f32 %v7952, 1.0
        %v7997 = vadd.f32 %v7954, 1.0
        %v7998 = vadd.f32 %v7956, 1.0
        %v7999 = vadd.f32 %v7958, 1.0
        %v8000 = vadd.f32 %v7960, 1.0
        %v8001 = vadd.f32 %v7962, 1.0
        %v8002 = vadd.f32 %v7964, 1.0
        %v8003 = vadd.f32 %v7966, 1.0
        %v8004 = vadd.f32 %v7968, 1.0
        %v8005 = vadd.f32 %v7970, 1.0
        %v8006 = vadd.f32 %v7972, 1.0
        %v8007 = vadd.f32 %v7974, 1.0
        %v8008 = vadd.f32 %v7976, 1.0
        %v8009 = vrcp.pop %v7977
        %v8010 = vmul.f32 %v7977, %v8009
        %v8011 = vsub.f32 1.0, %v8010
        %v8012 = vmul.f32 %v8009, %v8011
        %v8013 = vadd.f32 %v8009, %v8012
        %vm8014 = vweird.f32 %v7977
        %vm8015 = vweird.f32 %v8009
        %vm8016 = vmor %vm8014, %vm8015
        %v8017 = vsel %vm8016, %v8009, %v8013
        %v8018 = vand.u32 2147483647, %v7977
        %vm8019 = vcmp.eq.f32.partialorder %v8018, 8.507059e+37
        %v8020 = vand.u32 %v7977, 2147483648
        %v8021 = vor.u32 1.1754944e-38, %v8020
        %v8022 = vsel %vm8019, %v8021, %v8017
        %v8023 = vmul.f32 1.0, %v8022
        %v8024 = vrcp.pop %v7978
        %v8025 = vmul.f32 %v7978, %v8024
        %v8026 = vsub.f32 1.0, %v8025
        %v8027 = vmul.f32 %v8024, %v8026
        %v8028 = vadd.f32 %v8024, %v8027
        %vm8029 = vweird.f32 %v7978
        %vm8030 = vweird.f32 %v8024
        %vm8031 = vmor %vm8029, %vm8030
        %v8032 = vsel %vm8031, %v8024, %v8028
        %v8033 = vand.u32 2147483647, %v7978
        %vm8034 = vcmp.eq.f32.partialorder %v8033, 8.507059e+37
        %v8035 = vand.u32 %v7978, 2147483648
        %v8036 = vor.u32 1.1754944e-38, %v8035
        %v8037 = vsel %vm8034, %v8036, %v8032
        %v8038 = vmul.f32 1.0, %v8037
        %v8039 = vrcp.pop %v7979
        %v8040 = vmul.f32 %v7979, %v8039
        %v8041 = vsub.f32 1.0, %v8040
        %v8042 = vmul.f32 %v8039, %v8041
        %v8043 = vadd.f32 %v8039, %v8042
        %vm8044 = vweird.f32 %v7979
        %vm8045 = vweird.f32 %v8039
        %vm8046 = vmor %vm8044, %vm8045
        %v8047 = vsel %vm8046, %v8039, %v8043
        %v8048 = vand.u32 2147483647, %v7979
        %vm8049 = vcmp.eq.f32.partialorder %v8048, 8.507059e+37
        %v8050 = vand.u32 %v7979, 2147483648
        %v8051 = vor.u32 1.1754944e-38, %v8050
        %v8052 = vsel %vm8049, %v8051, %v8047
        %v8053 = vmul.f32 1.0, %v8052
        %v8054 = vrcp.pop %v7980
        %v8055 = vmul.f32 %v7980, %v8054
        %v8056 = vsub.f32 1.0, %v8055
        %v8057 = vmul.f32 %v8054, %v8056
        %v8058 = vadd.f32 %v8054, %v8057
        %vm8059 = vweird.f32 %v7980
        %vm8060 = vweird.f32 %v8054
        %vm8061 = vmor %vm8059, %vm8060
        %v8062 = vsel %vm8061, %v8054, %v8058
        %v8063 = vand.u32 2147483647, %v7980
        %vm8064 = vcmp.eq.f32.partialorder %v8063, 8.507059e+37
        %v8065 = vand.u32 %v7980, 2147483648
        %v8066 = vor.u32 1.1754944e-38, %v8065
        %v8067 = vsel %vm8064, %v8066, %v8062
        %v8068 = vmul.f32 1.0, %v8067
        %v8069 = vrcp.pop %v7981
        %v8070 = vmul.f32 %v7981, %v8069
        %v8071 = vsub.f32 1.0, %v8070
        %v8072 = vmul.f32 %v8069, %v8071
        %v8073 = vadd.f32 %v8069, %v8072
        %vm8074 = vweird.f32 %v7981
        %vm8075 = vweird.f32 %v8069
        %vm8076 = vmor %vm8074, %vm8075
        %v8077 = vsel %vm8076, %v8069, %v8073
        %v8078 = vand.u32 2147483647, %v7981
        %vm8079 = vcmp.eq.f32.partialorder %v8078, 8.507059e+37
        %v8080 = vand.u32 %v7981, 2147483648
        %v8081 = vor.u32 1.1754944e-38, %v8080
        %v8082 = vsel %vm8079, %v8081, %v8077
        %v8083 = vmul.f32 1.0, %v8082
        %v8084 = vrcp.pop %v7982
        %v8085 = vmul.f32 %v7982, %v8084
        %v8086 = vsub.f32 1.0, %v8085
        %v8087 = vmul.f32 %v8084, %v8086
        %v8088 = vadd.f32 %v8084, %v8087
        %vm8089 = vweird.f32 %v7982
        %vm8090 = vweird.f32 %v8084
        %vm8091 = vmor %vm8089, %vm8090
        %v8092 = vsel %vm8091, %v8084, %v8088
        %v8093 = vand.u32 2147483647, %v7982
        %vm8094 = vcmp.eq.f32.partialorder %v8093, 8.507059e+37
        %v8095 = vand.u32 %v7982, 2147483648
        %v8096 = vor.u32 1.1754944e-38, %v8095
        %v8097 = vsel %vm8094, %v8096, %v8092
        %v8098 = vmul.f32 1.0, %v8097
        %v8099 = vrcp.pop %v7983
        %v8100 = vmul.f32 %v7983, %v8099
        %v8101 = vsub.f32 1.0, %v8100
        %v8102 = vmul.f32 %v8099, %v8101
        %v8103 = vadd.f32 %v8099, %v8102
        %vm8104 = vweird.f32 %v7983
        %vm8105 = vweird.f32 %v8099
        %vm8106 = vmor %vm8104, %vm8105
        %v8107 = vsel %vm8106, %v8099, %v8103
        %v8108 = vand.u32 2147483647, %v7983
        %vm8109 = vcmp.eq.f32.partialorder %v8108, 8.507059e+37
        %v8110 = vand.u32 %v7983, 2147483648
        %v8111 = vor.u32 1.1754944e-38, %v8110
        %v8112 = vsel %vm8109, %v8111, %v8107
        %v8113 = vmul.f32 1.0, %v8112
        %v8114 = vrcp.pop %v7984
        %v8115 = vmul.f32 %v7984, %v8114
        %v8116 = vsub.f32 1.0, %v8115
        %v8117 = vmul.f32 %v8114, %v8116
        %v8118 = vadd.f32 %v8114, %v8117
        %vm8119 = vweird.f32 %v7984
        %vm8120 = vweird.f32 %v8114
        %vm8121 = vmor %vm8119, %vm8120
        %v8122 = vsel %vm8121, %v8114, %v8118
        %v8123 = vand.u32 2147483647, %v7984
        %vm8124 = vcmp.eq.f32.partialorder %v8123, 8.507059e+37
        %v8125 = vand.u32 %v7984, 2147483648
        %v8126 = vor.u32 1.1754944e-38, %v8125
        %v8127 = vsel %vm8124, %v8126, %v8122
        %v8128 = vmul.f32 1.0, %v8127
        %v8129 = vrcp.pop %v7985
        %v8130 = vmul.f32 %v7985, %v8129
        %v8131 = vsub.f32 1.0, %v8130
        %v8132 = vmul.f32 %v8129, %v8131
        %v8133 = vadd.f32 %v8129, %v8132
        %vm8134 = vweird.f32 %v7985
        %vm8135 = vweird.f32 %v8129
        %vm8136 = vmor %vm8134, %vm8135
        %v8137 = vsel %vm8136, %v8129, %v8133
        %v8138 = vand.u32 2147483647, %v7985
        %vm8139 = vcmp.eq.f32.partialorder %v8138, 8.507059e+37
        %v8140 = vand.u32 %v7985, 2147483648
        %v8141 = vor.u32 1.1754944e-38, %v8140
        %v8142 = vsel %vm8139, %v8141, %v8137
        %v8143 = vmul.f32 1.0, %v8142
        %v8144 = vrcp.pop %v7986
        %v8145 = vmul.f32 %v7986, %v8144
        %v8146 = vsub.f32 1.0, %v8145
        %v8147 = vmul.f32 %v8144, %v8146
        %v8148 = vadd.f32 %v8144, %v8147
        %vm8149 = vweird.f32 %v7986
        %vm8150 = vweird.f32 %v8144
        %vm8151 = vmor %vm8149, %vm8150
        %v8152 = vsel %vm8151, %v8144, %v8148
        %v8153 = vand.u32 2147483647, %v7986
        %vm8154 = vcmp.eq.f32.partialorder %v8153, 8.507059e+37
        %v8155 = vand.u32 %v7986, 2147483648
        %v8156 = vor.u32 1.1754944e-38, %v8155
        %v8157 = vsel %vm8154, %v8156, %v8152
        %v8158 = vmul.f32 1.0, %v8157
        %v8159 = vrcp.pop %v7987
        %v8160 = vmul.f32 %v7987, %v8159
        %v8161 = vsub.f32 1.0, %v8160
        %v8162 = vmul.f32 %v8159, %v8161
        %v8163 = vadd.f32 %v8159, %v8162
        %vm8164 = vweird.f32 %v7987
        %vm8165 = vweird.f32 %v8159
        %vm8166 = vmor %vm8164, %vm8165
        %v8167 = vsel %vm8166, %v8159, %v8163
        %v8168 = vand.u32 2147483647, %v7987
        %vm8169 = vcmp.eq.f32.partialorder %v8168, 8.507059e+37
        %v8170 = vand.u32 %v7987, 2147483648
        %v8171 = vor.u32 1.1754944e-38, %v8170
        %v8172 = vsel %vm8169, %v8171, %v8167
        %v8173 = vmul.f32 1.0, %v8172
        %v8174 = vrcp.pop %v7988
        %v8175 = vmul.f32 %v7988, %v8174
        %v8176 = vsub.f32 1.0, %v8175
        %v8177 = vmul.f32 %v8174, %v8176
        %v8178 = vadd.f32 %v8174, %v8177
        %vm8179 = vweird.f32 %v7988
        %vm8180 = vweird.f32 %v8174
        %vm8181 = vmor %vm8179, %vm8180
        %v8182 = vsel %vm8181, %v8174, %v8178
        %v8183 = vand.u32 2147483647, %v7988
        %vm8184 = vcmp.eq.f32.partialorder %v8183, 8.507059e+37
        %v8185 = vand.u32 %v7988, 2147483648
        %v8186 = vor.u32 1.1754944e-38, %v8185
        %v8187 = vsel %vm8184, %v8186, %v8182
        %v8188 = vmul.f32 1.0, %v8187
        %v8189 = vrcp.pop %v7989
        %v8190 = vmul.f32 %v7989, %v8189
        %v8191 = vsub.f32 1.0, %v8190
        %v8192 = vmul.f32 %v8189, %v8191
        %v8193 = vadd.f32 %v8189, %v8192
        %vm8194 = vweird.f32 %v7989
        %vm8195 = vweird.f32 %v8189
        %vm8196 = vmor %vm8194, %vm8195
        %v8197 = vsel %vm8196, %v8189, %v8193
        %v8198 = vand.u32 2147483647, %v7989
        %vm8199 = vcmp.eq.f32.partialorder %v8198, 8.507059e+37
        %v8200 = vand.u32 %v7989, 2147483648
        %v8201 = vor.u32 1.1754944e-38, %v8200
        %v8202 = vsel %vm8199, %v8201, %v8197
        %v8203 = vmul.f32 1.0, %v8202
        %v8204 = vrcp.pop %v7990
        %v8205 = vmul.f32 %v7990, %v8204
        %v8206 = vsub.f32 1.0, %v8205
        %v8207 = vmul.f32 %v8204, %v8206
        %v8208 = vadd.f32 %v8204, %v8207
        %vm8209 = vweird.f32 %v7990
        %vm8210 = vweird.f32 %v8204
        %vm8211 = vmor %vm8209, %vm8210
        %v8212 = vsel %vm8211, %v8204, %v8208
        %v8213 = vand.u32 2147483647, %v7990
        %vm8214 = vcmp.eq.f32.partialorder %v8213, 8.507059e+37
        %v8215 = vand.u32 %v7990, 2147483648
        %v8216 = vor.u32 1.1754944e-38, %v8215
        %v8217 = vsel %vm8214, %v8216, %v8212
        %v8218 = vmul.f32 1.0, %v8217
        %v8219 = vrcp.pop %v7991
        %v8220 = vmul.f32 %v7991, %v8219
        %v8221 = vsub.f32 1.0, %v8220
        %v8222 = vmul.f32 %v8219, %v8221
        %v8223 = vadd.f32 %v8219, %v8222
        %vm8224 = vweird.f32 %v7991
        %vm8225 = vweird.f32 %v8219
        %vm8226 = vmor %vm8224, %vm8225
        %v8227 = vsel %vm8226, %v8219, %v8223
        %v8228 = vand.u32 2147483647, %v7991
        %vm8229 = vcmp.eq.f32.partialorder %v8228, 8.507059e+37
        %v8230 = vand.u32 %v7991, 2147483648
        %v8231 = vor.u32 1.1754944e-38, %v8230
        %v8232 = vsel %vm8229, %v8231, %v8227
        %v8233 = vmul.f32 1.0, %v8232
        %v8234 = vrcp.pop %v7992
        %v8235 = vmul.f32 %v7992, %v8234
        %v8236 = vsub.f32 1.0, %v8235
        %v8237 = vmul.f32 %v8234, %v8236
        %v8238 = vadd.f32 %v8234, %v8237
        %vm8239 = vweird.f32 %v7992
        %vm8240 = vweird.f32 %v8234
        %vm8241 = vmor %vm8239, %vm8240
        %v8242 = vsel %vm8241, %v8234, %v8238
        %v8243 = vand.u32 2147483647, %v7992
        %vm8244 = vcmp.eq.f32.partialorder %v8243, 8.507059e+37
        %v8245 = vand.u32 %v7992, 2147483648
        %v8246 = vor.u32 1.1754944e-38, %v8245
        %v8247 = vsel %vm8244, %v8246, %v8242
        %v8248 = vmul.f32 1.0, %v8247
        %v8249 = vrcp.pop %v7993
        %v8250 = vmul.f32 %v7993, %v8249
        %v8251 = vsub.f32 1.0, %v8250
        %v8252 = vmul.f32 %v8249, %v8251
        %v8253 = vadd.f32 %v8249, %v8252
        %vm8254 = vweird.f32 %v7993
        %vm8255 = vweird.f32 %v8249
        %vm8256 = vmor %vm8254, %vm8255
        %v8257 = vsel %vm8256, %v8249, %v8253
        %v8258 = vand.u32 2147483647, %v7993
        %vm8259 = vcmp.eq.f32.partialorder %v8258, 8.507059e+37
        %v8260 = vand.u32 %v7993, 2147483648
        %v8261 = vor.u32 1.1754944e-38, %v8260
        %v8262 = vsel %vm8259, %v8261, %v8257
        %v8263 = vmul.f32 1.0, %v8262
        %v8264 = vrcp.pop %v7994
        %v8265 = vmul.f32 %v7994, %v8264
        %v8266 = vsub.f32 1.0, %v8265
        %v8267 = vmul.f32 %v8264, %v8266
        %v8268 = vadd.f32 %v8264, %v8267
        %vm8269 = vweird.f32 %v7994
        %vm8270 = vweird.f32 %v8264
        %vm8271 = vmor %vm8269, %vm8270
        %v8272 = vsel %vm8271, %v8264, %v8268
        %v8273 = vand.u32 2147483647, %v7994
        %vm8274 = vcmp.eq.f32.partialorder %v8273, 8.507059e+37
        %v8275 = vand.u32 %v7994, 2147483648
        %v8276 = vor.u32 1.1754944e-38, %v8275
        %v8277 = vsel %vm8274, %v8276, %v8272
        %v8278 = vmul.f32 1.0, %v8277
        %v8279 = vrcp.pop %v7995
        %v8280 = vmul.f32 %v7995, %v8279
        %v8281 = vsub.f32 1.0, %v8280
        %v8282 = vmul.f32 %v8279, %v8281
        %v8283 = vadd.f32 %v8279, %v8282
        %vm8284 = vweird.f32 %v7995
        %vm8285 = vweird.f32 %v8279
        %vm8286 = vmor %vm8284, %vm8285
        %v8287 = vsel %vm8286, %v8279, %v8283
        %v8288 = vand.u32 2147483647, %v7995
        %vm8289 = vcmp.eq.f32.partialorder %v8288, 8.507059e+37
        %v8290 = vand.u32 %v7995, 2147483648
        %v8291 = vor.u32 1.1754944e-38, %v8290
        %v8292 = vsel %vm8289, %v8291, %v8287
        %v8293 = vmul.f32 1.0, %v8292
        %v8294 = vrcp.pop %v7996
        %v8295 = vmul.f32 %v7996, %v8294
        %v8296 = vsub.f32 1.0, %v8295
        %v8297 = vmul.f32 %v8294, %v8296
        %v8298 = vadd.f32 %v8294, %v8297
        %vm8299 = vweird.f32 %v7996
        %vm8300 = vweird.f32 %v8294
        %vm8301 = vmor %vm8299, %vm8300
        %v8302 = vsel %vm8301, %v8294, %v8298
        %v8303 = vand.u32 2147483647, %v7996
        %vm8304 = vcmp.eq.f32.partialorder %v8303, 8.507059e+37
        %v8305 = vand.u32 %v7996, 2147483648
        %v8306 = vor.u32 1.1754944e-38, %v8305
        %v8307 = vsel %vm8304, %v8306, %v8302
        %v8308 = vmul.f32 1.0, %v8307
        %v8309 = vrcp.pop %v7997
        %v8310 = vmul.f32 %v7997, %v8309
        %v8311 = vsub.f32 1.0, %v8310
        %v8312 = vmul.f32 %v8309, %v8311
        %v8313 = vadd.f32 %v8309, %v8312
        %vm8314 = vweird.f32 %v7997
        %vm8315 = vweird.f32 %v8309
        %vm8316 = vmor %vm8314, %vm8315
        %v8317 = vsel %vm8316, %v8309, %v8313
        %v8318 = vand.u32 2147483647, %v7997
        %vm8319 = vcmp.eq.f32.partialorder %v8318, 8.507059e+37
        %v8320 = vand.u32 %v7997, 2147483648
        %v8321 = vor.u32 1.1754944e-38, %v8320
        %v8322 = vsel %vm8319, %v8321, %v8317
        %v8323 = vmul.f32 1.0, %v8322
        %v8324 = vrcp.pop %v7998
        %v8325 = vmul.f32 %v7998, %v8324
        %v8326 = vsub.f32 1.0, %v8325
        %v8327 = vmul.f32 %v8324, %v8326
        %v8328 = vadd.f32 %v8324, %v8327
        %vm8329 = vweird.f32 %v7998
        %vm8330 = vweird.f32 %v8324
        %vm8331 = vmor %vm8329, %vm8330
        %v8332 = vsel %vm8331, %v8324, %v8328
        %v8333 = vand.u32 2147483647, %v7998
        %vm8334 = vcmp.eq.f32.partialorder %v8333, 8.507059e+37
        %v8335 = vand.u32 %v7998, 2147483648
        %v8336 = vor.u32 1.1754944e-38, %v8335
        %v8337 = vsel %vm8334, %v8336, %v8332
        %v8338 = vmul.f32 1.0, %v8337
        %v8339 = vrcp.pop %v7999
        %v8340 = vmul.f32 %v7999, %v8339
        %v8341 = vsub.f32 1.0, %v8340
        %v8342 = vmul.f32 %v8339, %v8341
        %v8343 = vadd.f32 %v8339, %v8342
        %vm8344 = vweird.f32 %v7999
        %vm8345 = vweird.f32 %v8339
        %vm8346 = vmor %vm8344, %vm8345
        %v8347 = vsel %vm8346, %v8339, %v8343
        %v8348 = vand.u32 2147483647, %v7999
        %vm8349 = vcmp.eq.f32.partialorder %v8348, 8.507059e+37
        %v8350 = vand.u32 %v7999, 2147483648
        %v8351 = vor.u32 1.1754944e-38, %v8350
        %v8352 = vsel %vm8349, %v8351, %v8347
        %v8353 = vmul.f32 1.0, %v8352
        %v8354 = vrcp.pop %v8000
        %v8355 = vmul.f32 %v8000, %v8354
        %v8356 = vsub.f32 1.0, %v8355
        %v8357 = vmul.f32 %v8354, %v8356
        %v8358 = vadd.f32 %v8354, %v8357
        %vm8359 = vweird.f32 %v8000
        %vm8360 = vweird.f32 %v8354
        %vm8361 = vmor %vm8359, %vm8360
        %v8362 = vsel %vm8361, %v8354, %v8358
        %v8363 = vand.u32 2147483647, %v8000
        %vm8364 = vcmp.eq.f32.partialorder %v8363, 8.507059e+37
        %v8365 = vand.u32 %v8000, 2147483648
        %v8366 = vor.u32 1.1754944e-38, %v8365
        %v8367 = vsel %vm8364, %v8366, %v8362
        %v8368 = vmul.f32 1.0, %v8367
        %v8369 = vrcp.pop %v8001
        %v8370 = vmul.f32 %v8001, %v8369
        %v8371 = vsub.f32 1.0, %v8370
        %v8372 = vmul.f32 %v8369, %v8371
        %v8373 = vadd.f32 %v8369, %v8372
        %vm8374 = vweird.f32 %v8001
        %vm8375 = vweird.f32 %v8369
        %vm8376 = vmor %vm8374, %vm8375
        %v8377 = vsel %vm8376, %v8369, %v8373
        %v8378 = vand.u32 2147483647, %v8001
        %vm8379 = vcmp.eq.f32.partialorder %v8378, 8.507059e+37
        %v8380 = vand.u32 %v8001, 2147483648
        %v8381 = vor.u32 1.1754944e-38, %v8380
        %v8382 = vsel %vm8379, %v8381, %v8377
        %v8383 = vmul.f32 1.0, %v8382
        %v8384 = vrcp.pop %v8002
        %v8385 = vmul.f32 %v8002, %v8384
        %v8386 = vsub.f32 1.0, %v8385
        %v8387 = vmul.f32 %v8384, %v8386
        %v8388 = vadd.f32 %v8384, %v8387
        %vm8389 = vweird.f32 %v8002
        %vm8390 = vweird.f32 %v8384
        %vm8391 = vmor %vm8389, %vm8390
        %v8392 = vsel %vm8391, %v8384, %v8388
        %v8393 = vand.u32 2147483647, %v8002
        %vm8394 = vcmp.eq.f32.partialorder %v8393, 8.507059e+37
        %v8395 = vand.u32 %v8002, 2147483648
        %v8396 = vor.u32 1.1754944e-38, %v8395
        %v8397 = vsel %vm8394, %v8396, %v8392
        %v8398 = vmul.f32 1.0, %v8397
        %v8399 = vrcp.pop %v8003
        %v8400 = vmul.f32 %v8003, %v8399
        %v8401 = vsub.f32 1.0, %v8400
        %v8402 = vmul.f32 %v8399, %v8401
        %v8403 = vadd.f32 %v8399, %v8402
        %vm8404 = vweird.f32 %v8003
        %vm8405 = vweird.f32 %v8399
        %vm8406 = vmor %vm8404, %vm8405
        %v8407 = vsel %vm8406, %v8399, %v8403
        %v8408 = vand.u32 2147483647, %v8003
        %vm8409 = vcmp.eq.f32.partialorder %v8408, 8.507059e+37
        %v8410 = vand.u32 %v8003, 2147483648
        %v8411 = vor.u32 1.1754944e-38, %v8410
        %v8412 = vsel %vm8409, %v8411, %v8407
        %v8413 = vmul.f32 1.0, %v8412
        %v8414 = vrcp.pop %v8004
        %v8415 = vmul.f32 %v8004, %v8414
        %v8416 = vsub.f32 1.0, %v8415
        %v8417 = vmul.f32 %v8414, %v8416
        %v8418 = vadd.f32 %v8414, %v8417
        %vm8419 = vweird.f32 %v8004
        %vm8420 = vweird.f32 %v8414
        %vm8421 = vmor %vm8419, %vm8420
        %v8422 = vsel %vm8421, %v8414, %v8418
        %v8423 = vand.u32 2147483647, %v8004
        %vm8424 = vcmp.eq.f32.partialorder %v8423, 8.507059e+37
        %v8425 = vand.u32 %v8004, 2147483648
        %v8426 = vor.u32 1.1754944e-38, %v8425
        %v8427 = vsel %vm8424, %v8426, %v8422
        %v8428 = vmul.f32 1.0, %v8427
        %v8429 = vrcp.pop %v8005
        %v8430 = vmul.f32 %v8005, %v8429
        %v8431 = vsub.f32 1.0, %v8430
        %v8432 = vmul.f32 %v8429, %v8431
        %v8433 = vadd.f32 %v8429, %v8432
        %vm8434 = vweird.f32 %v8005
        %vm8435 = vweird.f32 %v8429
        %vm8436 = vmor %vm8434, %vm8435
        %v8437 = vsel %vm8436, %v8429, %v8433
        %v8438 = vand.u32 2147483647, %v8005
        %vm8439 = vcmp.eq.f32.partialorder %v8438, 8.507059e+37
        %v8440 = vand.u32 %v8005, 2147483648
        %v8441 = vor.u32 1.1754944e-38, %v8440
        %v8442 = vsel %vm8439, %v8441, %v8437
        %v8443 = vmul.f32 1.0, %v8442
        %v8444 = vrcp.pop %v8006
        %v8445 = vmul.f32 %v8006, %v8444
        %v8446 = vsub.f32 1.0, %v8445
        %v8447 = vmul.f32 %v8444, %v8446
        %v8448 = vadd.f32 %v8444, %v8447
        %vm8449 = vweird.f32 %v8006
        %vm8450 = vweird.f32 %v8444
        %vm8451 = vmor %vm8449, %vm8450
        %v8452 = vsel %vm8451, %v8444, %v8448
        %v8453 = vand.u32 2147483647, %v8006
        %vm8454 = vcmp.eq.f32.partialorder %v8453, 8.507059e+37
        %v8455 = vand.u32 %v8006, 2147483648
        %v8456 = vor.u32 1.1754944e-38, %v8455
        %v8457 = vsel %vm8454, %v8456, %v8452
        %v8458 = vmul.f32 1.0, %v8457
        %v8459 = vrcp.pop %v8007
        %v8460 = vmul.f32 %v8007, %v8459
        %v8461 = vsub.f32 1.0, %v8460
        %v8462 = vmul.f32 %v8459, %v8461
        %v8463 = vadd.f32 %v8459, %v8462
        %vm8464 = vweird.f32 %v8007
        %vm8465 = vweird.f32 %v8459
        %vm8466 = vmor %vm8464, %vm8465
        %v8467 = vsel %vm8466, %v8459, %v8463
        %v8468 = vand.u32 2147483647, %v8007
        %vm8469 = vcmp.eq.f32.partialorder %v8468, 8.507059e+37
        %v8470 = vand.u32 %v8007, 2147483648
        %v8471 = vor.u32 1.1754944e-38, %v8470
        %v8472 = vsel %vm8469, %v8471, %v8467
        %v8473 = vmul.f32 1.0, %v8472
        %v8474 = vrcp.pop %v8008
        %v8475 = vmul.f32 %v8008, %v8474
        %v8476 = vsub.f32 1.0, %v8475
        %v8477 = vmul.f32 %v8474, %v8476
        %v8478 = vadd.f32 %v8474, %v8477
        %vm8479 = vweird.f32 %v8008
        %vm8480 = vweird.f32 %v8474
        %vm8481 = vmor %vm8479, %vm8480
        %v8482 = vsel %vm8481, %v8474, %v8478
        %v8483 = vand.u32 2147483647, %v8008
        %vm8484 = vcmp.eq.f32.partialorder %v8483, 8.507059e+37
        %v8485 = vand.u32 %v8008, 2147483648
        %v8486 = vor.u32 1.1754944e-38, %v8485
        %v8487 = vsel %vm8484, %v8486, %v8482
        %v8488 = vmul.f32 1.0, %v8487
        %vm8489 = vcmp.ge.f32.partialorder %v7817, 0.0
        %vm8490 = vcmp.ge.f32.partialorder %v7818, 0.0
        %vm8491 = vcmp.ge.f32.partialorder %v7819, 0.0
        %vm8492 = vcmp.ge.f32.partialorder %v7820, 0.0
        %vm8493 = vcmp.ge.f32.partialorder %v7821, 0.0
        %vm8494 = vcmp.ge.f32.partialorder %v7822, 0.0
        %vm8495 = vcmp.ge.f32.partialorder %v7823, 0.0
        %vm8496 = vcmp.ge.f32.partialorder %v7824, 0.0
        %vm8497 = vcmp.ge.f32.partialorder %v7825, 0.0
        %vm8498 = vcmp.ge.f32.partialorder %v7826, 0.0
        %vm8499 = vcmp.ge.f32.partialorder %v7827, 0.0
        %vm8500 = vcmp.ge.f32.partialorder %v7828, 0.0
        %vm8501 = vcmp.ge.f32.partialorder %v7829, 0.0
        %vm8502 = vcmp.ge.f32.partialorder %v7830, 0.0
        %vm8503 = vcmp.ge.f32.partialorder %v7831, 0.0
        %vm8504 = vcmp.ge.f32.partialorder %v7832, 0.0
        %vm8505 = vcmp.ge.f32.partialorder %v7833, 0.0
        %vm8506 = vcmp.ge.f32.partialorder %v7834, 0.0
        %vm8507 = vcmp.ge.f32.partialorder %v7835, 0.0
        %vm8508 = vcmp.ge.f32.partialorder %v7836, 0.0
        %vm8509 = vcmp.ge.f32.partialorder %v7837, 0.0
        %vm8510 = vcmp.ge.f32.partialorder %v7838, 0.0
        %vm8511 = vcmp.ge.f32.partialorder %v7839, 0.0
        %vm8512 = vcmp.ge.f32.partialorder %v7840, 0.0
        %vm8513 = vcmp.ge.f32.partialorder %v7841, 0.0
        %vm8514 = vcmp.ge.f32.partialorder %v7842, 0.0
        %vm8515 = vcmp.ge.f32.partialorder %v7843, 0.0
        %vm8516 = vcmp.ge.f32.partialorder %v7844, 0.0
        %vm8517 = vcmp.ge.f32.partialorder %v7845, 0.0
        %vm8518 = vcmp.ge.f32.partialorder %v7846, 0.0
        %vm8519 = vcmp.ge.f32.partialorder %v7847, 0.0
        %vm8520 = vcmp.ge.f32.partialorder %v7848, 0.0
        %v8521 = vmul.f32 %v7914, %v8023
        %v8522 = vmul.f32 %v7916, %v8038
        %v8523 = vmul.f32 %v7918, %v8053
        %v8524 = vmul.f32 %v7920, %v8068
        %v8525 = vmul.f32 %v7922, %v8083
        %v8526 = vmul.f32 %v7924, %v8098
        %v8527 = vmul.f32 %v7926, %v8113
        %v8528 = vmul.f32 %v7928, %v8128
        %v8529 = vmul.f32 %v7930, %v8143
        %v8530 = vmul.f32 %v7932, %v8158
        %v8531 = vmul.f32 %v7934, %v8173
        %v8532 = vmul.f32 %v7936, %v8188
        %v8533 = vmul.f32 %v7938, %v8203
        %v8534 = vmul.f32 %v7940, %v8218
        %v8535 = vmul.f32 %v7942, %v8233
        %v8536 = vmul.f32 %v7944, %v8248
        %v8537 = vmul.f32 %v7946, %v8263
        %v8538 = vmul.f32 %v7948, %v8278
        %v8539 = vmul.f32 %v7950, %v8293
        %v8540 = vmul.f32 %v7952, %v8308
        %v8541 = vmul.f32 %v7954, %v8323
        %v8542 = vmul.f32 %v7956, %v8338
        %v8543 = vmul.f32 %v7958, %v8353
        %v8544 = vmul.f32 %v7960, %v8368
        %v8545 = vmul.f32 %v7962, %v8383
        %v8546 = vmul.f32 %v7964, %v8398
        %v8547 = vmul.f32 %v7966, %v8413
        %v8548 = vmul.f32 %v7968, %v8428
        %v8549 = vmul.f32 %v7970, %v8443
        %v8550 = vmul.f32 %v7972, %v8458
        %v8551 = vmul.f32 %v7974, %v8473
        %v8552 = vmul.f32 %v7976, %v8488
        %v8553 = vsel %vm8489, %v8023, %v8521
        %v8554 = vsel %vm8490, %v8038, %v8522
        %v8555 = vsel %vm8491, %v8053, %v8523
        %v8556 = vsel %vm8492, %v8068, %v8524
        %v8557 = vsel %vm8493, %v8083, %v8525
        %v8558 = vsel %vm8494, %v8098, %v8526
        %v8559 = vsel %vm8495, %v8113, %v8527
        %v8560 = vsel %vm8496, %v8128, %v8528
        %v8561 = vsel %vm8497, %v8143, %v8529
        %v8562 = vsel %vm8498, %v8158, %v8530
        %v8563 = vsel %vm8499, %v8173, %v8531
        %v8564 = vsel %vm8500, %v8188, %v8532
        %v8565 = vsel %vm8501, %v8203, %v8533
        %v8566 = vsel %vm8502, %v8218, %v8534
        %v8567 = vsel %vm8503, %v8233, %v8535
        %v8568 = vsel %vm8504, %v8248, %v8536
        %v8569 = vsel %vm8505, %v8263, %v8537
        %v8570 = vsel %vm8506, %v8278, %v8538
        %v8571 = vsel %vm8507, %v8293, %v8539
        %v8572 = vsel %vm8508, %v8308, %v8540
        %v8573 = vsel %vm8509, %v8323, %v8541
        %v8574 = vsel %vm8510, %v8338, %v8542
        %v8575 = vsel %vm8511, %v8353, %v8543
        %v8576 = vsel %vm8512, %v8368, %v8544
        %v8577 = vsel %vm8513, %v8383, %v8545
        %v8578 = vsel %vm8514, %v8398, %v8546
        %v8579 = vsel %vm8515, %v8413, %v8547
        %v8580 = vsel %vm8516, %v8428, %v8548
        %v8581 = vsel %vm8517, %v8443, %v8549
        %v8582 = vsel %vm8518, %v8458, %v8550
        %v8583 = vsel %vm8519, %v8473, %v8551
        %v8584 = vsel %vm8520, %v8488, %v8552
        %v8585 = vsub.f32 %v7145, %v7081
        %v8586 = vsub.f32 %v7146, %v7082
        %v8587 = vsub.f32 %v7147, %v7083
        %v8588 = vsub.f32 %v7148, %v7084
        %v8589 = vsub.f32 %v7149, %v7085
        %v8590 = vsub.f32 %v7150, %v7086
        %v8591 = vsub.f32 %v7151, %v7087
        %v8592 = vsub.f32 %v7152, %v7088
        %v8593 = vsub.f32 %v7153, %v7089
        %v8594 = vsub.f32 %v7154, %v7090
        %v8595 = vsub.f32 %v7155, %v7091
        %v8596 = vsub.f32 %v7156, %v7092
        %v8597 = vsub.f32 %v7157, %v7093
        %v8598 = vsub.f32 %v7158, %v7094
        %v8599 = vsub.f32 %v7159, %v7095
        %v8600 = vsub.f32 %v7160, %v7096
        %v8601 = vsub.f32 %v7161, %v7097
        %v8602 = vsub.f32 %v7162, %v7098
        %v8603 = vsub.f32 %v7163, %v7099
        %v8604 = vsub.f32 %v7164, %v7100
        %v8605 = vsub.f32 %v7165, %v7101
        %v8606 = vsub.f32 %v7166, %v7102
        %v8607 = vsub.f32 %v7167, %v7103
        %v8608 = vsub.f32 %v7168, %v7104
        %v8609 = vsub.f32 %v7169, %v7105
        %v8610 = vsub.f32 %v7170, %v7106
        %v8611 = vsub.f32 %v7171, %v7107
        %v8612 = vsub.f32 %v7172, %v7108
        %v8613 = vsub.f32 %v7173, %v7109
        %v8614 = vsub.f32 %v7174, %v7110
        %v8615 = vsub.f32 %v7175, %v7111
        %v8616 = vsub.f32 %v7176, %v7112
        %v8617 = vmul.f32 %v8585, %v8553
        %v8618 = vmul.f32 %v8586, %v8554
        %v8619 = vmul.f32 %v8587, %v8555
        %v8620 = vmul.f32 %v8588, %v8556
        %v8621 = vmul.f32 %v8589, %v8557
        %v8622 = vmul.f32 %v8590, %v8558
        %v8623 = vmul.f32 %v8591, %v8559
        %v8624 = vmul.f32 %v8592, %v8560
        %v8625 = vmul.f32 %v8593, %v8561
        %v8626 = vmul.f32 %v8594, %v8562
        %v8627 = vmul.f32 %v8595, %v8563
        %v8628 = vmul.f32 %v8596, %v8564
        %v8629 = vmul.f32 %v8597, %v8565
        %v8630 = vmul.f32 %v8598, %v8566
        %v8631 = vmul.f32 %v8599, %v8567
        %v8632 = vmul.f32 %v8600, %v8568
        %v8633 = vmul.f32 %v8601, %v8569
        %v8634 = vmul.f32 %v8602, %v8570
        %v8635 = vmul.f32 %v8603, %v8571
        %v8636 = vmul.f32 %v8604, %v8572
        %v8637 = vmul.f32 %v8605, %v8573
        %v8638 = vmul.f32 %v8606, %v8574
        %v8639 = vmul.f32 %v8607, %v8575
        %v8640 = vmul.f32 %v8608, %v8576
        %v8641 = vmul.f32 %v8609, %v8577
        %v8642 = vmul.f32 %v8610, %v8578
        %v8643 = vmul.f32 %v8611, %v8579
        %v8644 = vmul.f32 %v8612, %v8580
        %v8645 = vmul.f32 %v8613, %v8581
        %v8646 = vmul.f32 %v8614, %v8582
        %v8647 = vmul.f32 %v8615, %v8583
        %v8648 = vmul.f32 %v8616, %v8584
        %v8649 = vadd.f32 %v7081, %v8617
        %v8650 = vadd.f32 %v7082, %v8618
        %v8651 = vadd.f32 %v7083, %v8619
        %v8652 = vadd.f32 %v7084, %v8620
        %v8653 = vadd.f32 %v7085, %v8621
        %v8654 = vadd.f32 %v7086, %v8622
        %v8655 = vadd.f32 %v7087, %v8623
        %v8656 = vadd.f32 %v7088, %v8624
        %v8657 = vadd.f32 %v7089, %v8625
        %v8658 = vadd.f32 %v7090, %v8626
        %v8659 = vadd.f32 %v7091, %v8627
        %v8660 = vadd.f32 %v7092, %v8628
        %v8661 = vadd.f32 %v7093, %v8629
        %v8662 = vadd.f32 %v7094, %v8630
        %v8663 = vadd.f32 %v7095, %v8631
        %v8664 = vadd.f32 %v7096, %v8632
        %v8665 = vadd.f32 %v7097, %v8633
        %v8666 = vadd.f32 %v7098, %v8634
        %v8667 = vadd.f32 %v7099, %v8635
        %v8668 = vadd.f32 %v7100, %v8636
        %v8669 = vadd.f32 %v7101, %v8637
        %v8670 = vadd.f32 %v7102, %v8638
        %v8671 = vadd.f32 %v7103, %v8639
        %v8672 = vadd.f32 %v7104, %v8640
        %v8673 = vadd.f32 %v7105, %v8641
        %v8674 = vadd.f32 %v7106, %v8642
        %v8675 = vadd.f32 %v7107, %v8643
        %v8676 = vadd.f32 %v7108, %v8644
        %v8677 = vadd.f32 %v7109, %v8645
        %v8678 = vadd.f32 %v7110, %v8646
        %v8679 = vadd.f32 %v7111, %v8647
        %v8680 = vadd.f32 %v7112, %v8648
        %v8681 = vpack.c.bf16 %v8650, %v8649
        %v8682 = vpack.c.bf16 %v8652, %v8651
        %v8683 = vpack.c.bf16 %v8654, %v8653
        %v8684 = vpack.c.bf16 %v8656, %v8655
        %v8685 = vpack.c.bf16 %v8658, %v8657
        %v8686 = vpack.c.bf16 %v8660, %v8659
        %v8687 = vpack.c.bf16 %v8662, %v8661
        %v8688 = vpack.c.bf16 %v8664, %v8663
        %v8689 = vpack.c.bf16 %v8666, %v8665
        %v8690 = vpack.c.bf16 %v8668, %v8667
        %v8691 = vpack.c.bf16 %v8670, %v8669
        %v8692 = vpack.c.bf16 %v8672, %v8671
        %v8693 = vpack.c.bf16 %v8674, %v8673
        %v8694 = vpack.c.bf16 %v8676, %v8675
        %v8695 = vpack.c.bf16 %v8678, %v8677
        %v8696 = vpack.c.bf16 %v8680, %v8679
        %v8697 = vld [vmem:[#allocation15] sm:$0xf]
        %v8698 = vld [vmem:[#allocation15 + $0x4] sm:$0xf]
        %v8699 = vld [vmem:[#allocation15 + $0x8] sm:$0xf]
        %v8700 = vld [vmem:[#allocation15 + $0xc] sm:$0xf]
        %v8701 = vld [vmem:[#allocation15 + $0x10] sm:$0xf]
        %v8702 = vld [vmem:[#allocation15 + $0x14] sm:$0xf]
        %v8703 = vld [vmem:[#allocation15 + $0x18] sm:$0xf]
        %v8704 = vld [vmem:[#allocation15 + $0x1c] sm:$0xf]
        %v8705 = vld [vmem:[#allocation15 + $0x20] sm:$0xf]
        %v8706 = vld [vmem:[#allocation15 + $0x24] sm:$0xf]
        %v8707 = vld [vmem:[#allocation15 + $0x28] sm:$0xf]
        %v8708 = vld [vmem:[#allocation15 + $0x2c] sm:$0xf]
        %v8709 = vld [vmem:[#allocation15 + $0x30] sm:$0xf]
        %v8710 = vld [vmem:[#allocation15 + $0x34] sm:$0xf]
        %v8711 = vld [vmem:[#allocation15 + $0x38] sm:$0xf]
        %v8712 = vld [vmem:[#allocation15 + $0x3c] sm:$0xf]
        %v8713 = vld [vmem:[%s14] sm:$0x1]
        %v8715 = vperm.slane %v8713, 0
        %v8733 = vunpack.c.l.b16 %v8697
        %v8734 = vunpack.c.l.b16 %v8698
        %v8735 = vunpack.c.l.b16 %v8699
        %v8736 = vunpack.c.l.b16 %v8700
        %v8737 = vunpack.c.l.b16 %v8701
        %v8738 = vunpack.c.l.b16 %v8702
        %v8739 = vunpack.c.l.b16 %v8703
        %v8740 = vunpack.c.l.b16 %v8704
        %v8741 = vunpack.c.l.b16 %v8705
        %v8742 = vunpack.c.l.b16 %v8706
        %v8743 = vunpack.c.l.b16 %v8707
        %v8744 = vunpack.c.l.b16 %v8708
        %v8745 = vunpack.c.l.b16 %v8709
        %v8746 = vunpack.c.l.b16 %v8710
        %v8747 = vunpack.c.l.b16 %v8711
        %v8748 = vunpack.c.l.b16 %v8712
        %v8749 = vpack.c.b16 %v8734, %v8733
        %v8750 = vpack.c.b16 %v8736, %v8735
        %v8751 = vpack.c.b16 %v8738, %v8737
        %v8752 = vpack.c.b16 %v8740, %v8739
        %v8753 = vpack.c.b16 %v8742, %v8741
        %v8754 = vpack.c.b16 %v8744, %v8743
        %v8755 = vpack.c.b16 %v8746, %v8745
        %v8756 = vpack.c.b16 %v8748, %v8747
        %8765 = vmatpush.bf16.msra.mxu0 %v8756
        %8766 = vmatpush.bf16.msra.mxu0 %v8755
        %8767 = vmatpush.bf16.msra.mxu0 %v8754
        %8768 = vmatpush.bf16.msra.mxu0 %v8753
        %8769 = vmatpush.bf16.msra.mxu0 %v8752
        %8770 = vmatpush.bf16.msra.mxu0 %v8751
        %8771 = vmatpush.bf16.msra.mxu0 %v8750
        %8772 = vmatpush.bf16.msra.mxu0 %v8749
        %8773 = vmatmul.bf16.gmra.mxu0 %v8681
        %v8774 = vpop.f32.mrf.mxu0
        %v8775 = vadd.f32 %v8715, %v8774
        %v8776 = vpop.f32.mrf.mxu0
        %v8777 = vadd.f32 %v8715, %v8776
        %8778 = vmatmul.bf16.gmra.mxu0 %v8682
        %v8779 = vpop.f32.mrf.mxu0
        %v8780 = vadd.f32 %v8715, %v8779
        %v8781 = vpop.f32.mrf.mxu0
        %v8782 = vadd.f32 %v8715, %v8781
        %8783 = vmatmul.bf16.gmra.mxu0 %v8683
        %v8784 = vpop.f32.mrf.mxu0
        %v8785 = vadd.f32 %v8715, %v8784
        %v8786 = vpop.f32.mrf.mxu0
        %v8787 = vadd.f32 %v8715, %v8786
        %8788 = vmatmul.bf16.gmra.mxu0 %v8684
        %v8789 = vpop.f32.mrf.mxu0
        %v8790 = vadd.f32 %v8715, %v8789
        %v8791 = vpop.f32.mrf.mxu0
        %v8792 = vadd.f32 %v8715, %v8791
        %8793 = vmatmul.bf16.gmra.mxu0 %v8685
        %v8794 = vpop.f32.mrf.mxu0
        %v8795 = vadd.f32 %v8715, %v8794
        %v8796 = vpop.f32.mrf.mxu0
        %v8797 = vadd.f32 %v8715, %v8796
        %8798 = vmatmul.bf16.gmra.mxu0 %v8686
        %v8799 = vpop.f32.mrf.mxu0
        %v8800 = vadd.f32 %v8715, %v8799
        %v8801 = vpop.f32.mrf.mxu0
        %v8802 = vadd.f32 %v8715, %v8801
        %8803 = vmatmul.bf16.gmra.mxu0 %v8687
        %v8804 = vpop.f32.mrf.mxu0
        %v8805 = vadd.f32 %v8715, %v8804
        %v8806 = vpop.f32.mrf.mxu0
        %v8807 = vadd.f32 %v8715, %v8806
        %8808 = vmatmul.bf16.gmra.mxu0 %v8688
        %v8809 = vpop.f32.mrf.mxu0
        %v8810 = vadd.f32 %v8715, %v8809
        %v8811 = vpop.f32.mrf.mxu0
        %v8812 = vadd.f32 %v8715, %v8811
        %8813 = vmatmul.bf16.gmra.mxu0 %v8689
        %v8814 = vpop.f32.mrf.mxu0
        %v8815 = vadd.f32 %v8715, %v8814
        %v8816 = vpop.f32.mrf.mxu0
        %v8817 = vadd.f32 %v8715, %v8816
        %8818 = vmatmul.bf16.gmra.mxu0 %v8690
        %v8819 = vpop.f32.mrf.mxu0
        %v8820 = vadd.f32 %v8715, %v8819
        %v8821 = vpop.f32.mrf.mxu0
        %v8822 = vadd.f32 %v8715, %v8821
        %8823 = vmatmul.bf16.gmra.mxu0 %v8691
        %v8824 = vpop.f32.mrf.mxu0
        %v8825 = vadd.f32 %v8715, %v8824
        %v8826 = vpop.f32.mrf.mxu0
        %v8827 = vadd.f32 %v8715, %v8826
        %8828 = vmatmul.bf16.gmra.mxu0 %v8692
        %v8829 = vpop.f32.mrf.mxu0
        %v8830 = vadd.f32 %v8715, %v8829
        %v8831 = vpop.f32.mrf.mxu0
        %v8832 = vadd.f32 %v8715, %v8831
        %8833 = vmatmul.bf16.gmra.mxu0 %v8693
        %v8834 = vpop.f32.mrf.mxu0
        %v8835 = vadd.f32 %v8715, %v8834
        %v8836 = vpop.f32.mrf.mxu0
        %v8837 = vadd.f32 %v8715, %v8836
        %8838 = vmatmul.bf16.gmra.mxu0 %v8694
        %v8839 = vpop.f32.mrf.mxu0
        %v8840 = vadd.f32 %v8715, %v8839
        %v8841 = vpop.f32.mrf.mxu0
        %v8842 = vadd.f32 %v8715, %v8841
        %8843 = vmatmul.bf16.gmra.mxu0 %v8695
        %v8844 = vpop.f32.mrf.mxu0
        %v8845 = vadd.f32 %v8715, %v8844
        %v8846 = vpop.f32.mrf.mxu0
        %v8847 = vadd.f32 %v8715, %v8846
        %8848 = vmatmul.bf16.gmra.mxu0 %v8696
        %v8849 = vpop.f32.mrf.mxu0
        %v8850 = vadd.f32 %v8715, %v8849
        %v8851 = vpop.f32.mrf.mxu0
        %v8852 = vadd.f32 %v8715, %v8851
        %8853 = vdwg.mxu0
        %v8854 = vmax.f32 %v8775, 0.0
        %v8855 = vmax.f32 %v8777, 0.0
        %v8856 = vmax.f32 %v8780, 0.0
        %v8857 = vmax.f32 %v8782, 0.0
        %v8858 = vmax.f32 %v8785, 0.0
        %v8859 = vmax.f32 %v8787, 0.0
        %v8860 = vmax.f32 %v8790, 0.0
        %v8861 = vmax.f32 %v8792, 0.0
        %v8862 = vmax.f32 %v8795, 0.0
        %v8863 = vmax.f32 %v8797, 0.0
        %v8864 = vmax.f32 %v8800, 0.0
        %v8865 = vmax.f32 %v8802, 0.0
        %v8866 = vmax.f32 %v8805, 0.0
        %v8867 = vmax.f32 %v8807, 0.0
        %v8868 = vmax.f32 %v8810, 0.0
        %v8869 = vmax.f32 %v8812, 0.0
        %v8870 = vmax.f32 %v8815, 0.0
        %v8871 = vmax.f32 %v8817, 0.0
        %v8872 = vmax.f32 %v8820, 0.0
        %v8873 = vmax.f32 %v8822, 0.0
        %v8874 = vmax.f32 %v8825, 0.0
        %v8875 = vmax.f32 %v8827, 0.0
        %v8876 = vmax.f32 %v8830, 0.0
        %v8877 = vmax.f32 %v8832, 0.0
        %v8878 = vmax.f32 %v8835, 0.0
        %v8879 = vmax.f32 %v8837, 0.0
        %v8880 = vmax.f32 %v8840, 0.0
        %v8881 = vmax.f32 %v8842, 0.0
        %v8882 = vmax.f32 %v8845, 0.0
        %v8883 = vmax.f32 %v8847, 0.0
        %v8884 = vmax.f32 %v8850, 0.0
        %v8885 = vmax.f32 %v8852, 0.0
        %v8886 = vpack.c.bf16 %v8855, %v8854
        %v8887 = vpack.c.bf16 %v8857, %v8856
        %v8888 = vpack.c.bf16 %v8859, %v8858
        %v8889 = vpack.c.bf16 %v8861, %v8860
        %v8890 = vpack.c.bf16 %v8863, %v8862
        %v8891 = vpack.c.bf16 %v8865, %v8864
        %v8892 = vpack.c.bf16 %v8867, %v8866
        %v8893 = vpack.c.bf16 %v8869, %v8868
        %v8894 = vpack.c.bf16 %v8871, %v8870
        %v8895 = vpack.c.bf16 %v8873, %v8872
        %v8896 = vpack.c.bf16 %v8875, %v8874
        %v8897 = vpack.c.bf16 %v8877, %v8876
        %v8898 = vpack.c.bf16 %v8879, %v8878
        %v8899 = vpack.c.bf16 %v8881, %v8880
        %v8900 = vpack.c.bf16 %v8883, %v8882
        %v8901 = vpack.c.bf16 %v8885, %v8884
        %v8902 = vld [vmem:[#allocation17] sm:$0xf]
        %v8903 = vld [vmem:[#allocation17 + $0x4] sm:$0xf]
        %v8904 = vld [vmem:[#allocation17 + $0x8] sm:$0xf]
        %v8905 = vld [vmem:[#allocation17 + $0xc] sm:$0xf]
        %v8906 = vld [vmem:[#allocation17 + $0x10] sm:$0xf]
        %v8907 = vld [vmem:[#allocation17 + $0x14] sm:$0xf]
        %v8908 = vld [vmem:[#allocation17 + $0x18] sm:$0xf]
        %v8909 = vld [vmem:[#allocation17 + $0x1c] sm:$0xf]
        %v8910 = vld [vmem:[#allocation17 + $0x20] sm:$0xf]
        %v8911 = vld [vmem:[#allocation17 + $0x24] sm:$0xf]
        %v8912 = vld [vmem:[#allocation17 + $0x28] sm:$0xf]
        %v8913 = vld [vmem:[#allocation17 + $0x2c] sm:$0xf]
        %v8914 = vld [vmem:[#allocation17 + $0x30] sm:$0xf]
        %v8915 = vld [vmem:[#allocation17 + $0x34] sm:$0xf]
        %v8916 = vld [vmem:[#allocation17 + $0x38] sm:$0xf]
        %v8917 = vld [vmem:[#allocation17 + $0x3c] sm:$0xf]
        %v8918 = vld [vmem:[%s16] sm:$0x1]
        %v8920 = vperm.slane %v8918, 0
        %v8938 = vunpack.c.l.b16 %v8902
        %v8939 = vunpack.c.l.b16 %v8903
        %v8940 = vunpack.c.l.b16 %v8904
        %v8941 = vunpack.c.l.b16 %v8905
        %v8942 = vunpack.c.l.b16 %v8906
        %v8943 = vunpack.c.l.b16 %v8907
        %v8944 = vunpack.c.l.b16 %v8908
        %v8945 = vunpack.c.l.b16 %v8909
        %v8946 = vunpack.c.l.b16 %v8910
        %v8947 = vunpack.c.l.b16 %v8911
        %v8948 = vunpack.c.l.b16 %v8912
        %v8949 = vunpack.c.l.b16 %v8913
        %v8950 = vunpack.c.l.b16 %v8914
        %v8951 = vunpack.c.l.b16 %v8915
        %v8952 = vunpack.c.l.b16 %v8916
        %v8953 = vunpack.c.l.b16 %v8917
        %v8954 = vpack.c.b16 %v8939, %v8938
        %v8955 = vpack.c.b16 %v8941, %v8940
        %v8956 = vpack.c.b16 %v8943, %v8942
        %v8957 = vpack.c.b16 %v8945, %v8944
        %v8958 = vpack.c.b16 %v8947, %v8946
        %v8959 = vpack.c.b16 %v8949, %v8948
        %v8960 = vpack.c.b16 %v8951, %v8950
        %v8961 = vpack.c.b16 %v8953, %v8952
        %8970 = vmatpush.bf16.msra.mxu0 %v8961
        %8971 = vmatpush.bf16.msra.mxu0 %v8960
        %8972 = vmatpush.bf16.msra.mxu0 %v8959
        %8973 = vmatpush.bf16.msra.mxu0 %v8958
        %8974 = vmatpush.bf16.msra.mxu0 %v8957
        %8975 = vmatpush.bf16.msra.mxu0 %v8956
        %8976 = vmatpush.bf16.msra.mxu0 %v8955
        %8977 = vmatpush.bf16.msra.mxu0 %v8954
        %8978 = vmatmul.bf16.gmra.mxu0 %v8886
        %v8979 = vpop.f32.mrf.mxu0
        %v8980 = vadd.f32 %v8920, %v8979
        %v8981 = vpop.f32.mrf.mxu0
        %v8982 = vadd.f32 %v8920, %v8981
        %8983 = vmatmul.bf16.gmra.mxu0 %v8887
        %v8984 = vpop.f32.mrf.mxu0
        %v8985 = vadd.f32 %v8920, %v8984
        %v8986 = vpop.f32.mrf.mxu0
        %v8987 = vadd.f32 %v8920, %v8986
        %8988 = vmatmul.bf16.gmra.mxu0 %v8888
        %v8989 = vpop.f32.mrf.mxu0
        %v8990 = vadd.f32 %v8920, %v8989
        %v8991 = vpop.f32.mrf.mxu0
        %v8992 = vadd.f32 %v8920, %v8991
        %8993 = vmatmul.bf16.gmra.mxu0 %v8889
        %v8994 = vpop.f32.mrf.mxu0
        %v8995 = vadd.f32 %v8920, %v8994
        %v8996 = vpop.f32.mrf.mxu0
        %v8997 = vadd.f32 %v8920, %v8996
        %8998 = vmatmul.bf16.gmra.mxu0 %v8890
        %v8999 = vpop.f32.mrf.mxu0
        %v9000 = vadd.f32 %v8920, %v8999
        %v9001 = vpop.f32.mrf.mxu0
        %v9002 = vadd.f32 %v8920, %v9001
        %9003 = vmatmul.bf16.gmra.mxu0 %v8891
        %v9004 = vpop.f32.mrf.mxu0
        %v9005 = vadd.f32 %v8920, %v9004
        %v9006 = vpop.f32.mrf.mxu0
        %v9007 = vadd.f32 %v8920, %v9006
        %9008 = vmatmul.bf16.gmra.mxu0 %v8892
        %v9009 = vpop.f32.mrf.mxu0
        %v9010 = vadd.f32 %v8920, %v9009
        %v9011 = vpop.f32.mrf.mxu0
        %v9012 = vadd.f32 %v8920, %v9011
        %9013 = vmatmul.bf16.gmra.mxu0 %v8893
        %v9014 = vpop.f32.mrf.mxu0
        %v9015 = vadd.f32 %v8920, %v9014
        %v9016 = vpop.f32.mrf.mxu0
        %v9017 = vadd.f32 %v8920, %v9016
        %9018 = vmatmul.bf16.gmra.mxu0 %v8894
        %v9019 = vpop.f32.mrf.mxu0
        %v9020 = vadd.f32 %v8920, %v9019
        %v9021 = vpop.f32.mrf.mxu0
        %v9022 = vadd.f32 %v8920, %v9021
        %9023 = vmatmul.bf16.gmra.mxu0 %v8895
        %v9024 = vpop.f32.mrf.mxu0
        %v9025 = vadd.f32 %v8920, %v9024
        %v9026 = vpop.f32.mrf.mxu0
        %v9027 = vadd.f32 %v8920, %v9026
        %9028 = vmatmul.bf16.gmra.mxu0 %v8896
        %v9029 = vpop.f32.mrf.mxu0
        %v9030 = vadd.f32 %v8920, %v9029
        %v9031 = vpop.f32.mrf.mxu0
        %v9032 = vadd.f32 %v8920, %v9031
        %9033 = vmatmul.bf16.gmra.mxu0 %v8897
        %v9034 = vpop.f32.mrf.mxu0
        %v9035 = vadd.f32 %v8920, %v9034
        %v9036 = vpop.f32.mrf.mxu0
        %v9037 = vadd.f32 %v8920, %v9036
        %9038 = vmatmul.bf16.gmra.mxu0 %v8898
        %v9039 = vpop.f32.mrf.mxu0
        %v9040 = vadd.f32 %v8920, %v9039
        %v9041 = vpop.f32.mrf.mxu0
        %v9042 = vadd.f32 %v8920, %v9041
        %9043 = vmatmul.bf16.gmra.mxu0 %v8899
        %v9044 = vpop.f32.mrf.mxu0
        %v9045 = vadd.f32 %v8920, %v9044
        %v9046 = vpop.f32.mrf.mxu0
        %v9047 = vadd.f32 %v8920, %v9046
        %9048 = vmatmul.bf16.gmra.mxu0 %v8900
        %v9049 = vpop.f32.mrf.mxu0
        %v9050 = vadd.f32 %v8920, %v9049
        %v9051 = vpop.f32.mrf.mxu0
        %v9052 = vadd.f32 %v8920, %v9051
        %9053 = vmatmul.bf16.gmra.mxu0 %v8901
        %v9054 = vpop.f32.mrf.mxu0
        %v9055 = vadd.f32 %v8920, %v9054
        %v9056 = vpop.f32.mrf.mxu0
        %v9057 = vadd.f32 %v8920, %v9056
        %9058 = vdwg.mxu0
        %v9059 = vunpack.c.l.bf16 %v8681
        %v9060 = vunpack.c.h.bf16 %v8681
        %v9061 = vunpack.c.l.bf16 %v8682
        %v9062 = vunpack.c.h.bf16 %v8682
        %v9063 = vunpack.c.l.bf16 %v8683
        %v9064 = vunpack.c.h.bf16 %v8683
        %v9065 = vunpack.c.l.bf16 %v8684
        %v9066 = vunpack.c.h.bf16 %v8684
        %v9067 = vunpack.c.l.bf16 %v8685
        %v9068 = vunpack.c.h.bf16 %v8685
        %v9069 = vunpack.c.l.bf16 %v8686
        %v9070 = vunpack.c.h.bf16 %v8686
        %v9071 = vunpack.c.l.bf16 %v8687
        %v9072 = vunpack.c.h.bf16 %v8687
        %v9073 = vunpack.c.l.bf16 %v8688
        %v9074 = vunpack.c.h.bf16 %v8688
        %v9075 = vunpack.c.l.bf16 %v8689
        %v9076 = vunpack.c.h.bf16 %v8689
        %v9077 = vunpack.c.l.bf16 %v8690
        %v9078 = vunpack.c.h.bf16 %v8690
        %v9079 = vunpack.c.l.bf16 %v8691
        %v9080 = vunpack.c.h.bf16 %v8691
        %v9081 = vunpack.c.l.bf16 %v8692
        %v9082 = vunpack.c.h.bf16 %v8692
        %v9083 = vunpack.c.l.bf16 %v8693
        %v9084 = vunpack.c.h.bf16 %v8693
        %v9085 = vunpack.c.l.bf16 %v8694
        %v9086 = vunpack.c.h.bf16 %v8694
        %v9087 = vunpack.c.l.bf16 %v8695
        %v9088 = vunpack.c.h.bf16 %v8695
        %v9089 = vunpack.c.l.bf16 %v8696
        %v9090 = vunpack.c.h.bf16 %v8696
        %v9091 = vadd.f32 %v9059, %v9060
        %v9092 = vadd.f32 %v9091, %v9061
        %v9093 = vadd.f32 %v9092, %v9062
        %v9094 = vadd.f32 %v9093, %v9063
        %v9095 = vadd.f32 %v9094, %v9064
        %v9096 = vadd.f32 %v9095, %v9065
        %v9097 = vadd.f32 %v9096, %v9066
        %v9098 = vadd.f32 %v9097, %v9067
        %v9099 = vadd.f32 %v9098, %v9068
        %v9100 = vadd.f32 %v9099, %v9069
        %v9101 = vadd.f32 %v9100, %v9070
        %v9102 = vadd.f32 %v9101, %v9071
        %v9103 = vadd.f32 %v9102, %v9072
        %v9104 = vadd.f32 %v9103, %v9073
        %v9105 = vadd.f32 %v9104, %v9074
        %v9106 = vadd.f32 %v9105, %v9075
        %v9107 = vadd.f32 %v9106, %v9076
        %v9108 = vadd.f32 %v9107, %v9077
        %v9109 = vadd.f32 %v9108, %v9078
        %v9110 = vadd.f32 %v9109, %v9079
        %v9111 = vadd.f32 %v9110, %v9080
        %v9112 = vadd.f32 %v9111, %v9081
        %v9113 = vadd.f32 %v9112, %v9082
        %v9114 = vadd.f32 %v9113, %v9083
        %v9115 = vadd.f32 %v9114, %v9084
        %v9116 = vadd.f32 %v9115, %v9085
        %v9117 = vadd.f32 %v9116, %v9086
        %v9118 = vadd.f32 %v9117, %v9087
        %v9119 = vadd.f32 %v9118, %v9088
        %v9120 = vadd.f32 %v9119, %v9089
        %v9121 = vadd.f32 %v9120, %v9090
        %v9122 = vrot.slane %v9121, 4
        %v9123 = vadd.f32 %v9121, %v9122
        %v9124 = vrot.slane %v9123, 2
        %v9125 = vadd.f32 %v9123, %v9124
        %v9126 = vrot.slane %v9125, 1
        %v9127 = vadd.f32 %v9125, %v9126
        %v9128 = vmul.f32 %v9127, 0.00390625
        %v9129 = vpack.c.bf16 %v9128, %v9128
        %9130 = vmatpush.bf16.msra.mxu0 %v7714
        %9131 = vmatpush.bf16.msra.mxu0 %v7713
        %9132 = vmatpush.bf16.msra.mxu0 %v7712
        %9133 = vmatpush.bf16.msra.mxu0 %v7711
        %9134 = vmatpush.bf16.msra.mxu0 %v7710
        %9135 = vmatpush.bf16.msra.mxu0 %v7709
        %9136 = vmatpush.bf16.msra.mxu0 %v7708
        %9137 = vmatpush.bf16.msra.mxu0 %v7707
        %9138 = vmatmul.bf16.gmra.mxu0 %v9129
        %v9139 = vpop.f32.mrf.mxu0
        %v9140 = vadd.f32 %v7674, %v9139
        %v9141 = vpop.f32.mrf.mxu0
        %9142 = vdwg.mxu0
        %v9143 = vmax.f32 %v9140, 0.0
        %v9144 = vpack.c.bf16 %v9143, %v9143
        %9145 = vmatpush.bf16.msra.mxu0 %v7794
        %9146 = vmatpush.bf16.msra.mxu0 %v7793
        %9147 = vmatpush.bf16.msra.mxu0 %v7792
        %9148 = vmatpush.bf16.msra.mxu0 %v7791
        %9149 = vmatpush.bf16.msra.mxu0 %v7790
        %9150 = vmatpush.bf16.msra.mxu0 %v7789
        %9151 = vmatpush.bf16.msra.mxu0 %v7788
        %9152 = vmatpush.bf16.msra.mxu0 %v7787
        %9153 = vmatmul.bf16.gmra.mxu0 %v9144
        %v9154 = vpop.f32.mrf.mxu0
        %v9155 = vadd.f32 %v7754, %v9154
        %v9156 = vpop.f32.mrf.mxu0
        %9157 = vdwg.mxu0
        %v9158 = vperm.slane %v9155, 0
        %v9159 = vadd.f32 %v8980, %v9158
        %v9160 = vadd.f32 %v8982, %v9158
        %v9161 = vadd.f32 %v8985, %v9158
        %v9162 = vadd.f32 %v8987, %v9158
        %v9163 = vadd.f32 %v8990, %v9158
        %v9164 = vadd.f32 %v8992, %v9158
        %v9165 = vadd.f32 %v8995, %v9158
        %v9166 = vadd.f32 %v8997, %v9158
        %v9167 = vadd.f32 %v9000, %v9158
        %v9168 = vadd.f32 %v9002, %v9158
        %v9169 = vadd.f32 %v9005, %v9158
        %v9170 = vadd.f32 %v9007, %v9158
        %v9171 = vadd.f32 %v9010, %v9158
        %v9172 = vadd.f32 %v9012, %v9158
        %v9173 = vadd.f32 %v9015, %v9158
        %v9174 = vadd.f32 %v9017, %v9158
        %v9175 = vadd.f32 %v9020, %v9158
        %v9176 = vadd.f32 %v9022, %v9158
        %v9177 = vadd.f32 %v9025, %v9158
        %v9178 = vadd.f32 %v9027, %v9158
        %v9179 = vadd.f32 %v9030, %v9158
        %v9180 = vadd.f32 %v9032, %v9158
        %v9181 = vadd.f32 %v9035, %v9158
        %v9182 = vadd.f32 %v9037, %v9158
        %v9183 = vadd.f32 %v9040, %v9158
        %v9184 = vadd.f32 %v9042, %v9158
        %v9185 = vadd.f32 %v9045, %v9158
        %v9186 = vadd.f32 %v9047, %v9158
        %v9187 = vadd.f32 %v9050, %v9158
        %v9188 = vadd.f32 %v9052, %v9158
        %v9189 = vadd.f32 %v9055, %v9158
        %v9190 = vadd.f32 %v9057, %v9158
        %v9191 = vand.u32 2147483647, %v9159
        %v9192 = vand.u32 2147483647, %v9160
        %v9193 = vand.u32 2147483647, %v9161
        %v9194 = vand.u32 2147483647, %v9162
        %v9195 = vand.u32 2147483647, %v9163
        %v9196 = vand.u32 2147483647, %v9164
        %v9197 = vand.u32 2147483647, %v9165
        %v9198 = vand.u32 2147483647, %v9166
        %v9199 = vand.u32 2147483647, %v9167
        %v9200 = vand.u32 2147483647, %v9168
        %v9201 = vand.u32 2147483647, %v9169
        %v9202 = vand.u32 2147483647, %v9170
        %v9203 = vand.u32 2147483647, %v9171
        %v9204 = vand.u32 2147483647, %v9172
        %v9205 = vand.u32 2147483647, %v9173
        %v9206 = vand.u32 2147483647, %v9174
        %v9207 = vand.u32 2147483647, %v9175
        %v9208 = vand.u32 2147483647, %v9176
        %v9209 = vand.u32 2147483647, %v9177
        %v9210 = vand.u32 2147483647, %v9178
        %v9211 = vand.u32 2147483647, %v9179
        %v9212 = vand.u32 2147483647, %v9180
        %v9213 = vand.u32 2147483647, %v9181
        %v9214 = vand.u32 2147483647, %v9182
        %v9215 = vand.u32 2147483647, %v9183
        %v9216 = vand.u32 2147483647, %v9184
        %v9217 = vand.u32 2147483647, %v9185
        %v9218 = vand.u32 2147483647, %v9186
        %v9219 = vand.u32 2147483647, %v9187
        %v9220 = vand.u32 2147483647, %v9188
        %v9221 = vand.u32 2147483647, %v9189
        %v9222 = vand.u32 2147483647, %v9190
        %v9223 = vsub.f32 0.0, %v9191
        %v9224 = vsub.f32 0.0, %v9192
        %v9225 = vsub.f32 0.0, %v9193
        %v9226 = vsub.f32 0.0, %v9194
        %v9227 = vsub.f32 0.0, %v9195
        %v9228 = vsub.f32 0.0, %v9196
        %v9229 = vsub.f32 0.0, %v9197
        %v9230 = vsub.f32 0.0, %v9198
        %v9231 = vsub.f32 0.0, %v9199
        %v9232 = vsub.f32 0.0, %v9200
        %v9233 = vsub.f32 0.0, %v9201
        %v9234 = vsub.f32 0.0, %v9202
        %v9235 = vsub.f32 0.0, %v9203
        %v9236 = vsub.f32 0.0, %v9204
        %v9237 = vsub.f32 0.0, %v9205
        %v9238 = vsub.f32 0.0, %v9206
        %v9239 = vsub.f32 0.0, %v9207
        %v9240 = vsub.f32 0.0, %v9208
        %v9241 = vsub.f32 0.0, %v9209
        %v9242 = vsub.f32 0.0, %v9210
        %v9243 = vsub.f32 0.0, %v9211
        %v9244 = vsub.f32 0.0, %v9212
        %v9245 = vsub.f32 0.0, %v9213
        %v9246 = vsub.f32 0.0, %v9214
        %v9247 = vsub.f32 0.0, %v9215
        %v9248 = vsub.f32 0.0, %v9216
        %v9249 = vsub.f32 0.0, %v9217
        %v9250 = vsub.f32 0.0, %v9218
        %v9251 = vsub.f32 0.0, %v9219
        %v9252 = vsub.f32 0.0, %v9220
        %v9253 = vsub.f32 0.0, %v9221
        %v9254 = vsub.f32 0.0, %v9222
        %v9255 = vmul.f32 %v9223, 1.442695
        %v9256 = vpow.pop %v9255
        %v9257 = vmul.f32 %v9224, 1.442695
        %v9258 = vpow.pop %v9257
        %v9259 = vmul.f32 %v9225, 1.442695
        %v9260 = vpow.pop %v9259
        %v9261 = vmul.f32 %v9226, 1.442695
        %v9262 = vpow.pop %v9261
        %v9263 = vmul.f32 %v9227, 1.442695
        %v9264 = vpow.pop %v9263
        %v9265 = vmul.f32 %v9228, 1.442695
        %v9266 = vpow.pop %v9265
        %v9267 = vmul.f32 %v9229, 1.442695
        %v9268 = vpow.pop %v9267
        %v9269 = vmul.f32 %v9230, 1.442695
        %v9270 = vpow.pop %v9269
        %v9271 = vmul.f32 %v9231, 1.442695
        %v9272 = vpow.pop %v9271
        %v9273 = vmul.f32 %v9232, 1.442695
        %v9274 = vpow.pop %v9273
        %v9275 = vmul.f32 %v9233, 1.442695
        %v9276 = vpow.pop %v9275
        %v9277 = vmul.f32 %v9234, 1.442695
        %v9278 = vpow.pop %v9277
        %v9279 = vmul.f32 %v9235, 1.442695
        %v9280 = vpow.pop %v9279
        %v9281 = vmul.f32 %v9236, 1.442695
        %v9282 = vpow.pop %v9281
        %v9283 = vmul.f32 %v9237, 1.442695
        %v9284 = vpow.pop %v9283
        %v9285 = vmul.f32 %v9238, 1.442695
        %v9286 = vpow.pop %v9285
        %v9287 = vmul.f32 %v9239, 1.442695
        %v9288 = vpow.pop %v9287
        %v9289 = vmul.f32 %v9240, 1.442695
        %v9290 = vpow.pop %v9289
        %v9291 = vmul.f32 %v9241, 1.442695
        %v9292 = vpow.pop %v9291
        %v9293 = vmul.f32 %v9242, 1.442695
        %v9294 = vpow.pop %v9293
        %v9295 = vmul.f32 %v9243, 1.442695
        %v9296 = vpow.pop %v9295
        %v9297 = vmul.f32 %v9244, 1.442695
        %v9298 = vpow.pop %v9297
        %v9299 = vmul.f32 %v9245, 1.442695
        %v9300 = vpow.pop %v9299
        %v9301 = vmul.f32 %v9246, 1.442695
        %v9302 = vpow.pop %v9301
        %v9303 = vmul.f32 %v9247, 1.442695
        %v9304 = vpow.pop %v9303
        %v9305 = vmul.f32 %v9248, 1.442695
        %v9306 = vpow.pop %v9305
        %v9307 = vmul.f32 %v9249, 1.442695
        %v9308 = vpow.pop %v9307
        %v9309 = vmul.f32 %v9250, 1.442695
        %v9310 = vpow.pop %v9309
        %v9311 = vmul.f32 %v9251, 1.442695
        %v9312 = vpow.pop %v9311
        %v9313 = vmul.f32 %v9252, 1.442695
        %v9314 = vpow.pop %v9313
        %v9315 = vmul.f32 %v9253, 1.442695
        %v9316 = vpow.pop %v9315
        %v9317 = vmul.f32 %v9254, 1.442695
        %v9318 = vpow.pop %v9317
        %v9319 = vadd.f32 %v9256, 1.0
        %v9320 = vadd.f32 %v9258, 1.0
        %v9321 = vadd.f32 %v9260, 1.0
        %v9322 = vadd.f32 %v9262, 1.0
        %v9323 = vadd.f32 %v9264, 1.0
        %v9324 = vadd.f32 %v9266, 1.0
        %v9325 = vadd.f32 %v9268, 1.0
        %v9326 = vadd.f32 %v9270, 1.0
        %v9327 = vadd.f32 %v9272, 1.0
        %v9328 = vadd.f32 %v9274, 1.0
        %v9329 = vadd.f32 %v9276, 1.0
        %v9330 = vadd.f32 %v9278, 1.0
        %v9331 = vadd.f32 %v9280, 1.0
        %v9332 = vadd.f32 %v9282, 1.0
        %v9333 = vadd.f32 %v9284, 1.0
        %v9334 = vadd.f32 %v9286, 1.0
        %v9335 = vadd.f32 %v9288, 1.0
        %v9336 = vadd.f32 %v9290, 1.0
        %v9337 = vadd.f32 %v9292, 1.0
        %v9338 = vadd.f32 %v9294, 1.0
        %v9339 = vadd.f32 %v9296, 1.0
        %v9340 = vadd.f32 %v9298, 1.0
        %v9341 = vadd.f32 %v9300, 1.0
        %v9342 = vadd.f32 %v9302, 1.0
        %v9343 = vadd.f32 %v9304, 1.0
        %v9344 = vadd.f32 %v9306, 1.0
        %v9345 = vadd.f32 %v9308, 1.0
        %v9346 = vadd.f32 %v9310, 1.0
        %v9347 = vadd.f32 %v9312, 1.0
        %v9348 = vadd.f32 %v9314, 1.0
        %v9349 = vadd.f32 %v9316, 1.0
        %v9350 = vadd.f32 %v9318, 1.0
        %v9351 = vrcp.pop %v9319
        %v9352 = vmul.f32 %v9319, %v9351
        %v9353 = vsub.f32 1.0, %v9352
        %v9354 = vmul.f32 %v9351, %v9353
        %v9355 = vadd.f32 %v9351, %v9354
        %vm9356 = vweird.f32 %v9319
        %vm9357 = vweird.f32 %v9351
        %vm9358 = vmor %vm9356, %vm9357
        %v9359 = vsel %vm9358, %v9351, %v9355
        %v9360 = vand.u32 2147483647, %v9319
        %vm9361 = vcmp.eq.f32.partialorder %v9360, 8.507059e+37
        %v9362 = vand.u32 %v9319, 2147483648
        %v9363 = vor.u32 1.1754944e-38, %v9362
        %v9364 = vsel %vm9361, %v9363, %v9359
        %v9365 = vmul.f32 1.0, %v9364
        %v9366 = vrcp.pop %v9320
        %v9367 = vmul.f32 %v9320, %v9366
        %v9368 = vsub.f32 1.0, %v9367
        %v9369 = vmul.f32 %v9366, %v9368
        %v9370 = vadd.f32 %v9366, %v9369
        %vm9371 = vweird.f32 %v9320
        %vm9372 = vweird.f32 %v9366
        %vm9373 = vmor %vm9371, %vm9372
        %v9374 = vsel %vm9373, %v9366, %v9370
        %v9375 = vand.u32 2147483647, %v9320
        %vm9376 = vcmp.eq.f32.partialorder %v9375, 8.507059e+37
        %v9377 = vand.u32 %v9320, 2147483648
        %v9378 = vor.u32 1.1754944e-38, %v9377
        %v9379 = vsel %vm9376, %v9378, %v9374
        %v9380 = vmul.f32 1.0, %v9379
        %v9381 = vrcp.pop %v9321
        %v9382 = vmul.f32 %v9321, %v9381
        %v9383 = vsub.f32 1.0, %v9382
        %v9384 = vmul.f32 %v9381, %v9383
        %v9385 = vadd.f32 %v9381, %v9384
        %vm9386 = vweird.f32 %v9321
        %vm9387 = vweird.f32 %v9381
        %vm9388 = vmor %vm9386, %vm9387
        %v9389 = vsel %vm9388, %v9381, %v9385
        %v9390 = vand.u32 2147483647, %v9321
        %vm9391 = vcmp.eq.f32.partialorder %v9390, 8.507059e+37
        %v9392 = vand.u32 %v9321, 2147483648
        %v9393 = vor.u32 1.1754944e-38, %v9392
        %v9394 = vsel %vm9391, %v9393, %v9389
        %v9395 = vmul.f32 1.0, %v9394
        %v9396 = vrcp.pop %v9322
        %v9397 = vmul.f32 %v9322, %v9396
        %v9398 = vsub.f32 1.0, %v9397
        %v9399 = vmul.f32 %v9396, %v9398
        %v9400 = vadd.f32 %v9396, %v9399
        %vm9401 = vweird.f32 %v9322
        %vm9402 = vweird.f32 %v9396
        %vm9403 = vmor %vm9401, %vm9402
        %v9404 = vsel %vm9403, %v9396, %v9400
        %v9405 = vand.u32 2147483647, %v9322
        %vm9406 = vcmp.eq.f32.partialorder %v9405, 8.507059e+37
        %v9407 = vand.u32 %v9322, 2147483648
        %v9408 = vor.u32 1.1754944e-38, %v9407
        %v9409 = vsel %vm9406, %v9408, %v9404
        %v9410 = vmul.f32 1.0, %v9409
        %v9411 = vrcp.pop %v9323
        %v9412 = vmul.f32 %v9323, %v9411
        %v9413 = vsub.f32 1.0, %v9412
        %v9414 = vmul.f32 %v9411, %v9413
        %v9415 = vadd.f32 %v9411, %v9414
        %vm9416 = vweird.f32 %v9323
        %vm9417 = vweird.f32 %v9411
        %vm9418 = vmor %vm9416, %vm9417
        %v9419 = vsel %vm9418, %v9411, %v9415
        %v9420 = vand.u32 2147483647, %v9323
        %vm9421 = vcmp.eq.f32.partialorder %v9420, 8.507059e+37
        %v9422 = vand.u32 %v9323, 2147483648
        %v9423 = vor.u32 1.1754944e-38, %v9422
        %v9424 = vsel %vm9421, %v9423, %v9419
        %v9425 = vmul.f32 1.0, %v9424
        %v9426 = vrcp.pop %v9324
        %v9427 = vmul.f32 %v9324, %v9426
        %v9428 = vsub.f32 1.0, %v9427
        %v9429 = vmul.f32 %v9426, %v9428
        %v9430 = vadd.f32 %v9426, %v9429
        %vm9431 = vweird.f32 %v9324
        %vm9432 = vweird.f32 %v9426
        %vm9433 = vmor %vm9431, %vm9432
        %v9434 = vsel %vm9433, %v9426, %v9430
        %v9435 = vand.u32 2147483647, %v9324
        %vm9436 = vcmp.eq.f32.partialorder %v9435, 8.507059e+37
        %v9437 = vand.u32 %v9324, 2147483648
        %v9438 = vor.u32 1.1754944e-38, %v9437
        %v9439 = vsel %vm9436, %v9438, %v9434
        %v9440 = vmul.f32 1.0, %v9439
        %v9441 = vrcp.pop %v9325
        %v9442 = vmul.f32 %v9325, %v9441
        %v9443 = vsub.f32 1.0, %v9442
        %v9444 = vmul.f32 %v9441, %v9443
        %v9445 = vadd.f32 %v9441, %v9444
        %vm9446 = vweird.f32 %v9325
        %vm9447 = vweird.f32 %v9441
        %vm9448 = vmor %vm9446, %vm9447
        %v9449 = vsel %vm9448, %v9441, %v9445
        %v9450 = vand.u32 2147483647, %v9325
        %vm9451 = vcmp.eq.f32.partialorder %v9450, 8.507059e+37
        %v9452 = vand.u32 %v9325, 2147483648
        %v9453 = vor.u32 1.1754944e-38, %v9452
        %v9454 = vsel %vm9451, %v9453, %v9449
        %v9455 = vmul.f32 1.0, %v9454
        %v9456 = vrcp.pop %v9326
        %v9457 = vmul.f32 %v9326, %v9456
        %v9458 = vsub.f32 1.0, %v9457
        %v9459 = vmul.f32 %v9456, %v9458
        %v9460 = vadd.f32 %v9456, %v9459
        %vm9461 = vweird.f32 %v9326
        %vm9462 = vweird.f32 %v9456
        %vm9463 = vmor %vm9461, %vm9462
        %v9464 = vsel %vm9463, %v9456, %v9460
        %v9465 = vand.u32 2147483647, %v9326
        %vm9466 = vcmp.eq.f32.partialorder %v9465, 8.507059e+37
        %v9467 = vand.u32 %v9326, 2147483648
        %v9468 = vor.u32 1.1754944e-38, %v9467
        %v9469 = vsel %vm9466, %v9468, %v9464
        %v9470 = vmul.f32 1.0, %v9469
        %v9471 = vrcp.pop %v9327
        %v9472 = vmul.f32 %v9327, %v9471
        %v9473 = vsub.f32 1.0, %v9472
        %v9474 = vmul.f32 %v9471, %v9473
        %v9475 = vadd.f32 %v9471, %v9474
        %vm9476 = vweird.f32 %v9327
        %vm9477 = vweird.f32 %v9471
        %vm9478 = vmor %vm9476, %vm9477
        %v9479 = vsel %vm9478, %v9471, %v9475
        %v9480 = vand.u32 2147483647, %v9327
        %vm9481 = vcmp.eq.f32.partialorder %v9480, 8.507059e+37
        %v9482 = vand.u32 %v9327, 2147483648
        %v9483 = vor.u32 1.1754944e-38, %v9482
        %v9484 = vsel %vm9481, %v9483, %v9479
        %v9485 = vmul.f32 1.0, %v9484
        %v9486 = vrcp.pop %v9328
        %v9487 = vmul.f32 %v9328, %v9486
        %v9488 = vsub.f32 1.0, %v9487
        %v9489 = vmul.f32 %v9486, %v9488
        %v9490 = vadd.f32 %v9486, %v9489
        %vm9491 = vweird.f32 %v9328
        %vm9492 = vweird.f32 %v9486
        %vm9493 = vmor %vm9491, %vm9492
        %v9494 = vsel %vm9493, %v9486, %v9490
        %v9495 = vand.u32 2147483647, %v9328
        %vm9496 = vcmp.eq.f32.partialorder %v9495, 8.507059e+37
        %v9497 = vand.u32 %v9328, 2147483648
        %v9498 = vor.u32 1.1754944e-38, %v9497
        %v9499 = vsel %vm9496, %v9498, %v9494
        %v9500 = vmul.f32 1.0, %v9499
        %v9501 = vrcp.pop %v9329
        %v9502 = vmul.f32 %v9329, %v9501
        %v9503 = vsub.f32 1.0, %v9502
        %v9504 = vmul.f32 %v9501, %v9503
        %v9505 = vadd.f32 %v9501, %v9504
        %vm9506 = vweird.f32 %v9329
        %vm9507 = vweird.f32 %v9501
        %vm9508 = vmor %vm9506, %vm9507
        %v9509 = vsel %vm9508, %v9501, %v9505
        %v9510 = vand.u32 2147483647, %v9329
        %vm9511 = vcmp.eq.f32.partialorder %v9510, 8.507059e+37
        %v9512 = vand.u32 %v9329, 2147483648
        %v9513 = vor.u32 1.1754944e-38, %v9512
        %v9514 = vsel %vm9511, %v9513, %v9509
        %v9515 = vmul.f32 1.0, %v9514
        %v9516 = vrcp.pop %v9330
        %v9517 = vmul.f32 %v9330, %v9516
        %v9518 = vsub.f32 1.0, %v9517
        %v9519 = vmul.f32 %v9516, %v9518
        %v9520 = vadd.f32 %v9516, %v9519
        %vm9521 = vweird.f32 %v9330
        %vm9522 = vweird.f32 %v9516
        %vm9523 = vmor %vm9521, %vm9522
        %v9524 = vsel %vm9523, %v9516, %v9520
        %v9525 = vand.u32 2147483647, %v9330
        %vm9526 = vcmp.eq.f32.partialorder %v9525, 8.507059e+37
        %v9527 = vand.u32 %v9330, 2147483648
        %v9528 = vor.u32 1.1754944e-38, %v9527
        %v9529 = vsel %vm9526, %v9528, %v9524
        %v9530 = vmul.f32 1.0, %v9529
        %v9531 = vrcp.pop %v9331
        %v9532 = vmul.f32 %v9331, %v9531
        %v9533 = vsub.f32 1.0, %v9532
        %v9534 = vmul.f32 %v9531, %v9533
        %v9535 = vadd.f32 %v9531, %v9534
        %vm9536 = vweird.f32 %v9331
        %vm9537 = vweird.f32 %v9531
        %vm9538 = vmor %vm9536, %vm9537
        %v9539 = vsel %vm9538, %v9531, %v9535
        %v9540 = vand.u32 2147483647, %v9331
        %vm9541 = vcmp.eq.f32.partialorder %v9540, 8.507059e+37
        %v9542 = vand.u32 %v9331, 2147483648
        %v9543 = vor.u32 1.1754944e-38, %v9542
        %v9544 = vsel %vm9541, %v9543, %v9539
        %v9545 = vmul.f32 1.0, %v9544
        %v9546 = vrcp.pop %v9332
        %v9547 = vmul.f32 %v9332, %v9546
        %v9548 = vsub.f32 1.0, %v9547
        %v9549 = vmul.f32 %v9546, %v9548
        %v9550 = vadd.f32 %v9546, %v9549
        %vm9551 = vweird.f32 %v9332
        %vm9552 = vweird.f32 %v9546
        %vm9553 = vmor %vm9551, %vm9552
        %v9554 = vsel %vm9553, %v9546, %v9550
        %v9555 = vand.u32 2147483647, %v9332
        %vm9556 = vcmp.eq.f32.partialorder %v9555, 8.507059e+37
        %v9557 = vand.u32 %v9332, 2147483648
        %v9558 = vor.u32 1.1754944e-38, %v9557
        %v9559 = vsel %vm9556, %v9558, %v9554
        %v9560 = vmul.f32 1.0, %v9559
        %v9561 = vrcp.pop %v9333
        %v9562 = vmul.f32 %v9333, %v9561
        %v9563 = vsub.f32 1.0, %v9562
        %v9564 = vmul.f32 %v9561, %v9563
        %v9565 = vadd.f32 %v9561, %v9564
        %vm9566 = vweird.f32 %v9333
        %vm9567 = vweird.f32 %v9561
        %vm9568 = vmor %vm9566, %vm9567
        %v9569 = vsel %vm9568, %v9561, %v9565
        %v9570 = vand.u32 2147483647, %v9333
        %vm9571 = vcmp.eq.f32.partialorder %v9570, 8.507059e+37
        %v9572 = vand.u32 %v9333, 2147483648
        %v9573 = vor.u32 1.1754944e-38, %v9572
        %v9574 = vsel %vm9571, %v9573, %v9569
        %v9575 = vmul.f32 1.0, %v9574
        %v9576 = vrcp.pop %v9334
        %v9577 = vmul.f32 %v9334, %v9576
        %v9578 = vsub.f32 1.0, %v9577
        %v9579 = vmul.f32 %v9576, %v9578
        %v9580 = vadd.f32 %v9576, %v9579
        %vm9581 = vweird.f32 %v9334
        %vm9582 = vweird.f32 %v9576
        %vm9583 = vmor %vm9581, %vm9582
        %v9584 = vsel %vm9583, %v9576, %v9580
        %v9585 = vand.u32 2147483647, %v9334
        %vm9586 = vcmp.eq.f32.partialorder %v9585, 8.507059e+37
        %v9587 = vand.u32 %v9334, 2147483648
        %v9588 = vor.u32 1.1754944e-38, %v9587
        %v9589 = vsel %vm9586, %v9588, %v9584
        %v9590 = vmul.f32 1.0, %v9589
        %v9591 = vrcp.pop %v9335
        %v9592 = vmul.f32 %v9335, %v9591
        %v9593 = vsub.f32 1.0, %v9592
        %v9594 = vmul.f32 %v9591, %v9593
        %v9595 = vadd.f32 %v9591, %v9594
        %vm9596 = vweird.f32 %v9335
        %vm9597 = vweird.f32 %v9591
        %vm9598 = vmor %vm9596, %vm9597
        %v9599 = vsel %vm9598, %v9591, %v9595
        %v9600 = vand.u32 2147483647, %v9335
        %vm9601 = vcmp.eq.f32.partialorder %v9600, 8.507059e+37
        %v9602 = vand.u32 %v9335, 2147483648
        %v9603 = vor.u32 1.1754944e-38, %v9602
        %v9604 = vsel %vm9601, %v9603, %v9599
        %v9605 = vmul.f32 1.0, %v9604
        %v9606 = vrcp.pop %v9336
        %v9607 = vmul.f32 %v9336, %v9606
        %v9608 = vsub.f32 1.0, %v9607
        %v9609 = vmul.f32 %v9606, %v9608
        %v9610 = vadd.f32 %v9606, %v9609
        %vm9611 = vweird.f32 %v9336
        %vm9612 = vweird.f32 %v9606
        %vm9613 = vmor %vm9611, %vm9612
        %v9614 = vsel %vm9613, %v9606, %v9610
        %v9615 = vand.u32 2147483647, %v9336
        %vm9616 = vcmp.eq.f32.partialorder %v9615, 8.507059e+37
        %v9617 = vand.u32 %v9336, 2147483648
        %v9618 = vor.u32 1.1754944e-38, %v9617
        %v9619 = vsel %vm9616, %v9618, %v9614
        %v9620 = vmul.f32 1.0, %v9619
        %v9621 = vrcp.pop %v9337
        %v9622 = vmul.f32 %v9337, %v9621
        %v9623 = vsub.f32 1.0, %v9622
        %v9624 = vmul.f32 %v9621, %v9623
        %v9625 = vadd.f32 %v9621, %v9624
        %vm9626 = vweird.f32 %v9337
        %vm9627 = vweird.f32 %v9621
        %vm9628 = vmor %vm9626, %vm9627
        %v9629 = vsel %vm9628, %v9621, %v9625
        %v9630 = vand.u32 2147483647, %v9337
        %vm9631 = vcmp.eq.f32.partialorder %v9630, 8.507059e+37
        %v9632 = vand.u32 %v9337, 2147483648
        %v9633 = vor.u32 1.1754944e-38, %v9632
        %v9634 = vsel %vm9631, %v9633, %v9629
        %v9635 = vmul.f32 1.0, %v9634
        %v9636 = vrcp.pop %v9338
        %v9637 = vmul.f32 %v9338, %v9636
        %v9638 = vsub.f32 1.0, %v9637
        %v9639 = vmul.f32 %v9636, %v9638
        %v9640 = vadd.f32 %v9636, %v9639
        %vm9641 = vweird.f32 %v9338
        %vm9642 = vweird.f32 %v9636
        %vm9643 = vmor %vm9641, %vm9642
        %v9644 = vsel %vm9643, %v9636, %v9640
        %v9645 = vand.u32 2147483647, %v9338
        %vm9646 = vcmp.eq.f32.partialorder %v9645, 8.507059e+37
        %v9647 = vand.u32 %v9338, 2147483648
        %v9648 = vor.u32 1.1754944e-38, %v9647
        %v9649 = vsel %vm9646, %v9648, %v9644
        %v9650 = vmul.f32 1.0, %v9649
        %v9651 = vrcp.pop %v9339
        %v9652 = vmul.f32 %v9339, %v9651
        %v9653 = vsub.f32 1.0, %v9652
        %v9654 = vmul.f32 %v9651, %v9653
        %v9655 = vadd.f32 %v9651, %v9654
        %vm9656 = vweird.f32 %v9339
        %vm9657 = vweird.f32 %v9651
        %vm9658 = vmor %vm9656, %vm9657
        %v9659 = vsel %vm9658, %v9651, %v9655
        %v9660 = vand.u32 2147483647, %v9339
        %vm9661 = vcmp.eq.f32.partialorder %v9660, 8.507059e+37
        %v9662 = vand.u32 %v9339, 2147483648
        %v9663 = vor.u32 1.1754944e-38, %v9662
        %v9664 = vsel %vm9661, %v9663, %v9659
        %v9665 = vmul.f32 1.0, %v9664
        %v9666 = vrcp.pop %v9340
        %v9667 = vmul.f32 %v9340, %v9666
        %v9668 = vsub.f32 1.0, %v9667
        %v9669 = vmul.f32 %v9666, %v9668
        %v9670 = vadd.f32 %v9666, %v9669
        %vm9671 = vweird.f32 %v9340
        %vm9672 = vweird.f32 %v9666
        %vm9673 = vmor %vm9671, %vm9672
        %v9674 = vsel %vm9673, %v9666, %v9670
        %v9675 = vand.u32 2147483647, %v9340
        %vm9676 = vcmp.eq.f32.partialorder %v9675, 8.507059e+37
        %v9677 = vand.u32 %v9340, 2147483648
        %v9678 = vor.u32 1.1754944e-38, %v9677
        %v9679 = vsel %vm9676, %v9678, %v9674
        %v9680 = vmul.f32 1.0, %v9679
        %v9681 = vrcp.pop %v9341
        %v9682 = vmul.f32 %v9341, %v9681
        %v9683 = vsub.f32 1.0, %v9682
        %v9684 = vmul.f32 %v9681, %v9683
        %v9685 = vadd.f32 %v9681, %v9684
        %vm9686 = vweird.f32 %v9341
        %vm9687 = vweird.f32 %v9681
        %vm9688 = vmor %vm9686, %vm9687
        %v9689 = vsel %vm9688, %v9681, %v9685
        %v9690 = vand.u32 2147483647, %v9341
        %vm9691 = vcmp.eq.f32.partialorder %v9690, 8.507059e+37
        %v9692 = vand.u32 %v9341, 2147483648
        %v9693 = vor.u32 1.1754944e-38, %v9692
        %v9694 = vsel %vm9691, %v9693, %v9689
        %v9695 = vmul.f32 1.0, %v9694
        %v9696 = vrcp.pop %v9342
        %v9697 = vmul.f32 %v9342, %v9696
        %v9698 = vsub.f32 1.0, %v9697
        %v9699 = vmul.f32 %v9696, %v9698
        %v9700 = vadd.f32 %v9696, %v9699
        %vm9701 = vweird.f32 %v9342
        %vm9702 = vweird.f32 %v9696
        %vm9703 = vmor %vm9701, %vm9702
        %v9704 = vsel %vm9703, %v9696, %v9700
        %v9705 = vand.u32 2147483647, %v9342
        %vm9706 = vcmp.eq.f32.partialorder %v9705, 8.507059e+37
        %v9707 = vand.u32 %v9342, 2147483648
        %v9708 = vor.u32 1.1754944e-38, %v9707
        %v9709 = vsel %vm9706, %v9708, %v9704
        %v9710 = vmul.f32 1.0, %v9709
        %v9711 = vrcp.pop %v9343
        %v9712 = vmul.f32 %v9343, %v9711
        %v9713 = vsub.f32 1.0, %v9712
        %v9714 = vmul.f32 %v9711, %v9713
        %v9715 = vadd.f32 %v9711, %v9714
        %vm9716 = vweird.f32 %v9343
        %vm9717 = vweird.f32 %v9711
        %vm9718 = vmor %vm9716, %vm9717
        %v9719 = vsel %vm9718, %v9711, %v9715
        %v9720 = vand.u32 2147483647, %v9343
        %vm9721 = vcmp.eq.f32.partialorder %v9720, 8.507059e+37
        %v9722 = vand.u32 %v9343, 2147483648
        %v9723 = vor.u32 1.1754944e-38, %v9722
        %v9724 = vsel %vm9721, %v9723, %v9719
        %v9725 = vmul.f32 1.0, %v9724
        %v9726 = vrcp.pop %v9344
        %v9727 = vmul.f32 %v9344, %v9726
        %v9728 = vsub.f32 1.0, %v9727
        %v9729 = vmul.f32 %v9726, %v9728
        %v9730 = vadd.f32 %v9726, %v9729
        %vm9731 = vweird.f32 %v9344
        %vm9732 = vweird.f32 %v9726
        %vm9733 = vmor %vm9731, %vm9732
        %v9734 = vsel %vm9733, %v9726, %v9730
        %v9735 = vand.u32 2147483647, %v9344
        %vm9736 = vcmp.eq.f32.partialorder %v9735, 8.507059e+37
        %v9737 = vand.u32 %v9344, 2147483648
        %v9738 = vor.u32 1.1754944e-38, %v9737
        %v9739 = vsel %vm9736, %v9738, %v9734
        %v9740 = vmul.f32 1.0, %v9739
        %v9741 = vrcp.pop %v9345
        %v9742 = vmul.f32 %v9345, %v9741
        %v9743 = vsub.f32 1.0, %v9742
        %v9744 = vmul.f32 %v9741, %v9743
        %v9745 = vadd.f32 %v9741, %v9744
        %vm9746 = vweird.f32 %v9345
        %vm9747 = vweird.f32 %v9741
        %vm9748 = vmor %vm9746, %vm9747
        %v9749 = vsel %vm9748, %v9741, %v9745
        %v9750 = vand.u32 2147483647, %v9345
        %vm9751 = vcmp.eq.f32.partialorder %v9750, 8.507059e+37
        %v9752 = vand.u32 %v9345, 2147483648
        %v9753 = vor.u32 1.1754944e-38, %v9752
        %v9754 = vsel %vm9751, %v9753, %v9749
        %v9755 = vmul.f32 1.0, %v9754
        %v9756 = vrcp.pop %v9346
        %v9757 = vmul.f32 %v9346, %v9756
        %v9758 = vsub.f32 1.0, %v9757
        %v9759 = vmul.f32 %v9756, %v9758
        %v9760 = vadd.f32 %v9756, %v9759
        %vm9761 = vweird.f32 %v9346
        %vm9762 = vweird.f32 %v9756
        %vm9763 = vmor %vm9761, %vm9762
        %v9764 = vsel %vm9763, %v9756, %v9760
        %v9765 = vand.u32 2147483647, %v9346
        %vm9766 = vcmp.eq.f32.partialorder %v9765, 8.507059e+37
        %v9767 = vand.u32 %v9346, 2147483648
        %v9768 = vor.u32 1.1754944e-38, %v9767
        %v9769 = vsel %vm9766, %v9768, %v9764
        %v9770 = vmul.f32 1.0, %v9769
        %v9771 = vrcp.pop %v9347
        %v9772 = vmul.f32 %v9347, %v9771
        %v9773 = vsub.f32 1.0, %v9772
        %v9774 = vmul.f32 %v9771, %v9773
        %v9775 = vadd.f32 %v9771, %v9774
        %vm9776 = vweird.f32 %v9347
        %vm9777 = vweird.f32 %v9771
        %vm9778 = vmor %vm9776, %vm9777
        %v9779 = vsel %vm9778, %v9771, %v9775
        %v9780 = vand.u32 2147483647, %v9347
        %vm9781 = vcmp.eq.f32.partialorder %v9780, 8.507059e+37
        %v9782 = vand.u32 %v9347, 2147483648
        %v9783 = vor.u32 1.1754944e-38, %v9782
        %v9784 = vsel %vm9781, %v9783, %v9779
        %v9785 = vmul.f32 1.0, %v9784
        %v9786 = vrcp.pop %v9348
        %v9787 = vmul.f32 %v9348, %v9786
        %v9788 = vsub.f32 1.0, %v9787
        %v9789 = vmul.f32 %v9786, %v9788
        %v9790 = vadd.f32 %v9786, %v9789
        %vm9791 = vweird.f32 %v9348
        %vm9792 = vweird.f32 %v9786
        %vm9793 = vmor %vm9791, %vm9792
        %v9794 = vsel %vm9793, %v9786, %v9790
        %v9795 = vand.u32 2147483647, %v9348
        %vm9796 = vcmp.eq.f32.partialorder %v9795, 8.507059e+37
        %v9797 = vand.u32 %v9348, 2147483648
        %v9798 = vor.u32 1.1754944e-38, %v9797
        %v9799 = vsel %vm9796, %v9798, %v9794
        %v9800 = vmul.f32 1.0, %v9799
        %v9801 = vrcp.pop %v9349
        %v9802 = vmul.f32 %v9349, %v9801
        %v9803 = vsub.f32 1.0, %v9802
        %v9804 = vmul.f32 %v9801, %v9803
        %v9805 = vadd.f32 %v9801, %v9804
        %vm9806 = vweird.f32 %v9349
        %vm9807 = vweird.f32 %v9801
        %vm9808 = vmor %vm9806, %vm9807
        %v9809 = vsel %vm9808, %v9801, %v9805
        %v9810 = vand.u32 2147483647, %v9349
        %vm9811 = vcmp.eq.f32.partialorder %v9810, 8.507059e+37
        %v9812 = vand.u32 %v9349, 2147483648
        %v9813 = vor.u32 1.1754944e-38, %v9812
        %v9814 = vsel %vm9811, %v9813, %v9809
        %v9815 = vmul.f32 1.0, %v9814
        %v9816 = vrcp.pop %v9350
        %v9817 = vmul.f32 %v9350, %v9816
        %v9818 = vsub.f32 1.0, %v9817
        %v9819 = vmul.f32 %v9816, %v9818
        %v9820 = vadd.f32 %v9816, %v9819
        %vm9821 = vweird.f32 %v9350
        %vm9822 = vweird.f32 %v9816
        %vm9823 = vmor %vm9821, %vm9822
        %v9824 = vsel %vm9823, %v9816, %v9820
        %v9825 = vand.u32 2147483647, %v9350
        %vm9826 = vcmp.eq.f32.partialorder %v9825, 8.507059e+37
        %v9827 = vand.u32 %v9350, 2147483648
        %v9828 = vor.u32 1.1754944e-38, %v9827
        %v9829 = vsel %vm9826, %v9828, %v9824
        %v9830 = vmul.f32 1.0, %v9829
        %vm9831 = vcmp.ge.f32.partialorder %v9159, 0.0
        %vm9832 = vcmp.ge.f32.partialorder %v9160, 0.0
        %vm9833 = vcmp.ge.f32.partialorder %v9161, 0.0
        %vm9834 = vcmp.ge.f32.partialorder %v9162, 0.0
        %vm9835 = vcmp.ge.f32.partialorder %v9163, 0.0
        %vm9836 = vcmp.ge.f32.partialorder %v9164, 0.0
        %vm9837 = vcmp.ge.f32.partialorder %v9165, 0.0
        %vm9838 = vcmp.ge.f32.partialorder %v9166, 0.0
        %vm9839 = vcmp.ge.f32.partialorder %v9167, 0.0
        %vm9840 = vcmp.ge.f32.partialorder %v9168, 0.0
        %vm9841 = vcmp.ge.f32.partialorder %v9169, 0.0
        %vm9842 = vcmp.ge.f32.partialorder %v9170, 0.0
        %vm9843 = vcmp.ge.f32.partialorder %v9171, 0.0
        %vm9844 = vcmp.ge.f32.partialorder %v9172, 0.0
        %vm9845 = vcmp.ge.f32.partialorder %v9173, 0.0
        %vm9846 = vcmp.ge.f32.partialorder %v9174, 0.0
        %vm9847 = vcmp.ge.f32.partialorder %v9175, 0.0
        %vm9848 = vcmp.ge.f32.partialorder %v9176, 0.0
        %vm9849 = vcmp.ge.f32.partialorder %v9177, 0.0
        %vm9850 = vcmp.ge.f32.partialorder %v9178, 0.0
        %vm9851 = vcmp.ge.f32.partialorder %v9179, 0.0
        %vm9852 = vcmp.ge.f32.partialorder %v9180, 0.0
        %vm9853 = vcmp.ge.f32.partialorder %v9181, 0.0
        %vm9854 = vcmp.ge.f32.partialorder %v9182, 0.0
        %vm9855 = vcmp.ge.f32.partialorder %v9183, 0.0
        %vm9856 = vcmp.ge.f32.partialorder %v9184, 0.0
        %vm9857 = vcmp.ge.f32.partialorder %v9185, 0.0
        %vm9858 = vcmp.ge.f32.partialorder %v9186, 0.0
        %vm9859 = vcmp.ge.f32.partialorder %v9187, 0.0
        %vm9860 = vcmp.ge.f32.partialorder %v9188, 0.0
        %vm9861 = vcmp.ge.f32.partialorder %v9189, 0.0
        %vm9862 = vcmp.ge.f32.partialorder %v9190, 0.0
        %v9863 = vmul.f32 %v9256, %v9365
        %v9864 = vmul.f32 %v9258, %v9380
        %v9865 = vmul.f32 %v9260, %v9395
        %v9866 = vmul.f32 %v9262, %v9410
        %v9867 = vmul.f32 %v9264, %v9425
        %v9868 = vmul.f32 %v9266, %v9440
        %v9869 = vmul.f32 %v9268, %v9455
        %v9870 = vmul.f32 %v9270, %v9470
        %v9871 = vmul.f32 %v9272, %v9485
        %v9872 = vmul.f32 %v9274, %v9500
        %v9873 = vmul.f32 %v9276, %v9515
        %v9874 = vmul.f32 %v9278, %v9530
        %v9875 = vmul.f32 %v9280, %v9545
        %v9876 = vmul.f32 %v9282, %v9560
        %v9877 = vmul.f32 %v9284, %v9575
        %v9878 = vmul.f32 %v9286, %v9590
        %v9879 = vmul.f32 %v9288, %v9605
        %v9880 = vmul.f32 %v9290, %v9620
        %v9881 = vmul.f32 %v9292, %v9635
        %v9882 = vmul.f32 %v9294, %v9650
        %v9883 = vmul.f32 %v9296, %v9665
        %v9884 = vmul.f32 %v9298, %v9680
        %v9885 = vmul.f32 %v9300, %v9695
        %v9886 = vmul.f32 %v9302, %v9710
        %v9887 = vmul.f32 %v9304, %v9725
        %v9888 = vmul.f32 %v9306, %v9740
        %v9889 = vmul.f32 %v9308, %v9755
        %v9890 = vmul.f32 %v9310, %v9770
        %v9891 = vmul.f32 %v9312, %v9785
        %v9892 = vmul.f32 %v9314, %v9800
        %v9893 = vmul.f32 %v9316, %v9815
        %v9894 = vmul.f32 %v9318, %v9830
        %v9895 = vsel %vm9831, %v9365, %v9863
        %v9896 = vsel %vm9832, %v9380, %v9864
        %v9897 = vsel %vm9833, %v9395, %v9865
        %v9898 = vsel %vm9834, %v9410, %v9866
        %v9899 = vsel %vm9835, %v9425, %v9867
        %v9900 = vsel %vm9836, %v9440, %v9868
        %v9901 = vsel %vm9837, %v9455, %v9869
        %v9902 = vsel %vm9838, %v9470, %v9870
        %v9903 = vsel %vm9839, %v9485, %v9871
        %v9904 = vsel %vm9840, %v9500, %v9872
        %v9905 = vsel %vm9841, %v9515, %v9873
        %v9906 = vsel %vm9842, %v9530, %v9874
        %v9907 = vsel %vm9843, %v9545, %v9875
        %v9908 = vsel %vm9844, %v9560, %v9876
        %v9909 = vsel %vm9845, %v9575, %v9877
        %v9910 = vsel %vm9846, %v9590, %v9878
        %v9911 = vsel %vm9847, %v9605, %v9879
        %v9912 = vsel %vm9848, %v9620, %v9880
        %v9913 = vsel %vm9849, %v9635, %v9881
        %v9914 = vsel %vm9850, %v9650, %v9882
        %v9915 = vsel %vm9851, %v9665, %v9883
        %v9916 = vsel %vm9852, %v9680, %v9884
        %v9917 = vsel %vm9853, %v9695, %v9885
        %v9918 = vsel %vm9854, %v9710, %v9886
        %v9919 = vsel %vm9855, %v9725, %v9887
        %v9920 = vsel %vm9856, %v9740, %v9888
        %v9921 = vsel %vm9857, %v9755, %v9889
        %v9922 = vsel %vm9858, %v9770, %v9890
        %v9923 = vsel %vm9859, %v9785, %v9891
        %v9924 = vsel %vm9860, %v9800, %v9892
        %v9925 = vsel %vm9861, %v9815, %v9893
        %v9926 = vsel %vm9862, %v9830, %v9894
        %v9927 = vmul.f32 %v8585, %v9895
        %v9928 = vmul.f32 %v8586, %v9896
        %v9929 = vmul.f32 %v8587, %v9897
        %v9930 = vmul.f32 %v8588, %v9898
        %v9931 = vmul.f32 %v8589, %v9899
        %v9932 = vmul.f32 %v8590, %v9900
        %v9933 = vmul.f32 %v8591, %v9901
        %v9934 = vmul.f32 %v8592, %v9902
        %v9935 = vmul.f32 %v8593, %v9903
        %v9936 = vmul.f32 %v8594, %v9904
        %v9937 = vmul.f32 %v8595, %v9905
        %v9938 = vmul.f32 %v8596, %v9906
        %v9939 = vmul.f32 %v8597, %v9907
        %v9940 = vmul.f32 %v8598, %v9908
        %v9941 = vmul.f32 %v8599, %v9909
        %v9942 = vmul.f32 %v8600, %v9910
        %v9943 = vmul.f32 %v8601, %v9911
        %v9944 = vmul.f32 %v8602, %v9912
        %v9945 = vmul.f32 %v8603, %v9913
        %v9946 = vmul.f32 %v8604, %v9914
        %v9947 = vmul.f32 %v8605, %v9915
        %v9948 = vmul.f32 %v8606, %v9916
        %v9949 = vmul.f32 %v8607, %v9917
        %v9950 = vmul.f32 %v8608, %v9918
        %v9951 = vmul.f32 %v8609, %v9919
        %v9952 = vmul.f32 %v8610, %v9920
        %v9953 = vmul.f32 %v8611, %v9921
        %v9954 = vmul.f32 %v8612, %v9922
        %v9955 = vmul.f32 %v8613, %v9923
        %v9956 = vmul.f32 %v8614, %v9924
        %v9957 = vmul.f32 %v8615, %v9925
        %v9958 = vmul.f32 %v8616, %v9926
        %v9959 = vadd.f32 %v7081, %v9927
        %v9960 = vadd.f32 %v7082, %v9928
        %v9961 = vadd.f32 %v7083, %v9929
        %v9962 = vadd.f32 %v7084, %v9930
        %v9963 = vadd.f32 %v7085, %v9931
        %v9964 = vadd.f32 %v7086, %v9932
        %v9965 = vadd.f32 %v7087, %v9933
        %v9966 = vadd.f32 %v7088, %v9934
        %v9967 = vadd.f32 %v7089, %v9935
        %v9968 = vadd.f32 %v7090, %v9936
        %v9969 = vadd.f32 %v7091, %v9937
        %v9970 = vadd.f32 %v7092, %v9938
        %v9971 = vadd.f32 %v7093, %v9939
        %v9972 = vadd.f32 %v7094, %v9940
        %v9973 = vadd.f32 %v7095, %v9941
        %v9974 = vadd.f32 %v7096, %v9942
        %v9975 = vadd.f32 %v7097, %v9943
        %v9976 = vadd.f32 %v7098, %v9944
        %v9977 = vadd.f32 %v7099, %v9945
        %v9978 = vadd.f32 %v7100, %v9946
        %v9979 = vadd.f32 %v7101, %v9947
        %v9980 = vadd.f32 %v7102, %v9948
        %v9981 = vadd.f32 %v7103, %v9949
        %v9982 = vadd.f32 %v7104, %v9950
        %v9983 = vadd.f32 %v7105, %v9951
        %v9984 = vadd.f32 %v7106, %v9952
        %v9985 = vadd.f32 %v7107, %v9953
        %v9986 = vadd.f32 %v7108, %v9954
        %v9987 = vadd.f32 %v7109, %v9955
        %v9988 = vadd.f32 %v7110, %v9956
        %v9989 = vadd.f32 %v7111, %v9957
        %v9990 = vadd.f32 %v7112, %v9958
        %9991 = vst [vmem:[%s700] sm:$0xff] %v9959
        %9992 = vst [vmem:[%s700 + $0x8] sm:$0xff] %v9960
        %9993 = vst [vmem:[%s700 + $0x10] sm:$0xff] %v9961
        %9994 = vst [vmem:[%s700 + $0x18] sm:$0xff] %v9962
        %9995 = vst [vmem:[%s700 + $0x20] sm:$0xff] %v9963
        %9996 = vst [vmem:[%s700 + $0x28] sm:$0xff] %v9964
        %9997 = vst [vmem:[%s700 + $0x30] sm:$0xff] %v9965
        %9998 = vst [vmem:[%s700 + $0x38] sm:$0xff] %v9966
        %9999 = vst [vmem:[%s700 + $0x40] sm:$0xff] %v9967
        %10000 = vst [vmem:[%s700 + $0x48] sm:$0xff] %v9968
        %10001 = vst [vmem:[%s700 + $0x50] sm:$0xff] %v9969
        %10002 = vst [vmem:[%s700 + $0x58] sm:$0xff] %v9970
        %10003 = vst [vmem:[%s700 + $0x60] sm:$0xff] %v9971
        %10004 = vst [vmem:[%s700 + $0x68] sm:$0xff] %v9972
        %10005 = vst [vmem:[%s700 + $0x70] sm:$0xff] %v9973
        %10006 = vst [vmem:[%s700 + $0x78] sm:$0xff] %v9974
        %10007 = vst [vmem:[%s700 + $0x80] sm:$0xff] %v9975
        %10008 = vst [vmem:[%s700 + $0x88] sm:$0xff] %v9976
        %10009 = vst [vmem:[%s700 + $0x90] sm:$0xff] %v9977
        %10010 = vst [vmem:[%s700 + $0x98] sm:$0xff] %v9978
        %10011 = vst [vmem:[%s700 + $0xa0] sm:$0xff] %v9979
        %10012 = vst [vmem:[%s700 + $0xa8] sm:$0xff] %v9980
        %10013 = vst [vmem:[%s700 + $0xb0] sm:$0xff] %v9981
        %10014 = vst [vmem:[%s700 + $0xb8] sm:$0xff] %v9982
        %10015 = vst [vmem:[%s700 + $0xc0] sm:$0xff] %v9983
        %10016 = vst [vmem:[%s700 + $0xc8] sm:$0xff] %v9984
        %10017 = vst [vmem:[%s700 + $0xd0] sm:$0xff] %v9985
        %10018 = vst [vmem:[%s700 + $0xd8] sm:$0xff] %v9986
        %10019 = vst [vmem:[%s700 + $0xe0] sm:$0xff] %v9987
        %10020 = vst [vmem:[%s700 + $0xe8] sm:$0xff] %v9988
        %10021 = vst [vmem:[%s700 + $0xf0] sm:$0xff] %v9989
        %10022 = vst [vmem:[%s700 + $0xf8] sm:$0xff] %v9990
        %s10023 = sand.u32 %s408, 1
        %s10024 = scalar_lea.sflag [#allocation5], %s10023
        %s10025 = sand.u32 %s408, 1
        %s10026 = smul.addr %s10025, 256
        %s10027 = scalar_lea.vmem [#allocation18], %s10026
        // Predicated region
        $region125: #{tpu_custom_call.1} parent=87 // pred_check
          %p10028 = pneg %p418
        $region126: #{tpu_custom_call.1} parent=87 // pred_check_branch
          %10030 = sbr.rel (%p10028) target = $region128
        $region127: #{tpu_custom_call.1} parent=87 // pred_region
          %10032 = vsyncadd %s10024, 0
          %s10033 = smul.addr %s38, 32
          %s10034 = smul.addr %s10033, 8
          %s10035 = scalar_lea.hbm %s17, %s10034
          %s10036 = sshll.u32 %s10027, 4
          %s10037 = int_to_ptr.vmem [resolvable:$true] %s10036
          %s10038 = sshll.u32 %s10035, 4
          %s10039 = int_to_ptr.hbm [resolvable:$true] %s10038
          %10044 = dma.vmem_to_hbm [thread:$0]  %s10037, 4096, %s10039, %s10024, 128, 128, 8
        $region128: #{tpu_custom_call.1} parent=87 // pred_fallthru
          _
      $region88: #{tpu_custom_call.1} parent=5 // pred_fallthru
        _
      %p10045 = scmp.le.s32.totalorder 2, %s33
      // Predicated region
      $region129: #{tpu_custom_call.1} parent=5 // pred_check
        %p10046 = pneg %p10045
      $region130: #{tpu_custom_call.1} parent=5 // pred_check_branch
        %10048 = sbr.rel (%p10046) target = $region132
      $region131: #{tpu_custom_call.1} parent=5 // pred_region
        %s10049 = ssub.s32 %s33, 2
        // Predicated region
        $region133: #{tpu_custom_call.1} parent=131 // pred_check
          %p10050 = pneg %p424
        $region134: #{tpu_custom_call.1} parent=131 // pred_check_branch
          %10052 = sbr.rel (%p10050) target = $region136
        $region135: #{tpu_custom_call.1} parent=131 // pred_region
          %s10053 = sand.u32 %s409, 1
          %s10054 = scalar_lea.sflag [#allocation5], %s10053
          %s10055 = sand.u32 %s409, 1
          %s10056 = smul.addr %s10055, 256
          %s10057 = scalar_lea.vmem [#allocation18], %s10056
          %10059 = dma.done %s10054, 4096
        $region136: #{tpu_custom_call.1} parent=131 // pred_fallthru
          _
      $region132: #{tpu_custom_call.1} parent=5 // pred_fallthru
        _
    $region6: #{tpu_custom_call.1} parent=1 // loop_footer
      %s37 = sadd.s32 1, %s33
    $region7: #{tpu_custom_call.1} parent=1 // loop_footer_branch
      %32 = sbr.rel target = $region3
    $region8: #{tpu_custom_call.1} parent=1 // loop_exit
      _
    %10060 = vsyncpa [#allocation4], 1
    %s10061 = scalar_lea.sflag [#allocation4], 1
    %10062 = vsyncpa %s10061, 1
    %10063 = vsyncpa [#allocation7], 1
    %10064 = vsyncpa [#allocation10], 1
    %10065 = vsyncpa [#allocation13], 1
    %10066 = vsyncpa [#allocation16], 1
    %10067 = vsyncpa [#allocation5], 1
    %s10068 = scalar_lea.sflag [#allocation5], 1
    %10069 = vsyncpa %s10068, 1

</llo_original>
